<compile_context>
chip_gen: v7x
topology: tpu7x:2x2x1
jax: 0.10.0
libtpu: 0.0.40
codegen_flags: <defaults>
</compile_context>

<pallas_src>
import functools

import jax
import jax.numpy as jnp
from jax.experimental import pallas as pl
from jax.experimental.pallas import tpu as pltpu


def _round_up(x, m):
    return ((x + m - 1) // m) * m


def _similarity_kernel(lvec_ref, rvec_ref, wh_w_ref, wh_b_ref, wp_w_ref, wp_b_ref,
                       out_ref, *, mem_dim):
    # Upcast the bf16 activation streams to f32 for the elementwise distance
    # features (required on v5e, free on v6e/v7x).
    lvec = lvec_ref[...].astype(jnp.float32)
    rvec = rvec_ref[...].astype(jnp.float32)

    mult_dist = lvec * rvec              # VPU
    abs_dist = jnp.abs(lvec - rvec)      # VPU

    # Hidden layer: sigmoid(vec_dist @ Wh + bh), done as two accumulating MXU
    # dots against static slices of the weight ref (no lane-axis concat).
    h = jnp.dot(mult_dist, wh_w_ref[:mem_dim, :],
                preferred_element_type=jnp.float32,
                precision=jax.lax.Precision.HIGHEST)
    h = h + jnp.dot(abs_dist, wh_w_ref[mem_dim:, :],
                    preferred_element_type=jnp.float32,
                    precision=jax.lax.Precision.HIGHEST)
    h = jax.nn.sigmoid(h + wh_b_ref[...])          # exp/recip -> EUP slot

    # Output layer: log_softmax over the lane-padded class axis.  Padded lanes
    # carry a -1e30 bias (and zero weight columns) so they contribute nothing
    # to the max or the logsumexp.
    logits = jnp.dot(h, wp_w_ref[...],
                     preferred_element_type=jnp.float32,
                     precision=jax.lax.Precision.HIGHEST)
    logits = logits + wp_b_ref[...]
    m = jnp.max(logits, axis=1, keepdims=True)
    shifted = logits - m
    lse = jnp.log(jnp.sum(jnp.exp(shifted), axis=1, keepdims=True))
    out_ref[...] = (shifted - lse).astype(out_ref.dtype)


def similarity_forward(lvec, rvec, wh_w, wh_b, wp_w, wp_b, *, tb=1024):
    """Batched Similarity head: log_softmax(Wp @ sigmoid(Wh @ [l*r ; |l-r|]))."""
    B, mem_dim = lvec.shape
    two_mem, hidden_dim = wh_w.shape
    _, num_classes = wp_w.shape
    assert two_mem == 2 * mem_dim
    assert mem_dim % 8 == 0, "mem_dim must be 8-aligned for sublane tiling"

    # Stream the big activation tensors as bf16 (f32 accumulation in-kernel).
    lvec = lvec.astype(jnp.bfloat16)
    rvec = rvec.astype(jnp.bfloat16)
    wh_w = wh_w.astype(jnp.float32)
    wh_b = wh_b.astype(jnp.float32)

    # Lane-dense output path: pad classes to a multiple of 128 lanes.
    # Padded weight columns are 0 and padded bias lanes are -1e30, so the
    # padded logits are ~-1e30 and vanish under max / logsumexp.
    C = _round_up(num_classes, 128)
    wp_w_p = jnp.pad(wp_w.astype(jnp.float32), ((0, 0), (0, C - num_classes)))
    wp_b_p = jnp.pad(wp_b.astype(jnp.float32), ((0, 0), (0, C - num_classes)),
                     constant_values=-1e30)

    # Batch tile: as large as possible (16-row aligned for bf16 sublane
    # packing), a single grid step when B fits one tile.  No jnp.pad of the
    # inputs: Pallas pads the ragged last block on read and masks on write.
    tb_eff = min(_round_up(tb, 16), _round_up(B, 16))
    n_steps = pl.cdiv(B, tb_eff)
    if n_steps > 1 and n_steps % 2 == 1:
        # v7x: keep the "parallel" grid even so both TensorCores get equal work.
        tb_eff = _round_up(pl.cdiv(B, n_steps + 1), 16)
        n_steps = pl.cdiv(B, tb_eff)
    grid = (n_steps,)

    kernel = functools.partial(_similarity_kernel, mem_dim=mem_dim)

    out = pl.pallas_call(
        kernel,
        out_shape=jax.ShapeDtypeStruct((B, C), jnp.float32),
        grid=grid,
        in_specs=[
            # activations: tiled along the batch grid axis (pipelined)
            pl.BlockSpec((tb_eff, mem_dim), lambda i: (i, 0)),          # lvec
            pl.BlockSpec((tb_eff, mem_dim), lambda i: (i, 0)),          # rvec
            # weights / biases: constant index_map -> VMEM-resident across grid
            pl.BlockSpec((2 * mem_dim, hidden_dim), lambda i: (0, 0)),  # wh_w
            pl.BlockSpec((1, hidden_dim), lambda i: (0, 0)),            # wh_b
            pl.BlockSpec((hidden_dim, C), lambda i: (0, 0)),            # wp_w (padded)
            pl.BlockSpec((1, C), lambda i: (0, 0)),                     # wp_b (padded)
        ],
        out_specs=pl.BlockSpec((tb_eff, C), lambda i: (i, 0)),
        compiler_params=pltpu.CompilerParams(
            dimension_semantics=("parallel",),   # v7x: shard batch across 2 TCs
        ),
    )(lvec, rvec, wh_w, wh_b, wp_w_p, wp_b_p)

    return out[:, :num_classes]


def init_params(key, mem_dim, hidden_dim, num_classes):
    """Deterministic init mimicking torch.nn.Linear default U(-1/sqrt(fan_in), .)."""
    k1, k2, k3, k4 = jax.random.split(key, 4)
    kh = 1.0 / jnp.sqrt(2.0 * mem_dim)
    kp = 1.0 / jnp.sqrt(float(hidden_dim))
    wh_w = jax.random.uniform(k1, (2 * mem_dim, hidden_dim), jnp.float32, -kh, kh)
    wh_b = jax.random.uniform(k2, (1, hidden_dim), jnp.float32, -kh, kh)
    wp_w = jax.random.uniform(k3, (hidden_dim, num_classes), jnp.float32, -kp, kp)
    wp_b = jax.random.uniform(k4, (1, num_classes), jnp.float32, -kp, kp)
    return wh_w, wh_b, wp_w, wp_b


def similarity_ref(lvec, rvec, wh_w, wh_b, wp_w, wp_b):
    """Pure-JAX reference (takes the same bf16-stored lvec/rvec, f32 weights)."""
    lvec = lvec.astype(jnp.float32)
    rvec = rvec.astype(jnp.float32)
    vec_dist = jnp.concatenate([lvec * rvec, jnp.abs(lvec - rvec)], axis=1)
    h = jax.nn.sigmoid(
        jnp.dot(vec_dist, wh_w, precision=jax.lax.Precision.HIGHEST) + wh_b)
    logits = jnp.dot(h, wp_w, precision=jax.lax.Precision.HIGHEST) + wp_b
    return jax.nn.log_softmax(logits, axis=1)


if __name__ == "__main__":
    # Batch not a multiple of the 16-row alignment, to exercise the ragged
    # (Pallas-masked) last block without any wrapper-side padding copy.
    B, mem_dim, hidden_dim, num_classes = 300, 32, 32, 5

    key = jax.random.PRNGKey(0)
    k_l, k_r, k_p = jax.random.split(key, 3)
    # bf16 is the "storage" dtype for the streamed activations.
    lvec = jax.random.normal(k_l, (B, mem_dim), jnp.float32).astype(jnp.bfloat16)
    rvec = jax.random.normal(k_r, (B, mem_dim), jnp.float32).astype(jnp.bfloat16)
    wh_w, wh_b, wp_w, wp_b = init_params(k_p, mem_dim, hidden_dim, num_classes)

    out = similarity_forward(lvec, rvec, wh_w, wh_b, wp_w, wp_b)
    out = jax.block_until_ready(out)

    ref = similarity_ref(lvec, rvec, wh_w, wh_b, wp_w, wp_b)
    assert out.shape == (B, num_classes)
    assert not jnp.any(jnp.isnan(out))
    assert jnp.allclose(out, ref, atol=1e-4, rtol=1e-4)

    print("KERNEL_OK")
</pallas_src>

<mosaic_0001>
module attributes {stable_mosaic.version = 11 : i64} {
  func.func @_similarity_kernel(%arg0: i32, %arg1: memref<304x32xbf16, #tpu.memory_space<vmem>>, %arg2: memref<304x32xbf16, #tpu.memory_space<vmem>>, %arg3: memref<64x32xf32, #tpu.memory_space<vmem>>, %arg4: memref<1x32xf32, #tpu.memory_space<vmem>>, %arg5: memref<32x128xf32, #tpu.memory_space<vmem>>, %arg6: memref<1x128xf32, #tpu.memory_space<vmem>>, %arg7: memref<304x128xf32, #tpu.memory_space<vmem>>) attributes {dimension_semantics = [#tpu.dimension_semantics<parallel>], iteration_bounds = array<i64: 1>, scalar_prefetch = 0 : i64, scratch_operands = 0 : i64, tpu.core_type = #tpu.core_type<tc>, window_params = [{transform_indices = @transform_0, window_bounds = array<i64: 304, 32>}, {transform_indices = @transform_1, window_bounds = array<i64: 304, 32>}, {pipeline_mode = #tpu.pipeline_mode<synchronous>, transform_indices = @transform_2, window_bounds = array<i64: 64, 32>}, {pipeline_mode = #tpu.pipeline_mode<synchronous>, transform_indices = @transform_3, window_bounds = array<i64: 1, 32>}, {pipeline_mode = #tpu.pipeline_mode<synchronous>, transform_indices = @transform_4, window_bounds = array<i64: 32, 128>}, {pipeline_mode = #tpu.pipeline_mode<synchronous>, transform_indices = @transform_5, window_bounds = array<i64: 1, 128>}, {transform_indices = @transform_6, window_bounds = array<i64: 304, 128>}]} {
    %c0 = arith.constant 0 : index
    %c0_0 = arith.constant 0 : index
    %0 = vector.load %arg1[%c0, %c0_0] : memref<304x32xbf16, #tpu.memory_space<vmem>>, vector<304x32xbf16>
    %1 = arith.extf %0 : vector<304x32xbf16> to vector<304x32xf32>
    %c0_1 = arith.constant 0 : index
    %c0_2 = arith.constant 0 : index
    %2 = vector.load %arg2[%c0_1, %c0_2] : memref<304x32xbf16, #tpu.memory_space<vmem>>, vector<304x32xbf16>
    %3 = arith.extf %2 : vector<304x32xbf16> to vector<304x32xf32>
    %4 = arith.mulf %1, %3 : vector<304x32xf32>
    %5 = arith.subf %1, %3 : vector<304x32xf32>
    %6 = math.absf %5 : vector<304x32xf32>
    %c0_3 = arith.constant 0 : index
    %c0_4 = arith.constant 0 : index
    %7 = vector.load %arg3[%c0_3, %c0_4] : memref<64x32xf32, #tpu.memory_space<vmem>>, vector<32x32xf32>
    %cst = arith.constant dense<0.000000e+00> : vector<304x32xf32>
    %8 = tpu.matmul %4, %7, %cst {dimension_numbers = #tpu.dot_dimension_numbers<[1], [0], [0], [1], [0, 0, 1, 1], [], []>, precision = #tpu.contract_precision<fp32>} : vector<304x32xf32>, vector<32x32xf32>, vector<304x32xf32> -> vector<304x32xf32>
    %c32 = arith.constant 32 : index
    %c0_5 = arith.constant 0 : index
    %9 = vector.load %arg3[%c32, %c0_5] : memref<64x32xf32, #tpu.memory_space<vmem>>, vector<32x32xf32>
    %cst_6 = arith.constant dense<0.000000e+00> : vector<304x32xf32>
    %10 = tpu.matmul %6, %9, %cst_6 {dimension_numbers = #tpu.dot_dimension_numbers<[1], [0], [0], [1], [0, 0, 1, 1], [], []>, precision = #tpu.contract_precision<fp32>} : vector<304x32xf32>, vector<32x32xf32>, vector<304x32xf32> -> vector<304x32xf32>
    %11 = arith.addf %8, %10 : vector<304x32xf32>
    %c0_7 = arith.constant 0 : index
    %c0_8 = arith.constant 0 : index
    %12 = vector.load %arg4[%c0_7, %c0_8] : memref<1x32xf32, #tpu.memory_space<vmem>>, vector<1x32xf32>
    %13 = vector.broadcast %12 : vector<1x32xf32> to vector<304x32xf32>
    %14 = arith.addf %11, %13 : vector<304x32xf32>
    %15 = arith.negf %14 : vector<304x32xf32>
    %16 = math.exp %15 : vector<304x32xf32>
    %cst_9 = arith.constant 1.000000e+00 : f32
    %17 = vector.broadcast %cst_9 : f32 to vector<304x32xf32>
    %18 = arith.addf %17, %16 : vector<304x32xf32>
    %19 = arith.divf %17, %18 : vector<304x32xf32>
    %c0_10 = arith.constant 0 : index
    %c0_11 = arith.constant 0 : index
    %20 = vector.load %arg5[%c0_10, %c0_11] : memref<32x128xf32, #tpu.memory_space<vmem>>, vector<32x128xf32>
    %cst_12 = arith.constant dense<0.000000e+00> : vector<304x128xf32>
    %21 = tpu.matmul %19, %20, %cst_12 {dimension_numbers = #tpu.dot_dimension_numbers<[1], [0], [0], [1], [0, 0, 1, 1], [], []>, precision = #tpu.contract_precision<fp32>} : vector<304x32xf32>, vector<32x128xf32>, vector<304x128xf32> -> vector<304x128xf32>
    %c0_13 = arith.constant 0 : index
    %c0_14 = arith.constant 0 : index
    %22 = vector.load %arg6[%c0_13, %c0_14] : memref<1x128xf32, #tpu.memory_space<vmem>>, vector<1x128xf32>
    %23 = vector.broadcast %22 : vector<1x128xf32> to vector<304x128xf32>
    %24 = arith.addf %21, %23 : vector<304x128xf32>
    %cst_15 = arith.constant dense<0xFF800000> : vector<304xf32>
    %25 = vector.multi_reduction <maximumf>, %24, %cst_15 [1] : vector<304x128xf32> to vector<304xf32>
    %26 = vector.shape_cast %25 : vector<304xf32> to vector<304x1xf32>
    %27 = vector.broadcast %26 : vector<304x1xf32> to vector<304x128xf32>
    %28 = arith.subf %24, %27 : vector<304x128xf32>
    %29 = math.exp %28 : vector<304x128xf32>
    %cst_16 = arith.constant dense<0.000000e+00> : vector<304xf32>
    %30 = vector.multi_reduction <add>, %29, %cst_16 [1] : vector<304x128xf32> to vector<304xf32>
    %31 = vector.shape_cast %30 : vector<304xf32> to vector<304x1xf32>
    %32 = math.log %31 : vector<304x1xf32>
    %33 = vector.broadcast %32 : vector<304x1xf32> to vector<304x128xf32>
    %34 = arith.subf %28, %33 : vector<304x128xf32>
    %c0_17 = arith.constant 0 : index
    %c0_18 = arith.constant 0 : index
    %35 = vector.load %arg7[%c0_17, %c0_18] : memref<304x128xf32, #tpu.memory_space<vmem>>, vector<304x128xf32>
    tpu.vector_store %arg7[%c0_17, %c0_18], %34 {strides = array<i32>} : memref<304x128xf32, #tpu.memory_space<vmem>>, vector<304x128xf32>,
    return
  }
  func.func @transform_0(%arg0: i32) -> (i32, i32) {
    %c0_i32 = arith.constant 0 : i32
    %c0_i32_0 = arith.constant 0 : i32
    return %arg0, %c0_i32 : i32, i32
  }
  func.func @transform_1(%arg0: i32) -> (i32, i32) {
    %c0_i32 = arith.constant 0 : i32
    %c0_i32_0 = arith.constant 0 : i32
    return %arg0, %c0_i32 : i32, i32
  }
  func.func @transform_2(%arg0: i32) -> (i32, i32) {
    %c0_i32 = arith.constant 0 : i32
    %c0_i32_0 = arith.constant 0 : i32
    %c0_i32_1 = arith.constant 0 : i32
    return %c0_i32, %c0_i32_0 : i32, i32
  }
  func.func @transform_3(%arg0: i32) -> (i32, i32) {
    %c0_i32 = arith.constant 0 : i32
    %c0_i32_0 = arith.constant 0 : i32
    %c0_i32_1 = arith.constant 0 : i32
    return %c0_i32, %c0_i32_0 : i32, i32
  }
  func.func @transform_4(%arg0: i32) -> (i32, i32) {
    %c0_i32 = arith.constant 0 : i32
    %c0_i32_0 = arith.constant 0 : i32
    %c0_i32_1 = arith.constant 0 : i32
    return %c0_i32, %c0_i32_0 : i32, i32
  }
  func.func @transform_5(%arg0: i32) -> (i32, i32) {
    %c0_i32 = arith.constant 0 : i32
    %c0_i32_0 = arith.constant 0 : i32
    %c0_i32_1 = arith.constant 0 : i32
    return %c0_i32, %c0_i32_0 : i32, i32
  }
  func.func @transform_6(%arg0: i32) -> (i32, i32) {
    %c0_i32 = arith.constant 0 : i32
    %c0_i32_0 = arith.constant 0 : i32
    return %arg0, %c0_i32 : i32, i32
  }
}

</mosaic_0001>

<llo_original>
// kernel: tpu_custom_call.1
$region0: #{tpu_custom_call.1}
  #allocation0 [shape = 'u32[]', space=smem, size = 0x4, offset = 0x4, fixed_abs, tag = 'smem constant byte address 0x4 - core index']
  #allocation1 [shape = 'u32[144,128]{1,0:T(1,128)}', space=vmem, size = 0x12000, scoped, tag = 'internal scratch']
  %s0 = inlined_call_operand.vmem [shape: bf16[300,32], index: 0, kind: input, shape index: {}]
  %s1 = inlined_call_operand.vmem [shape: bf16[300,32], index: 1, kind: input, shape index: {}]
  %s2 = inlined_call_operand.vmem [shape: f32[64,32], index: 2, kind: input, shape index: {}]
  %s3 = inlined_call_operand.vmem [shape: f32[1,32], index: 3, kind: input, shape index: {}]
  %s4 = inlined_call_operand.vmem [shape: f32[32,128], index: 4, kind: input, shape index: {}]
  %s5 = inlined_call_operand.vmem [shape: f32[1,128], index: 5, kind: input, shape index: {}]
  %s6 = inlined_call_operand.hbm [shape: f32[300,128], index: 6, kind: output, shape index: {}]
  %s7 = sld [smem:[#allocation0]]
  $region34: #{tpu_custom_call.1} parent=0
    _
  %s9 = ssub.s32 1, %s7
  %s10 = scalar_select 0, %s9, %s7
  $region1: #{tpu_custom_call.1} parent=0
    #allocation2 [shape = 'u8[155648]{0}', space=vmem, size = 0x26000, scoped, tag = 'output window, operand 0, single buffered']
    #allocation3 [shape = 's32[1]{0}', space=sflag, size = 0x4, scoped, tag = 'scoped memory for tpu_custom_call.1']
    %11 = vsyncpa [#allocation3], 0
    // Predicated region
    $region2: #{tpu_custom_call.1} parent=1 // pred_check
      _
    $region3: #{tpu_custom_call.1} parent=1 // pred_check_branch
      %13 = sbr.rel (0) target = $region5
    $region4: #{tpu_custom_call.1} parent=1 // pred_region
      _
    $region5: #{tpu_custom_call.1} parent=1 // pred_fallthru
      _
    // Predicated region
    $region6: #{tpu_custom_call.1} parent=1 // pred_check
      _
    $region7: #{tpu_custom_call.1} parent=1 // pred_check_branch
      %15 = sbr.rel (0) target = $region9
    $region8: #{tpu_custom_call.1} parent=1 // pred_region
      _
    $region9: #{tpu_custom_call.1} parent=1 // pred_fallthru
      _
    // Predicated region
    $region10: #{tpu_custom_call.1} parent=1 // pred_check
      _
    $region11: #{tpu_custom_call.1} parent=1 // pred_check_branch
      %17 = sbr.rel (0) target = $region13
    $region12: #{tpu_custom_call.1} parent=1 // pred_region
      _
    $region13: #{tpu_custom_call.1} parent=1 // pred_fallthru
      _
    // Predicated region
    $region14: #{tpu_custom_call.1} parent=1 // pred_check
      _
    $region15: #{tpu_custom_call.1} parent=1 // pred_check_branch
      %19 = sbr.rel (0) target = $region17
    $region16: #{tpu_custom_call.1} parent=1 // pred_region
      _
    $region17: #{tpu_custom_call.1} parent=1 // pred_fallthru
      _
    // Predicated region
    $region18: #{tpu_custom_call.1} parent=1 // pred_check
      _
    $region19: #{tpu_custom_call.1} parent=1 // pred_check_branch
      %21 = sbr.rel (0) target = $region21
    $region20: #{tpu_custom_call.1} parent=1 // pred_region
      _
    $region21: #{tpu_custom_call.1} parent=1 // pred_fallthru
      _
    // Predicated region
    $region22: #{tpu_custom_call.1} parent=1 // pred_check
      _
    $region23: #{tpu_custom_call.1} parent=1 // pred_check_branch
      %23 = sbr.rel (0) target = $region25
    $region24: #{tpu_custom_call.1} parent=1 // pred_region
      _
    $region25: #{tpu_custom_call.1} parent=1 // pred_fallthru
      _
    %v24 = vld [vmem:[%s0] sm:$0xf]
    %v25 = vld [vmem:[%s0 + $0x4] sm:$0xf]
    %v26 = vld [vmem:[%s0 + $0x8] sm:$0xf]
    %v27 = vld [vmem:[%s0 + $0xc] sm:$0xf]
    %v28 = vld [vmem:[%s0 + $0x10] sm:$0xf]
    %v29 = vld [vmem:[%s0 + $0x14] sm:$0xf]
    %v30 = vld [vmem:[%s0 + $0x18] sm:$0xf]
    %v31 = vld [vmem:[%s0 + $0x1c] sm:$0xf]
    %v32 = vld [vmem:[%s0 + $0x20] sm:$0xf]
    %v33 = vld [vmem:[%s0 + $0x24] sm:$0xf]
    %v34 = vld [vmem:[%s0 + $0x28] sm:$0xf]
    %v35 = vld [vmem:[%s0 + $0x2c] sm:$0xf]
    %v36 = vld [vmem:[%s0 + $0x30] sm:$0xf]
    %v37 = vld [vmem:[%s0 + $0x34] sm:$0xf]
    %v38 = vld [vmem:[%s0 + $0x38] sm:$0xf]
    %v39 = vld [vmem:[%s0 + $0x3c] sm:$0xf]
    %v40 = vld [vmem:[%s0 + $0x40] sm:$0xf]
    %v41 = vld [vmem:[%s0 + $0x44] sm:$0xf]
    %v42 = vld [vmem:[%s0 + $0x48] sm:$0xf]
    %v43 = vld [vmem:[%s0 + $0x4c] sm:$0xf]
    %v44 = vld [vmem:[%s0 + $0x50] sm:$0xf]
    %v45 = vld [vmem:[%s0 + $0x54] sm:$0xf]
    %v46 = vld [vmem:[%s0 + $0x58] sm:$0xf]
    %v47 = vld [vmem:[%s0 + $0x5c] sm:$0xf]
    %v48 = vld [vmem:[%s0 + $0x60] sm:$0xf]
    %v49 = vld [vmem:[%s0 + $0x64] sm:$0xf]
    %v50 = vld [vmem:[%s0 + $0x68] sm:$0xf]
    %v51 = vld [vmem:[%s0 + $0x6c] sm:$0xf]
    %v52 = vld [vmem:[%s0 + $0x70] sm:$0xf]
    %v53 = vld [vmem:[%s0 + $0x74] sm:$0xf]
    %v54 = vld [vmem:[%s0 + $0x78] sm:$0xf]
    %v55 = vld [vmem:[%s0 + $0x7c] sm:$0xf]
    %v56 = vld [vmem:[%s0 + $0x80] sm:$0xf]
    %v57 = vld [vmem:[%s0 + $0x84] sm:$0xf]
    %v58 = vld [vmem:[%s0 + $0x88] sm:$0xf]
    %v59 = vld [vmem:[%s0 + $0x8c] sm:$0xf]
    %v60 = vld [vmem:[%s0 + $0x90] sm:$0xf]
    %v61 = vld [vmem:[%s0 + $0x94] sm:$0xf]
    %v62 = vunpack.c.l.bf16 %v24
    %v63 = vunpack.c.l.bf16 %v25
    %v64 = vunpack.c.l.bf16 %v26
    %v65 = vunpack.c.l.bf16 %v27
    %v66 = vunpack.c.l.bf16 %v28
    %v67 = vunpack.c.l.bf16 %v29
    %v68 = vunpack.c.l.bf16 %v30
    %v69 = vunpack.c.l.bf16 %v31
    %v70 = vunpack.c.l.bf16 %v32
    %v71 = vunpack.c.l.bf16 %v33
    %v72 = vunpack.c.l.bf16 %v34
    %v73 = vunpack.c.l.bf16 %v35
    %v74 = vunpack.c.l.bf16 %v36
    %v75 = vunpack.c.l.bf16 %v37
    %v76 = vunpack.c.l.bf16 %v38
    %v77 = vunpack.c.l.bf16 %v39
    %v78 = vunpack.c.l.bf16 %v40
    %v79 = vunpack.c.l.bf16 %v41
    %v80 = vunpack.c.l.bf16 %v42
    %v81 = vunpack.c.l.bf16 %v43
    %v82 = vunpack.c.l.bf16 %v44
    %v83 = vunpack.c.l.bf16 %v45
    %v84 = vunpack.c.l.bf16 %v46
    %v85 = vunpack.c.l.bf16 %v47
    %v86 = vunpack.c.l.bf16 %v48
    %v87 = vunpack.c.l.bf16 %v49
    %v88 = vunpack.c.l.bf16 %v50
    %v89 = vunpack.c.l.bf16 %v51
    %v90 = vunpack.c.l.bf16 %v52
    %v91 = vunpack.c.l.bf16 %v53
    %v92 = vunpack.c.l.bf16 %v54
    %v93 = vunpack.c.l.bf16 %v55
    %v94 = vunpack.c.l.bf16 %v56
    %v95 = vunpack.c.l.bf16 %v57
    %v96 = vunpack.c.l.bf16 %v58
    %v97 = vunpack.c.l.bf16 %v59
    %v98 = vunpack.c.l.bf16 %v60
    %v99 = vunpack.c.l.bf16 %v61
    %v100 = vld [vmem:[%s1] sm:$0xf]
    %v101 = vld [vmem:[%s1 + $0x4] sm:$0xf]
    %v102 = vld [vmem:[%s1 + $0x8] sm:$0xf]
    %v103 = vld [vmem:[%s1 + $0xc] sm:$0xf]
    %v104 = vld [vmem:[%s1 + $0x10] sm:$0xf]
    %v105 = vld [vmem:[%s1 + $0x14] sm:$0xf]
    %v106 = vld [vmem:[%s1 + $0x18] sm:$0xf]
    %v107 = vld [vmem:[%s1 + $0x1c] sm:$0xf]
    %v108 = vld [vmem:[%s1 + $0x20] sm:$0xf]
    %v109 = vld [vmem:[%s1 + $0x24] sm:$0xf]
    %v110 = vld [vmem:[%s1 + $0x28] sm:$0xf]
    %v111 = vld [vmem:[%s1 + $0x2c] sm:$0xf]
    %v112 = vld [vmem:[%s1 + $0x30] sm:$0xf]
    %v113 = vld [vmem:[%s1 + $0x34] sm:$0xf]
    %v114 = vld [vmem:[%s1 + $0x38] sm:$0xf]
    %v115 = vld [vmem:[%s1 + $0x3c] sm:$0xf]
    %v116 = vld [vmem:[%s1 + $0x40] sm:$0xf]
    %v117 = vld [vmem:[%s1 + $0x44] sm:$0xf]
    %v118 = vld [vmem:[%s1 + $0x48] sm:$0xf]
    %v119 = vld [vmem:[%s1 + $0x4c] sm:$0xf]
    %v120 = vld [vmem:[%s1 + $0x50] sm:$0xf]
    %v121 = vld [vmem:[%s1 + $0x54] sm:$0xf]
    %v122 = vld [vmem:[%s1 + $0x58] sm:$0xf]
    %v123 = vld [vmem:[%s1 + $0x5c] sm:$0xf]
    %v124 = vld [vmem:[%s1 + $0x60] sm:$0xf]
    %v125 = vld [vmem:[%s1 + $0x64] sm:$0xf]
    %v126 = vld [vmem:[%s1 + $0x68] sm:$0xf]
    %v127 = vld [vmem:[%s1 + $0x6c] sm:$0xf]
    %v128 = vld [vmem:[%s1 + $0x70] sm:$0xf]
    %v129 = vld [vmem:[%s1 + $0x74] sm:$0xf]
    %v130 = vld [vmem:[%s1 + $0x78] sm:$0xf]
    %v131 = vld [vmem:[%s1 + $0x7c] sm:$0xf]
    %v132 = vld [vmem:[%s1 + $0x80] sm:$0xf]
    %v133 = vld [vmem:[%s1 + $0x84] sm:$0xf]
    %v134 = vld [vmem:[%s1 + $0x88] sm:$0xf]
    %v135 = vld [vmem:[%s1 + $0x8c] sm:$0xf]
    %v136 = vld [vmem:[%s1 + $0x90] sm:$0xf]
    %v137 = vld [vmem:[%s1 + $0x94] sm:$0xf]
    %v138 = vunpack.c.l.bf16 %v100
    %v139 = vunpack.c.l.bf16 %v101
    %v140 = vunpack.c.l.bf16 %v102
    %v141 = vunpack.c.l.bf16 %v103
    %v142 = vunpack.c.l.bf16 %v104
    %v143 = vunpack.c.l.bf16 %v105
    %v144 = vunpack.c.l.bf16 %v106
    %v145 = vunpack.c.l.bf16 %v107
    %v146 = vunpack.c.l.bf16 %v108
    %v147 = vunpack.c.l.bf16 %v109
    %v148 = vunpack.c.l.bf16 %v110
    %v149 = vunpack.c.l.bf16 %v111
    %v150 = vunpack.c.l.bf16 %v112
    %v151 = vunpack.c.l.bf16 %v113
    %v152 = vunpack.c.l.bf16 %v114
    %v153 = vunpack.c.l.bf16 %v115
    %v154 = vunpack.c.l.bf16 %v116
    %v155 = vunpack.c.l.bf16 %v117
    %v156 = vunpack.c.l.bf16 %v118
    %v157 = vunpack.c.l.bf16 %v119
    %v158 = vunpack.c.l.bf16 %v120
    %v159 = vunpack.c.l.bf16 %v121
    %v160 = vunpack.c.l.bf16 %v122
    %v161 = vunpack.c.l.bf16 %v123
    %v162 = vunpack.c.l.bf16 %v124
    %v163 = vunpack.c.l.bf16 %v125
    %v164 = vunpack.c.l.bf16 %v126
    %v165 = vunpack.c.l.bf16 %v127
    %v166 = vunpack.c.l.bf16 %v128
    %v167 = vunpack.c.l.bf16 %v129
    %v168 = vunpack.c.l.bf16 %v130
    %v169 = vunpack.c.l.bf16 %v131
    %v170 = vunpack.c.l.bf16 %v132
    %v171 = vunpack.c.l.bf16 %v133
    %v172 = vunpack.c.l.bf16 %v134
    %v173 = vunpack.c.l.bf16 %v135
    %v174 = vunpack.c.l.bf16 %v136
    %v175 = vunpack.c.l.bf16 %v137
    %v176 = vmul.f32 %v62, %v138
    %v177 = vmul.f32 %v63, %v139
    %v178 = vmul.f32 %v64, %v140
    %v179 = vmul.f32 %v65, %v141
    %v180 = vmul.f32 %v66, %v142
    %v181 = vmul.f32 %v67, %v143
    %v182 = vmul.f32 %v68, %v144
    %v183 = vmul.f32 %v69, %v145
    %v184 = vmul.f32 %v70, %v146
    %v185 = vmul.f32 %v71, %v147
    %v186 = vmul.f32 %v72, %v148
    %v187 = vmul.f32 %v73, %v149
    %v188 = vmul.f32 %v74, %v150
    %v189 = vmul.f32 %v75, %v151
    %v190 = vmul.f32 %v76, %v152
    %v191 = vmul.f32 %v77, %v153
    %v192 = vmul.f32 %v78, %v154
    %v193 = vmul.f32 %v79, %v155
    %v194 = vmul.f32 %v80, %v156
    %v195 = vmul.f32 %v81, %v157
    %v196 = vmul.f32 %v82, %v158
    %v197 = vmul.f32 %v83, %v159
    %v198 = vmul.f32 %v84, %v160
    %v199 = vmul.f32 %v85, %v161
    %v200 = vmul.f32 %v86, %v162
    %v201 = vmul.f32 %v87, %v163
    %v202 = vmul.f32 %v88, %v164
    %v203 = vmul.f32 %v89, %v165
    %v204 = vmul.f32 %v90, %v166
    %v205 = vmul.f32 %v91, %v167
    %v206 = vmul.f32 %v92, %v168
    %v207 = vmul.f32 %v93, %v169
    %v208 = vmul.f32 %v94, %v170
    %v209 = vmul.f32 %v95, %v171
    %v210 = vmul.f32 %v96, %v172
    %v211 = vmul.f32 %v97, %v173
    %v212 = vmul.f32 %v98, %v174
    %v213 = vmul.f32 %v99, %v175
    %v214 = vsub.f32 %v62, %v138
    %v215 = vsub.f32 %v63, %v139
    %v216 = vsub.f32 %v64, %v140
    %v217 = vsub.f32 %v65, %v141
    %v218 = vsub.f32 %v66, %v142
    %v219 = vsub.f32 %v67, %v143
    %v220 = vsub.f32 %v68, %v144
    %v221 = vsub.f32 %v69, %v145
    %v222 = vsub.f32 %v70, %v146
    %v223 = vsub.f32 %v71, %v147
    %v224 = vsub.f32 %v72, %v148
    %v225 = vsub.f32 %v73, %v149
    %v226 = vsub.f32 %v74, %v150
    %v227 = vsub.f32 %v75, %v151
    %v228 = vsub.f32 %v76, %v152
    %v229 = vsub.f32 %v77, %v153
    %v230 = vsub.f32 %v78, %v154
    %v231 = vsub.f32 %v79, %v155
    %v232 = vsub.f32 %v80, %v156
    %v233 = vsub.f32 %v81, %v157
    %v234 = vsub.f32 %v82, %v158
    %v235 = vsub.f32 %v83, %v159
    %v236 = vsub.f32 %v84, %v160
    %v237 = vsub.f32 %v85, %v161
    %v238 = vsub.f32 %v86, %v162
    %v239 = vsub.f32 %v87, %v163
    %v240 = vsub.f32 %v88, %v164
    %v241 = vsub.f32 %v89, %v165
    %v242 = vsub.f32 %v90, %v166
    %v243 = vsub.f32 %v91, %v167
    %v244 = vsub.f32 %v92, %v168
    %v245 = vsub.f32 %v93, %v169
    %v246 = vsub.f32 %v94, %v170
    %v247 = vsub.f32 %v95, %v171
    %v248 = vsub.f32 %v96, %v172
    %v249 = vsub.f32 %v97, %v173
    %v250 = vsub.f32 %v98, %v174
    %v251 = vsub.f32 %v99, %v175
    %v252 = vand.u32 2147483647, %v214
    %v253 = vand.u32 2147483647, %v215
    %v254 = vand.u32 2147483647, %v216
    %v255 = vand.u32 2147483647, %v217
    %v256 = vand.u32 2147483647, %v218
    %v257 = vand.u32 2147483647, %v219
    %v258 = vand.u32 2147483647, %v220
    %v259 = vand.u32 2147483647, %v221
    %v260 = vand.u32 2147483647, %v222
    %v261 = vand.u32 2147483647, %v223
    %v262 = vand.u32 2147483647, %v224
    %v263 = vand.u32 2147483647, %v225
    %v264 = vand.u32 2147483647, %v226
    %v265 = vand.u32 2147483647, %v227
    %v266 = vand.u32 2147483647, %v228
    %v267 = vand.u32 2147483647, %v229
    %v268 = vand.u32 2147483647, %v230
    %v269 = vand.u32 2147483647, %v231
    %v270 = vand.u32 2147483647, %v232
    %v271 = vand.u32 2147483647, %v233
    %v272 = vand.u32 2147483647, %v234
    %v273 = vand.u32 2147483647, %v235
    %v274 = vand.u32 2147483647, %v236
    %v275 = vand.u32 2147483647, %v237
    %v276 = vand.u32 2147483647, %v238
    %v277 = vand.u32 2147483647, %v239
    %v278 = vand.u32 2147483647, %v240
    %v279 = vand.u32 2147483647, %v241
    %v280 = vand.u32 2147483647, %v242
    %v281 = vand.u32 2147483647, %v243
    %v282 = vand.u32 2147483647, %v244
    %v283 = vand.u32 2147483647, %v245
    %v284 = vand.u32 2147483647, %v246
    %v285 = vand.u32 2147483647, %v247
    %v286 = vand.u32 2147483647, %v248
    %v287 = vand.u32 2147483647, %v249
    %v288 = vand.u32 2147483647, %v250
    %v289 = vand.u32 2147483647, %v251
    %v290 = vld [vmem:[%s2] sm:$0xff]
    %v291 = vld [vmem:[%s2 + $0x8] sm:$0xff]
    %v292 = vld [vmem:[%s2 + $0x10] sm:$0xff]
    %v293 = vld [vmem:[%s2 + $0x18] sm:$0xff]
    %v294 = vld [vmem:[%s2 + $0x20] sm:$0xff]
    %v295 = vld [vmem:[%s2 + $0x28] sm:$0xff]
    %v296 = vld [vmem:[%s2 + $0x30] sm:$0xff]
    %v297 = vld [vmem:[%s2 + $0x38] sm:$0xff]
    %vm298 = vcmask 261120
    %v300 = vsel %vm298, %v252, 0
    %v303 = vsel %vm298, %v253, 0
    %v306 = vsel %vm298, %v254, 0
    %v309 = vsel %vm298, %v255, 0
    %v312 = vsel %vm298, %v256, 0
    %v315 = vsel %vm298, %v257, 0
    %v318 = vsel %vm298, %v258, 0
    %v321 = vsel %vm298, %v259, 0
    %v324 = vsel %vm298, %v260, 0
    %v327 = vsel %vm298, %v261, 0
    %v330 = vsel %vm298, %v262, 0
    %v333 = vsel %vm298, %v263, 0
    %v336 = vsel %vm298, %v264, 0
    %v339 = vsel %vm298, %v265, 0
    %v342 = vsel %vm298, %v266, 0
    %v345 = vsel %vm298, %v267, 0
    %v348 = vsel %vm298, %v268, 0
    %v351 = vsel %vm298, %v269, 0
    %v354 = vsel %vm298, %v270, 0
    %v357 = vsel %vm298, %v271, 0
    %v360 = vsel %vm298, %v272, 0
    %v363 = vsel %vm298, %v273, 0
    %v366 = vsel %vm298, %v274, 0
    %v369 = vsel %vm298, %v275, 0
    %v372 = vsel %vm298, %v276, 0
    %v375 = vsel %vm298, %v277, 0
    %v378 = vsel %vm298, %v278, 0
    %v381 = vsel %vm298, %v279, 0
    %v384 = vsel %vm298, %v280, 0
    %v387 = vsel %vm298, %v281, 0
    %v390 = vsel %vm298, %v282, 0
    %v393 = vsel %vm298, %v283, 0
    %v396 = vsel %vm298, %v284, 0
    %v399 = vsel %vm298, %v285, 0
    %v402 = vsel %vm298, %v286, 0
    %v405 = vsel %vm298, %v287, 0
    %v408 = vsel %vm298, %v288, 0
    %v411 = vsel %vm298, %v289, 0
    %413 = vmatprep.subr.mxu0 0.0
    %v414 = vand.u32 %v294, 4294901760
    %415 = vmatpush1.msra.mxu0 %v414
    %416 = vmatprep.subr.mxu0 0.0
    %v417 = vand.u32 %v295, 4294901760
    %418 = vmatpush1.msra.mxu0 %v417
    %419 = vmatprep.subr.mxu0 0.0
    %v420 = vand.u32 %v296, 4294901760
    %421 = vmatpush1.msra.mxu0 %v420
    %422 = vmatprep.subr.mxu0 0.0
    %v423 = vand.u32 %v297, 4294901760
    %424 = vmatpush1.msra.mxu0 %v423
    %425 = vmatprep.subr.mxu0 0.0
    %426 = vmatpush1.msra.mxu0 0.0
    %427 = vmatprep.subr.mxu0 0.0
    %428 = vmatpush1.msra.mxu0 0.0
    %429 = vmatprep.subr.mxu0 0.0
    %430 = vmatpush1.msra.mxu0 0.0
    %431 = vmatprep.subr.mxu0 0.0
    %432 = vmatpush1.msra.mxu0 0.0
    %433 = vmatprep.subr.mxu0 0.0
    %434 = vmatpush1.msra.mxu0 0.0
    %435 = vmatprep.subr.mxu0 0.0
    %436 = vmatpush1.msra.mxu0 0.0
    %437 = vmatprep.subr.mxu0 0.0
    %438 = vmatpush1.msra.mxu0 0.0
    %439 = vmatprep.subr.mxu0 0.0
    %440 = vmatpush1.msra.mxu0 0.0
    %441 = vmatprep.subr.mxu0 0.0
    %442 = vmatpush1.msra.mxu0 0.0
    %443 = vmatprep.subr.mxu0 0.0
    %444 = vmatpush1.msra.mxu0 0.0
    %445 = vmatprep.subr.mxu0 0.0
    %446 = vmatpush1.msra.mxu0 0.0
    %447 = vmatprep.subr.mxu0 0.0
    %448 = vmatpush1.msra.mxu0 0.0
    %449 = vmatprep.subr.mxu0 0.0
    %450 = vmatpush1.msra.mxu0 0.0
    %451 = vmatprep.subr.mxu0 0.0
    %452 = vmatpush1.msra.mxu0 0.0
    %453 = vmatprep.subr.mxu0 0.0
    %454 = vmatpush1.msra.mxu0 0.0
    %455 = vmatprep.subr.mxu0 0.0
    %456 = vmatpush1.msra.mxu0 0.0
    %457 = vmatprep.subr.mxu0 0.0
    %458 = vmatpush1.msra.mxu0 0.0
    %459 = vmatprep.subr.mxu0 0.0
    %460 = vmatpush1.msra.mxu0 0.0
    %461 = vmatprep.subr.mxu0 0.0
    %462 = vmatpush1.msra.mxu0 0.0
    %463 = vmatprep.subr.mxu0 0.0
    %464 = vmatpush1.msra.mxu0 0.0
    %465 = vmatprep.subr.mxu0 0.0
    %466 = vmatpush1.msra.mxu0 0.0
    %467 = vmatprep.subr.mxu0 0.0
    %468 = vmatpush1.msra.mxu0 0.0
    %469 = vmatprep.subr.mxu0 0.0
    %470 = vmatpush1.msra.mxu0 0.0
    %471 = vmatprep.subr.mxu0 0.0
    %472 = vmatpush1.msra.mxu0 0.0
    %473 = vmatprep.subr.mxu0 0.0
    %474 = vmatpush1.msra.mxu0 0.0
    %475 = vmatprep.subr.mxu0 0.0
    %476 = vmatpush1.msra.mxu0 0.0
    %477 = vmatprep.subr.mxu0 0.0
    %478 = vmatpush1.msra.mxu0 0.0
    %479 = vmatprep.subr.mxu0 0.0
    %480 = vmatpush1.msra.mxu0 0.0
    %481 = vmatprep.mubr.f32.mxu0 0.0
    %v482 = vand.u32 %v300, 4294901760
    %v483 = vsub.f32 %v300, %v482
    %v484 = vand.u32 %v483, 4294901760
    %v485 = vsub.f32 %v483, %v484
    %v486 = vand.u32 %v485, 4294901760
    %487 = vmatmul.mubr.f32.gmra.mrb[0].mxu0 %v486
    %v488 = vpop.f32.mrb[0].mxu0
    %v489 = vadd.f32 0.0, %v488
    %v490 = vpop.f32.mrb[0].mxu0
    %491 = vmatprep.mubr.f32.mxu0 0.0
    %v492 = vand.u32 %v303, 4294901760
    %v493 = vsub.f32 %v303, %v492
    %v494 = vand.u32 %v493, 4294901760
    %v495 = vsub.f32 %v493, %v494
    %v496 = vand.u32 %v495, 4294901760
    %497 = vmatmul.mubr.f32.gmra.mrb[0].mxu0 %v496
    %v498 = vpop.f32.mrb[0].mxu0
    %v499 = vadd.f32 0.0, %v498
    %v500 = vpop.f32.mrb[0].mxu0
    %501 = vmatprep.mubr.f32.mxu0 0.0
    %v502 = vand.u32 %v306, 4294901760
    %v503 = vsub.f32 %v306, %v502
    %v504 = vand.u32 %v503, 4294901760
    %v505 = vsub.f32 %v503, %v504
    %v506 = vand.u32 %v505, 4294901760
    %507 = vmatmul.mubr.f32.gmra.mrb[0].mxu0 %v506
    %v508 = vpop.f32.mrb[0].mxu0
    %v509 = vadd.f32 0.0, %v508
    %v510 = vpop.f32.mrb[0].mxu0
    %511 = vmatprep.mubr.f32.mxu0 0.0
    %v512 = vand.u32 %v309, 4294901760
    %v513 = vsub.f32 %v309, %v512
    %v514 = vand.u32 %v513, 4294901760
    %v515 = vsub.f32 %v513, %v514
    %v516 = vand.u32 %v515, 4294901760
    %517 = vmatmul.mubr.f32.gmra.mrb[0].mxu0 %v516
    %v518 = vpop.f32.mrb[0].mxu0
    %v519 = vadd.f32 0.0, %v518
    %v520 = vpop.f32.mrb[0].mxu0
    %521 = vmatprep.mubr.f32.mxu0 0.0
    %v522 = vand.u32 %v312, 4294901760
    %v523 = vsub.f32 %v312, %v522
    %v524 = vand.u32 %v523, 4294901760
    %v525 = vsub.f32 %v523, %v524
    %v526 = vand.u32 %v525, 4294901760
    %527 = vmatmul.mubr.f32.gmra.mrb[0].mxu0 %v526
    %v528 = vpop.f32.mrb[0].mxu0
    %v529 = vadd.f32 0.0, %v528
    %v530 = vpop.f32.mrb[0].mxu0
    %531 = vmatprep.mubr.f32.mxu0 0.0
    %v532 = vand.u32 %v315, 4294901760
    %v533 = vsub.f32 %v315, %v532
    %v534 = vand.u32 %v533, 4294901760
    %v535 = vsub.f32 %v533, %v534
    %v536 = vand.u32 %v535, 4294901760
    %537 = vmatmul.mubr.f32.gmra.mrb[0].mxu0 %v536
    %v538 = vpop.f32.mrb[0].mxu0
    %v539 = vadd.f32 0.0, %v538
    %v540 = vpop.f32.mrb[0].mxu0
    %541 = vmatprep.mubr.f32.mxu0 0.0
    %v542 = vand.u32 %v318, 4294901760
    %v543 = vsub.f32 %v318, %v542
    %v544 = vand.u32 %v543, 4294901760
    %v545 = vsub.f32 %v543, %v544
    %v546 = vand.u32 %v545, 4294901760
    %547 = vmatmul.mubr.f32.gmra.mrb[0].mxu0 %v546
    %v548 = vpop.f32.mrb[0].mxu0
    %v549 = vadd.f32 0.0, %v548
    %v550 = vpop.f32.mrb[0].mxu0
    %551 = vmatprep.mubr.f32.mxu0 0.0
    %v552 = vand.u32 %v321, 4294901760
    %v553 = vsub.f32 %v321, %v552
    %v554 = vand.u32 %v553, 4294901760
    %v555 = vsub.f32 %v553, %v554
    %v556 = vand.u32 %v555, 4294901760
    %557 = vmatmul.mubr.f32.gmra.mrb[0].mxu0 %v556
    %v558 = vpop.f32.mrb[0].mxu0
    %v559 = vadd.f32 0.0, %v558
    %v560 = vpop.f32.mrb[0].mxu0
    %561 = vmatprep.mubr.f32.mxu0 0.0
    %v562 = vand.u32 %v324, 4294901760
    %v563 = vsub.f32 %v324, %v562
    %v564 = vand.u32 %v563, 4294901760
    %v565 = vsub.f32 %v563, %v564
    %v566 = vand.u32 %v565, 4294901760
    %567 = vmatmul.mubr.f32.gmra.mrb[0].mxu0 %v566
    %v568 = vpop.f32.mrb[0].mxu0
    %v569 = vadd.f32 0.0, %v568
    %v570 = vpop.f32.mrb[0].mxu0
    %571 = vmatprep.mubr.f32.mxu0 0.0
    %v572 = vand.u32 %v327, 4294901760
    %v573 = vsub.f32 %v327, %v572
    %v574 = vand.u32 %v573, 4294901760
    %v575 = vsub.f32 %v573, %v574
    %v576 = vand.u32 %v575, 4294901760
    %577 = vmatmul.mubr.f32.gmra.mrb[0].mxu0 %v576
    %v578 = vpop.f32.mrb[0].mxu0
    %v579 = vadd.f32 0.0, %v578
    %v580 = vpop.f32.mrb[0].mxu0
    %581 = vmatprep.mubr.f32.mxu0 0.0
    %v582 = vand.u32 %v330, 4294901760
    %v583 = vsub.f32 %v330, %v582
    %v584 = vand.u32 %v583, 4294901760
    %v585 = vsub.f32 %v583, %v584
    %v586 = vand.u32 %v585, 4294901760
    %587 = vmatmul.mubr.f32.gmra.mrb[0].mxu0 %v586
    %v588 = vpop.f32.mrb[0].mxu0
    %v589 = vadd.f32 0.0, %v588
    %v590 = vpop.f32.mrb[0].mxu0
    %591 = vmatprep.mubr.f32.mxu0 0.0
    %v592 = vand.u32 %v333, 4294901760
    %v593 = vsub.f32 %v333, %v592
    %v594 = vand.u32 %v593, 4294901760
    %v595 = vsub.f32 %v593, %v594
    %v596 = vand.u32 %v595, 4294901760
    %597 = vmatmul.mubr.f32.gmra.mrb[0].mxu0 %v596
    %v598 = vpop.f32.mrb[0].mxu0
    %v599 = vadd.f32 0.0, %v598
    %v600 = vpop.f32.mrb[0].mxu0
    %601 = vmatprep.mubr.f32.mxu0 0.0
    %v602 = vand.u32 %v336, 4294901760
    %v603 = vsub.f32 %v336, %v602
    %v604 = vand.u32 %v603, 4294901760
    %v605 = vsub.f32 %v603, %v604
    %v606 = vand.u32 %v605, 4294901760
    %607 = vmatmul.mubr.f32.gmra.mrb[0].mxu0 %v606
    %v608 = vpop.f32.mrb[0].mxu0
    %v609 = vadd.f32 0.0, %v608
    %v610 = vpop.f32.mrb[0].mxu0
    %611 = vmatprep.mubr.f32.mxu0 0.0
    %v612 = vand.u32 %v339, 4294901760
    %v613 = vsub.f32 %v339, %v612
    %v614 = vand.u32 %v613, 4294901760
    %v615 = vsub.f32 %v613, %v614
    %v616 = vand.u32 %v615, 4294901760
    %617 = vmatmul.mubr.f32.gmra.mrb[0].mxu0 %v616
    %v618 = vpop.f32.mrb[0].mxu0
    %v619 = vadd.f32 0.0, %v618
    %v620 = vpop.f32.mrb[0].mxu0
    %621 = vmatprep.mubr.f32.mxu0 0.0
    %v622 = vand.u32 %v342, 4294901760
    %v623 = vsub.f32 %v342, %v622
    %v624 = vand.u32 %v623, 4294901760
    %v625 = vsub.f32 %v623, %v624
    %v626 = vand.u32 %v625, 4294901760
    %627 = vmatmul.mubr.f32.gmra.mrb[0].mxu0 %v626
    %v628 = vpop.f32.mrb[0].mxu0
    %v629 = vadd.f32 0.0, %v628
    %v630 = vpop.f32.mrb[0].mxu0
    %631 = vmatprep.mubr.f32.mxu0 0.0
    %v632 = vand.u32 %v345, 4294901760
    %v633 = vsub.f32 %v345, %v632
    %v634 = vand.u32 %v633, 4294901760
    %v635 = vsub.f32 %v633, %v634
    %v636 = vand.u32 %v635, 4294901760
    %637 = vmatmul.mubr.f32.gmra.mrb[0].mxu0 %v636
    %v638 = vpop.f32.mrb[0].mxu0
    %v639 = vadd.f32 0.0, %v638
    %v640 = vpop.f32.mrb[0].mxu0
    %641 = vmatprep.mubr.f32.mxu0 0.0
    %v642 = vand.u32 %v348, 4294901760
    %v643 = vsub.f32 %v348, %v642
    %v644 = vand.u32 %v643, 4294901760
    %v645 = vsub.f32 %v643, %v644
    %v646 = vand.u32 %v645, 4294901760
    %647 = vmatmul.mubr.f32.gmra.mrb[0].mxu0 %v646
    %v648 = vpop.f32.mrb[0].mxu0
    %v649 = vadd.f32 0.0, %v648
    %v650 = vpop.f32.mrb[0].mxu0
    %651 = vmatprep.mubr.f32.mxu0 0.0
    %v652 = vand.u32 %v351, 4294901760
    %v653 = vsub.f32 %v351, %v652
    %v654 = vand.u32 %v653, 4294901760
    %v655 = vsub.f32 %v653, %v654
    %v656 = vand.u32 %v655, 4294901760
    %657 = vmatmul.mubr.f32.gmra.mrb[0].mxu0 %v656
    %v658 = vpop.f32.mrb[0].mxu0
    %v659 = vadd.f32 0.0, %v658
    %v660 = vpop.f32.mrb[0].mxu0
    %661 = vmatprep.mubr.f32.mxu0 0.0
    %v662 = vand.u32 %v354, 4294901760
    %v663 = vsub.f32 %v354, %v662
    %v664 = vand.u32 %v663, 4294901760
    %v665 = vsub.f32 %v663, %v664
    %v666 = vand.u32 %v665, 4294901760
    %667 = vmatmul.mubr.f32.gmra.mrb[0].mxu0 %v666
    %v668 = vpop.f32.mrb[0].mxu0
    %v669 = vadd.f32 0.0, %v668
    %v670 = vpop.f32.mrb[0].mxu0
    %671 = vmatprep.mubr.f32.mxu0 0.0
    %v672 = vand.u32 %v357, 4294901760
    %v673 = vsub.f32 %v357, %v672
    %v674 = vand.u32 %v673, 4294901760
    %v675 = vsub.f32 %v673, %v674
    %v676 = vand.u32 %v675, 4294901760
    %677 = vmatmul.mubr.f32.gmra.mrb[0].mxu0 %v676
    %v678 = vpop.f32.mrb[0].mxu0
    %v679 = vadd.f32 0.0, %v678
    %v680 = vpop.f32.mrb[0].mxu0
    %681 = vmatprep.mubr.f32.mxu0 0.0
    %v682 = vand.u32 %v360, 4294901760
    %v683 = vsub.f32 %v360, %v682
    %v684 = vand.u32 %v683, 4294901760
    %v685 = vsub.f32 %v683, %v684
    %v686 = vand.u32 %v685, 4294901760
    %687 = vmatmul.mubr.f32.gmra.mrb[0].mxu0 %v686
    %v688 = vpop.f32.mrb[0].mxu0
    %v689 = vadd.f32 0.0, %v688
    %v690 = vpop.f32.mrb[0].mxu0
    %691 = vmatprep.mubr.f32.mxu0 0.0
    %v692 = vand.u32 %v363, 4294901760
    %v693 = vsub.f32 %v363, %v692
    %v694 = vand.u32 %v693, 4294901760
    %v695 = vsub.f32 %v693, %v694
    %v696 = vand.u32 %v695, 4294901760
    %697 = vmatmul.mubr.f32.gmra.mrb[0].mxu0 %v696
    %v698 = vpop.f32.mrb[0].mxu0
    %v699 = vadd.f32 0.0, %v698
    %v700 = vpop.f32.mrb[0].mxu0
    %701 = vmatprep.mubr.f32.mxu0 0.0
    %v702 = vand.u32 %v366, 4294901760
    %v703 = vsub.f32 %v366, %v702
    %v704 = vand.u32 %v703, 4294901760
    %v705 = vsub.f32 %v703, %v704
    %v706 = vand.u32 %v705, 4294901760
    %707 = vmatmul.mubr.f32.gmra.mrb[0].mxu0 %v706
    %v708 = vpop.f32.mrb[0].mxu0
    %v709 = vadd.f32 0.0, %v708
    %v710 = vpop.f32.mrb[0].mxu0
    %711 = vmatprep.mubr.f32.mxu0 0.0
    %v712 = vand.u32 %v369, 4294901760
    %v713 = vsub.f32 %v369, %v712
    %v714 = vand.u32 %v713, 4294901760
    %v715 = vsub.f32 %v713, %v714
    %v716 = vand.u32 %v715, 4294901760
    %717 = vmatmul.mubr.f32.gmra.mrb[0].mxu0 %v716
    %v718 = vpop.f32.mrb[0].mxu0
    %v719 = vadd.f32 0.0, %v718
    %v720 = vpop.f32.mrb[0].mxu0
    %721 = vmatprep.mubr.f32.mxu0 0.0
    %v722 = vand.u32 %v372, 4294901760
    %v723 = vsub.f32 %v372, %v722
    %v724 = vand.u32 %v723, 4294901760
    %v725 = vsub.f32 %v723, %v724
    %v726 = vand.u32 %v725, 4294901760
    %727 = vmatmul.mubr.f32.gmra.mrb[0].mxu0 %v726
    %v728 = vpop.f32.mrb[0].mxu0
    %v729 = vadd.f32 0.0, %v728
    %v730 = vpop.f32.mrb[0].mxu0
    %731 = vmatprep.mubr.f32.mxu0 0.0
    %v732 = vand.u32 %v375, 4294901760
    %v733 = vsub.f32 %v375, %v732
    %v734 = vand.u32 %v733, 4294901760
    %v735 = vsub.f32 %v733, %v734
    %v736 = vand.u32 %v735, 4294901760
    %737 = vmatmul.mubr.f32.gmra.mrb[0].mxu0 %v736
    %v738 = vpop.f32.mrb[0].mxu0
    %v739 = vadd.f32 0.0, %v738
    %v740 = vpop.f32.mrb[0].mxu0
    %741 = vmatprep.mubr.f32.mxu0 0.0
    %v742 = vand.u32 %v378, 4294901760
    %v743 = vsub.f32 %v378, %v742
    %v744 = vand.u32 %v743, 4294901760
    %v745 = vsub.f32 %v743, %v744
    %v746 = vand.u32 %v745, 4294901760
    %747 = vmatmul.mubr.f32.gmra.mrb[0].mxu0 %v746
    %v748 = vpop.f32.mrb[0].mxu0
    %v749 = vadd.f32 0.0, %v748
    %v750 = vpop.f32.mrb[0].mxu0
    %751 = vmatprep.mubr.f32.mxu0 0.0
    %v752 = vand.u32 %v381, 4294901760
    %v753 = vsub.f32 %v381, %v752
    %v754 = vand.u32 %v753, 4294901760
    %v755 = vsub.f32 %v753, %v754
    %v756 = vand.u32 %v755, 4294901760
    %757 = vmatmul.mubr.f32.gmra.mrb[0].mxu0 %v756
    %v758 = vpop.f32.mrb[0].mxu0
    %v759 = vadd.f32 0.0, %v758
    %v760 = vpop.f32.mrb[0].mxu0
    %761 = vmatprep.mubr.f32.mxu0 0.0
    %v762 = vand.u32 %v384, 4294901760
    %v763 = vsub.f32 %v384, %v762
    %v764 = vand.u32 %v763, 4294901760
    %v765 = vsub.f32 %v763, %v764
    %v766 = vand.u32 %v765, 4294901760
    %767 = vmatmul.mubr.f32.gmra.mrb[0].mxu0 %v766
    %v768 = vpop.f32.mrb[0].mxu0
    %v769 = vadd.f32 0.0, %v768
    %v770 = vpop.f32.mrb[0].mxu0
    %771 = vmatprep.mubr.f32.mxu0 0.0
    %v772 = vand.u32 %v387, 4294901760
    %v773 = vsub.f32 %v387, %v772
    %v774 = vand.u32 %v773, 4294901760
    %v775 = vsub.f32 %v773, %v774
    %v776 = vand.u32 %v775, 4294901760
    %777 = vmatmul.mubr.f32.gmra.mrb[0].mxu0 %v776
    %v778 = vpop.f32.mrb[0].mxu0
    %v779 = vadd.f32 0.0, %v778
    %v780 = vpop.f32.mrb[0].mxu0
    %781 = vmatprep.mubr.f32.mxu0 0.0
    %v782 = vand.u32 %v390, 4294901760
    %v783 = vsub.f32 %v390, %v782
    %v784 = vand.u32 %v783, 4294901760
    %v785 = vsub.f32 %v783, %v784
    %v786 = vand.u32 %v785, 4294901760
    %787 = vmatmul.mubr.f32.gmra.mrb[0].mxu0 %v786
    %v788 = vpop.f32.mrb[0].mxu0
    %v789 = vadd.f32 0.0, %v788
    %v790 = vpop.f32.mrb[0].mxu0
    %791 = vmatprep.mubr.f32.mxu0 0.0
    %v792 = vand.u32 %v393, 4294901760
    %v793 = vsub.f32 %v393, %v792
    %v794 = vand.u32 %v793, 4294901760
    %v795 = vsub.f32 %v793, %v794
    %v796 = vand.u32 %v795, 4294901760
    %797 = vmatmul.mubr.f32.gmra.mrb[0].mxu0 %v796
    %v798 = vpop.f32.mrb[0].mxu0
    %v799 = vadd.f32 0.0, %v798
    %v800 = vpop.f32.mrb[0].mxu0
    %801 = vmatprep.mubr.f32.mxu0 0.0
    %v802 = vand.u32 %v396, 4294901760
    %v803 = vsub.f32 %v396, %v802
    %v804 = vand.u32 %v803, 4294901760
    %v805 = vsub.f32 %v803, %v804
    %v806 = vand.u32 %v805, 4294901760
    %807 = vmatmul.mubr.f32.gmra.mrb[0].mxu0 %v806
    %v808 = vpop.f32.mrb[0].mxu0
    %v809 = vadd.f32 0.0, %v808
    %v810 = vpop.f32.mrb[0].mxu0
    %811 = vmatprep.mubr.f32.mxu0 0.0
    %v812 = vand.u32 %v399, 4294901760
    %v813 = vsub.f32 %v399, %v812
    %v814 = vand.u32 %v813, 4294901760
    %v815 = vsub.f32 %v813, %v814
    %v816 = vand.u32 %v815, 4294901760
    %817 = vmatmul.mubr.f32.gmra.mrb[0].mxu0 %v816
    %v818 = vpop.f32.mrb[0].mxu0
    %v819 = vadd.f32 0.0, %v818
    %v820 = vpop.f32.mrb[0].mxu0
    %821 = vmatprep.mubr.f32.mxu0 0.0
    %v822 = vand.u32 %v402, 4294901760
    %v823 = vsub.f32 %v402, %v822
    %v824 = vand.u32 %v823, 4294901760
    %v825 = vsub.f32 %v823, %v824
    %v826 = vand.u32 %v825, 4294901760
    %827 = vmatmul.mubr.f32.gmra.mrb[0].mxu0 %v826
    %v828 = vpop.f32.mrb[0].mxu0
    %v829 = vadd.f32 0.0, %v828
    %v830 = vpop.f32.mrb[0].mxu0
    %831 = vmatprep.mubr.f32.mxu0 0.0
    %v832 = vand.u32 %v405, 4294901760
    %v833 = vsub.f32 %v405, %v832
    %v834 = vand.u32 %v833, 4294901760
    %v835 = vsub.f32 %v833, %v834
    %v836 = vand.u32 %v835, 4294901760
    %837 = vmatmul.mubr.f32.gmra.mrb[0].mxu0 %v836
    %v838 = vpop.f32.mrb[0].mxu0
    %v839 = vadd.f32 0.0, %v838
    %v840 = vpop.f32.mrb[0].mxu0
    %841 = vmatprep.mubr.f32.mxu0 0.0
    %v842 = vand.u32 %v408, 4294901760
    %v843 = vsub.f32 %v408, %v842
    %v844 = vand.u32 %v843, 4294901760
    %v845 = vsub.f32 %v843, %v844
    %v846 = vand.u32 %v845, 4294901760
    %847 = vmatmul.mubr.f32.gmra.mrb[0].mxu0 %v846
    %v848 = vpop.f32.mrb[0].mxu0
    %v849 = vadd.f32 0.0, %v848
    %v850 = vpop.f32.mrb[0].mxu0
    %851 = vmatprep.mubr.f32.mxu0 0.0
    %v852 = vand.u32 %v411, 4294901760
    %v853 = vsub.f32 %v411, %v852
    %v854 = vand.u32 %v853, 4294901760
    %v855 = vsub.f32 %v853, %v854
    %v856 = vand.u32 %v855, 4294901760
    %857 = vmatmul.mubr.f32.gmra.mrb[0].mxu0 %v856
    %v858 = vpop.f32.mrb[0].mxu0
    %v859 = vadd.f32 0.0, %v858
    %v860 = vpop.f32.mrb[0].mxu0
    %861 = vdwg.mxu0
    %862 = vmatprep.subr.mxu0 0.0
    %v863 = vand.u32 %v294, 4294901760
    %v864 = vsub.f32 %v294, %v863
    %v865 = vand.u32 %v864, 4294901760
    %v866 = vsub.f32 %v864, %v865
    %v867 = vand.u32 %v866, 4294901760
    %868 = vmatpush1.msra.mxu0 %v867
    %869 = vmatprep.subr.mxu0 0.0
    %v870 = vand.u32 %v295, 4294901760
    %v871 = vsub.f32 %v295, %v870
    %v872 = vand.u32 %v871, 4294901760
    %v873 = vsub.f32 %v871, %v872
    %v874 = vand.u32 %v873, 4294901760
    %875 = vmatpush1.msra.mxu0 %v874
    %876 = vmatprep.subr.mxu0 0.0
    %v877 = vand.u32 %v296, 4294901760
    %v878 = vsub.f32 %v296, %v877
    %v879 = vand.u32 %v878, 4294901760
    %v880 = vsub.f32 %v878, %v879
    %v881 = vand.u32 %v880, 4294901760
    %882 = vmatpush1.msra.mxu0 %v881
    %883 = vmatprep.subr.mxu0 0.0
    %v884 = vand.u32 %v297, 4294901760
    %v885 = vsub.f32 %v297, %v884
    %v886 = vand.u32 %v885, 4294901760
    %v887 = vsub.f32 %v885, %v886
    %v888 = vand.u32 %v887, 4294901760
    %889 = vmatpush1.msra.mxu0 %v888
    %890 = vmatprep.subr.mxu0 0.0
    %891 = vmatpush1.msra.mxu0 0.0
    %892 = vmatprep.subr.mxu0 0.0
    %893 = vmatpush1.msra.mxu0 0.0
    %894 = vmatprep.subr.mxu0 0.0
    %895 = vmatpush1.msra.mxu0 0.0
    %896 = vmatprep.subr.mxu0 0.0
    %897 = vmatpush1.msra.mxu0 0.0
    %898 = vmatprep.subr.mxu0 0.0
    %899 = vmatpush1.msra.mxu0 0.0
    %900 = vmatprep.subr.mxu0 0.0
    %901 = vmatpush1.msra.mxu0 0.0
    %902 = vmatprep.subr.mxu0 0.0
    %903 = vmatpush1.msra.mxu0 0.0
    %904 = vmatprep.subr.mxu0 0.0
    %905 = vmatpush1.msra.mxu0 0.0
    %906 = vmatprep.subr.mxu0 0.0
    %907 = vmatpush1.msra.mxu0 0.0
    %908 = vmatprep.subr.mxu0 0.0
    %909 = vmatpush1.msra.mxu0 0.0
    %910 = vmatprep.subr.mxu0 0.0
    %911 = vmatpush1.msra.mxu0 0.0
    %912 = vmatprep.subr.mxu0 0.0
    %913 = vmatpush1.msra.mxu0 0.0
    %914 = vmatprep.subr.mxu0 0.0
    %915 = vmatpush1.msra.mxu0 0.0
    %916 = vmatprep.subr.mxu0 0.0
    %917 = vmatpush1.msra.mxu0 0.0
    %918 = vmatprep.subr.mxu0 0.0
    %919 = vmatpush1.msra.mxu0 0.0
    %920 = vmatprep.subr.mxu0 0.0
    %921 = vmatpush1.msra.mxu0 0.0
    %922 = vmatprep.subr.mxu0 0.0
    %923 = vmatpush1.msra.mxu0 0.0
    %924 = vmatprep.subr.mxu0 0.0
    %925 = vmatpush1.msra.mxu0 0.0
    %926 = vmatprep.subr.mxu0 0.0
    %927 = vmatpush1.msra.mxu0 0.0
    %928 = vmatprep.subr.mxu0 0.0
    %929 = vmatpush1.msra.mxu0 0.0
    %930 = vmatprep.subr.mxu0 0.0
    %931 = vmatpush1.msra.mxu0 0.0
    %932 = vmatprep.subr.mxu0 0.0
    %933 = vmatpush1.msra.mxu0 0.0
    %934 = vmatprep.subr.mxu0 0.0
    %935 = vmatpush1.msra.mxu0 0.0
    %936 = vmatprep.subr.mxu0 0.0
    %937 = vmatpush1.msra.mxu0 0.0
    %938 = vmatprep.subr.mxu0 0.0
    %939 = vmatpush1.msra.mxu0 0.0
    %940 = vmatprep.subr.mxu0 0.0
    %941 = vmatpush1.msra.mxu0 0.0
    %942 = vmatprep.subr.mxu0 0.0
    %943 = vmatpush1.msra.mxu0 0.0
    %944 = vmatprep.subr.mxu0 0.0
    %945 = vmatpush1.msra.mxu0 0.0
    %946 = vmatprep.mubr.f32.mxu0 0.0
    %v947 = vand.u32 %v300, 4294901760
    %948 = vmatmul.mubr.f32.gmra.mrb[0].mxu0 %v947
    %v949 = vpop.f32.mrb[0].mxu0
    %v950 = vadd.f32 %v489, %v949
    %v951 = vpop.f32.mrb[0].mxu0
    %952 = vmatprep.mubr.f32.mxu0 0.0
    %v953 = vand.u32 %v303, 4294901760
    %954 = vmatmul.mubr.f32.gmra.mrb[0].mxu0 %v953
    %v955 = vpop.f32.mrb[0].mxu0
    %v956 = vadd.f32 %v499, %v955
    %v957 = vpop.f32.mrb[0].mxu0
    %958 = vmatprep.mubr.f32.mxu0 0.0
    %v959 = vand.u32 %v306, 4294901760
    %960 = vmatmul.mubr.f32.gmra.mrb[0].mxu0 %v959
    %v961 = vpop.f32.mrb[0].mxu0
    %v962 = vadd.f32 %v509, %v961
    %v963 = vpop.f32.mrb[0].mxu0
    %964 = vmatprep.mubr.f32.mxu0 0.0
    %v965 = vand.u32 %v309, 4294901760
    %966 = vmatmul.mubr.f32.gmra.mrb[0].mxu0 %v965
    %v967 = vpop.f32.mrb[0].mxu0
    %v968 = vadd.f32 %v519, %v967
    %v969 = vpop.f32.mrb[0].mxu0
    %970 = vmatprep.mubr.f32.mxu0 0.0
    %v971 = vand.u32 %v312, 4294901760
    %972 = vmatmul.mubr.f32.gmra.mrb[0].mxu0 %v971
    %v973 = vpop.f32.mrb[0].mxu0
    %v974 = vadd.f32 %v529, %v973
    %v975 = vpop.f32.mrb[0].mxu0
    %976 = vmatprep.mubr.f32.mxu0 0.0
    %v977 = vand.u32 %v315, 4294901760
    %978 = vmatmul.mubr.f32.gmra.mrb[0].mxu0 %v977
    %v979 = vpop.f32.mrb[0].mxu0
    %v980 = vadd.f32 %v539, %v979
    %v981 = vpop.f32.mrb[0].mxu0
    %982 = vmatprep.mubr.f32.mxu0 0.0
    %v983 = vand.u32 %v318, 4294901760
    %984 = vmatmul.mubr.f32.gmra.mrb[0].mxu0 %v983
    %v985 = vpop.f32.mrb[0].mxu0
    %v986 = vadd.f32 %v549, %v985
    %v987 = vpop.f32.mrb[0].mxu0
    %988 = vmatprep.mubr.f32.mxu0 0.0
    %v989 = vand.u32 %v321, 4294901760
    %990 = vmatmul.mubr.f32.gmra.mrb[0].mxu0 %v989
    %v991 = vpop.f32.mrb[0].mxu0
    %v992 = vadd.f32 %v559, %v991
    %v993 = vpop.f32.mrb[0].mxu0
    %994 = vmatprep.mubr.f32.mxu0 0.0
    %v995 = vand.u32 %v324, 4294901760
    %996 = vmatmul.mubr.f32.gmra.mrb[0].mxu0 %v995
    %v997 = vpop.f32.mrb[0].mxu0
    %v998 = vadd.f32 %v569, %v997
    %v999 = vpop.f32.mrb[0].mxu0
    %1000 = vmatprep.mubr.f32.mxu0 0.0
    %v1001 = vand.u32 %v327, 4294901760
    %1002 = vmatmul.mubr.f32.gmra.mrb[0].mxu0 %v1001
    %v1003 = vpop.f32.mrb[0].mxu0
    %v1004 = vadd.f32 %v579, %v1003
    %v1005 = vpop.f32.mrb[0].mxu0
    %1006 = vmatprep.mubr.f32.mxu0 0.0
    %v1007 = vand.u32 %v330, 4294901760
    %1008 = vmatmul.mubr.f32.gmra.mrb[0].mxu0 %v1007
    %v1009 = vpop.f32.mrb[0].mxu0
    %v1010 = vadd.f32 %v589, %v1009
    %v1011 = vpop.f32.mrb[0].mxu0
    %1012 = vmatprep.mubr.f32.mxu0 0.0
    %v1013 = vand.u32 %v333, 4294901760
    %1014 = vmatmul.mubr.f32.gmra.mrb[0].mxu0 %v1013
    %v1015 = vpop.f32.mrb[0].mxu0
    %v1016 = vadd.f32 %v599, %v1015
    %v1017 = vpop.f32.mrb[0].mxu0
    %1018 = vmatprep.mubr.f32.mxu0 0.0
    %v1019 = vand.u32 %v336, 4294901760
    %1020 = vmatmul.mubr.f32.gmra.mrb[0].mxu0 %v1019
    %v1021 = vpop.f32.mrb[0].mxu0
    %v1022 = vadd.f32 %v609, %v1021
    %v1023 = vpop.f32.mrb[0].mxu0
    %1024 = vmatprep.mubr.f32.mxu0 0.0
    %v1025 = vand.u32 %v339, 4294901760
    %1026 = vmatmul.mubr.f32.gmra.mrb[0].mxu0 %v1025
    %v1027 = vpop.f32.mrb[0].mxu0
    %v1028 = vadd.f32 %v619, %v1027
    %v1029 = vpop.f32.mrb[0].mxu0
    %1030 = vmatprep.mubr.f32.mxu0 0.0
    %v1031 = vand.u32 %v342, 4294901760
    %1032 = vmatmul.mubr.f32.gmra.mrb[0].mxu0 %v1031
    %v1033 = vpop.f32.mrb[0].mxu0
    %v1034 = vadd.f32 %v629, %v1033
    %v1035 = vpop.f32.mrb[0].mxu0
    %1036 = vmatprep.mubr.f32.mxu0 0.0
    %v1037 = vand.u32 %v345, 4294901760
    %1038 = vmatmul.mubr.f32.gmra.mrb[0].mxu0 %v1037
    %v1039 = vpop.f32.mrb[0].mxu0
    %v1040 = vadd.f32 %v639, %v1039
    %v1041 = vpop.f32.mrb[0].mxu0
    %1042 = vmatprep.mubr.f32.mxu0 0.0
    %v1043 = vand.u32 %v348, 4294901760
    %1044 = vmatmul.mubr.f32.gmra.mrb[0].mxu0 %v1043
    %v1045 = vpop.f32.mrb[0].mxu0
    %v1046 = vadd.f32 %v649, %v1045
    %v1047 = vpop.f32.mrb[0].mxu0
    %1048 = vmatprep.mubr.f32.mxu0 0.0
    %v1049 = vand.u32 %v351, 4294901760
    %1050 = vmatmul.mubr.f32.gmra.mrb[0].mxu0 %v1049
    %v1051 = vpop.f32.mrb[0].mxu0
    %v1052 = vadd.f32 %v659, %v1051
    %v1053 = vpop.f32.mrb[0].mxu0
    %1054 = vmatprep.mubr.f32.mxu0 0.0
    %v1055 = vand.u32 %v354, 4294901760
    %1056 = vmatmul.mubr.f32.gmra.mrb[0].mxu0 %v1055
    %v1057 = vpop.f32.mrb[0].mxu0
    %v1058 = vadd.f32 %v669, %v1057
    %v1059 = vpop.f32.mrb[0].mxu0
    %1060 = vmatprep.mubr.f32.mxu0 0.0
    %v1061 = vand.u32 %v357, 4294901760
    %1062 = vmatmul.mubr.f32.gmra.mrb[0].mxu0 %v1061
    %v1063 = vpop.f32.mrb[0].mxu0
    %v1064 = vadd.f32 %v679, %v1063
    %v1065 = vpop.f32.mrb[0].mxu0
    %1066 = vmatprep.mubr.f32.mxu0 0.0
    %v1067 = vand.u32 %v360, 4294901760
    %1068 = vmatmul.mubr.f32.gmra.mrb[0].mxu0 %v1067
    %v1069 = vpop.f32.mrb[0].mxu0
    %v1070 = vadd.f32 %v689, %v1069
    %v1071 = vpop.f32.mrb[0].mxu0
    %1072 = vmatprep.mubr.f32.mxu0 0.0
    %v1073 = vand.u32 %v363, 4294901760
    %1074 = vmatmul.mubr.f32.gmra.mrb[0].mxu0 %v1073
    %v1075 = vpop.f32.mrb[0].mxu0
    %v1076 = vadd.f32 %v699, %v1075
    %v1077 = vpop.f32.mrb[0].mxu0
    %1078 = vmatprep.mubr.f32.mxu0 0.0
    %v1079 = vand.u32 %v366, 4294901760
    %1080 = vmatmul.mubr.f32.gmra.mrb[0].mxu0 %v1079
    %v1081 = vpop.f32.mrb[0].mxu0
    %v1082 = vadd.f32 %v709, %v1081
    %v1083 = vpop.f32.mrb[0].mxu0
    %1084 = vmatprep.mubr.f32.mxu0 0.0
    %v1085 = vand.u32 %v369, 4294901760
    %1086 = vmatmul.mubr.f32.gmra.mrb[0].mxu0 %v1085
    %v1087 = vpop.f32.mrb[0].mxu0
    %v1088 = vadd.f32 %v719, %v1087
    %v1089 = vpop.f32.mrb[0].mxu0
    %1090 = vmatprep.mubr.f32.mxu0 0.0
    %v1091 = vand.u32 %v372, 4294901760
    %1092 = vmatmul.mubr.f32.gmra.mrb[0].mxu0 %v1091
    %v1093 = vpop.f32.mrb[0].mxu0
    %v1094 = vadd.f32 %v729, %v1093
    %v1095 = vpop.f32.mrb[0].mxu0
    %1096 = vmatprep.mubr.f32.mxu0 0.0
    %v1097 = vand.u32 %v375, 4294901760
    %1098 = vmatmul.mubr.f32.gmra.mrb[0].mxu0 %v1097
    %v1099 = vpop.f32.mrb[0].mxu0
    %v1100 = vadd.f32 %v739, %v1099
    %v1101 = vpop.f32.mrb[0].mxu0
    %1102 = vmatprep.mubr.f32.mxu0 0.0
    %v1103 = vand.u32 %v378, 4294901760
    %1104 = vmatmul.mubr.f32.gmra.mrb[0].mxu0 %v1103
    %v1105 = vpop.f32.mrb[0].mxu0
    %v1106 = vadd.f32 %v749, %v1105
    %v1107 = vpop.f32.mrb[0].mxu0
    %1108 = vmatprep.mubr.f32.mxu0 0.0
    %v1109 = vand.u32 %v381, 4294901760
    %1110 = vmatmul.mubr.f32.gmra.mrb[0].mxu0 %v1109
    %v1111 = vpop.f32.mrb[0].mxu0
    %v1112 = vadd.f32 %v759, %v1111
    %v1113 = vpop.f32.mrb[0].mxu0
    %1114 = vmatprep.mubr.f32.mxu0 0.0
    %v1115 = vand.u32 %v384, 4294901760
    %1116 = vmatmul.mubr.f32.gmra.mrb[0].mxu0 %v1115
    %v1117 = vpop.f32.mrb[0].mxu0
    %v1118 = vadd.f32 %v769, %v1117
    %v1119 = vpop.f32.mrb[0].mxu0
    %1120 = vmatprep.mubr.f32.mxu0 0.0
    %v1121 = vand.u32 %v387, 4294901760
    %1122 = vmatmul.mubr.f32.gmra.mrb[0].mxu0 %v1121
    %v1123 = vpop.f32.mrb[0].mxu0
    %v1124 = vadd.f32 %v779, %v1123
    %v1125 = vpop.f32.mrb[0].mxu0
    %1126 = vmatprep.mubr.f32.mxu0 0.0
    %v1127 = vand.u32 %v390, 4294901760
    %1128 = vmatmul.mubr.f32.gmra.mrb[0].mxu0 %v1127
    %v1129 = vpop.f32.mrb[0].mxu0
    %v1130 = vadd.f32 %v789, %v1129
    %v1131 = vpop.f32.mrb[0].mxu0
    %1132 = vmatprep.mubr.f32.mxu0 0.0
    %v1133 = vand.u32 %v393, 4294901760
    %1134 = vmatmul.mubr.f32.gmra.mrb[0].mxu0 %v1133
    %v1135 = vpop.f32.mrb[0].mxu0
    %v1136 = vadd.f32 %v799, %v1135
    %v1137 = vpop.f32.mrb[0].mxu0
    %1138 = vmatprep.mubr.f32.mxu0 0.0
    %v1139 = vand.u32 %v396, 4294901760
    %1140 = vmatmul.mubr.f32.gmra.mrb[0].mxu0 %v1139
    %v1141 = vpop.f32.mrb[0].mxu0
    %v1142 = vadd.f32 %v809, %v1141
    %v1143 = vpop.f32.mrb[0].mxu0
    %1144 = vmatprep.mubr.f32.mxu0 0.0
    %v1145 = vand.u32 %v399, 4294901760
    %1146 = vmatmul.mubr.f32.gmra.mrb[0].mxu0 %v1145
    %v1147 = vpop.f32.mrb[0].mxu0
    %v1148 = vadd.f32 %v819, %v1147
    %v1149 = vpop.f32.mrb[0].mxu0
    %1150 = vmatprep.mubr.f32.mxu0 0.0
    %v1151 = vand.u32 %v402, 4294901760
    %1152 = vmatmul.mubr.f32.gmra.mrb[0].mxu0 %v1151
    %v1153 = vpop.f32.mrb[0].mxu0
    %v1154 = vadd.f32 %v829, %v1153
    %v1155 = vpop.f32.mrb[0].mxu0
    %1156 = vmatprep.mubr.f32.mxu0 0.0
    %v1157 = vand.u32 %v405, 4294901760
    %1158 = vmatmul.mubr.f32.gmra.mrb[0].mxu0 %v1157
    %v1159 = vpop.f32.mrb[0].mxu0
    %v1160 = vadd.f32 %v839, %v1159
    %v1161 = vpop.f32.mrb[0].mxu0
    %1162 = vmatprep.mubr.f32.mxu0 0.0
    %v1163 = vand.u32 %v408, 4294901760
    %1164 = vmatmul.mubr.f32.gmra.mrb[0].mxu0 %v1163
    %v1165 = vpop.f32.mrb[0].mxu0
    %v1166 = vadd.f32 %v849, %v1165
    %v1167 = vpop.f32.mrb[0].mxu0
    %1168 = vmatprep.mubr.f32.mxu0 0.0
    %v1169 = vand.u32 %v411, 4294901760
    %1170 = vmatmul.mubr.f32.gmra.mrb[0].mxu0 %v1169
    %v1171 = vpop.f32.mrb[0].mxu0
    %v1172 = vadd.f32 %v859, %v1171
    %v1173 = vpop.f32.mrb[0].mxu0
    %1174 = vdwg.mxu0
    %1175 = vmatprep.subr.mxu0 0.0
    %v1176 = vand.u32 %v294, 4294901760
    %v1177 = vsub.f32 %v294, %v1176
    %1178 = vmatpush1.msra.mxu0 %v1177
    %1179 = vmatprep.subr.mxu0 0.0
    %v1180 = vand.u32 %v295, 4294901760
    %v1181 = vsub.f32 %v295, %v1180
    %1182 = vmatpush1.msra.mxu0 %v1181
    %1183 = vmatprep.subr.mxu0 0.0
    %v1184 = vand.u32 %v296, 4294901760
    %v1185 = vsub.f32 %v296, %v1184
    %1186 = vmatpush1.msra.mxu0 %v1185
    %1187 = vmatprep.subr.mxu0 0.0
    %v1188 = vand.u32 %v297, 4294901760
    %v1189 = vsub.f32 %v297, %v1188
    %1190 = vmatpush1.msra.mxu0 %v1189
    %1191 = vmatprep.subr.mxu0 0.0
    %1192 = vmatpush1.msra.mxu0 0.0
    %1193 = vmatprep.subr.mxu0 0.0
    %1194 = vmatpush1.msra.mxu0 0.0
    %1195 = vmatprep.subr.mxu0 0.0
    %1196 = vmatpush1.msra.mxu0 0.0
    %1197 = vmatprep.subr.mxu0 0.0
    %1198 = vmatpush1.msra.mxu0 0.0
    %1199 = vmatprep.subr.mxu0 0.0
    %1200 = vmatpush1.msra.mxu0 0.0
    %1201 = vmatprep.subr.mxu0 0.0
    %1202 = vmatpush1.msra.mxu0 0.0
    %1203 = vmatprep.subr.mxu0 0.0
    %1204 = vmatpush1.msra.mxu0 0.0
    %1205 = vmatprep.subr.mxu0 0.0
    %1206 = vmatpush1.msra.mxu0 0.0
    %1207 = vmatprep.subr.mxu0 0.0
    %1208 = vmatpush1.msra.mxu0 0.0
    %1209 = vmatprep.subr.mxu0 0.0
    %1210 = vmatpush1.msra.mxu0 0.0
    %1211 = vmatprep.subr.mxu0 0.0
    %1212 = vmatpush1.msra.mxu0 0.0
    %1213 = vmatprep.subr.mxu0 0.0
    %1214 = vmatpush1.msra.mxu0 0.0
    %1215 = vmatprep.subr.mxu0 0.0
    %1216 = vmatpush1.msra.mxu0 0.0
    %1217 = vmatprep.subr.mxu0 0.0
    %1218 = vmatpush1.msra.mxu0 0.0
    %1219 = vmatprep.subr.mxu0 0.0
    %1220 = vmatpush1.msra.mxu0 0.0
    %1221 = vmatprep.subr.mxu0 0.0
    %1222 = vmatpush1.msra.mxu0 0.0
    %1223 = vmatprep.subr.mxu0 0.0
    %1224 = vmatpush1.msra.mxu0 0.0
    %1225 = vmatprep.subr.mxu0 0.0
    %1226 = vmatpush1.msra.mxu0 0.0
    %1227 = vmatprep.subr.mxu0 0.0
    %1228 = vmatpush1.msra.mxu0 0.0
    %1229 = vmatprep.subr.mxu0 0.0
    %1230 = vmatpush1.msra.mxu0 0.0
    %1231 = vmatprep.subr.mxu0 0.0
    %1232 = vmatpush1.msra.mxu0 0.0
    %1233 = vmatprep.subr.mxu0 0.0
    %1234 = vmatpush1.msra.mxu0 0.0
    %1235 = vmatprep.subr.mxu0 0.0
    %1236 = vmatpush1.msra.mxu0 0.0
    %1237 = vmatprep.subr.mxu0 0.0
    %1238 = vmatpush1.msra.mxu0 0.0
    %1239 = vmatprep.subr.mxu0 0.0
    %1240 = vmatpush1.msra.mxu0 0.0
    %1241 = vmatprep.subr.mxu0 0.0
    %1242 = vmatpush1.msra.mxu0 0.0
    %1243 = vmatprep.subr.mxu0 0.0
    %1244 = vmatpush1.msra.mxu0 0.0
    %1245 = vmatprep.subr.mxu0 0.0
    %1246 = vmatpush1.msra.mxu0 0.0
    %1247 = vmatprep.mubr.f32.mxu0 0.0
    %v1248 = vand.u32 %v300, 4294901760
    %v1249 = vsub.f32 %v300, %v1248
    %1250 = vmatmul.mubr.f32.gmra.mrb[0].mxu0 %v1249
    %v1251 = vpop.f32.mrb[0].mxu0
    %v1252 = vadd.f32 %v950, %v1251
    %v1253 = vpop.f32.mrb[0].mxu0
    %1254 = vmatprep.mubr.f32.mxu0 0.0
    %v1255 = vand.u32 %v303, 4294901760
    %v1256 = vsub.f32 %v303, %v1255
    %1257 = vmatmul.mubr.f32.gmra.mrb[0].mxu0 %v1256
    %v1258 = vpop.f32.mrb[0].mxu0
    %v1259 = vadd.f32 %v956, %v1258
    %v1260 = vpop.f32.mrb[0].mxu0
    %1261 = vmatprep.mubr.f32.mxu0 0.0
    %v1262 = vand.u32 %v306, 4294901760
    %v1263 = vsub.f32 %v306, %v1262
    %1264 = vmatmul.mubr.f32.gmra.mrb[0].mxu0 %v1263
    %v1265 = vpop.f32.mrb[0].mxu0
    %v1266 = vadd.f32 %v962, %v1265
    %v1267 = vpop.f32.mrb[0].mxu0
    %1268 = vmatprep.mubr.f32.mxu0 0.0
    %v1269 = vand.u32 %v309, 4294901760
    %v1270 = vsub.f32 %v309, %v1269
    %1271 = vmatmul.mubr.f32.gmra.mrb[0].mxu0 %v1270
    %v1272 = vpop.f32.mrb[0].mxu0
    %v1273 = vadd.f32 %v968, %v1272
    %v1274 = vpop.f32.mrb[0].mxu0
    %1275 = vmatprep.mubr.f32.mxu0 0.0
    %v1276 = vand.u32 %v312, 4294901760
    %v1277 = vsub.f32 %v312, %v1276
    %1278 = vmatmul.mubr.f32.gmra.mrb[0].mxu0 %v1277
    %v1279 = vpop.f32.mrb[0].mxu0
    %v1280 = vadd.f32 %v974, %v1279
    %v1281 = vpop.f32.mrb[0].mxu0
    %1282 = vmatprep.mubr.f32.mxu0 0.0
    %v1283 = vand.u32 %v315, 4294901760
    %v1284 = vsub.f32 %v315, %v1283
    %1285 = vmatmul.mubr.f32.gmra.mrb[0].mxu0 %v1284
    %v1286 = vpop.f32.mrb[0].mxu0
    %v1287 = vadd.f32 %v980, %v1286
    %v1288 = vpop.f32.mrb[0].mxu0
    %1289 = vmatprep.mubr.f32.mxu0 0.0
    %v1290 = vand.u32 %v318, 4294901760
    %v1291 = vsub.f32 %v318, %v1290
    %1292 = vmatmul.mubr.f32.gmra.mrb[0].mxu0 %v1291
    %v1293 = vpop.f32.mrb[0].mxu0
    %v1294 = vadd.f32 %v986, %v1293
    %v1295 = vpop.f32.mrb[0].mxu0
    %1296 = vmatprep.mubr.f32.mxu0 0.0
    %v1297 = vand.u32 %v321, 4294901760
    %v1298 = vsub.f32 %v321, %v1297
    %1299 = vmatmul.mubr.f32.gmra.mrb[0].mxu0 %v1298
    %v1300 = vpop.f32.mrb[0].mxu0
    %v1301 = vadd.f32 %v992, %v1300
    %v1302 = vpop.f32.mrb[0].mxu0
    %1303 = vmatprep.mubr.f32.mxu0 0.0
    %v1304 = vand.u32 %v324, 4294901760
    %v1305 = vsub.f32 %v324, %v1304
    %1306 = vmatmul.mubr.f32.gmra.mrb[0].mxu0 %v1305
    %v1307 = vpop.f32.mrb[0].mxu0
    %v1308 = vadd.f32 %v998, %v1307
    %v1309 = vpop.f32.mrb[0].mxu0
    %1310 = vmatprep.mubr.f32.mxu0 0.0
    %v1311 = vand.u32 %v327, 4294901760
    %v1312 = vsub.f32 %v327, %v1311
    %1313 = vmatmul.mubr.f32.gmra.mrb[0].mxu0 %v1312
    %v1314 = vpop.f32.mrb[0].mxu0
    %v1315 = vadd.f32 %v1004, %v1314
    %v1316 = vpop.f32.mrb[0].mxu0
    %1317 = vmatprep.mubr.f32.mxu0 0.0
    %v1318 = vand.u32 %v330, 4294901760
    %v1319 = vsub.f32 %v330, %v1318
    %1320 = vmatmul.mubr.f32.gmra.mrb[0].mxu0 %v1319
    %v1321 = vpop.f32.mrb[0].mxu0
    %v1322 = vadd.f32 %v1010, %v1321
    %v1323 = vpop.f32.mrb[0].mxu0
    %1324 = vmatprep.mubr.f32.mxu0 0.0
    %v1325 = vand.u32 %v333, 4294901760
    %v1326 = vsub.f32 %v333, %v1325
    %1327 = vmatmul.mubr.f32.gmra.mrb[0].mxu0 %v1326
    %v1328 = vpop.f32.mrb[0].mxu0
    %v1329 = vadd.f32 %v1016, %v1328
    %v1330 = vpop.f32.mrb[0].mxu0
    %1331 = vmatprep.mubr.f32.mxu0 0.0
    %v1332 = vand.u32 %v336, 4294901760
    %v1333 = vsub.f32 %v336, %v1332
    %1334 = vmatmul.mubr.f32.gmra.mrb[0].mxu0 %v1333
    %v1335 = vpop.f32.mrb[0].mxu0
    %v1336 = vadd.f32 %v1022, %v1335
    %v1337 = vpop.f32.mrb[0].mxu0
    %1338 = vmatprep.mubr.f32.mxu0 0.0
    %v1339 = vand.u32 %v339, 4294901760
    %v1340 = vsub.f32 %v339, %v1339
    %1341 = vmatmul.mubr.f32.gmra.mrb[0].mxu0 %v1340
    %v1342 = vpop.f32.mrb[0].mxu0
    %v1343 = vadd.f32 %v1028, %v1342
    %v1344 = vpop.f32.mrb[0].mxu0
    %1345 = vmatprep.mubr.f32.mxu0 0.0
    %v1346 = vand.u32 %v342, 4294901760
    %v1347 = vsub.f32 %v342, %v1346
    %1348 = vmatmul.mubr.f32.gmra.mrb[0].mxu0 %v1347
    %v1349 = vpop.f32.mrb[0].mxu0
    %v1350 = vadd.f32 %v1034, %v1349
    %v1351 = vpop.f32.mrb[0].mxu0
    %1352 = vmatprep.mubr.f32.mxu0 0.0
    %v1353 = vand.u32 %v345, 4294901760
    %v1354 = vsub.f32 %v345, %v1353
    %1355 = vmatmul.mubr.f32.gmra.mrb[0].mxu0 %v1354
    %v1356 = vpop.f32.mrb[0].mxu0
    %v1357 = vadd.f32 %v1040, %v1356
    %v1358 = vpop.f32.mrb[0].mxu0
    %1359 = vmatprep.mubr.f32.mxu0 0.0
    %v1360 = vand.u32 %v348, 4294901760
    %v1361 = vsub.f32 %v348, %v1360
    %1362 = vmatmul.mubr.f32.gmra.mrb[0].mxu0 %v1361
    %v1363 = vpop.f32.mrb[0].mxu0
    %v1364 = vadd.f32 %v1046, %v1363
    %v1365 = vpop.f32.mrb[0].mxu0
    %1366 = vmatprep.mubr.f32.mxu0 0.0
    %v1367 = vand.u32 %v351, 4294901760
    %v1368 = vsub.f32 %v351, %v1367
    %1369 = vmatmul.mubr.f32.gmra.mrb[0].mxu0 %v1368
    %v1370 = vpop.f32.mrb[0].mxu0
    %v1371 = vadd.f32 %v1052, %v1370
    %v1372 = vpop.f32.mrb[0].mxu0
    %1373 = vmatprep.mubr.f32.mxu0 0.0
    %v1374 = vand.u32 %v354, 4294901760
    %v1375 = vsub.f32 %v354, %v1374
    %1376 = vmatmul.mubr.f32.gmra.mrb[0].mxu0 %v1375
    %v1377 = vpop.f32.mrb[0].mxu0
    %v1378 = vadd.f32 %v1058, %v1377
    %v1379 = vpop.f32.mrb[0].mxu0
    %1380 = vmatprep.mubr.f32.mxu0 0.0
    %v1381 = vand.u32 %v357, 4294901760
    %v1382 = vsub.f32 %v357, %v1381
    %1383 = vmatmul.mubr.f32.gmra.mrb[0].mxu0 %v1382
    %v1384 = vpop.f32.mrb[0].mxu0
    %v1385 = vadd.f32 %v1064, %v1384
    %v1386 = vpop.f32.mrb[0].mxu0
    %1387 = vmatprep.mubr.f32.mxu0 0.0
    %v1388 = vand.u32 %v360, 4294901760
    %v1389 = vsub.f32 %v360, %v1388
    %1390 = vmatmul.mubr.f32.gmra.mrb[0].mxu0 %v1389
    %v1391 = vpop.f32.mrb[0].mxu0
    %v1392 = vadd.f32 %v1070, %v1391
    %v1393 = vpop.f32.mrb[0].mxu0
    %1394 = vmatprep.mubr.f32.mxu0 0.0
    %v1395 = vand.u32 %v363, 4294901760
    %v1396 = vsub.f32 %v363, %v1395
    %1397 = vmatmul.mubr.f32.gmra.mrb[0].mxu0 %v1396
    %v1398 = vpop.f32.mrb[0].mxu0
    %v1399 = vadd.f32 %v1076, %v1398
    %v1400 = vpop.f32.mrb[0].mxu0
    %1401 = vmatprep.mubr.f32.mxu0 0.0
    %v1402 = vand.u32 %v366, 4294901760
    %v1403 = vsub.f32 %v366, %v1402
    %1404 = vmatmul.mubr.f32.gmra.mrb[0].mxu0 %v1403
    %v1405 = vpop.f32.mrb[0].mxu0
    %v1406 = vadd.f32 %v1082, %v1405
    %v1407 = vpop.f32.mrb[0].mxu0
    %1408 = vmatprep.mubr.f32.mxu0 0.0
    %v1409 = vand.u32 %v369, 4294901760
    %v1410 = vsub.f32 %v369, %v1409
    %1411 = vmatmul.mubr.f32.gmra.mrb[0].mxu0 %v1410
    %v1412 = vpop.f32.mrb[0].mxu0
    %v1413 = vadd.f32 %v1088, %v1412
    %v1414 = vpop.f32.mrb[0].mxu0
    %1415 = vmatprep.mubr.f32.mxu0 0.0
    %v1416 = vand.u32 %v372, 4294901760
    %v1417 = vsub.f32 %v372, %v1416
    %1418 = vmatmul.mubr.f32.gmra.mrb[0].mxu0 %v1417
    %v1419 = vpop.f32.mrb[0].mxu0
    %v1420 = vadd.f32 %v1094, %v1419
    %v1421 = vpop.f32.mrb[0].mxu0
    %1422 = vmatprep.mubr.f32.mxu0 0.0
    %v1423 = vand.u32 %v375, 4294901760
    %v1424 = vsub.f32 %v375, %v1423
    %1425 = vmatmul.mubr.f32.gmra.mrb[0].mxu0 %v1424
    %v1426 = vpop.f32.mrb[0].mxu0
    %v1427 = vadd.f32 %v1100, %v1426
    %v1428 = vpop.f32.mrb[0].mxu0
    %1429 = vmatprep.mubr.f32.mxu0 0.0
    %v1430 = vand.u32 %v378, 4294901760
    %v1431 = vsub.f32 %v378, %v1430
    %1432 = vmatmul.mubr.f32.gmra.mrb[0].mxu0 %v1431
    %v1433 = vpop.f32.mrb[0].mxu0
    %v1434 = vadd.f32 %v1106, %v1433
    %v1435 = vpop.f32.mrb[0].mxu0
    %1436 = vmatprep.mubr.f32.mxu0 0.0
    %v1437 = vand.u32 %v381, 4294901760
    %v1438 = vsub.f32 %v381, %v1437
    %1439 = vmatmul.mubr.f32.gmra.mrb[0].mxu0 %v1438
    %v1440 = vpop.f32.mrb[0].mxu0
    %v1441 = vadd.f32 %v1112, %v1440
    %v1442 = vpop.f32.mrb[0].mxu0
    %1443 = vmatprep.mubr.f32.mxu0 0.0
    %v1444 = vand.u32 %v384, 4294901760
    %v1445 = vsub.f32 %v384, %v1444
    %1446 = vmatmul.mubr.f32.gmra.mrb[0].mxu0 %v1445
    %v1447 = vpop.f32.mrb[0].mxu0
    %v1448 = vadd.f32 %v1118, %v1447
    %v1449 = vpop.f32.mrb[0].mxu0
    %1450 = vmatprep.mubr.f32.mxu0 0.0
    %v1451 = vand.u32 %v387, 4294901760
    %v1452 = vsub.f32 %v387, %v1451
    %1453 = vmatmul.mubr.f32.gmra.mrb[0].mxu0 %v1452
    %v1454 = vpop.f32.mrb[0].mxu0
    %v1455 = vadd.f32 %v1124, %v1454
    %v1456 = vpop.f32.mrb[0].mxu0
    %1457 = vmatprep.mubr.f32.mxu0 0.0
    %v1458 = vand.u32 %v390, 4294901760
    %v1459 = vsub.f32 %v390, %v1458
    %1460 = vmatmul.mubr.f32.gmra.mrb[0].mxu0 %v1459
    %v1461 = vpop.f32.mrb[0].mxu0
    %v1462 = vadd.f32 %v1130, %v1461
    %v1463 = vpop.f32.mrb[0].mxu0
    %1464 = vmatprep.mubr.f32.mxu0 0.0
    %v1465 = vand.u32 %v393, 4294901760
    %v1466 = vsub.f32 %v393, %v1465
    %1467 = vmatmul.mubr.f32.gmra.mrb[0].mxu0 %v1466
    %v1468 = vpop.f32.mrb[0].mxu0
    %v1469 = vadd.f32 %v1136, %v1468
    %v1470 = vpop.f32.mrb[0].mxu0
    %1471 = vmatprep.mubr.f32.mxu0 0.0
    %v1472 = vand.u32 %v396, 4294901760
    %v1473 = vsub.f32 %v396, %v1472
    %1474 = vmatmul.mubr.f32.gmra.mrb[0].mxu0 %v1473
    %v1475 = vpop.f32.mrb[0].mxu0
    %v1476 = vadd.f32 %v1142, %v1475
    %v1477 = vpop.f32.mrb[0].mxu0
    %1478 = vmatprep.mubr.f32.mxu0 0.0
    %v1479 = vand.u32 %v399, 4294901760
    %v1480 = vsub.f32 %v399, %v1479
    %1481 = vmatmul.mubr.f32.gmra.mrb[0].mxu0 %v1480
    %v1482 = vpop.f32.mrb[0].mxu0
    %v1483 = vadd.f32 %v1148, %v1482
    %v1484 = vpop.f32.mrb[0].mxu0
    %1485 = vmatprep.mubr.f32.mxu0 0.0
    %v1486 = vand.u32 %v402, 4294901760
    %v1487 = vsub.f32 %v402, %v1486
    %1488 = vmatmul.mubr.f32.gmra.mrb[0].mxu0 %v1487
    %v1489 = vpop.f32.mrb[0].mxu0
    %v1490 = vadd.f32 %v1154, %v1489
    %v1491 = vpop.f32.mrb[0].mxu0
    %1492 = vmatprep.mubr.f32.mxu0 0.0
    %v1493 = vand.u32 %v405, 4294901760
    %v1494 = vsub.f32 %v405, %v1493
    %1495 = vmatmul.mubr.f32.gmra.mrb[0].mxu0 %v1494
    %v1496 = vpop.f32.mrb[0].mxu0
    %v1497 = vadd.f32 %v1160, %v1496
    %v1498 = vpop.f32.mrb[0].mxu0
    %1499 = vmatprep.mubr.f32.mxu0 0.0
    %v1500 = vand.u32 %v408, 4294901760
    %v1501 = vsub.f32 %v408, %v1500
    %1502 = vmatmul.mubr.f32.gmra.mrb[0].mxu0 %v1501
    %v1503 = vpop.f32.mrb[0].mxu0
    %v1504 = vadd.f32 %v1166, %v1503
    %v1505 = vpop.f32.mrb[0].mxu0
    %1506 = vmatprep.mubr.f32.mxu0 0.0
    %v1507 = vand.u32 %v411, 4294901760
    %v1508 = vsub.f32 %v411, %v1507
    %1509 = vmatmul.mubr.f32.gmra.mrb[0].mxu0 %v1508
    %v1510 = vpop.f32.mrb[0].mxu0
    %v1511 = vadd.f32 %v1172, %v1510
    %v1512 = vpop.f32.mrb[0].mxu0
    %1513 = vdwg.mxu0
    %1514 = vmatprep.subr.mxu0 0.0
    %v1515 = vand.u32 %v294, 4294901760
    %1516 = vmatpush1.msra.mxu0 %v1515
    %1517 = vmatprep.subr.mxu0 0.0
    %v1518 = vand.u32 %v295, 4294901760
    %1519 = vmatpush1.msra.mxu0 %v1518
    %1520 = vmatprep.subr.mxu0 0.0
    %v1521 = vand.u32 %v296, 4294901760
    %1522 = vmatpush1.msra.mxu0 %v1521
    %1523 = vmatprep.subr.mxu0 0.0
    %v1524 = vand.u32 %v297, 4294901760
    %1525 = vmatpush1.msra.mxu0 %v1524
    %1526 = vmatprep.subr.mxu0 0.0
    %1527 = vmatpush1.msra.mxu0 0.0
    %1528 = vmatprep.subr.mxu0 0.0
    %1529 = vmatpush1.msra.mxu0 0.0
    %1530 = vmatprep.subr.mxu0 0.0
    %1531 = vmatpush1.msra.mxu0 0.0
    %1532 = vmatprep.subr.mxu0 0.0
    %1533 = vmatpush1.msra.mxu0 0.0
    %1534 = vmatprep.subr.mxu0 0.0
    %1535 = vmatpush1.msra.mxu0 0.0
    %1536 = vmatprep.subr.mxu0 0.0
    %1537 = vmatpush1.msra.mxu0 0.0
    %1538 = vmatprep.subr.mxu0 0.0
    %1539 = vmatpush1.msra.mxu0 0.0
    %1540 = vmatprep.subr.mxu0 0.0
    %1541 = vmatpush1.msra.mxu0 0.0
    %1542 = vmatprep.subr.mxu0 0.0
    %1543 = vmatpush1.msra.mxu0 0.0
    %1544 = vmatprep.subr.mxu0 0.0
    %1545 = vmatpush1.msra.mxu0 0.0
    %1546 = vmatprep.subr.mxu0 0.0
    %1547 = vmatpush1.msra.mxu0 0.0
    %1548 = vmatprep.subr.mxu0 0.0
    %1549 = vmatpush1.msra.mxu0 0.0
    %1550 = vmatprep.subr.mxu0 0.0
    %1551 = vmatpush1.msra.mxu0 0.0
    %1552 = vmatprep.subr.mxu0 0.0
    %1553 = vmatpush1.msra.mxu0 0.0
    %1554 = vmatprep.subr.mxu0 0.0
    %1555 = vmatpush1.msra.mxu0 0.0
    %1556 = vmatprep.subr.mxu0 0.0
    %1557 = vmatpush1.msra.mxu0 0.0
    %1558 = vmatprep.subr.mxu0 0.0
    %1559 = vmatpush1.msra.mxu0 0.0
    %1560 = vmatprep.subr.mxu0 0.0
    %1561 = vmatpush1.msra.mxu0 0.0
    %1562 = vmatprep.subr.mxu0 0.0
    %1563 = vmatpush1.msra.mxu0 0.0
    %1564 = vmatprep.subr.mxu0 0.0
    %1565 = vmatpush1.msra.mxu0 0.0
    %1566 = vmatprep.subr.mxu0 0.0
    %1567 = vmatpush1.msra.mxu0 0.0
    %1568 = vmatprep.subr.mxu0 0.0
    %1569 = vmatpush1.msra.mxu0 0.0
    %1570 = vmatprep.subr.mxu0 0.0
    %1571 = vmatpush1.msra.mxu0 0.0
    %1572 = vmatprep.subr.mxu0 0.0
    %1573 = vmatpush1.msra.mxu0 0.0
    %1574 = vmatprep.subr.mxu0 0.0
    %1575 = vmatpush1.msra.mxu0 0.0
    %1576 = vmatprep.subr.mxu0 0.0
    %1577 = vmatpush1.msra.mxu0 0.0
    %1578 = vmatprep.subr.mxu0 0.0
    %1579 = vmatpush1.msra.mxu0 0.0
    %1580 = vmatprep.subr.mxu0 0.0
    %1581 = vmatpush1.msra.mxu0 0.0
    %1582 = vmatprep.mubr.f32.mxu0 0.0
    %v1583 = vand.u32 %v300, 4294901760
    %v1584 = vsub.f32 %v300, %v1583
    %v1585 = vand.u32 %v1584, 4294901760
    %1586 = vmatmul.mubr.f32.gmra.mrb[0].mxu0 %v1585
    %v1587 = vpop.f32.mrb[0].mxu0
    %v1588 = vadd.f32 %v1252, %v1587
    %v1589 = vpop.f32.mrb[0].mxu0
    %1590 = vmatprep.mubr.f32.mxu0 0.0
    %v1591 = vand.u32 %v303, 4294901760
    %v1592 = vsub.f32 %v303, %v1591
    %v1593 = vand.u32 %v1592, 4294901760
    %1594 = vmatmul.mubr.f32.gmra.mrb[0].mxu0 %v1593
    %v1595 = vpop.f32.mrb[0].mxu0
    %v1596 = vadd.f32 %v1259, %v1595
    %v1597 = vpop.f32.mrb[0].mxu0
    %1598 = vmatprep.mubr.f32.mxu0 0.0
    %v1599 = vand.u32 %v306, 4294901760
    %v1600 = vsub.f32 %v306, %v1599
    %v1601 = vand.u32 %v1600, 4294901760
    %1602 = vmatmul.mubr.f32.gmra.mrb[0].mxu0 %v1601
    %v1603 = vpop.f32.mrb[0].mxu0
    %v1604 = vadd.f32 %v1266, %v1603
    %v1605 = vpop.f32.mrb[0].mxu0
    %1606 = vmatprep.mubr.f32.mxu0 0.0
    %v1607 = vand.u32 %v309, 4294901760
    %v1608 = vsub.f32 %v309, %v1607
    %v1609 = vand.u32 %v1608, 4294901760
    %1610 = vmatmul.mubr.f32.gmra.mrb[0].mxu0 %v1609
    %v1611 = vpop.f32.mrb[0].mxu0
    %v1612 = vadd.f32 %v1273, %v1611
    %v1613 = vpop.f32.mrb[0].mxu0
    %1614 = vmatprep.mubr.f32.mxu0 0.0
    %v1615 = vand.u32 %v312, 4294901760
    %v1616 = vsub.f32 %v312, %v1615
    %v1617 = vand.u32 %v1616, 4294901760
    %1618 = vmatmul.mubr.f32.gmra.mrb[0].mxu0 %v1617
    %v1619 = vpop.f32.mrb[0].mxu0
    %v1620 = vadd.f32 %v1280, %v1619
    %v1621 = vpop.f32.mrb[0].mxu0
    %1622 = vmatprep.mubr.f32.mxu0 0.0
    %v1623 = vand.u32 %v315, 4294901760
    %v1624 = vsub.f32 %v315, %v1623
    %v1625 = vand.u32 %v1624, 4294901760
    %1626 = vmatmul.mubr.f32.gmra.mrb[0].mxu0 %v1625
    %v1627 = vpop.f32.mrb[0].mxu0
    %v1628 = vadd.f32 %v1287, %v1627
    %v1629 = vpop.f32.mrb[0].mxu0
    %1630 = vmatprep.mubr.f32.mxu0 0.0
    %v1631 = vand.u32 %v318, 4294901760
    %v1632 = vsub.f32 %v318, %v1631
    %v1633 = vand.u32 %v1632, 4294901760
    %1634 = vmatmul.mubr.f32.gmra.mrb[0].mxu0 %v1633
    %v1635 = vpop.f32.mrb[0].mxu0
    %v1636 = vadd.f32 %v1294, %v1635
    %v1637 = vpop.f32.mrb[0].mxu0
    %1638 = vmatprep.mubr.f32.mxu0 0.0
    %v1639 = vand.u32 %v321, 4294901760
    %v1640 = vsub.f32 %v321, %v1639
    %v1641 = vand.u32 %v1640, 4294901760
    %1642 = vmatmul.mubr.f32.gmra.mrb[0].mxu0 %v1641
    %v1643 = vpop.f32.mrb[0].mxu0
    %v1644 = vadd.f32 %v1301, %v1643
    %v1645 = vpop.f32.mrb[0].mxu0
    %1646 = vmatprep.mubr.f32.mxu0 0.0
    %v1647 = vand.u32 %v324, 4294901760
    %v1648 = vsub.f32 %v324, %v1647
    %v1649 = vand.u32 %v1648, 4294901760
    %1650 = vmatmul.mubr.f32.gmra.mrb[0].mxu0 %v1649
    %v1651 = vpop.f32.mrb[0].mxu0
    %v1652 = vadd.f32 %v1308, %v1651
    %v1653 = vpop.f32.mrb[0].mxu0
    %1654 = vmatprep.mubr.f32.mxu0 0.0
    %v1655 = vand.u32 %v327, 4294901760
    %v1656 = vsub.f32 %v327, %v1655
    %v1657 = vand.u32 %v1656, 4294901760
    %1658 = vmatmul.mubr.f32.gmra.mrb[0].mxu0 %v1657
    %v1659 = vpop.f32.mrb[0].mxu0
    %v1660 = vadd.f32 %v1315, %v1659
    %v1661 = vpop.f32.mrb[0].mxu0
    %1662 = vmatprep.mubr.f32.mxu0 0.0
    %v1663 = vand.u32 %v330, 4294901760
    %v1664 = vsub.f32 %v330, %v1663
    %v1665 = vand.u32 %v1664, 4294901760
    %1666 = vmatmul.mubr.f32.gmra.mrb[0].mxu0 %v1665
    %v1667 = vpop.f32.mrb[0].mxu0
    %v1668 = vadd.f32 %v1322, %v1667
    %v1669 = vpop.f32.mrb[0].mxu0
    %1670 = vmatprep.mubr.f32.mxu0 0.0
    %v1671 = vand.u32 %v333, 4294901760
    %v1672 = vsub.f32 %v333, %v1671
    %v1673 = vand.u32 %v1672, 4294901760
    %1674 = vmatmul.mubr.f32.gmra.mrb[0].mxu0 %v1673
    %v1675 = vpop.f32.mrb[0].mxu0
    %v1676 = vadd.f32 %v1329, %v1675
    %v1677 = vpop.f32.mrb[0].mxu0
    %1678 = vmatprep.mubr.f32.mxu0 0.0
    %v1679 = vand.u32 %v336, 4294901760
    %v1680 = vsub.f32 %v336, %v1679
    %v1681 = vand.u32 %v1680, 4294901760
    %1682 = vmatmul.mubr.f32.gmra.mrb[0].mxu0 %v1681
    %v1683 = vpop.f32.mrb[0].mxu0
    %v1684 = vadd.f32 %v1336, %v1683
    %v1685 = vpop.f32.mrb[0].mxu0
    %1686 = vmatprep.mubr.f32.mxu0 0.0
    %v1687 = vand.u32 %v339, 4294901760
    %v1688 = vsub.f32 %v339, %v1687
    %v1689 = vand.u32 %v1688, 4294901760
    %1690 = vmatmul.mubr.f32.gmra.mrb[0].mxu0 %v1689
    %v1691 = vpop.f32.mrb[0].mxu0
    %v1692 = vadd.f32 %v1343, %v1691
    %v1693 = vpop.f32.mrb[0].mxu0
    %1694 = vmatprep.mubr.f32.mxu0 0.0
    %v1695 = vand.u32 %v342, 4294901760
    %v1696 = vsub.f32 %v342, %v1695
    %v1697 = vand.u32 %v1696, 4294901760
    %1698 = vmatmul.mubr.f32.gmra.mrb[0].mxu0 %v1697
    %v1699 = vpop.f32.mrb[0].mxu0
    %v1700 = vadd.f32 %v1350, %v1699
    %v1701 = vpop.f32.mrb[0].mxu0
    %1702 = vmatprep.mubr.f32.mxu0 0.0
    %v1703 = vand.u32 %v345, 4294901760
    %v1704 = vsub.f32 %v345, %v1703
    %v1705 = vand.u32 %v1704, 4294901760
    %1706 = vmatmul.mubr.f32.gmra.mrb[0].mxu0 %v1705
    %v1707 = vpop.f32.mrb[0].mxu0
    %v1708 = vadd.f32 %v1357, %v1707
    %v1709 = vpop.f32.mrb[0].mxu0
    %1710 = vmatprep.mubr.f32.mxu0 0.0
    %v1711 = vand.u32 %v348, 4294901760
    %v1712 = vsub.f32 %v348, %v1711
    %v1713 = vand.u32 %v1712, 4294901760
    %1714 = vmatmul.mubr.f32.gmra.mrb[0].mxu0 %v1713
    %v1715 = vpop.f32.mrb[0].mxu0
    %v1716 = vadd.f32 %v1364, %v1715
    %v1717 = vpop.f32.mrb[0].mxu0
    %1718 = vmatprep.mubr.f32.mxu0 0.0
    %v1719 = vand.u32 %v351, 4294901760
    %v1720 = vsub.f32 %v351, %v1719
    %v1721 = vand.u32 %v1720, 4294901760
    %1722 = vmatmul.mubr.f32.gmra.mrb[0].mxu0 %v1721
    %v1723 = vpop.f32.mrb[0].mxu0
    %v1724 = vadd.f32 %v1371, %v1723
    %v1725 = vpop.f32.mrb[0].mxu0
    %1726 = vmatprep.mubr.f32.mxu0 0.0
    %v1727 = vand.u32 %v354, 4294901760
    %v1728 = vsub.f32 %v354, %v1727
    %v1729 = vand.u32 %v1728, 4294901760
    %1730 = vmatmul.mubr.f32.gmra.mrb[0].mxu0 %v1729
    %v1731 = vpop.f32.mrb[0].mxu0
    %v1732 = vadd.f32 %v1378, %v1731
    %v1733 = vpop.f32.mrb[0].mxu0
    %1734 = vmatprep.mubr.f32.mxu0 0.0
    %v1735 = vand.u32 %v357, 4294901760
    %v1736 = vsub.f32 %v357, %v1735
    %v1737 = vand.u32 %v1736, 4294901760
    %1738 = vmatmul.mubr.f32.gmra.mrb[0].mxu0 %v1737
    %v1739 = vpop.f32.mrb[0].mxu0
    %v1740 = vadd.f32 %v1385, %v1739
    %v1741 = vpop.f32.mrb[0].mxu0
    %1742 = vmatprep.mubr.f32.mxu0 0.0
    %v1743 = vand.u32 %v360, 4294901760
    %v1744 = vsub.f32 %v360, %v1743
    %v1745 = vand.u32 %v1744, 4294901760
    %1746 = vmatmul.mubr.f32.gmra.mrb[0].mxu0 %v1745
    %v1747 = vpop.f32.mrb[0].mxu0
    %v1748 = vadd.f32 %v1392, %v1747
    %v1749 = vpop.f32.mrb[0].mxu0
    %1750 = vmatprep.mubr.f32.mxu0 0.0
    %v1751 = vand.u32 %v363, 4294901760
    %v1752 = vsub.f32 %v363, %v1751
    %v1753 = vand.u32 %v1752, 4294901760
    %1754 = vmatmul.mubr.f32.gmra.mrb[0].mxu0 %v1753
    %v1755 = vpop.f32.mrb[0].mxu0
    %v1756 = vadd.f32 %v1399, %v1755
    %v1757 = vpop.f32.mrb[0].mxu0
    %1758 = vmatprep.mubr.f32.mxu0 0.0
    %v1759 = vand.u32 %v366, 4294901760
    %v1760 = vsub.f32 %v366, %v1759
    %v1761 = vand.u32 %v1760, 4294901760
    %1762 = vmatmul.mubr.f32.gmra.mrb[0].mxu0 %v1761
    %v1763 = vpop.f32.mrb[0].mxu0
    %v1764 = vadd.f32 %v1406, %v1763
    %v1765 = vpop.f32.mrb[0].mxu0
    %1766 = vmatprep.mubr.f32.mxu0 0.0
    %v1767 = vand.u32 %v369, 4294901760
    %v1768 = vsub.f32 %v369, %v1767
    %v1769 = vand.u32 %v1768, 4294901760
    %1770 = vmatmul.mubr.f32.gmra.mrb[0].mxu0 %v1769
    %v1771 = vpop.f32.mrb[0].mxu0
    %v1772 = vadd.f32 %v1413, %v1771
    %v1773 = vpop.f32.mrb[0].mxu0
    %1774 = vmatprep.mubr.f32.mxu0 0.0
    %v1775 = vand.u32 %v372, 4294901760
    %v1776 = vsub.f32 %v372, %v1775
    %v1777 = vand.u32 %v1776, 4294901760
    %1778 = vmatmul.mubr.f32.gmra.mrb[0].mxu0 %v1777
    %v1779 = vpop.f32.mrb[0].mxu0
    %v1780 = vadd.f32 %v1420, %v1779
    %v1781 = vpop.f32.mrb[0].mxu0
    %1782 = vmatprep.mubr.f32.mxu0 0.0
    %v1783 = vand.u32 %v375, 4294901760
    %v1784 = vsub.f32 %v375, %v1783
    %v1785 = vand.u32 %v1784, 4294901760
    %1786 = vmatmul.mubr.f32.gmra.mrb[0].mxu0 %v1785
    %v1787 = vpop.f32.mrb[0].mxu0
    %v1788 = vadd.f32 %v1427, %v1787
    %v1789 = vpop.f32.mrb[0].mxu0
    %1790 = vmatprep.mubr.f32.mxu0 0.0
    %v1791 = vand.u32 %v378, 4294901760
    %v1792 = vsub.f32 %v378, %v1791
    %v1793 = vand.u32 %v1792, 4294901760
    %1794 = vmatmul.mubr.f32.gmra.mrb[0].mxu0 %v1793
    %v1795 = vpop.f32.mrb[0].mxu0
    %v1796 = vadd.f32 %v1434, %v1795
    %v1797 = vpop.f32.mrb[0].mxu0
    %1798 = vmatprep.mubr.f32.mxu0 0.0
    %v1799 = vand.u32 %v381, 4294901760
    %v1800 = vsub.f32 %v381, %v1799
    %v1801 = vand.u32 %v1800, 4294901760
    %1802 = vmatmul.mubr.f32.gmra.mrb[0].mxu0 %v1801
    %v1803 = vpop.f32.mrb[0].mxu0
    %v1804 = vadd.f32 %v1441, %v1803
    %v1805 = vpop.f32.mrb[0].mxu0
    %1806 = vmatprep.mubr.f32.mxu0 0.0
    %v1807 = vand.u32 %v384, 4294901760
    %v1808 = vsub.f32 %v384, %v1807
    %v1809 = vand.u32 %v1808, 4294901760
    %1810 = vmatmul.mubr.f32.gmra.mrb[0].mxu0 %v1809
    %v1811 = vpop.f32.mrb[0].mxu0
    %v1812 = vadd.f32 %v1448, %v1811
    %v1813 = vpop.f32.mrb[0].mxu0
    %1814 = vmatprep.mubr.f32.mxu0 0.0
    %v1815 = vand.u32 %v387, 4294901760
    %v1816 = vsub.f32 %v387, %v1815
    %v1817 = vand.u32 %v1816, 4294901760
    %1818 = vmatmul.mubr.f32.gmra.mrb[0].mxu0 %v1817
    %v1819 = vpop.f32.mrb[0].mxu0
    %v1820 = vadd.f32 %v1455, %v1819
    %v1821 = vpop.f32.mrb[0].mxu0
    %1822 = vmatprep.mubr.f32.mxu0 0.0
    %v1823 = vand.u32 %v390, 4294901760
    %v1824 = vsub.f32 %v390, %v1823
    %v1825 = vand.u32 %v1824, 4294901760
    %1826 = vmatmul.mubr.f32.gmra.mrb[0].mxu0 %v1825
    %v1827 = vpop.f32.mrb[0].mxu0
    %v1828 = vadd.f32 %v1462, %v1827
    %v1829 = vpop.f32.mrb[0].mxu0
    %1830 = vmatprep.mubr.f32.mxu0 0.0
    %v1831 = vand.u32 %v393, 4294901760
    %v1832 = vsub.f32 %v393, %v1831
    %v1833 = vand.u32 %v1832, 4294901760
    %1834 = vmatmul.mubr.f32.gmra.mrb[0].mxu0 %v1833
    %v1835 = vpop.f32.mrb[0].mxu0
    %v1836 = vadd.f32 %v1469, %v1835
    %v1837 = vpop.f32.mrb[0].mxu0
    %1838 = vmatprep.mubr.f32.mxu0 0.0
    %v1839 = vand.u32 %v396, 4294901760
    %v1840 = vsub.f32 %v396, %v1839
    %v1841 = vand.u32 %v1840, 4294901760
    %1842 = vmatmul.mubr.f32.gmra.mrb[0].mxu0 %v1841
    %v1843 = vpop.f32.mrb[0].mxu0
    %v1844 = vadd.f32 %v1476, %v1843
    %v1845 = vpop.f32.mrb[0].mxu0
    %1846 = vmatprep.mubr.f32.mxu0 0.0
    %v1847 = vand.u32 %v399, 4294901760
    %v1848 = vsub.f32 %v399, %v1847
    %v1849 = vand.u32 %v1848, 4294901760
    %1850 = vmatmul.mubr.f32.gmra.mrb[0].mxu0 %v1849
    %v1851 = vpop.f32.mrb[0].mxu0
    %v1852 = vadd.f32 %v1483, %v1851
    %v1853 = vpop.f32.mrb[0].mxu0
    %1854 = vmatprep.mubr.f32.mxu0 0.0
    %v1855 = vand.u32 %v402, 4294901760
    %v1856 = vsub.f32 %v402, %v1855
    %v1857 = vand.u32 %v1856, 4294901760
    %1858 = vmatmul.mubr.f32.gmra.mrb[0].mxu0 %v1857
    %v1859 = vpop.f32.mrb[0].mxu0
    %v1860 = vadd.f32 %v1490, %v1859
    %v1861 = vpop.f32.mrb[0].mxu0
    %1862 = vmatprep.mubr.f32.mxu0 0.0
    %v1863 = vand.u32 %v405, 4294901760
    %v1864 = vsub.f32 %v405, %v1863
    %v1865 = vand.u32 %v1864, 4294901760
    %1866 = vmatmul.mubr.f32.gmra.mrb[0].mxu0 %v1865
    %v1867 = vpop.f32.mrb[0].mxu0
    %v1868 = vadd.f32 %v1497, %v1867
    %v1869 = vpop.f32.mrb[0].mxu0
    %1870 = vmatprep.mubr.f32.mxu0 0.0
    %v1871 = vand.u32 %v408, 4294901760
    %v1872 = vsub.f32 %v408, %v1871
    %v1873 = vand.u32 %v1872, 4294901760
    %1874 = vmatmul.mubr.f32.gmra.mrb[0].mxu0 %v1873
    %v1875 = vpop.f32.mrb[0].mxu0
    %v1876 = vadd.f32 %v1504, %v1875
    %v1877 = vpop.f32.mrb[0].mxu0
    %1878 = vmatprep.mubr.f32.mxu0 0.0
    %v1879 = vand.u32 %v411, 4294901760
    %v1880 = vsub.f32 %v411, %v1879
    %v1881 = vand.u32 %v1880, 4294901760
    %1882 = vmatmul.mubr.f32.gmra.mrb[0].mxu0 %v1881
    %v1883 = vpop.f32.mrb[0].mxu0
    %v1884 = vadd.f32 %v1511, %v1883
    %v1885 = vpop.f32.mrb[0].mxu0
    %1886 = vdwg.mxu0
    %1887 = vmatprep.subr.mxu0 0.0
    %v1888 = vand.u32 %v294, 4294901760
    %v1889 = vsub.f32 %v294, %v1888
    %v1890 = vand.u32 %v1889, 4294901760
    %1891 = vmatpush1.msra.mxu0 %v1890
    %1892 = vmatprep.subr.mxu0 0.0
    %v1893 = vand.u32 %v295, 4294901760
    %v1894 = vsub.f32 %v295, %v1893
    %v1895 = vand.u32 %v1894, 4294901760
    %1896 = vmatpush1.msra.mxu0 %v1895
    %1897 = vmatprep.subr.mxu0 0.0
    %v1898 = vand.u32 %v296, 4294901760
    %v1899 = vsub.f32 %v296, %v1898
    %v1900 = vand.u32 %v1899, 4294901760
    %1901 = vmatpush1.msra.mxu0 %v1900
    %1902 = vmatprep.subr.mxu0 0.0
    %v1903 = vand.u32 %v297, 4294901760
    %v1904 = vsub.f32 %v297, %v1903
    %v1905 = vand.u32 %v1904, 4294901760
    %1906 = vmatpush1.msra.mxu0 %v1905
    %1907 = vmatprep.subr.mxu0 0.0
    %1908 = vmatpush1.msra.mxu0 0.0
    %1909 = vmatprep.subr.mxu0 0.0
    %1910 = vmatpush1.msra.mxu0 0.0
    %1911 = vmatprep.subr.mxu0 0.0
    %1912 = vmatpush1.msra.mxu0 0.0
    %1913 = vmatprep.subr.mxu0 0.0
    %1914 = vmatpush1.msra.mxu0 0.0
    %1915 = vmatprep.subr.mxu0 0.0
    %1916 = vmatpush1.msra.mxu0 0.0
    %1917 = vmatprep.subr.mxu0 0.0
    %1918 = vmatpush1.msra.mxu0 0.0
    %1919 = vmatprep.subr.mxu0 0.0
    %1920 = vmatpush1.msra.mxu0 0.0
    %1921 = vmatprep.subr.mxu0 0.0
    %1922 = vmatpush1.msra.mxu0 0.0
    %1923 = vmatprep.subr.mxu0 0.0
    %1924 = vmatpush1.msra.mxu0 0.0
    %1925 = vmatprep.subr.mxu0 0.0
    %1926 = vmatpush1.msra.mxu0 0.0
    %1927 = vmatprep.subr.mxu0 0.0
    %1928 = vmatpush1.msra.mxu0 0.0
    %1929 = vmatprep.subr.mxu0 0.0
    %1930 = vmatpush1.msra.mxu0 0.0
    %1931 = vmatprep.subr.mxu0 0.0
    %1932 = vmatpush1.msra.mxu0 0.0
    %1933 = vmatprep.subr.mxu0 0.0
    %1934 = vmatpush1.msra.mxu0 0.0
    %1935 = vmatprep.subr.mxu0 0.0
    %1936 = vmatpush1.msra.mxu0 0.0
    %1937 = vmatprep.subr.mxu0 0.0
    %1938 = vmatpush1.msra.mxu0 0.0
    %1939 = vmatprep.subr.mxu0 0.0
    %1940 = vmatpush1.msra.mxu0 0.0
    %1941 = vmatprep.subr.mxu0 0.0
    %1942 = vmatpush1.msra.mxu0 0.0
    %1943 = vmatprep.subr.mxu0 0.0
    %1944 = vmatpush1.msra.mxu0 0.0
    %1945 = vmatprep.subr.mxu0 0.0
    %1946 = vmatpush1.msra.mxu0 0.0
    %1947 = vmatprep.subr.mxu0 0.0
    %1948 = vmatpush1.msra.mxu0 0.0
    %1949 = vmatprep.subr.mxu0 0.0
    %1950 = vmatpush1.msra.mxu0 0.0
    %1951 = vmatprep.subr.mxu0 0.0
    %1952 = vmatpush1.msra.mxu0 0.0
    %1953 = vmatprep.subr.mxu0 0.0
    %1954 = vmatpush1.msra.mxu0 0.0
    %1955 = vmatprep.subr.mxu0 0.0
    %1956 = vmatpush1.msra.mxu0 0.0
    %1957 = vmatprep.subr.mxu0 0.0
    %1958 = vmatpush1.msra.mxu0 0.0
    %1959 = vmatprep.subr.mxu0 0.0
    %1960 = vmatpush1.msra.mxu0 0.0
    %1961 = vmatprep.subr.mxu0 0.0
    %1962 = vmatpush1.msra.mxu0 0.0
    %1963 = vmatprep.mubr.f32.mxu0 0.0
    %v1964 = vand.u32 %v300, 4294901760
    %1965 = vmatmul.mubr.f32.gmra.mrb[0].mxu0 %v1964
    %v1966 = vpop.f32.mrb[0].mxu0
    %v1967 = vadd.f32 %v1588, %v1966
    %v1968 = vpop.f32.mrb[0].mxu0
    %1969 = vmatprep.mubr.f32.mxu0 0.0
    %v1970 = vand.u32 %v303, 4294901760
    %1971 = vmatmul.mubr.f32.gmra.mrb[0].mxu0 %v1970
    %v1972 = vpop.f32.mrb[0].mxu0
    %v1973 = vadd.f32 %v1596, %v1972
    %v1974 = vpop.f32.mrb[0].mxu0
    %1975 = vmatprep.mubr.f32.mxu0 0.0
    %v1976 = vand.u32 %v306, 4294901760
    %1977 = vmatmul.mubr.f32.gmra.mrb[0].mxu0 %v1976
    %v1978 = vpop.f32.mrb[0].mxu0
    %v1979 = vadd.f32 %v1604, %v1978
    %v1980 = vpop.f32.mrb[0].mxu0
    %1981 = vmatprep.mubr.f32.mxu0 0.0
    %v1982 = vand.u32 %v309, 4294901760
    %1983 = vmatmul.mubr.f32.gmra.mrb[0].mxu0 %v1982
    %v1984 = vpop.f32.mrb[0].mxu0
    %v1985 = vadd.f32 %v1612, %v1984
    %v1986 = vpop.f32.mrb[0].mxu0
    %1987 = vmatprep.mubr.f32.mxu0 0.0
    %v1988 = vand.u32 %v312, 4294901760
    %1989 = vmatmul.mubr.f32.gmra.mrb[0].mxu0 %v1988
    %v1990 = vpop.f32.mrb[0].mxu0
    %v1991 = vadd.f32 %v1620, %v1990
    %v1992 = vpop.f32.mrb[0].mxu0
    %1993 = vmatprep.mubr.f32.mxu0 0.0
    %v1994 = vand.u32 %v315, 4294901760
    %1995 = vmatmul.mubr.f32.gmra.mrb[0].mxu0 %v1994
    %v1996 = vpop.f32.mrb[0].mxu0
    %v1997 = vadd.f32 %v1628, %v1996
    %v1998 = vpop.f32.mrb[0].mxu0
    %1999 = vmatprep.mubr.f32.mxu0 0.0
    %v2000 = vand.u32 %v318, 4294901760
    %2001 = vmatmul.mubr.f32.gmra.mrb[0].mxu0 %v2000
    %v2002 = vpop.f32.mrb[0].mxu0
    %v2003 = vadd.f32 %v1636, %v2002
    %v2004 = vpop.f32.mrb[0].mxu0
    %2005 = vmatprep.mubr.f32.mxu0 0.0
    %v2006 = vand.u32 %v321, 4294901760
    %2007 = vmatmul.mubr.f32.gmra.mrb[0].mxu0 %v2006
    %v2008 = vpop.f32.mrb[0].mxu0
    %v2009 = vadd.f32 %v1644, %v2008
    %v2010 = vpop.f32.mrb[0].mxu0
    %2011 = vmatprep.mubr.f32.mxu0 0.0
    %v2012 = vand.u32 %v324, 4294901760
    %2013 = vmatmul.mubr.f32.gmra.mrb[0].mxu0 %v2012
    %v2014 = vpop.f32.mrb[0].mxu0
    %v2015 = vadd.f32 %v1652, %v2014
    %v2016 = vpop.f32.mrb[0].mxu0
    %2017 = vmatprep.mubr.f32.mxu0 0.0
    %v2018 = vand.u32 %v327, 4294901760
    %2019 = vmatmul.mubr.f32.gmra.mrb[0].mxu0 %v2018
    %v2020 = vpop.f32.mrb[0].mxu0
    %v2021 = vadd.f32 %v1660, %v2020
    %v2022 = vpop.f32.mrb[0].mxu0
    %2023 = vmatprep.mubr.f32.mxu0 0.0
    %v2024 = vand.u32 %v330, 4294901760
    %2025 = vmatmul.mubr.f32.gmra.mrb[0].mxu0 %v2024
    %v2026 = vpop.f32.mrb[0].mxu0
    %v2027 = vadd.f32 %v1668, %v2026
    %v2028 = vpop.f32.mrb[0].mxu0
    %2029 = vmatprep.mubr.f32.mxu0 0.0
    %v2030 = vand.u32 %v333, 4294901760
    %2031 = vmatmul.mubr.f32.gmra.mrb[0].mxu0 %v2030
    %v2032 = vpop.f32.mrb[0].mxu0
    %v2033 = vadd.f32 %v1676, %v2032
    %v2034 = vpop.f32.mrb[0].mxu0
    %2035 = vmatprep.mubr.f32.mxu0 0.0
    %v2036 = vand.u32 %v336, 4294901760
    %2037 = vmatmul.mubr.f32.gmra.mrb[0].mxu0 %v2036
    %v2038 = vpop.f32.mrb[0].mxu0
    %v2039 = vadd.f32 %v1684, %v2038
    %v2040 = vpop.f32.mrb[0].mxu0
    %2041 = vmatprep.mubr.f32.mxu0 0.0
    %v2042 = vand.u32 %v339, 4294901760
    %2043 = vmatmul.mubr.f32.gmra.mrb[0].mxu0 %v2042
    %v2044 = vpop.f32.mrb[0].mxu0
    %v2045 = vadd.f32 %v1692, %v2044
    %v2046 = vpop.f32.mrb[0].mxu0
    %2047 = vmatprep.mubr.f32.mxu0 0.0
    %v2048 = vand.u32 %v342, 4294901760
    %2049 = vmatmul.mubr.f32.gmra.mrb[0].mxu0 %v2048
    %v2050 = vpop.f32.mrb[0].mxu0
    %v2051 = vadd.f32 %v1700, %v2050
    %v2052 = vpop.f32.mrb[0].mxu0
    %2053 = vmatprep.mubr.f32.mxu0 0.0
    %v2054 = vand.u32 %v345, 4294901760
    %2055 = vmatmul.mubr.f32.gmra.mrb[0].mxu0 %v2054
    %v2056 = vpop.f32.mrb[0].mxu0
    %v2057 = vadd.f32 %v1708, %v2056
    %v2058 = vpop.f32.mrb[0].mxu0
    %2059 = vmatprep.mubr.f32.mxu0 0.0
    %v2060 = vand.u32 %v348, 4294901760
    %2061 = vmatmul.mubr.f32.gmra.mrb[0].mxu0 %v2060
    %v2062 = vpop.f32.mrb[0].mxu0
    %v2063 = vadd.f32 %v1716, %v2062
    %v2064 = vpop.f32.mrb[0].mxu0
    %2065 = vmatprep.mubr.f32.mxu0 0.0
    %v2066 = vand.u32 %v351, 4294901760
    %2067 = vmatmul.mubr.f32.gmra.mrb[0].mxu0 %v2066
    %v2068 = vpop.f32.mrb[0].mxu0
    %v2069 = vadd.f32 %v1724, %v2068
    %v2070 = vpop.f32.mrb[0].mxu0
    %2071 = vmatprep.mubr.f32.mxu0 0.0
    %v2072 = vand.u32 %v354, 4294901760
    %2073 = vmatmul.mubr.f32.gmra.mrb[0].mxu0 %v2072
    %v2074 = vpop.f32.mrb[0].mxu0
    %v2075 = vadd.f32 %v1732, %v2074
    %v2076 = vpop.f32.mrb[0].mxu0
    %2077 = vmatprep.mubr.f32.mxu0 0.0
    %v2078 = vand.u32 %v357, 4294901760
    %2079 = vmatmul.mubr.f32.gmra.mrb[0].mxu0 %v2078
    %v2080 = vpop.f32.mrb[0].mxu0
    %v2081 = vadd.f32 %v1740, %v2080
    %v2082 = vpop.f32.mrb[0].mxu0
    %2083 = vmatprep.mubr.f32.mxu0 0.0
    %v2084 = vand.u32 %v360, 4294901760
    %2085 = vmatmul.mubr.f32.gmra.mrb[0].mxu0 %v2084
    %v2086 = vpop.f32.mrb[0].mxu0
    %v2087 = vadd.f32 %v1748, %v2086
    %v2088 = vpop.f32.mrb[0].mxu0
    %2089 = vmatprep.mubr.f32.mxu0 0.0
    %v2090 = vand.u32 %v363, 4294901760
    %2091 = vmatmul.mubr.f32.gmra.mrb[0].mxu0 %v2090
    %v2092 = vpop.f32.mrb[0].mxu0
    %v2093 = vadd.f32 %v1756, %v2092
    %v2094 = vpop.f32.mrb[0].mxu0
    %2095 = vmatprep.mubr.f32.mxu0 0.0
    %v2096 = vand.u32 %v366, 4294901760
    %2097 = vmatmul.mubr.f32.gmra.mrb[0].mxu0 %v2096
    %v2098 = vpop.f32.mrb[0].mxu0
    %v2099 = vadd.f32 %v1764, %v2098
    %v2100 = vpop.f32.mrb[0].mxu0
    %2101 = vmatprep.mubr.f32.mxu0 0.0
    %v2102 = vand.u32 %v369, 4294901760
    %2103 = vmatmul.mubr.f32.gmra.mrb[0].mxu0 %v2102
    %v2104 = vpop.f32.mrb[0].mxu0
    %v2105 = vadd.f32 %v1772, %v2104
    %v2106 = vpop.f32.mrb[0].mxu0
    %2107 = vmatprep.mubr.f32.mxu0 0.0
    %v2108 = vand.u32 %v372, 4294901760
    %2109 = vmatmul.mubr.f32.gmra.mrb[0].mxu0 %v2108
    %v2110 = vpop.f32.mrb[0].mxu0
    %v2111 = vadd.f32 %v1780, %v2110
    %v2112 = vpop.f32.mrb[0].mxu0
    %2113 = vmatprep.mubr.f32.mxu0 0.0
    %v2114 = vand.u32 %v375, 4294901760
    %2115 = vmatmul.mubr.f32.gmra.mrb[0].mxu0 %v2114
    %v2116 = vpop.f32.mrb[0].mxu0
    %v2117 = vadd.f32 %v1788, %v2116
    %v2118 = vpop.f32.mrb[0].mxu0
    %2119 = vmatprep.mubr.f32.mxu0 0.0
    %v2120 = vand.u32 %v378, 4294901760
    %2121 = vmatmul.mubr.f32.gmra.mrb[0].mxu0 %v2120
    %v2122 = vpop.f32.mrb[0].mxu0
    %v2123 = vadd.f32 %v1796, %v2122
    %v2124 = vpop.f32.mrb[0].mxu0
    %2125 = vmatprep.mubr.f32.mxu0 0.0
    %v2126 = vand.u32 %v381, 4294901760
    %2127 = vmatmul.mubr.f32.gmra.mrb[0].mxu0 %v2126
    %v2128 = vpop.f32.mrb[0].mxu0
    %v2129 = vadd.f32 %v1804, %v2128
    %v2130 = vpop.f32.mrb[0].mxu0
    %2131 = vmatprep.mubr.f32.mxu0 0.0
    %v2132 = vand.u32 %v384, 4294901760
    %2133 = vmatmul.mubr.f32.gmra.mrb[0].mxu0 %v2132
    %v2134 = vpop.f32.mrb[0].mxu0
    %v2135 = vadd.f32 %v1812, %v2134
    %v2136 = vpop.f32.mrb[0].mxu0
    %2137 = vmatprep.mubr.f32.mxu0 0.0
    %v2138 = vand.u32 %v387, 4294901760
    %2139 = vmatmul.mubr.f32.gmra.mrb[0].mxu0 %v2138
    %v2140 = vpop.f32.mrb[0].mxu0
    %v2141 = vadd.f32 %v1820, %v2140
    %v2142 = vpop.f32.mrb[0].mxu0
    %2143 = vmatprep.mubr.f32.mxu0 0.0
    %v2144 = vand.u32 %v390, 4294901760
    %2145 = vmatmul.mubr.f32.gmra.mrb[0].mxu0 %v2144
    %v2146 = vpop.f32.mrb[0].mxu0
    %v2147 = vadd.f32 %v1828, %v2146
    %v2148 = vpop.f32.mrb[0].mxu0
    %2149 = vmatprep.mubr.f32.mxu0 0.0
    %v2150 = vand.u32 %v393, 4294901760
    %2151 = vmatmul.mubr.f32.gmra.mrb[0].mxu0 %v2150
    %v2152 = vpop.f32.mrb[0].mxu0
    %v2153 = vadd.f32 %v1836, %v2152
    %v2154 = vpop.f32.mrb[0].mxu0
    %2155 = vmatprep.mubr.f32.mxu0 0.0
    %v2156 = vand.u32 %v396, 4294901760
    %2157 = vmatmul.mubr.f32.gmra.mrb[0].mxu0 %v2156
    %v2158 = vpop.f32.mrb[0].mxu0
    %v2159 = vadd.f32 %v1844, %v2158
    %v2160 = vpop.f32.mrb[0].mxu0
    %2161 = vmatprep.mubr.f32.mxu0 0.0
    %v2162 = vand.u32 %v399, 4294901760
    %2163 = vmatmul.mubr.f32.gmra.mrb[0].mxu0 %v2162
    %v2164 = vpop.f32.mrb[0].mxu0
    %v2165 = vadd.f32 %v1852, %v2164
    %v2166 = vpop.f32.mrb[0].mxu0
    %2167 = vmatprep.mubr.f32.mxu0 0.0
    %v2168 = vand.u32 %v402, 4294901760
    %2169 = vmatmul.mubr.f32.gmra.mrb[0].mxu0 %v2168
    %v2170 = vpop.f32.mrb[0].mxu0
    %v2171 = vadd.f32 %v1860, %v2170
    %v2172 = vpop.f32.mrb[0].mxu0
    %2173 = vmatprep.mubr.f32.mxu0 0.0
    %v2174 = vand.u32 %v405, 4294901760
    %2175 = vmatmul.mubr.f32.gmra.mrb[0].mxu0 %v2174
    %v2176 = vpop.f32.mrb[0].mxu0
    %v2177 = vadd.f32 %v1868, %v2176
    %v2178 = vpop.f32.mrb[0].mxu0
    %2179 = vmatprep.mubr.f32.mxu0 0.0
    %v2180 = vand.u32 %v408, 4294901760
    %2181 = vmatmul.mubr.f32.gmra.mrb[0].mxu0 %v2180
    %v2182 = vpop.f32.mrb[0].mxu0
    %v2183 = vadd.f32 %v1876, %v2182
    %v2184 = vpop.f32.mrb[0].mxu0
    %2185 = vmatprep.mubr.f32.mxu0 0.0
    %v2186 = vand.u32 %v411, 4294901760
    %2187 = vmatmul.mubr.f32.gmra.mrb[0].mxu0 %v2186
    %v2188 = vpop.f32.mrb[0].mxu0
    %v2189 = vadd.f32 %v1884, %v2188
    %v2190 = vpop.f32.mrb[0].mxu0
    %2191 = vdwg.mxu0
    %2192 = vmatprep.subr.mxu0 0.0
    %v2193 = vand.u32 %v294, 4294901760
    %2194 = vmatpush1.msra.mxu0 %v2193
    %2195 = vmatprep.subr.mxu0 0.0
    %v2196 = vand.u32 %v295, 4294901760
    %2197 = vmatpush1.msra.mxu0 %v2196
    %2198 = vmatprep.subr.mxu0 0.0
    %v2199 = vand.u32 %v296, 4294901760
    %2200 = vmatpush1.msra.mxu0 %v2199
    %2201 = vmatprep.subr.mxu0 0.0
    %v2202 = vand.u32 %v297, 4294901760
    %2203 = vmatpush1.msra.mxu0 %v2202
    %2204 = vmatprep.subr.mxu0 0.0
    %2205 = vmatpush1.msra.mxu0 0.0
    %2206 = vmatprep.subr.mxu0 0.0
    %2207 = vmatpush1.msra.mxu0 0.0
    %2208 = vmatprep.subr.mxu0 0.0
    %2209 = vmatpush1.msra.mxu0 0.0
    %2210 = vmatprep.subr.mxu0 0.0
    %2211 = vmatpush1.msra.mxu0 0.0
    %2212 = vmatprep.subr.mxu0 0.0
    %2213 = vmatpush1.msra.mxu0 0.0
    %2214 = vmatprep.subr.mxu0 0.0
    %2215 = vmatpush1.msra.mxu0 0.0
    %2216 = vmatprep.subr.mxu0 0.0
    %2217 = vmatpush1.msra.mxu0 0.0
    %2218 = vmatprep.subr.mxu0 0.0
    %2219 = vmatpush1.msra.mxu0 0.0
    %2220 = vmatprep.subr.mxu0 0.0
    %2221 = vmatpush1.msra.mxu0 0.0
    %2222 = vmatprep.subr.mxu0 0.0
    %2223 = vmatpush1.msra.mxu0 0.0
    %2224 = vmatprep.subr.mxu0 0.0
    %2225 = vmatpush1.msra.mxu0 0.0
    %2226 = vmatprep.subr.mxu0 0.0
    %2227 = vmatpush1.msra.mxu0 0.0
    %2228 = vmatprep.subr.mxu0 0.0
    %2229 = vmatpush1.msra.mxu0 0.0
    %2230 = vmatprep.subr.mxu0 0.0
    %2231 = vmatpush1.msra.mxu0 0.0
    %2232 = vmatprep.subr.mxu0 0.0
    %2233 = vmatpush1.msra.mxu0 0.0
    %2234 = vmatprep.subr.mxu0 0.0
    %2235 = vmatpush1.msra.mxu0 0.0
    %2236 = vmatprep.subr.mxu0 0.0
    %2237 = vmatpush1.msra.mxu0 0.0
    %2238 = vmatprep.subr.mxu0 0.0
    %2239 = vmatpush1.msra.mxu0 0.0
    %2240 = vmatprep.subr.mxu0 0.0
    %2241 = vmatpush1.msra.mxu0 0.0
    %2242 = vmatprep.subr.mxu0 0.0
    %2243 = vmatpush1.msra.mxu0 0.0
    %2244 = vmatprep.subr.mxu0 0.0
    %2245 = vmatpush1.msra.mxu0 0.0
    %2246 = vmatprep.subr.mxu0 0.0
    %2247 = vmatpush1.msra.mxu0 0.0
    %2248 = vmatprep.subr.mxu0 0.0
    %2249 = vmatpush1.msra.mxu0 0.0
    %2250 = vmatprep.subr.mxu0 0.0
    %2251 = vmatpush1.msra.mxu0 0.0
    %2252 = vmatprep.subr.mxu0 0.0
    %2253 = vmatpush1.msra.mxu0 0.0
    %2254 = vmatprep.subr.mxu0 0.0
    %2255 = vmatpush1.msra.mxu0 0.0
    %2256 = vmatprep.subr.mxu0 0.0
    %2257 = vmatpush1.msra.mxu0 0.0
    %2258 = vmatprep.subr.mxu0 0.0
    %2259 = vmatpush1.msra.mxu0 0.0
    %2260 = vmatprep.mubr.f32.mxu0 0.0
    %v2261 = vand.u32 %v300, 4294901760
    %2262 = vmatmul.mubr.f32.gmra.mrb[0].mxu0 %v2261
    %v2263 = vpop.f32.mrb[0].mxu0
    %v2264 = vadd.f32 %v1967, %v2263
    %v2265 = vpop.f32.mrb[0].mxu0
    %2266 = vmatprep.mubr.f32.mxu0 0.0
    %v2267 = vand.u32 %v303, 4294901760
    %2268 = vmatmul.mubr.f32.gmra.mrb[0].mxu0 %v2267
    %v2269 = vpop.f32.mrb[0].mxu0
    %v2270 = vadd.f32 %v1973, %v2269
    %v2271 = vpop.f32.mrb[0].mxu0
    %2272 = vmatprep.mubr.f32.mxu0 0.0
    %v2273 = vand.u32 %v306, 4294901760
    %2274 = vmatmul.mubr.f32.gmra.mrb[0].mxu0 %v2273
    %v2275 = vpop.f32.mrb[0].mxu0
    %v2276 = vadd.f32 %v1979, %v2275
    %v2277 = vpop.f32.mrb[0].mxu0
    %2278 = vmatprep.mubr.f32.mxu0 0.0
    %v2279 = vand.u32 %v309, 4294901760
    %2280 = vmatmul.mubr.f32.gmra.mrb[0].mxu0 %v2279
    %v2281 = vpop.f32.mrb[0].mxu0
    %v2282 = vadd.f32 %v1985, %v2281
    %v2283 = vpop.f32.mrb[0].mxu0
    %2284 = vmatprep.mubr.f32.mxu0 0.0
    %v2285 = vand.u32 %v312, 4294901760
    %2286 = vmatmul.mubr.f32.gmra.mrb[0].mxu0 %v2285
    %v2287 = vpop.f32.mrb[0].mxu0
    %v2288 = vadd.f32 %v1991, %v2287
    %v2289 = vpop.f32.mrb[0].mxu0
    %2290 = vmatprep.mubr.f32.mxu0 0.0
    %v2291 = vand.u32 %v315, 4294901760
    %2292 = vmatmul.mubr.f32.gmra.mrb[0].mxu0 %v2291
    %v2293 = vpop.f32.mrb[0].mxu0
    %v2294 = vadd.f32 %v1997, %v2293
    %v2295 = vpop.f32.mrb[0].mxu0
    %2296 = vmatprep.mubr.f32.mxu0 0.0
    %v2297 = vand.u32 %v318, 4294901760
    %2298 = vmatmul.mubr.f32.gmra.mrb[0].mxu0 %v2297
    %v2299 = vpop.f32.mrb[0].mxu0
    %v2300 = vadd.f32 %v2003, %v2299
    %v2301 = vpop.f32.mrb[0].mxu0
    %2302 = vmatprep.mubr.f32.mxu0 0.0
    %v2303 = vand.u32 %v321, 4294901760
    %2304 = vmatmul.mubr.f32.gmra.mrb[0].mxu0 %v2303
    %v2305 = vpop.f32.mrb[0].mxu0
    %v2306 = vadd.f32 %v2009, %v2305
    %v2307 = vpop.f32.mrb[0].mxu0
    %2308 = vmatprep.mubr.f32.mxu0 0.0
    %v2309 = vand.u32 %v324, 4294901760
    %2310 = vmatmul.mubr.f32.gmra.mrb[0].mxu0 %v2309
    %v2311 = vpop.f32.mrb[0].mxu0
    %v2312 = vadd.f32 %v2015, %v2311
    %v2313 = vpop.f32.mrb[0].mxu0
    %2314 = vmatprep.mubr.f32.mxu0 0.0
    %v2315 = vand.u32 %v327, 4294901760
    %2316 = vmatmul.mubr.f32.gmra.mrb[0].mxu0 %v2315
    %v2317 = vpop.f32.mrb[0].mxu0
    %v2318 = vadd.f32 %v2021, %v2317
    %v2319 = vpop.f32.mrb[0].mxu0
    %2320 = vmatprep.mubr.f32.mxu0 0.0
    %v2321 = vand.u32 %v330, 4294901760
    %2322 = vmatmul.mubr.f32.gmra.mrb[0].mxu0 %v2321
    %v2323 = vpop.f32.mrb[0].mxu0
    %v2324 = vadd.f32 %v2027, %v2323
    %v2325 = vpop.f32.mrb[0].mxu0
    %2326 = vmatprep.mubr.f32.mxu0 0.0
    %v2327 = vand.u32 %v333, 4294901760
    %2328 = vmatmul.mubr.f32.gmra.mrb[0].mxu0 %v2327
    %v2329 = vpop.f32.mrb[0].mxu0
    %v2330 = vadd.f32 %v2033, %v2329
    %v2331 = vpop.f32.mrb[0].mxu0
    %2332 = vmatprep.mubr.f32.mxu0 0.0
    %v2333 = vand.u32 %v336, 4294901760
    %2334 = vmatmul.mubr.f32.gmra.mrb[0].mxu0 %v2333
    %v2335 = vpop.f32.mrb[0].mxu0
    %v2336 = vadd.f32 %v2039, %v2335
    %v2337 = vpop.f32.mrb[0].mxu0
    %2338 = vmatprep.mubr.f32.mxu0 0.0
    %v2339 = vand.u32 %v339, 4294901760
    %2340 = vmatmul.mubr.f32.gmra.mrb[0].mxu0 %v2339
    %v2341 = vpop.f32.mrb[0].mxu0
    %v2342 = vadd.f32 %v2045, %v2341
    %v2343 = vpop.f32.mrb[0].mxu0
    %2344 = vmatprep.mubr.f32.mxu0 0.0
    %v2345 = vand.u32 %v342, 4294901760
    %2346 = vmatmul.mubr.f32.gmra.mrb[0].mxu0 %v2345
    %v2347 = vpop.f32.mrb[0].mxu0
    %v2348 = vadd.f32 %v2051, %v2347
    %v2349 = vpop.f32.mrb[0].mxu0
    %2350 = vmatprep.mubr.f32.mxu0 0.0
    %v2351 = vand.u32 %v345, 4294901760
    %2352 = vmatmul.mubr.f32.gmra.mrb[0].mxu0 %v2351
    %v2353 = vpop.f32.mrb[0].mxu0
    %v2354 = vadd.f32 %v2057, %v2353
    %v2355 = vpop.f32.mrb[0].mxu0
    %2356 = vmatprep.mubr.f32.mxu0 0.0
    %v2357 = vand.u32 %v348, 4294901760
    %2358 = vmatmul.mubr.f32.gmra.mrb[0].mxu0 %v2357
    %v2359 = vpop.f32.mrb[0].mxu0
    %v2360 = vadd.f32 %v2063, %v2359
    %v2361 = vpop.f32.mrb[0].mxu0
    %2362 = vmatprep.mubr.f32.mxu0 0.0
    %v2363 = vand.u32 %v351, 4294901760
    %2364 = vmatmul.mubr.f32.gmra.mrb[0].mxu0 %v2363
    %v2365 = vpop.f32.mrb[0].mxu0
    %v2366 = vadd.f32 %v2069, %v2365
    %v2367 = vpop.f32.mrb[0].mxu0
    %2368 = vmatprep.mubr.f32.mxu0 0.0
    %v2369 = vand.u32 %v354, 4294901760
    %2370 = vmatmul.mubr.f32.gmra.mrb[0].mxu0 %v2369
    %v2371 = vpop.f32.mrb[0].mxu0
    %v2372 = vadd.f32 %v2075, %v2371
    %v2373 = vpop.f32.mrb[0].mxu0
    %2374 = vmatprep.mubr.f32.mxu0 0.0
    %v2375 = vand.u32 %v357, 4294901760
    %2376 = vmatmul.mubr.f32.gmra.mrb[0].mxu0 %v2375
    %v2377 = vpop.f32.mrb[0].mxu0
    %v2378 = vadd.f32 %v2081, %v2377
    %v2379 = vpop.f32.mrb[0].mxu0
    %2380 = vmatprep.mubr.f32.mxu0 0.0
    %v2381 = vand.u32 %v360, 4294901760
    %2382 = vmatmul.mubr.f32.gmra.mrb[0].mxu0 %v2381
    %v2383 = vpop.f32.mrb[0].mxu0
    %v2384 = vadd.f32 %v2087, %v2383
    %v2385 = vpop.f32.mrb[0].mxu0
    %2386 = vmatprep.mubr.f32.mxu0 0.0
    %v2387 = vand.u32 %v363, 4294901760
    %2388 = vmatmul.mubr.f32.gmra.mrb[0].mxu0 %v2387
    %v2389 = vpop.f32.mrb[0].mxu0
    %v2390 = vadd.f32 %v2093, %v2389
    %v2391 = vpop.f32.mrb[0].mxu0
    %2392 = vmatprep.mubr.f32.mxu0 0.0
    %v2393 = vand.u32 %v366, 4294901760
    %2394 = vmatmul.mubr.f32.gmra.mrb[0].mxu0 %v2393
    %v2395 = vpop.f32.mrb[0].mxu0
    %v2396 = vadd.f32 %v2099, %v2395
    %v2397 = vpop.f32.mrb[0].mxu0
    %2398 = vmatprep.mubr.f32.mxu0 0.0
    %v2399 = vand.u32 %v369, 4294901760
    %2400 = vmatmul.mubr.f32.gmra.mrb[0].mxu0 %v2399
    %v2401 = vpop.f32.mrb[0].mxu0
    %v2402 = vadd.f32 %v2105, %v2401
    %v2403 = vpop.f32.mrb[0].mxu0
    %2404 = vmatprep.mubr.f32.mxu0 0.0
    %v2405 = vand.u32 %v372, 4294901760
    %2406 = vmatmul.mubr.f32.gmra.mrb[0].mxu0 %v2405
    %v2407 = vpop.f32.mrb[0].mxu0
    %v2408 = vadd.f32 %v2111, %v2407
    %v2409 = vpop.f32.mrb[0].mxu0
    %2410 = vmatprep.mubr.f32.mxu0 0.0
    %v2411 = vand.u32 %v375, 4294901760
    %2412 = vmatmul.mubr.f32.gmra.mrb[0].mxu0 %v2411
    %v2413 = vpop.f32.mrb[0].mxu0
    %v2414 = vadd.f32 %v2117, %v2413
    %v2415 = vpop.f32.mrb[0].mxu0
    %2416 = vmatprep.mubr.f32.mxu0 0.0
    %v2417 = vand.u32 %v378, 4294901760
    %2418 = vmatmul.mubr.f32.gmra.mrb[0].mxu0 %v2417
    %v2419 = vpop.f32.mrb[0].mxu0
    %v2420 = vadd.f32 %v2123, %v2419
    %v2421 = vpop.f32.mrb[0].mxu0
    %2422 = vmatprep.mubr.f32.mxu0 0.0
    %v2423 = vand.u32 %v381, 4294901760
    %2424 = vmatmul.mubr.f32.gmra.mrb[0].mxu0 %v2423
    %v2425 = vpop.f32.mrb[0].mxu0
    %v2426 = vadd.f32 %v2129, %v2425
    %v2427 = vpop.f32.mrb[0].mxu0
    %2428 = vmatprep.mubr.f32.mxu0 0.0
    %v2429 = vand.u32 %v384, 4294901760
    %2430 = vmatmul.mubr.f32.gmra.mrb[0].mxu0 %v2429
    %v2431 = vpop.f32.mrb[0].mxu0
    %v2432 = vadd.f32 %v2135, %v2431
    %v2433 = vpop.f32.mrb[0].mxu0
    %2434 = vmatprep.mubr.f32.mxu0 0.0
    %v2435 = vand.u32 %v387, 4294901760
    %2436 = vmatmul.mubr.f32.gmra.mrb[0].mxu0 %v2435
    %v2437 = vpop.f32.mrb[0].mxu0
    %v2438 = vadd.f32 %v2141, %v2437
    %v2439 = vpop.f32.mrb[0].mxu0
    %2440 = vmatprep.mubr.f32.mxu0 0.0
    %v2441 = vand.u32 %v390, 4294901760
    %2442 = vmatmul.mubr.f32.gmra.mrb[0].mxu0 %v2441
    %v2443 = vpop.f32.mrb[0].mxu0
    %v2444 = vadd.f32 %v2147, %v2443
    %v2445 = vpop.f32.mrb[0].mxu0
    %2446 = vmatprep.mubr.f32.mxu0 0.0
    %v2447 = vand.u32 %v393, 4294901760
    %2448 = vmatmul.mubr.f32.gmra.mrb[0].mxu0 %v2447
    %v2449 = vpop.f32.mrb[0].mxu0
    %v2450 = vadd.f32 %v2153, %v2449
    %v2451 = vpop.f32.mrb[0].mxu0
    %2452 = vmatprep.mubr.f32.mxu0 0.0
    %v2453 = vand.u32 %v396, 4294901760
    %2454 = vmatmul.mubr.f32.gmra.mrb[0].mxu0 %v2453
    %v2455 = vpop.f32.mrb[0].mxu0
    %v2456 = vadd.f32 %v2159, %v2455
    %v2457 = vpop.f32.mrb[0].mxu0
    %2458 = vmatprep.mubr.f32.mxu0 0.0
    %v2459 = vand.u32 %v399, 4294901760
    %2460 = vmatmul.mubr.f32.gmra.mrb[0].mxu0 %v2459
    %v2461 = vpop.f32.mrb[0].mxu0
    %v2462 = vadd.f32 %v2165, %v2461
    %v2463 = vpop.f32.mrb[0].mxu0
    %2464 = vmatprep.mubr.f32.mxu0 0.0
    %v2465 = vand.u32 %v402, 4294901760
    %2466 = vmatmul.mubr.f32.gmra.mrb[0].mxu0 %v2465
    %v2467 = vpop.f32.mrb[0].mxu0
    %v2468 = vadd.f32 %v2171, %v2467
    %v2469 = vpop.f32.mrb[0].mxu0
    %2470 = vmatprep.mubr.f32.mxu0 0.0
    %v2471 = vand.u32 %v405, 4294901760
    %2472 = vmatmul.mubr.f32.gmra.mrb[0].mxu0 %v2471
    %v2473 = vpop.f32.mrb[0].mxu0
    %v2474 = vadd.f32 %v2177, %v2473
    %v2475 = vpop.f32.mrb[0].mxu0
    %2476 = vmatprep.mubr.f32.mxu0 0.0
    %v2477 = vand.u32 %v408, 4294901760
    %2478 = vmatmul.mubr.f32.gmra.mrb[0].mxu0 %v2477
    %v2479 = vpop.f32.mrb[0].mxu0
    %v2480 = vadd.f32 %v2183, %v2479
    %v2481 = vpop.f32.mrb[0].mxu0
    %2482 = vmatprep.mubr.f32.mxu0 0.0
    %v2483 = vand.u32 %v411, 4294901760
    %2484 = vmatmul.mubr.f32.gmra.mrb[0].mxu0 %v2483
    %v2485 = vpop.f32.mrb[0].mxu0
    %v2486 = vadd.f32 %v2189, %v2485
    %v2487 = vpop.f32.mrb[0].mxu0
    %2488 = vdwg.mxu0
    %v2490 = vsel %vm298, %v176, 0
    %v2493 = vsel %vm298, %v177, 0
    %v2496 = vsel %vm298, %v178, 0
    %v2499 = vsel %vm298, %v179, 0
    %v2502 = vsel %vm298, %v180, 0
    %v2505 = vsel %vm298, %v181, 0
    %v2508 = vsel %vm298, %v182, 0
    %v2511 = vsel %vm298, %v183, 0
    %v2514 = vsel %vm298, %v184, 0
    %v2517 = vsel %vm298, %v185, 0
    %v2520 = vsel %vm298, %v186, 0
    %v2523 = vsel %vm298, %v187, 0
    %v2526 = vsel %vm298, %v188, 0
    %v2529 = vsel %vm298, %v189, 0
    %v2532 = vsel %vm298, %v190, 0
    %v2535 = vsel %vm298, %v191, 0
    %v2538 = vsel %vm298, %v192, 0
    %v2541 = vsel %vm298, %v193, 0
    %v2544 = vsel %vm298, %v194, 0
    %v2547 = vsel %vm298, %v195, 0
    %v2550 = vsel %vm298, %v196, 0
    %v2553 = vsel %vm298, %v197, 0
    %v2556 = vsel %vm298, %v198, 0
    %v2559 = vsel %vm298, %v199, 0
    %v2562 = vsel %vm298, %v200, 0
    %v2565 = vsel %vm298, %v201, 0
    %v2568 = vsel %vm298, %v202, 0
    %v2571 = vsel %vm298, %v203, 0
    %v2574 = vsel %vm298, %v204, 0
    %v2577 = vsel %vm298, %v205, 0
    %v2580 = vsel %vm298, %v206, 0
    %v2583 = vsel %vm298, %v207, 0
    %v2586 = vsel %vm298, %v208, 0
    %v2589 = vsel %vm298, %v209, 0
    %v2592 = vsel %vm298, %v210, 0
    %v2595 = vsel %vm298, %v211, 0
    %v2598 = vsel %vm298, %v212, 0
    %v2601 = vsel %vm298, %v213, 0
    %2603 = vmatprep.subr.mxu0 0.0
    %v2604 = vand.u32 %v290, 4294901760
    %2605 = vmatpush1.msra.mxu0 %v2604
    %2606 = vmatprep.subr.mxu0 0.0
    %v2607 = vand.u32 %v291, 4294901760
    %2608 = vmatpush1.msra.mxu0 %v2607
    %2609 = vmatprep.subr.mxu0 0.0
    %v2610 = vand.u32 %v292, 4294901760
    %2611 = vmatpush1.msra.mxu0 %v2610
    %2612 = vmatprep.subr.mxu0 0.0
    %v2613 = vand.u32 %v293, 4294901760
    %2614 = vmatpush1.msra.mxu0 %v2613
    %2615 = vmatprep.subr.mxu0 0.0
    %2616 = vmatpush1.msra.mxu0 0.0
    %2617 = vmatprep.subr.mxu0 0.0
    %2618 = vmatpush1.msra.mxu0 0.0
    %2619 = vmatprep.subr.mxu0 0.0
    %2620 = vmatpush1.msra.mxu0 0.0
    %2621 = vmatprep.subr.mxu0 0.0
    %2622 = vmatpush1.msra.mxu0 0.0
    %2623 = vmatprep.subr.mxu0 0.0
    %2624 = vmatpush1.msra.mxu0 0.0
    %2625 = vmatprep.subr.mxu0 0.0
    %2626 = vmatpush1.msra.mxu0 0.0
    %2627 = vmatprep.subr.mxu0 0.0
    %2628 = vmatpush1.msra.mxu0 0.0
    %2629 = vmatprep.subr.mxu0 0.0
    %2630 = vmatpush1.msra.mxu0 0.0
    %2631 = vmatprep.subr.mxu0 0.0
    %2632 = vmatpush1.msra.mxu0 0.0
    %2633 = vmatprep.subr.mxu0 0.0
    %2634 = vmatpush1.msra.mxu0 0.0
    %2635 = vmatprep.subr.mxu0 0.0
    %2636 = vmatpush1.msra.mxu0 0.0
    %2637 = vmatprep.subr.mxu0 0.0
    %2638 = vmatpush1.msra.mxu0 0.0
    %2639 = vmatprep.subr.mxu0 0.0
    %2640 = vmatpush1.msra.mxu0 0.0
    %2641 = vmatprep.subr.mxu0 0.0
    %2642 = vmatpush1.msra.mxu0 0.0
    %2643 = vmatprep.subr.mxu0 0.0
    %2644 = vmatpush1.msra.mxu0 0.0
    %2645 = vmatprep.subr.mxu0 0.0
    %2646 = vmatpush1.msra.mxu0 0.0
    %2647 = vmatprep.subr.mxu0 0.0
    %2648 = vmatpush1.msra.mxu0 0.0
    %2649 = vmatprep.subr.mxu0 0.0
    %2650 = vmatpush1.msra.mxu0 0.0
    %2651 = vmatprep.subr.mxu0 0.0
    %2652 = vmatpush1.msra.mxu0 0.0
    %2653 = vmatprep.subr.mxu0 0.0
    %2654 = vmatpush1.msra.mxu0 0.0
    %2655 = vmatprep.subr.mxu0 0.0
    %2656 = vmatpush1.msra.mxu0 0.0
    %2657 = vmatprep.subr.mxu0 0.0
    %2658 = vmatpush1.msra.mxu0 0.0
    %2659 = vmatprep.subr.mxu0 0.0
    %2660 = vmatpush1.msra.mxu0 0.0
    %2661 = vmatprep.subr.mxu0 0.0
    %2662 = vmatpush1.msra.mxu0 0.0
    %2663 = vmatprep.subr.mxu0 0.0
    %2664 = vmatpush1.msra.mxu0 0.0
    %2665 = vmatprep.subr.mxu0 0.0
    %2666 = vmatpush1.msra.mxu0 0.0
    %2667 = vmatprep.subr.mxu0 0.0
    %2668 = vmatpush1.msra.mxu0 0.0
    %2669 = vmatprep.subr.mxu0 0.0
    %2670 = vmatpush1.msra.mxu0 0.0
    %2671 = vmatprep.mubr.f32.mxu0 0.0
    %v2672 = vand.u32 %v2490, 4294901760
    %v2673 = vsub.f32 %v2490, %v2672
    %v2674 = vand.u32 %v2673, 4294901760
    %v2675 = vsub.f32 %v2673, %v2674
    %v2676 = vand.u32 %v2675, 4294901760
    %2677 = vmatmul.mubr.f32.gmra.mrb[0].mxu0 %v2676
    %v2678 = vpop.f32.mrb[0].mxu0
    %v2679 = vadd.f32 %v2264, %v2678
    %v2680 = vpop.f32.mrb[0].mxu0
    %2681 = vmatprep.mubr.f32.mxu0 0.0
    %v2682 = vand.u32 %v2493, 4294901760
    %v2683 = vsub.f32 %v2493, %v2682
    %v2684 = vand.u32 %v2683, 4294901760
    %v2685 = vsub.f32 %v2683, %v2684
    %v2686 = vand.u32 %v2685, 4294901760
    %2687 = vmatmul.mubr.f32.gmra.mrb[0].mxu0 %v2686
    %v2688 = vpop.f32.mrb[0].mxu0
    %v2689 = vadd.f32 %v2270, %v2688
    %v2690 = vpop.f32.mrb[0].mxu0
    %2691 = vmatprep.mubr.f32.mxu0 0.0
    %v2692 = vand.u32 %v2496, 4294901760
    %v2693 = vsub.f32 %v2496, %v2692
    %v2694 = vand.u32 %v2693, 4294901760
    %v2695 = vsub.f32 %v2693, %v2694
    %v2696 = vand.u32 %v2695, 4294901760
    %2697 = vmatmul.mubr.f32.gmra.mrb[0].mxu0 %v2696
    %v2698 = vpop.f32.mrb[0].mxu0
    %v2699 = vadd.f32 %v2276, %v2698
    %v2700 = vpop.f32.mrb[0].mxu0
    %2701 = vmatprep.mubr.f32.mxu0 0.0
    %v2702 = vand.u32 %v2499, 4294901760
    %v2703 = vsub.f32 %v2499, %v2702
    %v2704 = vand.u32 %v2703, 4294901760
    %v2705 = vsub.f32 %v2703, %v2704
    %v2706 = vand.u32 %v2705, 4294901760
    %2707 = vmatmul.mubr.f32.gmra.mrb[0].mxu0 %v2706
    %v2708 = vpop.f32.mrb[0].mxu0
    %v2709 = vadd.f32 %v2282, %v2708
    %v2710 = vpop.f32.mrb[0].mxu0
    %2711 = vmatprep.mubr.f32.mxu0 0.0
    %v2712 = vand.u32 %v2502, 4294901760
    %v2713 = vsub.f32 %v2502, %v2712
    %v2714 = vand.u32 %v2713, 4294901760
    %v2715 = vsub.f32 %v2713, %v2714
    %v2716 = vand.u32 %v2715, 4294901760
    %2717 = vmatmul.mubr.f32.gmra.mrb[0].mxu0 %v2716
    %v2718 = vpop.f32.mrb[0].mxu0
    %v2719 = vadd.f32 %v2288, %v2718
    %v2720 = vpop.f32.mrb[0].mxu0
    %2721 = vmatprep.mubr.f32.mxu0 0.0
    %v2722 = vand.u32 %v2505, 4294901760
    %v2723 = vsub.f32 %v2505, %v2722
    %v2724 = vand.u32 %v2723, 4294901760
    %v2725 = vsub.f32 %v2723, %v2724
    %v2726 = vand.u32 %v2725, 4294901760
    %2727 = vmatmul.mubr.f32.gmra.mrb[0].mxu0 %v2726
    %v2728 = vpop.f32.mrb[0].mxu0
    %v2729 = vadd.f32 %v2294, %v2728
    %v2730 = vpop.f32.mrb[0].mxu0
    %2731 = vmatprep.mubr.f32.mxu0 0.0
    %v2732 = vand.u32 %v2508, 4294901760
    %v2733 = vsub.f32 %v2508, %v2732
    %v2734 = vand.u32 %v2733, 4294901760
    %v2735 = vsub.f32 %v2733, %v2734
    %v2736 = vand.u32 %v2735, 4294901760
    %2737 = vmatmul.mubr.f32.gmra.mrb[0].mxu0 %v2736
    %v2738 = vpop.f32.mrb[0].mxu0
    %v2739 = vadd.f32 %v2300, %v2738
    %v2740 = vpop.f32.mrb[0].mxu0
    %2741 = vmatprep.mubr.f32.mxu0 0.0
    %v2742 = vand.u32 %v2511, 4294901760
    %v2743 = vsub.f32 %v2511, %v2742
    %v2744 = vand.u32 %v2743, 4294901760
    %v2745 = vsub.f32 %v2743, %v2744
    %v2746 = vand.u32 %v2745, 4294901760
    %2747 = vmatmul.mubr.f32.gmra.mrb[0].mxu0 %v2746
    %v2748 = vpop.f32.mrb[0].mxu0
    %v2749 = vadd.f32 %v2306, %v2748
    %v2750 = vpop.f32.mrb[0].mxu0
    %2751 = vmatprep.mubr.f32.mxu0 0.0
    %v2752 = vand.u32 %v2514, 4294901760
    %v2753 = vsub.f32 %v2514, %v2752
    %v2754 = vand.u32 %v2753, 4294901760
    %v2755 = vsub.f32 %v2753, %v2754
    %v2756 = vand.u32 %v2755, 4294901760
    %2757 = vmatmul.mubr.f32.gmra.mrb[0].mxu0 %v2756
    %v2758 = vpop.f32.mrb[0].mxu0
    %v2759 = vadd.f32 %v2312, %v2758
    %v2760 = vpop.f32.mrb[0].mxu0
    %2761 = vmatprep.mubr.f32.mxu0 0.0
    %v2762 = vand.u32 %v2517, 4294901760
    %v2763 = vsub.f32 %v2517, %v2762
    %v2764 = vand.u32 %v2763, 4294901760
    %v2765 = vsub.f32 %v2763, %v2764
    %v2766 = vand.u32 %v2765, 4294901760
    %2767 = vmatmul.mubr.f32.gmra.mrb[0].mxu0 %v2766
    %v2768 = vpop.f32.mrb[0].mxu0
    %v2769 = vadd.f32 %v2318, %v2768
    %v2770 = vpop.f32.mrb[0].mxu0
    %2771 = vmatprep.mubr.f32.mxu0 0.0
    %v2772 = vand.u32 %v2520, 4294901760
    %v2773 = vsub.f32 %v2520, %v2772
    %v2774 = vand.u32 %v2773, 4294901760
    %v2775 = vsub.f32 %v2773, %v2774
    %v2776 = vand.u32 %v2775, 4294901760
    %2777 = vmatmul.mubr.f32.gmra.mrb[0].mxu0 %v2776
    %v2778 = vpop.f32.mrb[0].mxu0
    %v2779 = vadd.f32 %v2324, %v2778
    %v2780 = vpop.f32.mrb[0].mxu0
    %2781 = vmatprep.mubr.f32.mxu0 0.0
    %v2782 = vand.u32 %v2523, 4294901760
    %v2783 = vsub.f32 %v2523, %v2782
    %v2784 = vand.u32 %v2783, 4294901760
    %v2785 = vsub.f32 %v2783, %v2784
    %v2786 = vand.u32 %v2785, 4294901760
    %2787 = vmatmul.mubr.f32.gmra.mrb[0].mxu0 %v2786
    %v2788 = vpop.f32.mrb[0].mxu0
    %v2789 = vadd.f32 %v2330, %v2788
    %v2790 = vpop.f32.mrb[0].mxu0
    %2791 = vmatprep.mubr.f32.mxu0 0.0
    %v2792 = vand.u32 %v2526, 4294901760
    %v2793 = vsub.f32 %v2526, %v2792
    %v2794 = vand.u32 %v2793, 4294901760
    %v2795 = vsub.f32 %v2793, %v2794
    %v2796 = vand.u32 %v2795, 4294901760
    %2797 = vmatmul.mubr.f32.gmra.mrb[0].mxu0 %v2796
    %v2798 = vpop.f32.mrb[0].mxu0
    %v2799 = vadd.f32 %v2336, %v2798
    %v2800 = vpop.f32.mrb[0].mxu0
    %2801 = vmatprep.mubr.f32.mxu0 0.0
    %v2802 = vand.u32 %v2529, 4294901760
    %v2803 = vsub.f32 %v2529, %v2802
    %v2804 = vand.u32 %v2803, 4294901760
    %v2805 = vsub.f32 %v2803, %v2804
    %v2806 = vand.u32 %v2805, 4294901760
    %2807 = vmatmul.mubr.f32.gmra.mrb[0].mxu0 %v2806
    %v2808 = vpop.f32.mrb[0].mxu0
    %v2809 = vadd.f32 %v2342, %v2808
    %v2810 = vpop.f32.mrb[0].mxu0
    %2811 = vmatprep.mubr.f32.mxu0 0.0
    %v2812 = vand.u32 %v2532, 4294901760
    %v2813 = vsub.f32 %v2532, %v2812
    %v2814 = vand.u32 %v2813, 4294901760
    %v2815 = vsub.f32 %v2813, %v2814
    %v2816 = vand.u32 %v2815, 4294901760
    %2817 = vmatmul.mubr.f32.gmra.mrb[0].mxu0 %v2816
    %v2818 = vpop.f32.mrb[0].mxu0
    %v2819 = vadd.f32 %v2348, %v2818
    %v2820 = vpop.f32.mrb[0].mxu0
    %2821 = vmatprep.mubr.f32.mxu0 0.0
    %v2822 = vand.u32 %v2535, 4294901760
    %v2823 = vsub.f32 %v2535, %v2822
    %v2824 = vand.u32 %v2823, 4294901760
    %v2825 = vsub.f32 %v2823, %v2824
    %v2826 = vand.u32 %v2825, 4294901760
    %2827 = vmatmul.mubr.f32.gmra.mrb[0].mxu0 %v2826
    %v2828 = vpop.f32.mrb[0].mxu0
    %v2829 = vadd.f32 %v2354, %v2828
    %v2830 = vpop.f32.mrb[0].mxu0
    %2831 = vmatprep.mubr.f32.mxu0 0.0
    %v2832 = vand.u32 %v2538, 4294901760
    %v2833 = vsub.f32 %v2538, %v2832
    %v2834 = vand.u32 %v2833, 4294901760
    %v2835 = vsub.f32 %v2833, %v2834
    %v2836 = vand.u32 %v2835, 4294901760
    %2837 = vmatmul.mubr.f32.gmra.mrb[0].mxu0 %v2836
    %v2838 = vpop.f32.mrb[0].mxu0
    %v2839 = vadd.f32 %v2360, %v2838
    %v2840 = vpop.f32.mrb[0].mxu0
    %2841 = vmatprep.mubr.f32.mxu0 0.0
    %v2842 = vand.u32 %v2541, 4294901760
    %v2843 = vsub.f32 %v2541, %v2842
    %v2844 = vand.u32 %v2843, 4294901760
    %v2845 = vsub.f32 %v2843, %v2844
    %v2846 = vand.u32 %v2845, 4294901760
    %2847 = vmatmul.mubr.f32.gmra.mrb[0].mxu0 %v2846
    %v2848 = vpop.f32.mrb[0].mxu0
    %v2849 = vadd.f32 %v2366, %v2848
    %v2850 = vpop.f32.mrb[0].mxu0
    %2851 = vmatprep.mubr.f32.mxu0 0.0
    %v2852 = vand.u32 %v2544, 4294901760
    %v2853 = vsub.f32 %v2544, %v2852
    %v2854 = vand.u32 %v2853, 4294901760
    %v2855 = vsub.f32 %v2853, %v2854
    %v2856 = vand.u32 %v2855, 4294901760
    %2857 = vmatmul.mubr.f32.gmra.mrb[0].mxu0 %v2856
    %v2858 = vpop.f32.mrb[0].mxu0
    %v2859 = vadd.f32 %v2372, %v2858
    %v2860 = vpop.f32.mrb[0].mxu0
    %2861 = vmatprep.mubr.f32.mxu0 0.0
    %v2862 = vand.u32 %v2547, 4294901760
    %v2863 = vsub.f32 %v2547, %v2862
    %v2864 = vand.u32 %v2863, 4294901760
    %v2865 = vsub.f32 %v2863, %v2864
    %v2866 = vand.u32 %v2865, 4294901760
    %2867 = vmatmul.mubr.f32.gmra.mrb[0].mxu0 %v2866
    %v2868 = vpop.f32.mrb[0].mxu0
    %v2869 = vadd.f32 %v2378, %v2868
    %v2870 = vpop.f32.mrb[0].mxu0
    %2871 = vmatprep.mubr.f32.mxu0 0.0
    %v2872 = vand.u32 %v2550, 4294901760
    %v2873 = vsub.f32 %v2550, %v2872
    %v2874 = vand.u32 %v2873, 4294901760
    %v2875 = vsub.f32 %v2873, %v2874
    %v2876 = vand.u32 %v2875, 4294901760
    %2877 = vmatmul.mubr.f32.gmra.mrb[0].mxu0 %v2876
    %v2878 = vpop.f32.mrb[0].mxu0
    %v2879 = vadd.f32 %v2384, %v2878
    %v2880 = vpop.f32.mrb[0].mxu0
    %2881 = vmatprep.mubr.f32.mxu0 0.0
    %v2882 = vand.u32 %v2553, 4294901760
    %v2883 = vsub.f32 %v2553, %v2882
    %v2884 = vand.u32 %v2883, 4294901760
    %v2885 = vsub.f32 %v2883, %v2884
    %v2886 = vand.u32 %v2885, 4294901760
    %2887 = vmatmul.mubr.f32.gmra.mrb[0].mxu0 %v2886
    %v2888 = vpop.f32.mrb[0].mxu0
    %v2889 = vadd.f32 %v2390, %v2888
    %v2890 = vpop.f32.mrb[0].mxu0
    %2891 = vmatprep.mubr.f32.mxu0 0.0
    %v2892 = vand.u32 %v2556, 4294901760
    %v2893 = vsub.f32 %v2556, %v2892
    %v2894 = vand.u32 %v2893, 4294901760
    %v2895 = vsub.f32 %v2893, %v2894
    %v2896 = vand.u32 %v2895, 4294901760
    %2897 = vmatmul.mubr.f32.gmra.mrb[0].mxu0 %v2896
    %v2898 = vpop.f32.mrb[0].mxu0
    %v2899 = vadd.f32 %v2396, %v2898
    %v2900 = vpop.f32.mrb[0].mxu0
    %2901 = vmatprep.mubr.f32.mxu0 0.0
    %v2902 = vand.u32 %v2559, 4294901760
    %v2903 = vsub.f32 %v2559, %v2902
    %v2904 = vand.u32 %v2903, 4294901760
    %v2905 = vsub.f32 %v2903, %v2904
    %v2906 = vand.u32 %v2905, 4294901760
    %2907 = vmatmul.mubr.f32.gmra.mrb[0].mxu0 %v2906
    %v2908 = vpop.f32.mrb[0].mxu0
    %v2909 = vadd.f32 %v2402, %v2908
    %v2910 = vpop.f32.mrb[0].mxu0
    %2911 = vmatprep.mubr.f32.mxu0 0.0
    %v2912 = vand.u32 %v2562, 4294901760
    %v2913 = vsub.f32 %v2562, %v2912
    %v2914 = vand.u32 %v2913, 4294901760
    %v2915 = vsub.f32 %v2913, %v2914
    %v2916 = vand.u32 %v2915, 4294901760
    %2917 = vmatmul.mubr.f32.gmra.mrb[0].mxu0 %v2916
    %v2918 = vpop.f32.mrb[0].mxu0
    %v2919 = vadd.f32 %v2408, %v2918
    %v2920 = vpop.f32.mrb[0].mxu0
    %2921 = vmatprep.mubr.f32.mxu0 0.0
    %v2922 = vand.u32 %v2565, 4294901760
    %v2923 = vsub.f32 %v2565, %v2922
    %v2924 = vand.u32 %v2923, 4294901760
    %v2925 = vsub.f32 %v2923, %v2924
    %v2926 = vand.u32 %v2925, 4294901760
    %2927 = vmatmul.mubr.f32.gmra.mrb[0].mxu0 %v2926
    %v2928 = vpop.f32.mrb[0].mxu0
    %v2929 = vadd.f32 %v2414, %v2928
    %v2930 = vpop.f32.mrb[0].mxu0
    %2931 = vmatprep.mubr.f32.mxu0 0.0
    %v2932 = vand.u32 %v2568, 4294901760
    %v2933 = vsub.f32 %v2568, %v2932
    %v2934 = vand.u32 %v2933, 4294901760
    %v2935 = vsub.f32 %v2933, %v2934
    %v2936 = vand.u32 %v2935, 4294901760
    %2937 = vmatmul.mubr.f32.gmra.mrb[0].mxu0 %v2936
    %v2938 = vpop.f32.mrb[0].mxu0
    %v2939 = vadd.f32 %v2420, %v2938
    %v2940 = vpop.f32.mrb[0].mxu0
    %2941 = vmatprep.mubr.f32.mxu0 0.0
    %v2942 = vand.u32 %v2571, 4294901760
    %v2943 = vsub.f32 %v2571, %v2942
    %v2944 = vand.u32 %v2943, 4294901760
    %v2945 = vsub.f32 %v2943, %v2944
    %v2946 = vand.u32 %v2945, 4294901760
    %2947 = vmatmul.mubr.f32.gmra.mrb[0].mxu0 %v2946
    %v2948 = vpop.f32.mrb[0].mxu0
    %v2949 = vadd.f32 %v2426, %v2948
    %v2950 = vpop.f32.mrb[0].mxu0
    %2951 = vmatprep.mubr.f32.mxu0 0.0
    %v2952 = vand.u32 %v2574, 4294901760
    %v2953 = vsub.f32 %v2574, %v2952
    %v2954 = vand.u32 %v2953, 4294901760
    %v2955 = vsub.f32 %v2953, %v2954
    %v2956 = vand.u32 %v2955, 4294901760
    %2957 = vmatmul.mubr.f32.gmra.mrb[0].mxu0 %v2956
    %v2958 = vpop.f32.mrb[0].mxu0
    %v2959 = vadd.f32 %v2432, %v2958
    %v2960 = vpop.f32.mrb[0].mxu0
    %2961 = vmatprep.mubr.f32.mxu0 0.0
    %v2962 = vand.u32 %v2577, 4294901760
    %v2963 = vsub.f32 %v2577, %v2962
    %v2964 = vand.u32 %v2963, 4294901760
    %v2965 = vsub.f32 %v2963, %v2964
    %v2966 = vand.u32 %v2965, 4294901760
    %2967 = vmatmul.mubr.f32.gmra.mrb[0].mxu0 %v2966
    %v2968 = vpop.f32.mrb[0].mxu0
    %v2969 = vadd.f32 %v2438, %v2968
    %v2970 = vpop.f32.mrb[0].mxu0
    %2971 = vmatprep.mubr.f32.mxu0 0.0
    %v2972 = vand.u32 %v2580, 4294901760
    %v2973 = vsub.f32 %v2580, %v2972
    %v2974 = vand.u32 %v2973, 4294901760
    %v2975 = vsub.f32 %v2973, %v2974
    %v2976 = vand.u32 %v2975, 4294901760
    %2977 = vmatmul.mubr.f32.gmra.mrb[0].mxu0 %v2976
    %v2978 = vpop.f32.mrb[0].mxu0
    %v2979 = vadd.f32 %v2444, %v2978
    %v2980 = vpop.f32.mrb[0].mxu0
    %2981 = vmatprep.mubr.f32.mxu0 0.0
    %v2982 = vand.u32 %v2583, 4294901760
    %v2983 = vsub.f32 %v2583, %v2982
    %v2984 = vand.u32 %v2983, 4294901760
    %v2985 = vsub.f32 %v2983, %v2984
    %v2986 = vand.u32 %v2985, 4294901760
    %2987 = vmatmul.mubr.f32.gmra.mrb[0].mxu0 %v2986
    %v2988 = vpop.f32.mrb[0].mxu0
    %v2989 = vadd.f32 %v2450, %v2988
    %v2990 = vpop.f32.mrb[0].mxu0
    %2991 = vmatprep.mubr.f32.mxu0 0.0
    %v2992 = vand.u32 %v2586, 4294901760
    %v2993 = vsub.f32 %v2586, %v2992
    %v2994 = vand.u32 %v2993, 4294901760
    %v2995 = vsub.f32 %v2993, %v2994
    %v2996 = vand.u32 %v2995, 4294901760
    %2997 = vmatmul.mubr.f32.gmra.mrb[0].mxu0 %v2996
    %v2998 = vpop.f32.mrb[0].mxu0
    %v2999 = vadd.f32 %v2456, %v2998
    %v3000 = vpop.f32.mrb[0].mxu0
    %3001 = vmatprep.mubr.f32.mxu0 0.0
    %v3002 = vand.u32 %v2589, 4294901760
    %v3003 = vsub.f32 %v2589, %v3002
    %v3004 = vand.u32 %v3003, 4294901760
    %v3005 = vsub.f32 %v3003, %v3004
    %v3006 = vand.u32 %v3005, 4294901760
    %3007 = vmatmul.mubr.f32.gmra.mrb[0].mxu0 %v3006
    %v3008 = vpop.f32.mrb[0].mxu0
    %v3009 = vadd.f32 %v2462, %v3008
    %v3010 = vpop.f32.mrb[0].mxu0
    %3011 = vmatprep.mubr.f32.mxu0 0.0
    %v3012 = vand.u32 %v2592, 4294901760
    %v3013 = vsub.f32 %v2592, %v3012
    %v3014 = vand.u32 %v3013, 4294901760
    %v3015 = vsub.f32 %v3013, %v3014
    %v3016 = vand.u32 %v3015, 4294901760
    %3017 = vmatmul.mubr.f32.gmra.mrb[0].mxu0 %v3016
    %v3018 = vpop.f32.mrb[0].mxu0
    %v3019 = vadd.f32 %v2468, %v3018
    %v3020 = vpop.f32.mrb[0].mxu0
    %3021 = vmatprep.mubr.f32.mxu0 0.0
    %v3022 = vand.u32 %v2595, 4294901760
    %v3023 = vsub.f32 %v2595, %v3022
    %v3024 = vand.u32 %v3023, 4294901760
    %v3025 = vsub.f32 %v3023, %v3024
    %v3026 = vand.u32 %v3025, 4294901760
    %3027 = vmatmul.mubr.f32.gmra.mrb[0].mxu0 %v3026
    %v3028 = vpop.f32.mrb[0].mxu0
    %v3029 = vadd.f32 %v2474, %v3028
    %v3030 = vpop.f32.mrb[0].mxu0
    %3031 = vmatprep.mubr.f32.mxu0 0.0
    %v3032 = vand.u32 %v2598, 4294901760
    %v3033 = vsub.f32 %v2598, %v3032
    %v3034 = vand.u32 %v3033, 4294901760
    %v3035 = vsub.f32 %v3033, %v3034
    %v3036 = vand.u32 %v3035, 4294901760
    %3037 = vmatmul.mubr.f32.gmra.mrb[0].mxu0 %v3036
    %v3038 = vpop.f32.mrb[0].mxu0
    %v3039 = vadd.f32 %v2480, %v3038
    %v3040 = vpop.f32.mrb[0].mxu0
    %3041 = vmatprep.mubr.f32.mxu0 0.0
    %v3042 = vand.u32 %v2601, 4294901760
    %v3043 = vsub.f32 %v2601, %v3042
    %v3044 = vand.u32 %v3043, 4294901760
    %v3045 = vsub.f32 %v3043, %v3044
    %v3046 = vand.u32 %v3045, 4294901760
    %3047 = vmatmul.mubr.f32.gmra.mrb[0].mxu0 %v3046
    %v3048 = vpop.f32.mrb[0].mxu0
    %v3049 = vadd.f32 %v2486, %v3048
    %v3050 = vpop.f32.mrb[0].mxu0
    %3051 = vdwg.mxu0
    %3052 = vmatprep.subr.mxu0 0.0
    %v3053 = vand.u32 %v290, 4294901760
    %v3054 = vsub.f32 %v290, %v3053
    %v3055 = vand.u32 %v3054, 4294901760
    %v3056 = vsub.f32 %v3054, %v3055
    %v3057 = vand.u32 %v3056, 4294901760
    %3058 = vmatpush1.msra.mxu0 %v3057
    %3059 = vmatprep.subr.mxu0 0.0
    %v3060 = vand.u32 %v291, 4294901760
    %v3061 = vsub.f32 %v291, %v3060
    %v3062 = vand.u32 %v3061, 4294901760
    %v3063 = vsub.f32 %v3061, %v3062
    %v3064 = vand.u32 %v3063, 4294901760
    %3065 = vmatpush1.msra.mxu0 %v3064
    %3066 = vmatprep.subr.mxu0 0.0
    %v3067 = vand.u32 %v292, 4294901760
    %v3068 = vsub.f32 %v292, %v3067
    %v3069 = vand.u32 %v3068, 4294901760
    %v3070 = vsub.f32 %v3068, %v3069
    %v3071 = vand.u32 %v3070, 4294901760
    %3072 = vmatpush1.msra.mxu0 %v3071
    %3073 = vmatprep.subr.mxu0 0.0
    %v3074 = vand.u32 %v293, 4294901760
    %v3075 = vsub.f32 %v293, %v3074
    %v3076 = vand.u32 %v3075, 4294901760
    %v3077 = vsub.f32 %v3075, %v3076
    %v3078 = vand.u32 %v3077, 4294901760
    %3079 = vmatpush1.msra.mxu0 %v3078
    %3080 = vmatprep.subr.mxu0 0.0
    %3081 = vmatpush1.msra.mxu0 0.0
    %3082 = vmatprep.subr.mxu0 0.0
    %3083 = vmatpush1.msra.mxu0 0.0
    %3084 = vmatprep.subr.mxu0 0.0
    %3085 = vmatpush1.msra.mxu0 0.0
    %3086 = vmatprep.subr.mxu0 0.0
    %3087 = vmatpush1.msra.mxu0 0.0
    %3088 = vmatprep.subr.mxu0 0.0
    %3089 = vmatpush1.msra.mxu0 0.0
    %3090 = vmatprep.subr.mxu0 0.0
    %3091 = vmatpush1.msra.mxu0 0.0
    %3092 = vmatprep.subr.mxu0 0.0
    %3093 = vmatpush1.msra.mxu0 0.0
    %3094 = vmatprep.subr.mxu0 0.0
    %3095 = vmatpush1.msra.mxu0 0.0
    %3096 = vmatprep.subr.mxu0 0.0
    %3097 = vmatpush1.msra.mxu0 0.0
    %3098 = vmatprep.subr.mxu0 0.0
    %3099 = vmatpush1.msra.mxu0 0.0
    %3100 = vmatprep.subr.mxu0 0.0
    %3101 = vmatpush1.msra.mxu0 0.0
    %3102 = vmatprep.subr.mxu0 0.0
    %3103 = vmatpush1.msra.mxu0 0.0
    %3104 = vmatprep.subr.mxu0 0.0
    %3105 = vmatpush1.msra.mxu0 0.0
    %3106 = vmatprep.subr.mxu0 0.0
    %3107 = vmatpush1.msra.mxu0 0.0
    %3108 = vmatprep.subr.mxu0 0.0
    %3109 = vmatpush1.msra.mxu0 0.0
    %3110 = vmatprep.subr.mxu0 0.0
    %3111 = vmatpush1.msra.mxu0 0.0
    %3112 = vmatprep.subr.mxu0 0.0
    %3113 = vmatpush1.msra.mxu0 0.0
    %3114 = vmatprep.subr.mxu0 0.0
    %3115 = vmatpush1.msra.mxu0 0.0
    %3116 = vmatprep.subr.mxu0 0.0
    %3117 = vmatpush1.msra.mxu0 0.0
    %3118 = vmatprep.subr.mxu0 0.0
    %3119 = vmatpush1.msra.mxu0 0.0
    %3120 = vmatprep.subr.mxu0 0.0
    %3121 = vmatpush1.msra.mxu0 0.0
    %3122 = vmatprep.subr.mxu0 0.0
    %3123 = vmatpush1.msra.mxu0 0.0
    %3124 = vmatprep.subr.mxu0 0.0
    %3125 = vmatpush1.msra.mxu0 0.0
    %3126 = vmatprep.subr.mxu0 0.0
    %3127 = vmatpush1.msra.mxu0 0.0
    %3128 = vmatprep.subr.mxu0 0.0
    %3129 = vmatpush1.msra.mxu0 0.0
    %3130 = vmatprep.subr.mxu0 0.0
    %3131 = vmatpush1.msra.mxu0 0.0
    %3132 = vmatprep.subr.mxu0 0.0
    %3133 = vmatpush1.msra.mxu0 0.0
    %3134 = vmatprep.subr.mxu0 0.0
    %3135 = vmatpush1.msra.mxu0 0.0
    %3136 = vmatprep.mubr.f32.mxu0 0.0
    %v3137 = vand.u32 %v2490, 4294901760
    %3138 = vmatmul.mubr.f32.gmra.mrb[0].mxu0 %v3137
    %v3139 = vpop.f32.mrb[0].mxu0
    %v3140 = vadd.f32 %v2679, %v3139
    %v3141 = vpop.f32.mrb[0].mxu0
    %3142 = vmatprep.mubr.f32.mxu0 0.0
    %v3143 = vand.u32 %v2493, 4294901760
    %3144 = vmatmul.mubr.f32.gmra.mrb[0].mxu0 %v3143
    %v3145 = vpop.f32.mrb[0].mxu0
    %v3146 = vadd.f32 %v2689, %v3145
    %v3147 = vpop.f32.mrb[0].mxu0
    %3148 = vmatprep.mubr.f32.mxu0 0.0
    %v3149 = vand.u32 %v2496, 4294901760
    %3150 = vmatmul.mubr.f32.gmra.mrb[0].mxu0 %v3149
    %v3151 = vpop.f32.mrb[0].mxu0
    %v3152 = vadd.f32 %v2699, %v3151
    %v3153 = vpop.f32.mrb[0].mxu0
    %3154 = vmatprep.mubr.f32.mxu0 0.0
    %v3155 = vand.u32 %v2499, 4294901760
    %3156 = vmatmul.mubr.f32.gmra.mrb[0].mxu0 %v3155
    %v3157 = vpop.f32.mrb[0].mxu0
    %v3158 = vadd.f32 %v2709, %v3157
    %v3159 = vpop.f32.mrb[0].mxu0
    %3160 = vmatprep.mubr.f32.mxu0 0.0
    %v3161 = vand.u32 %v2502, 4294901760
    %3162 = vmatmul.mubr.f32.gmra.mrb[0].mxu0 %v3161
    %v3163 = vpop.f32.mrb[0].mxu0
    %v3164 = vadd.f32 %v2719, %v3163
    %v3165 = vpop.f32.mrb[0].mxu0
    %3166 = vmatprep.mubr.f32.mxu0 0.0
    %v3167 = vand.u32 %v2505, 4294901760
    %3168 = vmatmul.mubr.f32.gmra.mrb[0].mxu0 %v3167
    %v3169 = vpop.f32.mrb[0].mxu0
    %v3170 = vadd.f32 %v2729, %v3169
    %v3171 = vpop.f32.mrb[0].mxu0
    %3172 = vmatprep.mubr.f32.mxu0 0.0
    %v3173 = vand.u32 %v2508, 4294901760
    %3174 = vmatmul.mubr.f32.gmra.mrb[0].mxu0 %v3173
    %v3175 = vpop.f32.mrb[0].mxu0
    %v3176 = vadd.f32 %v2739, %v3175
    %v3177 = vpop.f32.mrb[0].mxu0
    %3178 = vmatprep.mubr.f32.mxu0 0.0
    %v3179 = vand.u32 %v2511, 4294901760
    %3180 = vmatmul.mubr.f32.gmra.mrb[0].mxu0 %v3179
    %v3181 = vpop.f32.mrb[0].mxu0
    %v3182 = vadd.f32 %v2749, %v3181
    %v3183 = vpop.f32.mrb[0].mxu0
    %3184 = vmatprep.mubr.f32.mxu0 0.0
    %v3185 = vand.u32 %v2514, 4294901760
    %3186 = vmatmul.mubr.f32.gmra.mrb[0].mxu0 %v3185
    %v3187 = vpop.f32.mrb[0].mxu0
    %v3188 = vadd.f32 %v2759, %v3187
    %v3189 = vpop.f32.mrb[0].mxu0
    %3190 = vmatprep.mubr.f32.mxu0 0.0
    %v3191 = vand.u32 %v2517, 4294901760
    %3192 = vmatmul.mubr.f32.gmra.mrb[0].mxu0 %v3191
    %v3193 = vpop.f32.mrb[0].mxu0
    %v3194 = vadd.f32 %v2769, %v3193
    %v3195 = vpop.f32.mrb[0].mxu0
    %3196 = vmatprep.mubr.f32.mxu0 0.0
    %v3197 = vand.u32 %v2520, 4294901760
    %3198 = vmatmul.mubr.f32.gmra.mrb[0].mxu0 %v3197
    %v3199 = vpop.f32.mrb[0].mxu0
    %v3200 = vadd.f32 %v2779, %v3199
    %v3201 = vpop.f32.mrb[0].mxu0
    %3202 = vmatprep.mubr.f32.mxu0 0.0
    %v3203 = vand.u32 %v2523, 4294901760
    %3204 = vmatmul.mubr.f32.gmra.mrb[0].mxu0 %v3203
    %v3205 = vpop.f32.mrb[0].mxu0
    %v3206 = vadd.f32 %v2789, %v3205
    %v3207 = vpop.f32.mrb[0].mxu0
    %3208 = vmatprep.mubr.f32.mxu0 0.0
    %v3209 = vand.u32 %v2526, 4294901760
    %3210 = vmatmul.mubr.f32.gmra.mrb[0].mxu0 %v3209
    %v3211 = vpop.f32.mrb[0].mxu0
    %v3212 = vadd.f32 %v2799, %v3211
    %v3213 = vpop.f32.mrb[0].mxu0
    %3214 = vmatprep.mubr.f32.mxu0 0.0
    %v3215 = vand.u32 %v2529, 4294901760
    %3216 = vmatmul.mubr.f32.gmra.mrb[0].mxu0 %v3215
    %v3217 = vpop.f32.mrb[0].mxu0
    %v3218 = vadd.f32 %v2809, %v3217
    %v3219 = vpop.f32.mrb[0].mxu0
    %3220 = vmatprep.mubr.f32.mxu0 0.0
    %v3221 = vand.u32 %v2532, 4294901760
    %3222 = vmatmul.mubr.f32.gmra.mrb[0].mxu0 %v3221
    %v3223 = vpop.f32.mrb[0].mxu0
    %v3224 = vadd.f32 %v2819, %v3223
    %v3225 = vpop.f32.mrb[0].mxu0
    %3226 = vmatprep.mubr.f32.mxu0 0.0
    %v3227 = vand.u32 %v2535, 4294901760
    %3228 = vmatmul.mubr.f32.gmra.mrb[0].mxu0 %v3227
    %v3229 = vpop.f32.mrb[0].mxu0
    %v3230 = vadd.f32 %v2829, %v3229
    %v3231 = vpop.f32.mrb[0].mxu0
    %3232 = vmatprep.mubr.f32.mxu0 0.0
    %v3233 = vand.u32 %v2538, 4294901760
    %3234 = vmatmul.mubr.f32.gmra.mrb[0].mxu0 %v3233
    %v3235 = vpop.f32.mrb[0].mxu0
    %v3236 = vadd.f32 %v2839, %v3235
    %v3237 = vpop.f32.mrb[0].mxu0
    %3238 = vmatprep.mubr.f32.mxu0 0.0
    %v3239 = vand.u32 %v2541, 4294901760
    %3240 = vmatmul.mubr.f32.gmra.mrb[0].mxu0 %v3239
    %v3241 = vpop.f32.mrb[0].mxu0
    %v3242 = vadd.f32 %v2849, %v3241
    %v3243 = vpop.f32.mrb[0].mxu0
    %3244 = vmatprep.mubr.f32.mxu0 0.0
    %v3245 = vand.u32 %v2544, 4294901760
    %3246 = vmatmul.mubr.f32.gmra.mrb[0].mxu0 %v3245
    %v3247 = vpop.f32.mrb[0].mxu0
    %v3248 = vadd.f32 %v2859, %v3247
    %v3249 = vpop.f32.mrb[0].mxu0
    %3250 = vmatprep.mubr.f32.mxu0 0.0
    %v3251 = vand.u32 %v2547, 4294901760
    %3252 = vmatmul.mubr.f32.gmra.mrb[0].mxu0 %v3251
    %v3253 = vpop.f32.mrb[0].mxu0
    %v3254 = vadd.f32 %v2869, %v3253
    %v3255 = vpop.f32.mrb[0].mxu0
    %3256 = vmatprep.mubr.f32.mxu0 0.0
    %v3257 = vand.u32 %v2550, 4294901760
    %3258 = vmatmul.mubr.f32.gmra.mrb[0].mxu0 %v3257
    %v3259 = vpop.f32.mrb[0].mxu0
    %v3260 = vadd.f32 %v2879, %v3259
    %v3261 = vpop.f32.mrb[0].mxu0
    %3262 = vmatprep.mubr.f32.mxu0 0.0
    %v3263 = vand.u32 %v2553, 4294901760
    %3264 = vmatmul.mubr.f32.gmra.mrb[0].mxu0 %v3263
    %v3265 = vpop.f32.mrb[0].mxu0
    %v3266 = vadd.f32 %v2889, %v3265
    %v3267 = vpop.f32.mrb[0].mxu0
    %3268 = vmatprep.mubr.f32.mxu0 0.0
    %v3269 = vand.u32 %v2556, 4294901760
    %3270 = vmatmul.mubr.f32.gmra.mrb[0].mxu0 %v3269
    %v3271 = vpop.f32.mrb[0].mxu0
    %v3272 = vadd.f32 %v2899, %v3271
    %v3273 = vpop.f32.mrb[0].mxu0
    %3274 = vmatprep.mubr.f32.mxu0 0.0
    %v3275 = vand.u32 %v2559, 4294901760
    %3276 = vmatmul.mubr.f32.gmra.mrb[0].mxu0 %v3275
    %v3277 = vpop.f32.mrb[0].mxu0
    %v3278 = vadd.f32 %v2909, %v3277
    %v3279 = vpop.f32.mrb[0].mxu0
    %3280 = vmatprep.mubr.f32.mxu0 0.0
    %v3281 = vand.u32 %v2562, 4294901760
    %3282 = vmatmul.mubr.f32.gmra.mrb[0].mxu0 %v3281
    %v3283 = vpop.f32.mrb[0].mxu0
    %v3284 = vadd.f32 %v2919, %v3283
    %v3285 = vpop.f32.mrb[0].mxu0
    %3286 = vmatprep.mubr.f32.mxu0 0.0
    %v3287 = vand.u32 %v2565, 4294901760
    %3288 = vmatmul.mubr.f32.gmra.mrb[0].mxu0 %v3287
    %v3289 = vpop.f32.mrb[0].mxu0
    %v3290 = vadd.f32 %v2929, %v3289
    %v3291 = vpop.f32.mrb[0].mxu0
    %3292 = vmatprep.mubr.f32.mxu0 0.0
    %v3293 = vand.u32 %v2568, 4294901760
    %3294 = vmatmul.mubr.f32.gmra.mrb[0].mxu0 %v3293
    %v3295 = vpop.f32.mrb[0].mxu0
    %v3296 = vadd.f32 %v2939, %v3295
    %v3297 = vpop.f32.mrb[0].mxu0
    %3298 = vmatprep.mubr.f32.mxu0 0.0
    %v3299 = vand.u32 %v2571, 4294901760
    %3300 = vmatmul.mubr.f32.gmra.mrb[0].mxu0 %v3299
    %v3301 = vpop.f32.mrb[0].mxu0
    %v3302 = vadd.f32 %v2949, %v3301
    %v3303 = vpop.f32.mrb[0].mxu0
    %3304 = vmatprep.mubr.f32.mxu0 0.0
    %v3305 = vand.u32 %v2574, 4294901760
    %3306 = vmatmul.mubr.f32.gmra.mrb[0].mxu0 %v3305
    %v3307 = vpop.f32.mrb[0].mxu0
    %v3308 = vadd.f32 %v2959, %v3307
    %v3309 = vpop.f32.mrb[0].mxu0
    %3310 = vmatprep.mubr.f32.mxu0 0.0
    %v3311 = vand.u32 %v2577, 4294901760
    %3312 = vmatmul.mubr.f32.gmra.mrb[0].mxu0 %v3311
    %v3313 = vpop.f32.mrb[0].mxu0
    %v3314 = vadd.f32 %v2969, %v3313
    %v3315 = vpop.f32.mrb[0].mxu0
    %3316 = vmatprep.mubr.f32.mxu0 0.0
    %v3317 = vand.u32 %v2580, 4294901760
    %3318 = vmatmul.mubr.f32.gmra.mrb[0].mxu0 %v3317
    %v3319 = vpop.f32.mrb[0].mxu0
    %v3320 = vadd.f32 %v2979, %v3319
    %v3321 = vpop.f32.mrb[0].mxu0
    %3322 = vmatprep.mubr.f32.mxu0 0.0
    %v3323 = vand.u32 %v2583, 4294901760
    %3324 = vmatmul.mubr.f32.gmra.mrb[0].mxu0 %v3323
    %v3325 = vpop.f32.mrb[0].mxu0
    %v3326 = vadd.f32 %v2989, %v3325
    %v3327 = vpop.f32.mrb[0].mxu0
    %3328 = vmatprep.mubr.f32.mxu0 0.0
    %v3329 = vand.u32 %v2586, 4294901760
    %3330 = vmatmul.mubr.f32.gmra.mrb[0].mxu0 %v3329
    %v3331 = vpop.f32.mrb[0].mxu0
    %v3332 = vadd.f32 %v2999, %v3331
    %v3333 = vpop.f32.mrb[0].mxu0
    %3334 = vmatprep.mubr.f32.mxu0 0.0
    %v3335 = vand.u32 %v2589, 4294901760
    %3336 = vmatmul.mubr.f32.gmra.mrb[0].mxu0 %v3335
    %v3337 = vpop.f32.mrb[0].mxu0
    %v3338 = vadd.f32 %v3009, %v3337
    %v3339 = vpop.f32.mrb[0].mxu0
    %3340 = vmatprep.mubr.f32.mxu0 0.0
    %v3341 = vand.u32 %v2592, 4294901760
    %3342 = vmatmul.mubr.f32.gmra.mrb[0].mxu0 %v3341
    %v3343 = vpop.f32.mrb[0].mxu0
    %v3344 = vadd.f32 %v3019, %v3343
    %v3345 = vpop.f32.mrb[0].mxu0
    %3346 = vmatprep.mubr.f32.mxu0 0.0
    %v3347 = vand.u32 %v2595, 4294901760
    %3348 = vmatmul.mubr.f32.gmra.mrb[0].mxu0 %v3347
    %v3349 = vpop.f32.mrb[0].mxu0
    %v3350 = vadd.f32 %v3029, %v3349
    %v3351 = vpop.f32.mrb[0].mxu0
    %3352 = vmatprep.mubr.f32.mxu0 0.0
    %v3353 = vand.u32 %v2598, 4294901760
    %3354 = vmatmul.mubr.f32.gmra.mrb[0].mxu0 %v3353
    %v3355 = vpop.f32.mrb[0].mxu0
    %v3356 = vadd.f32 %v3039, %v3355
    %v3357 = vpop.f32.mrb[0].mxu0
    %3358 = vmatprep.mubr.f32.mxu0 0.0
    %v3359 = vand.u32 %v2601, 4294901760
    %3360 = vmatmul.mubr.f32.gmra.mrb[0].mxu0 %v3359
    %v3361 = vpop.f32.mrb[0].mxu0
    %v3362 = vadd.f32 %v3049, %v3361
    %v3363 = vpop.f32.mrb[0].mxu0
    %3364 = vdwg.mxu0
    %3365 = vmatprep.subr.mxu0 0.0
    %v3366 = vand.u32 %v290, 4294901760
    %v3367 = vsub.f32 %v290, %v3366
    %3368 = vmatpush1.msra.mxu0 %v3367
    %3369 = vmatprep.subr.mxu0 0.0
    %v3370 = vand.u32 %v291, 4294901760
    %v3371 = vsub.f32 %v291, %v3370
    %3372 = vmatpush1.msra.mxu0 %v3371
    %3373 = vmatprep.subr.mxu0 0.0
    %v3374 = vand.u32 %v292, 4294901760
    %v3375 = vsub.f32 %v292, %v3374
    %3376 = vmatpush1.msra.mxu0 %v3375
    %3377 = vmatprep.subr.mxu0 0.0
    %v3378 = vand.u32 %v293, 4294901760
    %v3379 = vsub.f32 %v293, %v3378
    %3380 = vmatpush1.msra.mxu0 %v3379
    %3381 = vmatprep.subr.mxu0 0.0
    %3382 = vmatpush1.msra.mxu0 0.0
    %3383 = vmatprep.subr.mxu0 0.0
    %3384 = vmatpush1.msra.mxu0 0.0
    %3385 = vmatprep.subr.mxu0 0.0
    %3386 = vmatpush1.msra.mxu0 0.0
    %3387 = vmatprep.subr.mxu0 0.0
    %3388 = vmatpush1.msra.mxu0 0.0
    %3389 = vmatprep.subr.mxu0 0.0
    %3390 = vmatpush1.msra.mxu0 0.0
    %3391 = vmatprep.subr.mxu0 0.0
    %3392 = vmatpush1.msra.mxu0 0.0
    %3393 = vmatprep.subr.mxu0 0.0
    %3394 = vmatpush1.msra.mxu0 0.0
    %3395 = vmatprep.subr.mxu0 0.0
    %3396 = vmatpush1.msra.mxu0 0.0
    %3397 = vmatprep.subr.mxu0 0.0
    %3398 = vmatpush1.msra.mxu0 0.0
    %3399 = vmatprep.subr.mxu0 0.0
    %3400 = vmatpush1.msra.mxu0 0.0
    %3401 = vmatprep.subr.mxu0 0.0
    %3402 = vmatpush1.msra.mxu0 0.0
    %3403 = vmatprep.subr.mxu0 0.0
    %3404 = vmatpush1.msra.mxu0 0.0
    %3405 = vmatprep.subr.mxu0 0.0
    %3406 = vmatpush1.msra.mxu0 0.0
    %3407 = vmatprep.subr.mxu0 0.0
    %3408 = vmatpush1.msra.mxu0 0.0
    %3409 = vmatprep.subr.mxu0 0.0
    %3410 = vmatpush1.msra.mxu0 0.0
    %3411 = vmatprep.subr.mxu0 0.0
    %3412 = vmatpush1.msra.mxu0 0.0
    %3413 = vmatprep.subr.mxu0 0.0
    %3414 = vmatpush1.msra.mxu0 0.0
    %3415 = vmatprep.subr.mxu0 0.0
    %3416 = vmatpush1.msra.mxu0 0.0
    %3417 = vmatprep.subr.mxu0 0.0
    %3418 = vmatpush1.msra.mxu0 0.0
    %3419 = vmatprep.subr.mxu0 0.0
    %3420 = vmatpush1.msra.mxu0 0.0
    %3421 = vmatprep.subr.mxu0 0.0
    %3422 = vmatpush1.msra.mxu0 0.0
    %3423 = vmatprep.subr.mxu0 0.0
    %3424 = vmatpush1.msra.mxu0 0.0
    %3425 = vmatprep.subr.mxu0 0.0
    %3426 = vmatpush1.msra.mxu0 0.0
    %3427 = vmatprep.subr.mxu0 0.0
    %3428 = vmatpush1.msra.mxu0 0.0
    %3429 = vmatprep.subr.mxu0 0.0
    %3430 = vmatpush1.msra.mxu0 0.0
    %3431 = vmatprep.subr.mxu0 0.0
    %3432 = vmatpush1.msra.mxu0 0.0
    %3433 = vmatprep.subr.mxu0 0.0
    %3434 = vmatpush1.msra.mxu0 0.0
    %3435 = vmatprep.subr.mxu0 0.0
    %3436 = vmatpush1.msra.mxu0 0.0
    %3437 = vmatprep.mubr.f32.mxu0 0.0
    %v3438 = vand.u32 %v2490, 4294901760
    %v3439 = vsub.f32 %v2490, %v3438
    %3440 = vmatmul.mubr.f32.gmra.mrb[0].mxu0 %v3439
    %v3441 = vpop.f32.mrb[0].mxu0
    %v3442 = vadd.f32 %v3140, %v3441
    %v3443 = vpop.f32.mrb[0].mxu0
    %3444 = vmatprep.mubr.f32.mxu0 0.0
    %v3445 = vand.u32 %v2493, 4294901760
    %v3446 = vsub.f32 %v2493, %v3445
    %3447 = vmatmul.mubr.f32.gmra.mrb[0].mxu0 %v3446
    %v3448 = vpop.f32.mrb[0].mxu0
    %v3449 = vadd.f32 %v3146, %v3448
    %v3450 = vpop.f32.mrb[0].mxu0
    %3451 = vmatprep.mubr.f32.mxu0 0.0
    %v3452 = vand.u32 %v2496, 4294901760
    %v3453 = vsub.f32 %v2496, %v3452
    %3454 = vmatmul.mubr.f32.gmra.mrb[0].mxu0 %v3453
    %v3455 = vpop.f32.mrb[0].mxu0
    %v3456 = vadd.f32 %v3152, %v3455
    %v3457 = vpop.f32.mrb[0].mxu0
    %3458 = vmatprep.mubr.f32.mxu0 0.0
    %v3459 = vand.u32 %v2499, 4294901760
    %v3460 = vsub.f32 %v2499, %v3459
    %3461 = vmatmul.mubr.f32.gmra.mrb[0].mxu0 %v3460
    %v3462 = vpop.f32.mrb[0].mxu0
    %v3463 = vadd.f32 %v3158, %v3462
    %v3464 = vpop.f32.mrb[0].mxu0
    %3465 = vmatprep.mubr.f32.mxu0 0.0
    %v3466 = vand.u32 %v2502, 4294901760
    %v3467 = vsub.f32 %v2502, %v3466
    %3468 = vmatmul.mubr.f32.gmra.mrb[0].mxu0 %v3467
    %v3469 = vpop.f32.mrb[0].mxu0
    %v3470 = vadd.f32 %v3164, %v3469
    %v3471 = vpop.f32.mrb[0].mxu0
    %3472 = vmatprep.mubr.f32.mxu0 0.0
    %v3473 = vand.u32 %v2505, 4294901760
    %v3474 = vsub.f32 %v2505, %v3473
    %3475 = vmatmul.mubr.f32.gmra.mrb[0].mxu0 %v3474
    %v3476 = vpop.f32.mrb[0].mxu0
    %v3477 = vadd.f32 %v3170, %v3476
    %v3478 = vpop.f32.mrb[0].mxu0
    %3479 = vmatprep.mubr.f32.mxu0 0.0
    %v3480 = vand.u32 %v2508, 4294901760
    %v3481 = vsub.f32 %v2508, %v3480
    %3482 = vmatmul.mubr.f32.gmra.mrb[0].mxu0 %v3481
    %v3483 = vpop.f32.mrb[0].mxu0
    %v3484 = vadd.f32 %v3176, %v3483
    %v3485 = vpop.f32.mrb[0].mxu0
    %3486 = vmatprep.mubr.f32.mxu0 0.0
    %v3487 = vand.u32 %v2511, 4294901760
    %v3488 = vsub.f32 %v2511, %v3487
    %3489 = vmatmul.mubr.f32.gmra.mrb[0].mxu0 %v3488
    %v3490 = vpop.f32.mrb[0].mxu0
    %v3491 = vadd.f32 %v3182, %v3490
    %v3492 = vpop.f32.mrb[0].mxu0
    %3493 = vmatprep.mubr.f32.mxu0 0.0
    %v3494 = vand.u32 %v2514, 4294901760
    %v3495 = vsub.f32 %v2514, %v3494
    %3496 = vmatmul.mubr.f32.gmra.mrb[0].mxu0 %v3495
    %v3497 = vpop.f32.mrb[0].mxu0
    %v3498 = vadd.f32 %v3188, %v3497
    %v3499 = vpop.f32.mrb[0].mxu0
    %3500 = vmatprep.mubr.f32.mxu0 0.0
    %v3501 = vand.u32 %v2517, 4294901760
    %v3502 = vsub.f32 %v2517, %v3501
    %3503 = vmatmul.mubr.f32.gmra.mrb[0].mxu0 %v3502
    %v3504 = vpop.f32.mrb[0].mxu0
    %v3505 = vadd.f32 %v3194, %v3504
    %v3506 = vpop.f32.mrb[0].mxu0
    %3507 = vmatprep.mubr.f32.mxu0 0.0
    %v3508 = vand.u32 %v2520, 4294901760
    %v3509 = vsub.f32 %v2520, %v3508
    %3510 = vmatmul.mubr.f32.gmra.mrb[0].mxu0 %v3509
    %v3511 = vpop.f32.mrb[0].mxu0
    %v3512 = vadd.f32 %v3200, %v3511
    %v3513 = vpop.f32.mrb[0].mxu0
    %3514 = vmatprep.mubr.f32.mxu0 0.0
    %v3515 = vand.u32 %v2523, 4294901760
    %v3516 = vsub.f32 %v2523, %v3515
    %3517 = vmatmul.mubr.f32.gmra.mrb[0].mxu0 %v3516
    %v3518 = vpop.f32.mrb[0].mxu0
    %v3519 = vadd.f32 %v3206, %v3518
    %v3520 = vpop.f32.mrb[0].mxu0
    %3521 = vmatprep.mubr.f32.mxu0 0.0
    %v3522 = vand.u32 %v2526, 4294901760
    %v3523 = vsub.f32 %v2526, %v3522
    %3524 = vmatmul.mubr.f32.gmra.mrb[0].mxu0 %v3523
    %v3525 = vpop.f32.mrb[0].mxu0
    %v3526 = vadd.f32 %v3212, %v3525
    %v3527 = vpop.f32.mrb[0].mxu0
    %3528 = vmatprep.mubr.f32.mxu0 0.0
    %v3529 = vand.u32 %v2529, 4294901760
    %v3530 = vsub.f32 %v2529, %v3529
    %3531 = vmatmul.mubr.f32.gmra.mrb[0].mxu0 %v3530
    %v3532 = vpop.f32.mrb[0].mxu0
    %v3533 = vadd.f32 %v3218, %v3532
    %v3534 = vpop.f32.mrb[0].mxu0
    %3535 = vmatprep.mubr.f32.mxu0 0.0
    %v3536 = vand.u32 %v2532, 4294901760
    %v3537 = vsub.f32 %v2532, %v3536
    %3538 = vmatmul.mubr.f32.gmra.mrb[0].mxu0 %v3537
    %v3539 = vpop.f32.mrb[0].mxu0
    %v3540 = vadd.f32 %v3224, %v3539
    %v3541 = vpop.f32.mrb[0].mxu0
    %3542 = vmatprep.mubr.f32.mxu0 0.0
    %v3543 = vand.u32 %v2535, 4294901760
    %v3544 = vsub.f32 %v2535, %v3543
    %3545 = vmatmul.mubr.f32.gmra.mrb[0].mxu0 %v3544
    %v3546 = vpop.f32.mrb[0].mxu0
    %v3547 = vadd.f32 %v3230, %v3546
    %v3548 = vpop.f32.mrb[0].mxu0
    %3549 = vmatprep.mubr.f32.mxu0 0.0
    %v3550 = vand.u32 %v2538, 4294901760
    %v3551 = vsub.f32 %v2538, %v3550
    %3552 = vmatmul.mubr.f32.gmra.mrb[0].mxu0 %v3551
    %v3553 = vpop.f32.mrb[0].mxu0
    %v3554 = vadd.f32 %v3236, %v3553
    %v3555 = vpop.f32.mrb[0].mxu0
    %3556 = vmatprep.mubr.f32.mxu0 0.0
    %v3557 = vand.u32 %v2541, 4294901760
    %v3558 = vsub.f32 %v2541, %v3557
    %3559 = vmatmul.mubr.f32.gmra.mrb[0].mxu0 %v3558
    %v3560 = vpop.f32.mrb[0].mxu0
    %v3561 = vadd.f32 %v3242, %v3560
    %v3562 = vpop.f32.mrb[0].mxu0
    %3563 = vmatprep.mubr.f32.mxu0 0.0
    %v3564 = vand.u32 %v2544, 4294901760
    %v3565 = vsub.f32 %v2544, %v3564
    %3566 = vmatmul.mubr.f32.gmra.mrb[0].mxu0 %v3565
    %v3567 = vpop.f32.mrb[0].mxu0
    %v3568 = vadd.f32 %v3248, %v3567
    %v3569 = vpop.f32.mrb[0].mxu0
    %3570 = vmatprep.mubr.f32.mxu0 0.0
    %v3571 = vand.u32 %v2547, 4294901760
    %v3572 = vsub.f32 %v2547, %v3571
    %3573 = vmatmul.mubr.f32.gmra.mrb[0].mxu0 %v3572
    %v3574 = vpop.f32.mrb[0].mxu0
    %v3575 = vadd.f32 %v3254, %v3574
    %v3576 = vpop.f32.mrb[0].mxu0
    %3577 = vmatprep.mubr.f32.mxu0 0.0
    %v3578 = vand.u32 %v2550, 4294901760
    %v3579 = vsub.f32 %v2550, %v3578
    %3580 = vmatmul.mubr.f32.gmra.mrb[0].mxu0 %v3579
    %v3581 = vpop.f32.mrb[0].mxu0
    %v3582 = vadd.f32 %v3260, %v3581
    %v3583 = vpop.f32.mrb[0].mxu0
    %3584 = vmatprep.mubr.f32.mxu0 0.0
    %v3585 = vand.u32 %v2553, 4294901760
    %v3586 = vsub.f32 %v2553, %v3585
    %3587 = vmatmul.mubr.f32.gmra.mrb[0].mxu0 %v3586
    %v3588 = vpop.f32.mrb[0].mxu0
    %v3589 = vadd.f32 %v3266, %v3588
    %v3590 = vpop.f32.mrb[0].mxu0
    %3591 = vmatprep.mubr.f32.mxu0 0.0
    %v3592 = vand.u32 %v2556, 4294901760
    %v3593 = vsub.f32 %v2556, %v3592
    %3594 = vmatmul.mubr.f32.gmra.mrb[0].mxu0 %v3593
    %v3595 = vpop.f32.mrb[0].mxu0
    %v3596 = vadd.f32 %v3272, %v3595
    %v3597 = vpop.f32.mrb[0].mxu0
    %3598 = vmatprep.mubr.f32.mxu0 0.0
    %v3599 = vand.u32 %v2559, 4294901760
    %v3600 = vsub.f32 %v2559, %v3599
    %3601 = vmatmul.mubr.f32.gmra.mrb[0].mxu0 %v3600
    %v3602 = vpop.f32.mrb[0].mxu0
    %v3603 = vadd.f32 %v3278, %v3602
    %v3604 = vpop.f32.mrb[0].mxu0
    %3605 = vmatprep.mubr.f32.mxu0 0.0
    %v3606 = vand.u32 %v2562, 4294901760
    %v3607 = vsub.f32 %v2562, %v3606
    %3608 = vmatmul.mubr.f32.gmra.mrb[0].mxu0 %v3607
    %v3609 = vpop.f32.mrb[0].mxu0
    %v3610 = vadd.f32 %v3284, %v3609
    %v3611 = vpop.f32.mrb[0].mxu0
    %3612 = vmatprep.mubr.f32.mxu0 0.0
    %v3613 = vand.u32 %v2565, 4294901760
    %v3614 = vsub.f32 %v2565, %v3613
    %3615 = vmatmul.mubr.f32.gmra.mrb[0].mxu0 %v3614
    %v3616 = vpop.f32.mrb[0].mxu0
    %v3617 = vadd.f32 %v3290, %v3616
    %v3618 = vpop.f32.mrb[0].mxu0
    %3619 = vmatprep.mubr.f32.mxu0 0.0
    %v3620 = vand.u32 %v2568, 4294901760
    %v3621 = vsub.f32 %v2568, %v3620
    %3622 = vmatmul.mubr.f32.gmra.mrb[0].mxu0 %v3621
    %v3623 = vpop.f32.mrb[0].mxu0
    %v3624 = vadd.f32 %v3296, %v3623
    %v3625 = vpop.f32.mrb[0].mxu0
    %3626 = vmatprep.mubr.f32.mxu0 0.0
    %v3627 = vand.u32 %v2571, 4294901760
    %v3628 = vsub.f32 %v2571, %v3627
    %3629 = vmatmul.mubr.f32.gmra.mrb[0].mxu0 %v3628
    %v3630 = vpop.f32.mrb[0].mxu0
    %v3631 = vadd.f32 %v3302, %v3630
    %v3632 = vpop.f32.mrb[0].mxu0
    %3633 = vmatprep.mubr.f32.mxu0 0.0
    %v3634 = vand.u32 %v2574, 4294901760
    %v3635 = vsub.f32 %v2574, %v3634
    %3636 = vmatmul.mubr.f32.gmra.mrb[0].mxu0 %v3635
    %v3637 = vpop.f32.mrb[0].mxu0
    %v3638 = vadd.f32 %v3308, %v3637
    %v3639 = vpop.f32.mrb[0].mxu0
    %3640 = vmatprep.mubr.f32.mxu0 0.0
    %v3641 = vand.u32 %v2577, 4294901760
    %v3642 = vsub.f32 %v2577, %v3641
    %3643 = vmatmul.mubr.f32.gmra.mrb[0].mxu0 %v3642
    %v3644 = vpop.f32.mrb[0].mxu0
    %v3645 = vadd.f32 %v3314, %v3644
    %v3646 = vpop.f32.mrb[0].mxu0
    %3647 = vmatprep.mubr.f32.mxu0 0.0
    %v3648 = vand.u32 %v2580, 4294901760
    %v3649 = vsub.f32 %v2580, %v3648
    %3650 = vmatmul.mubr.f32.gmra.mrb[0].mxu0 %v3649
    %v3651 = vpop.f32.mrb[0].mxu0
    %v3652 = vadd.f32 %v3320, %v3651
    %v3653 = vpop.f32.mrb[0].mxu0
    %3654 = vmatprep.mubr.f32.mxu0 0.0
    %v3655 = vand.u32 %v2583, 4294901760
    %v3656 = vsub.f32 %v2583, %v3655
    %3657 = vmatmul.mubr.f32.gmra.mrb[0].mxu0 %v3656
    %v3658 = vpop.f32.mrb[0].mxu0
    %v3659 = vadd.f32 %v3326, %v3658
    %v3660 = vpop.f32.mrb[0].mxu0
    %3661 = vmatprep.mubr.f32.mxu0 0.0
    %v3662 = vand.u32 %v2586, 4294901760
    %v3663 = vsub.f32 %v2586, %v3662
    %3664 = vmatmul.mubr.f32.gmra.mrb[0].mxu0 %v3663
    %v3665 = vpop.f32.mrb[0].mxu0
    %v3666 = vadd.f32 %v3332, %v3665
    %v3667 = vpop.f32.mrb[0].mxu0
    %3668 = vmatprep.mubr.f32.mxu0 0.0
    %v3669 = vand.u32 %v2589, 4294901760
    %v3670 = vsub.f32 %v2589, %v3669
    %3671 = vmatmul.mubr.f32.gmra.mrb[0].mxu0 %v3670
    %v3672 = vpop.f32.mrb[0].mxu0
    %v3673 = vadd.f32 %v3338, %v3672
    %v3674 = vpop.f32.mrb[0].mxu0
    %3675 = vmatprep.mubr.f32.mxu0 0.0
    %v3676 = vand.u32 %v2592, 4294901760
    %v3677 = vsub.f32 %v2592, %v3676
    %3678 = vmatmul.mubr.f32.gmra.mrb[0].mxu0 %v3677
    %v3679 = vpop.f32.mrb[0].mxu0
    %v3680 = vadd.f32 %v3344, %v3679
    %v3681 = vpop.f32.mrb[0].mxu0
    %3682 = vmatprep.mubr.f32.mxu0 0.0
    %v3683 = vand.u32 %v2595, 4294901760
    %v3684 = vsub.f32 %v2595, %v3683
    %3685 = vmatmul.mubr.f32.gmra.mrb[0].mxu0 %v3684
    %v3686 = vpop.f32.mrb[0].mxu0
    %v3687 = vadd.f32 %v3350, %v3686
    %v3688 = vpop.f32.mrb[0].mxu0
    %3689 = vmatprep.mubr.f32.mxu0 0.0
    %v3690 = vand.u32 %v2598, 4294901760
    %v3691 = vsub.f32 %v2598, %v3690
    %3692 = vmatmul.mubr.f32.gmra.mrb[0].mxu0 %v3691
    %v3693 = vpop.f32.mrb[0].mxu0
    %v3694 = vadd.f32 %v3356, %v3693
    %v3695 = vpop.f32.mrb[0].mxu0
    %3696 = vmatprep.mubr.f32.mxu0 0.0
    %v3697 = vand.u32 %v2601, 4294901760
    %v3698 = vsub.f32 %v2601, %v3697
    %3699 = vmatmul.mubr.f32.gmra.mrb[0].mxu0 %v3698
    %v3700 = vpop.f32.mrb[0].mxu0
    %v3701 = vadd.f32 %v3362, %v3700
    %v3702 = vpop.f32.mrb[0].mxu0
    %3703 = vdwg.mxu0
    %3704 = vmatprep.subr.mxu0 0.0
    %v3705 = vand.u32 %v290, 4294901760
    %3706 = vmatpush1.msra.mxu0 %v3705
    %3707 = vmatprep.subr.mxu0 0.0
    %v3708 = vand.u32 %v291, 4294901760
    %3709 = vmatpush1.msra.mxu0 %v3708
    %3710 = vmatprep.subr.mxu0 0.0
    %v3711 = vand.u32 %v292, 4294901760
    %3712 = vmatpush1.msra.mxu0 %v3711
    %3713 = vmatprep.subr.mxu0 0.0
    %v3714 = vand.u32 %v293, 4294901760
    %3715 = vmatpush1.msra.mxu0 %v3714
    %3716 = vmatprep.subr.mxu0 0.0
    %3717 = vmatpush1.msra.mxu0 0.0
    %3718 = vmatprep.subr.mxu0 0.0
    %3719 = vmatpush1.msra.mxu0 0.0
    %3720 = vmatprep.subr.mxu0 0.0
    %3721 = vmatpush1.msra.mxu0 0.0
    %3722 = vmatprep.subr.mxu0 0.0
    %3723 = vmatpush1.msra.mxu0 0.0
    %3724 = vmatprep.subr.mxu0 0.0
    %3725 = vmatpush1.msra.mxu0 0.0
    %3726 = vmatprep.subr.mxu0 0.0
    %3727 = vmatpush1.msra.mxu0 0.0
    %3728 = vmatprep.subr.mxu0 0.0
    %3729 = vmatpush1.msra.mxu0 0.0
    %3730 = vmatprep.subr.mxu0 0.0
    %3731 = vmatpush1.msra.mxu0 0.0
    %3732 = vmatprep.subr.mxu0 0.0
    %3733 = vmatpush1.msra.mxu0 0.0
    %3734 = vmatprep.subr.mxu0 0.0
    %3735 = vmatpush1.msra.mxu0 0.0
    %3736 = vmatprep.subr.mxu0 0.0
    %3737 = vmatpush1.msra.mxu0 0.0
    %3738 = vmatprep.subr.mxu0 0.0
    %3739 = vmatpush1.msra.mxu0 0.0
    %3740 = vmatprep.subr.mxu0 0.0
    %3741 = vmatpush1.msra.mxu0 0.0
    %3742 = vmatprep.subr.mxu0 0.0
    %3743 = vmatpush1.msra.mxu0 0.0
    %3744 = vmatprep.subr.mxu0 0.0
    %3745 = vmatpush1.msra.mxu0 0.0
    %3746 = vmatprep.subr.mxu0 0.0
    %3747 = vmatpush1.msra.mxu0 0.0
    %3748 = vmatprep.subr.mxu0 0.0
    %3749 = vmatpush1.msra.mxu0 0.0
    %3750 = vmatprep.subr.mxu0 0.0
    %3751 = vmatpush1.msra.mxu0 0.0
    %3752 = vmatprep.subr.mxu0 0.0
    %3753 = vmatpush1.msra.mxu0 0.0
    %3754 = vmatprep.subr.mxu0 0.0
    %3755 = vmatpush1.msra.mxu0 0.0
    %3756 = vmatprep.subr.mxu0 0.0
    %3757 = vmatpush1.msra.mxu0 0.0
    %3758 = vmatprep.subr.mxu0 0.0
    %3759 = vmatpush1.msra.mxu0 0.0
    %3760 = vmatprep.subr.mxu0 0.0
    %3761 = vmatpush1.msra.mxu0 0.0
    %3762 = vmatprep.subr.mxu0 0.0
    %3763 = vmatpush1.msra.mxu0 0.0
    %3764 = vmatprep.subr.mxu0 0.0
    %3765 = vmatpush1.msra.mxu0 0.0
    %3766 = vmatprep.subr.mxu0 0.0
    %3767 = vmatpush1.msra.mxu0 0.0
    %3768 = vmatprep.subr.mxu0 0.0
    %3769 = vmatpush1.msra.mxu0 0.0
    %3770 = vmatprep.subr.mxu0 0.0
    %3771 = vmatpush1.msra.mxu0 0.0
    %3772 = vmatprep.mubr.f32.mxu0 0.0
    %v3773 = vand.u32 %v2490, 4294901760
    %v3774 = vsub.f32 %v2490, %v3773
    %v3775 = vand.u32 %v3774, 4294901760
    %3776 = vmatmul.mubr.f32.gmra.mrb[0].mxu0 %v3775
    %v3777 = vpop.f32.mrb[0].mxu0
    %v3778 = vadd.f32 %v3442, %v3777
    %v3779 = vpop.f32.mrb[0].mxu0
    %3780 = vmatprep.mubr.f32.mxu0 0.0
    %v3781 = vand.u32 %v2493, 4294901760
    %v3782 = vsub.f32 %v2493, %v3781
    %v3783 = vand.u32 %v3782, 4294901760
    %3784 = vmatmul.mubr.f32.gmra.mrb[0].mxu0 %v3783
    %v3785 = vpop.f32.mrb[0].mxu0
    %v3786 = vadd.f32 %v3449, %v3785
    %v3787 = vpop.f32.mrb[0].mxu0
    %3788 = vmatprep.mubr.f32.mxu0 0.0
    %v3789 = vand.u32 %v2496, 4294901760
    %v3790 = vsub.f32 %v2496, %v3789
    %v3791 = vand.u32 %v3790, 4294901760
    %3792 = vmatmul.mubr.f32.gmra.mrb[0].mxu0 %v3791
    %v3793 = vpop.f32.mrb[0].mxu0
    %v3794 = vadd.f32 %v3456, %v3793
    %v3795 = vpop.f32.mrb[0].mxu0
    %3796 = vmatprep.mubr.f32.mxu0 0.0
    %v3797 = vand.u32 %v2499, 4294901760
    %v3798 = vsub.f32 %v2499, %v3797
    %v3799 = vand.u32 %v3798, 4294901760
    %3800 = vmatmul.mubr.f32.gmra.mrb[0].mxu0 %v3799
    %v3801 = vpop.f32.mrb[0].mxu0
    %v3802 = vadd.f32 %v3463, %v3801
    %v3803 = vpop.f32.mrb[0].mxu0
    %3804 = vmatprep.mubr.f32.mxu0 0.0
    %v3805 = vand.u32 %v2502, 4294901760
    %v3806 = vsub.f32 %v2502, %v3805
    %v3807 = vand.u32 %v3806, 4294901760
    %3808 = vmatmul.mubr.f32.gmra.mrb[0].mxu0 %v3807
    %v3809 = vpop.f32.mrb[0].mxu0
    %v3810 = vadd.f32 %v3470, %v3809
    %v3811 = vpop.f32.mrb[0].mxu0
    %3812 = vmatprep.mubr.f32.mxu0 0.0
    %v3813 = vand.u32 %v2505, 4294901760
    %v3814 = vsub.f32 %v2505, %v3813
    %v3815 = vand.u32 %v3814, 4294901760
    %3816 = vmatmul.mubr.f32.gmra.mrb[0].mxu0 %v3815
    %v3817 = vpop.f32.mrb[0].mxu0
    %v3818 = vadd.f32 %v3477, %v3817
    %v3819 = vpop.f32.mrb[0].mxu0
    %3820 = vmatprep.mubr.f32.mxu0 0.0
    %v3821 = vand.u32 %v2508, 4294901760
    %v3822 = vsub.f32 %v2508, %v3821
    %v3823 = vand.u32 %v3822, 4294901760
    %3824 = vmatmul.mubr.f32.gmra.mrb[0].mxu0 %v3823
    %v3825 = vpop.f32.mrb[0].mxu0
    %v3826 = vadd.f32 %v3484, %v3825
    %v3827 = vpop.f32.mrb[0].mxu0
    %3828 = vmatprep.mubr.f32.mxu0 0.0
    %v3829 = vand.u32 %v2511, 4294901760
    %v3830 = vsub.f32 %v2511, %v3829
    %v3831 = vand.u32 %v3830, 4294901760
    %3832 = vmatmul.mubr.f32.gmra.mrb[0].mxu0 %v3831
    %v3833 = vpop.f32.mrb[0].mxu0
    %v3834 = vadd.f32 %v3491, %v3833
    %v3835 = vpop.f32.mrb[0].mxu0
    %3836 = vmatprep.mubr.f32.mxu0 0.0
    %v3837 = vand.u32 %v2514, 4294901760
    %v3838 = vsub.f32 %v2514, %v3837
    %v3839 = vand.u32 %v3838, 4294901760
    %3840 = vmatmul.mubr.f32.gmra.mrb[0].mxu0 %v3839
    %v3841 = vpop.f32.mrb[0].mxu0
    %v3842 = vadd.f32 %v3498, %v3841
    %v3843 = vpop.f32.mrb[0].mxu0
    %3844 = vmatprep.mubr.f32.mxu0 0.0
    %v3845 = vand.u32 %v2517, 4294901760
    %v3846 = vsub.f32 %v2517, %v3845
    %v3847 = vand.u32 %v3846, 4294901760
    %3848 = vmatmul.mubr.f32.gmra.mrb[0].mxu0 %v3847
    %v3849 = vpop.f32.mrb[0].mxu0
    %v3850 = vadd.f32 %v3505, %v3849
    %v3851 = vpop.f32.mrb[0].mxu0
    %3852 = vmatprep.mubr.f32.mxu0 0.0
    %v3853 = vand.u32 %v2520, 4294901760
    %v3854 = vsub.f32 %v2520, %v3853
    %v3855 = vand.u32 %v3854, 4294901760
    %3856 = vmatmul.mubr.f32.gmra.mrb[0].mxu0 %v3855
    %v3857 = vpop.f32.mrb[0].mxu0
    %v3858 = vadd.f32 %v3512, %v3857
    %v3859 = vpop.f32.mrb[0].mxu0
    %3860 = vmatprep.mubr.f32.mxu0 0.0
    %v3861 = vand.u32 %v2523, 4294901760
    %v3862 = vsub.f32 %v2523, %v3861
    %v3863 = vand.u32 %v3862, 4294901760
    %3864 = vmatmul.mubr.f32.gmra.mrb[0].mxu0 %v3863
    %v3865 = vpop.f32.mrb[0].mxu0
    %v3866 = vadd.f32 %v3519, %v3865
    %v3867 = vpop.f32.mrb[0].mxu0
    %3868 = vmatprep.mubr.f32.mxu0 0.0
    %v3869 = vand.u32 %v2526, 4294901760
    %v3870 = vsub.f32 %v2526, %v3869
    %v3871 = vand.u32 %v3870, 4294901760
    %3872 = vmatmul.mubr.f32.gmra.mrb[0].mxu0 %v3871
    %v3873 = vpop.f32.mrb[0].mxu0
    %v3874 = vadd.f32 %v3526, %v3873
    %v3875 = vpop.f32.mrb[0].mxu0
    %3876 = vmatprep.mubr.f32.mxu0 0.0
    %v3877 = vand.u32 %v2529, 4294901760
    %v3878 = vsub.f32 %v2529, %v3877
    %v3879 = vand.u32 %v3878, 4294901760
    %3880 = vmatmul.mubr.f32.gmra.mrb[0].mxu0 %v3879
    %v3881 = vpop.f32.mrb[0].mxu0
    %v3882 = vadd.f32 %v3533, %v3881
    %v3883 = vpop.f32.mrb[0].mxu0
    %3884 = vmatprep.mubr.f32.mxu0 0.0
    %v3885 = vand.u32 %v2532, 4294901760
    %v3886 = vsub.f32 %v2532, %v3885
    %v3887 = vand.u32 %v3886, 4294901760
    %3888 = vmatmul.mubr.f32.gmra.mrb[0].mxu0 %v3887
    %v3889 = vpop.f32.mrb[0].mxu0
    %v3890 = vadd.f32 %v3540, %v3889
    %v3891 = vpop.f32.mrb[0].mxu0
    %3892 = vmatprep.mubr.f32.mxu0 0.0
    %v3893 = vand.u32 %v2535, 4294901760
    %v3894 = vsub.f32 %v2535, %v3893
    %v3895 = vand.u32 %v3894, 4294901760
    %3896 = vmatmul.mubr.f32.gmra.mrb[0].mxu0 %v3895
    %v3897 = vpop.f32.mrb[0].mxu0
    %v3898 = vadd.f32 %v3547, %v3897
    %v3899 = vpop.f32.mrb[0].mxu0
    %3900 = vmatprep.mubr.f32.mxu0 0.0
    %v3901 = vand.u32 %v2538, 4294901760
    %v3902 = vsub.f32 %v2538, %v3901
    %v3903 = vand.u32 %v3902, 4294901760
    %3904 = vmatmul.mubr.f32.gmra.mrb[0].mxu0 %v3903
    %v3905 = vpop.f32.mrb[0].mxu0
    %v3906 = vadd.f32 %v3554, %v3905
    %v3907 = vpop.f32.mrb[0].mxu0
    %3908 = vmatprep.mubr.f32.mxu0 0.0
    %v3909 = vand.u32 %v2541, 4294901760
    %v3910 = vsub.f32 %v2541, %v3909
    %v3911 = vand.u32 %v3910, 4294901760
    %3912 = vmatmul.mubr.f32.gmra.mrb[0].mxu0 %v3911
    %v3913 = vpop.f32.mrb[0].mxu0
    %v3914 = vadd.f32 %v3561, %v3913
    %v3915 = vpop.f32.mrb[0].mxu0
    %3916 = vmatprep.mubr.f32.mxu0 0.0
    %v3917 = vand.u32 %v2544, 4294901760
    %v3918 = vsub.f32 %v2544, %v3917
    %v3919 = vand.u32 %v3918, 4294901760
    %3920 = vmatmul.mubr.f32.gmra.mrb[0].mxu0 %v3919
    %v3921 = vpop.f32.mrb[0].mxu0
    %v3922 = vadd.f32 %v3568, %v3921
    %v3923 = vpop.f32.mrb[0].mxu0
    %3924 = vmatprep.mubr.f32.mxu0 0.0
    %v3925 = vand.u32 %v2547, 4294901760
    %v3926 = vsub.f32 %v2547, %v3925
    %v3927 = vand.u32 %v3926, 4294901760
    %3928 = vmatmul.mubr.f32.gmra.mrb[0].mxu0 %v3927
    %v3929 = vpop.f32.mrb[0].mxu0
    %v3930 = vadd.f32 %v3575, %v3929
    %v3931 = vpop.f32.mrb[0].mxu0
    %3932 = vmatprep.mubr.f32.mxu0 0.0
    %v3933 = vand.u32 %v2550, 4294901760
    %v3934 = vsub.f32 %v2550, %v3933
    %v3935 = vand.u32 %v3934, 4294901760
    %3936 = vmatmul.mubr.f32.gmra.mrb[0].mxu0 %v3935
    %v3937 = vpop.f32.mrb[0].mxu0
    %v3938 = vadd.f32 %v3582, %v3937
    %v3939 = vpop.f32.mrb[0].mxu0
    %3940 = vmatprep.mubr.f32.mxu0 0.0
    %v3941 = vand.u32 %v2553, 4294901760
    %v3942 = vsub.f32 %v2553, %v3941
    %v3943 = vand.u32 %v3942, 4294901760
    %3944 = vmatmul.mubr.f32.gmra.mrb[0].mxu0 %v3943
    %v3945 = vpop.f32.mrb[0].mxu0
    %v3946 = vadd.f32 %v3589, %v3945
    %v3947 = vpop.f32.mrb[0].mxu0
    %3948 = vmatprep.mubr.f32.mxu0 0.0
    %v3949 = vand.u32 %v2556, 4294901760
    %v3950 = vsub.f32 %v2556, %v3949
    %v3951 = vand.u32 %v3950, 4294901760
    %3952 = vmatmul.mubr.f32.gmra.mrb[0].mxu0 %v3951
    %v3953 = vpop.f32.mrb[0].mxu0
    %v3954 = vadd.f32 %v3596, %v3953
    %v3955 = vpop.f32.mrb[0].mxu0
    %3956 = vmatprep.mubr.f32.mxu0 0.0
    %v3957 = vand.u32 %v2559, 4294901760
    %v3958 = vsub.f32 %v2559, %v3957
    %v3959 = vand.u32 %v3958, 4294901760
    %3960 = vmatmul.mubr.f32.gmra.mrb[0].mxu0 %v3959
    %v3961 = vpop.f32.mrb[0].mxu0
    %v3962 = vadd.f32 %v3603, %v3961
    %v3963 = vpop.f32.mrb[0].mxu0
    %3964 = vmatprep.mubr.f32.mxu0 0.0
    %v3965 = vand.u32 %v2562, 4294901760
    %v3966 = vsub.f32 %v2562, %v3965
    %v3967 = vand.u32 %v3966, 4294901760
    %3968 = vmatmul.mubr.f32.gmra.mrb[0].mxu0 %v3967
    %v3969 = vpop.f32.mrb[0].mxu0
    %v3970 = vadd.f32 %v3610, %v3969
    %v3971 = vpop.f32.mrb[0].mxu0
    %3972 = vmatprep.mubr.f32.mxu0 0.0
    %v3973 = vand.u32 %v2565, 4294901760
    %v3974 = vsub.f32 %v2565, %v3973
    %v3975 = vand.u32 %v3974, 4294901760
    %3976 = vmatmul.mubr.f32.gmra.mrb[0].mxu0 %v3975
    %v3977 = vpop.f32.mrb[0].mxu0
    %v3978 = vadd.f32 %v3617, %v3977
    %v3979 = vpop.f32.mrb[0].mxu0
    %3980 = vmatprep.mubr.f32.mxu0 0.0
    %v3981 = vand.u32 %v2568, 4294901760
    %v3982 = vsub.f32 %v2568, %v3981
    %v3983 = vand.u32 %v3982, 4294901760
    %3984 = vmatmul.mubr.f32.gmra.mrb[0].mxu0 %v3983
    %v3985 = vpop.f32.mrb[0].mxu0
    %v3986 = vadd.f32 %v3624, %v3985
    %v3987 = vpop.f32.mrb[0].mxu0
    %3988 = vmatprep.mubr.f32.mxu0 0.0
    %v3989 = vand.u32 %v2571, 4294901760
    %v3990 = vsub.f32 %v2571, %v3989
    %v3991 = vand.u32 %v3990, 4294901760
    %3992 = vmatmul.mubr.f32.gmra.mrb[0].mxu0 %v3991
    %v3993 = vpop.f32.mrb[0].mxu0
    %v3994 = vadd.f32 %v3631, %v3993
    %v3995 = vpop.f32.mrb[0].mxu0
    %3996 = vmatprep.mubr.f32.mxu0 0.0
    %v3997 = vand.u32 %v2574, 4294901760
    %v3998 = vsub.f32 %v2574, %v3997
    %v3999 = vand.u32 %v3998, 4294901760
    %4000 = vmatmul.mubr.f32.gmra.mrb[0].mxu0 %v3999
    %v4001 = vpop.f32.mrb[0].mxu0
    %v4002 = vadd.f32 %v3638, %v4001
    %v4003 = vpop.f32.mrb[0].mxu0
    %4004 = vmatprep.mubr.f32.mxu0 0.0
    %v4005 = vand.u32 %v2577, 4294901760
    %v4006 = vsub.f32 %v2577, %v4005
    %v4007 = vand.u32 %v4006, 4294901760
    %4008 = vmatmul.mubr.f32.gmra.mrb[0].mxu0 %v4007
    %v4009 = vpop.f32.mrb[0].mxu0
    %v4010 = vadd.f32 %v3645, %v4009
    %v4011 = vpop.f32.mrb[0].mxu0
    %4012 = vmatprep.mubr.f32.mxu0 0.0
    %v4013 = vand.u32 %v2580, 4294901760
    %v4014 = vsub.f32 %v2580, %v4013
    %v4015 = vand.u32 %v4014, 4294901760
    %4016 = vmatmul.mubr.f32.gmra.mrb[0].mxu0 %v4015
    %v4017 = vpop.f32.mrb[0].mxu0
    %v4018 = vadd.f32 %v3652, %v4017
    %v4019 = vpop.f32.mrb[0].mxu0
    %4020 = vmatprep.mubr.f32.mxu0 0.0
    %v4021 = vand.u32 %v2583, 4294901760
    %v4022 = vsub.f32 %v2583, %v4021
    %v4023 = vand.u32 %v4022, 4294901760
    %4024 = vmatmul.mubr.f32.gmra.mrb[0].mxu0 %v4023
    %v4025 = vpop.f32.mrb[0].mxu0
    %v4026 = vadd.f32 %v3659, %v4025
    %v4027 = vpop.f32.mrb[0].mxu0
    %4028 = vmatprep.mubr.f32.mxu0 0.0
    %v4029 = vand.u32 %v2586, 4294901760
    %v4030 = vsub.f32 %v2586, %v4029
    %v4031 = vand.u32 %v4030, 4294901760
    %4032 = vmatmul.mubr.f32.gmra.mrb[0].mxu0 %v4031
    %v4033 = vpop.f32.mrb[0].mxu0
    %v4034 = vadd.f32 %v3666, %v4033
    %v4035 = vpop.f32.mrb[0].mxu0
    %4036 = vmatprep.mubr.f32.mxu0 0.0
    %v4037 = vand.u32 %v2589, 4294901760
    %v4038 = vsub.f32 %v2589, %v4037
    %v4039 = vand.u32 %v4038, 4294901760
    %4040 = vmatmul.mubr.f32.gmra.mrb[0].mxu0 %v4039
    %v4041 = vpop.f32.mrb[0].mxu0
    %v4042 = vadd.f32 %v3673, %v4041
    %v4043 = vpop.f32.mrb[0].mxu0
    %4044 = vmatprep.mubr.f32.mxu0 0.0
    %v4045 = vand.u32 %v2592, 4294901760
    %v4046 = vsub.f32 %v2592, %v4045
    %v4047 = vand.u32 %v4046, 4294901760
    %4048 = vmatmul.mubr.f32.gmra.mrb[0].mxu0 %v4047
    %v4049 = vpop.f32.mrb[0].mxu0
    %v4050 = vadd.f32 %v3680, %v4049
    %v4051 = vpop.f32.mrb[0].mxu0
    %4052 = vmatprep.mubr.f32.mxu0 0.0
    %v4053 = vand.u32 %v2595, 4294901760
    %v4054 = vsub.f32 %v2595, %v4053
    %v4055 = vand.u32 %v4054, 4294901760
    %4056 = vmatmul.mubr.f32.gmra.mrb[0].mxu0 %v4055
    %v4057 = vpop.f32.mrb[0].mxu0
    %v4058 = vadd.f32 %v3687, %v4057
    %v4059 = vpop.f32.mrb[0].mxu0
    %4060 = vmatprep.mubr.f32.mxu0 0.0
    %v4061 = vand.u32 %v2598, 4294901760
    %v4062 = vsub.f32 %v2598, %v4061
    %v4063 = vand.u32 %v4062, 4294901760
    %4064 = vmatmul.mubr.f32.gmra.mrb[0].mxu0 %v4063
    %v4065 = vpop.f32.mrb[0].mxu0
    %v4066 = vadd.f32 %v3694, %v4065
    %v4067 = vpop.f32.mrb[0].mxu0
    %4068 = vmatprep.mubr.f32.mxu0 0.0
    %v4069 = vand.u32 %v2601, 4294901760
    %v4070 = vsub.f32 %v2601, %v4069
    %v4071 = vand.u32 %v4070, 4294901760
    %4072 = vmatmul.mubr.f32.gmra.mrb[0].mxu0 %v4071
    %v4073 = vpop.f32.mrb[0].mxu0
    %v4074 = vadd.f32 %v3701, %v4073
    %v4075 = vpop.f32.mrb[0].mxu0
    %4076 = vdwg.mxu0
    %4077 = vmatprep.subr.mxu0 0.0
    %v4078 = vand.u32 %v290, 4294901760
    %v4079 = vsub.f32 %v290, %v4078
    %v4080 = vand.u32 %v4079, 4294901760
    %4081 = vmatpush1.msra.mxu0 %v4080
    %4082 = vmatprep.subr.mxu0 0.0
    %v4083 = vand.u32 %v291, 4294901760
    %v4084 = vsub.f32 %v291, %v4083
    %v4085 = vand.u32 %v4084, 4294901760
    %4086 = vmatpush1.msra.mxu0 %v4085
    %4087 = vmatprep.subr.mxu0 0.0
    %v4088 = vand.u32 %v292, 4294901760
    %v4089 = vsub.f32 %v292, %v4088
    %v4090 = vand.u32 %v4089, 4294901760
    %4091 = vmatpush1.msra.mxu0 %v4090
    %4092 = vmatprep.subr.mxu0 0.0
    %v4093 = vand.u32 %v293, 4294901760
    %v4094 = vsub.f32 %v293, %v4093
    %v4095 = vand.u32 %v4094, 4294901760
    %4096 = vmatpush1.msra.mxu0 %v4095
    %4097 = vmatprep.subr.mxu0 0.0
    %4098 = vmatpush1.msra.mxu0 0.0
    %4099 = vmatprep.subr.mxu0 0.0
    %4100 = vmatpush1.msra.mxu0 0.0
    %4101 = vmatprep.subr.mxu0 0.0
    %4102 = vmatpush1.msra.mxu0 0.0
    %4103 = vmatprep.subr.mxu0 0.0
    %4104 = vmatpush1.msra.mxu0 0.0
    %4105 = vmatprep.subr.mxu0 0.0
    %4106 = vmatpush1.msra.mxu0 0.0
    %4107 = vmatprep.subr.mxu0 0.0
    %4108 = vmatpush1.msra.mxu0 0.0
    %4109 = vmatprep.subr.mxu0 0.0
    %4110 = vmatpush1.msra.mxu0 0.0
    %4111 = vmatprep.subr.mxu0 0.0
    %4112 = vmatpush1.msra.mxu0 0.0
    %4113 = vmatprep.subr.mxu0 0.0
    %4114 = vmatpush1.msra.mxu0 0.0
    %4115 = vmatprep.subr.mxu0 0.0
    %4116 = vmatpush1.msra.mxu0 0.0
    %4117 = vmatprep.subr.mxu0 0.0
    %4118 = vmatpush1.msra.mxu0 0.0
    %4119 = vmatprep.subr.mxu0 0.0
    %4120 = vmatpush1.msra.mxu0 0.0
    %4121 = vmatprep.subr.mxu0 0.0
    %4122 = vmatpush1.msra.mxu0 0.0
    %4123 = vmatprep.subr.mxu0 0.0
    %4124 = vmatpush1.msra.mxu0 0.0
    %4125 = vmatprep.subr.mxu0 0.0
    %4126 = vmatpush1.msra.mxu0 0.0
    %4127 = vmatprep.subr.mxu0 0.0
    %4128 = vmatpush1.msra.mxu0 0.0
    %4129 = vmatprep.subr.mxu0 0.0
    %4130 = vmatpush1.msra.mxu0 0.0
    %4131 = vmatprep.subr.mxu0 0.0
    %4132 = vmatpush1.msra.mxu0 0.0
    %4133 = vmatprep.subr.mxu0 0.0
    %4134 = vmatpush1.msra.mxu0 0.0
    %4135 = vmatprep.subr.mxu0 0.0
    %4136 = vmatpush1.msra.mxu0 0.0
    %4137 = vmatprep.subr.mxu0 0.0
    %4138 = vmatpush1.msra.mxu0 0.0
    %4139 = vmatprep.subr.mxu0 0.0
    %4140 = vmatpush1.msra.mxu0 0.0
    %4141 = vmatprep.subr.mxu0 0.0
    %4142 = vmatpush1.msra.mxu0 0.0
    %4143 = vmatprep.subr.mxu0 0.0
    %4144 = vmatpush1.msra.mxu0 0.0
    %4145 = vmatprep.subr.mxu0 0.0
    %4146 = vmatpush1.msra.mxu0 0.0
    %4147 = vmatprep.subr.mxu0 0.0
    %4148 = vmatpush1.msra.mxu0 0.0
    %4149 = vmatprep.subr.mxu0 0.0
    %4150 = vmatpush1.msra.mxu0 0.0
    %4151 = vmatprep.subr.mxu0 0.0
    %4152 = vmatpush1.msra.mxu0 0.0
    %4153 = vmatprep.mubr.f32.mxu0 0.0
    %v4154 = vand.u32 %v2490, 4294901760
    %4155 = vmatmul.mubr.f32.gmra.mrb[0].mxu0 %v4154
    %v4156 = vpop.f32.mrb[0].mxu0
    %v4157 = vadd.f32 %v3778, %v4156
    %v4158 = vpop.f32.mrb[0].mxu0
    %4159 = vmatprep.mubr.f32.mxu0 0.0
    %v4160 = vand.u32 %v2493, 4294901760
    %4161 = vmatmul.mubr.f32.gmra.mrb[0].mxu0 %v4160
    %v4162 = vpop.f32.mrb[0].mxu0
    %v4163 = vadd.f32 %v3786, %v4162
    %v4164 = vpop.f32.mrb[0].mxu0
    %4165 = vmatprep.mubr.f32.mxu0 0.0
    %v4166 = vand.u32 %v2496, 4294901760
    %4167 = vmatmul.mubr.f32.gmra.mrb[0].mxu0 %v4166
    %v4168 = vpop.f32.mrb[0].mxu0
    %v4169 = vadd.f32 %v3794, %v4168
    %v4170 = vpop.f32.mrb[0].mxu0
    %4171 = vmatprep.mubr.f32.mxu0 0.0
    %v4172 = vand.u32 %v2499, 4294901760
    %4173 = vmatmul.mubr.f32.gmra.mrb[0].mxu0 %v4172
    %v4174 = vpop.f32.mrb[0].mxu0
    %v4175 = vadd.f32 %v3802, %v4174
    %v4176 = vpop.f32.mrb[0].mxu0
    %4177 = vmatprep.mubr.f32.mxu0 0.0
    %v4178 = vand.u32 %v2502, 4294901760
    %4179 = vmatmul.mubr.f32.gmra.mrb[0].mxu0 %v4178
    %v4180 = vpop.f32.mrb[0].mxu0
    %v4181 = vadd.f32 %v3810, %v4180
    %v4182 = vpop.f32.mrb[0].mxu0
    %4183 = vmatprep.mubr.f32.mxu0 0.0
    %v4184 = vand.u32 %v2505, 4294901760
    %4185 = vmatmul.mubr.f32.gmra.mrb[0].mxu0 %v4184
    %v4186 = vpop.f32.mrb[0].mxu0
    %v4187 = vadd.f32 %v3818, %v4186
    %v4188 = vpop.f32.mrb[0].mxu0
    %4189 = vmatprep.mubr.f32.mxu0 0.0
    %v4190 = vand.u32 %v2508, 4294901760
    %4191 = vmatmul.mubr.f32.gmra.mrb[0].mxu0 %v4190
    %v4192 = vpop.f32.mrb[0].mxu0
    %v4193 = vadd.f32 %v3826, %v4192
    %v4194 = vpop.f32.mrb[0].mxu0
    %4195 = vmatprep.mubr.f32.mxu0 0.0
    %v4196 = vand.u32 %v2511, 4294901760
    %4197 = vmatmul.mubr.f32.gmra.mrb[0].mxu0 %v4196
    %v4198 = vpop.f32.mrb[0].mxu0
    %v4199 = vadd.f32 %v3834, %v4198
    %v4200 = vpop.f32.mrb[0].mxu0
    %4201 = vmatprep.mubr.f32.mxu0 0.0
    %v4202 = vand.u32 %v2514, 4294901760
    %4203 = vmatmul.mubr.f32.gmra.mrb[0].mxu0 %v4202
    %v4204 = vpop.f32.mrb[0].mxu0
    %v4205 = vadd.f32 %v3842, %v4204
    %v4206 = vpop.f32.mrb[0].mxu0
    %4207 = vmatprep.mubr.f32.mxu0 0.0
    %v4208 = vand.u32 %v2517, 4294901760
    %4209 = vmatmul.mubr.f32.gmra.mrb[0].mxu0 %v4208
    %v4210 = vpop.f32.mrb[0].mxu0
    %v4211 = vadd.f32 %v3850, %v4210
    %v4212 = vpop.f32.mrb[0].mxu0
    %4213 = vmatprep.mubr.f32.mxu0 0.0
    %v4214 = vand.u32 %v2520, 4294901760
    %4215 = vmatmul.mubr.f32.gmra.mrb[0].mxu0 %v4214
    %v4216 = vpop.f32.mrb[0].mxu0
    %v4217 = vadd.f32 %v3858, %v4216
    %v4218 = vpop.f32.mrb[0].mxu0
    %4219 = vmatprep.mubr.f32.mxu0 0.0
    %v4220 = vand.u32 %v2523, 4294901760
    %4221 = vmatmul.mubr.f32.gmra.mrb[0].mxu0 %v4220
    %v4222 = vpop.f32.mrb[0].mxu0
    %v4223 = vadd.f32 %v3866, %v4222
    %v4224 = vpop.f32.mrb[0].mxu0
    %4225 = vmatprep.mubr.f32.mxu0 0.0
    %v4226 = vand.u32 %v2526, 4294901760
    %4227 = vmatmul.mubr.f32.gmra.mrb[0].mxu0 %v4226
    %v4228 = vpop.f32.mrb[0].mxu0
    %v4229 = vadd.f32 %v3874, %v4228
    %v4230 = vpop.f32.mrb[0].mxu0
    %4231 = vmatprep.mubr.f32.mxu0 0.0
    %v4232 = vand.u32 %v2529, 4294901760
    %4233 = vmatmul.mubr.f32.gmra.mrb[0].mxu0 %v4232
    %v4234 = vpop.f32.mrb[0].mxu0
    %v4235 = vadd.f32 %v3882, %v4234
    %v4236 = vpop.f32.mrb[0].mxu0
    %4237 = vmatprep.mubr.f32.mxu0 0.0
    %v4238 = vand.u32 %v2532, 4294901760
    %4239 = vmatmul.mubr.f32.gmra.mrb[0].mxu0 %v4238
    %v4240 = vpop.f32.mrb[0].mxu0
    %v4241 = vadd.f32 %v3890, %v4240
    %v4242 = vpop.f32.mrb[0].mxu0
    %4243 = vmatprep.mubr.f32.mxu0 0.0
    %v4244 = vand.u32 %v2535, 4294901760
    %4245 = vmatmul.mubr.f32.gmra.mrb[0].mxu0 %v4244
    %v4246 = vpop.f32.mrb[0].mxu0
    %v4247 = vadd.f32 %v3898, %v4246
    %v4248 = vpop.f32.mrb[0].mxu0
    %4249 = vmatprep.mubr.f32.mxu0 0.0
    %v4250 = vand.u32 %v2538, 4294901760
    %4251 = vmatmul.mubr.f32.gmra.mrb[0].mxu0 %v4250
    %v4252 = vpop.f32.mrb[0].mxu0
    %v4253 = vadd.f32 %v3906, %v4252
    %v4254 = vpop.f32.mrb[0].mxu0
    %4255 = vmatprep.mubr.f32.mxu0 0.0
    %v4256 = vand.u32 %v2541, 4294901760
    %4257 = vmatmul.mubr.f32.gmra.mrb[0].mxu0 %v4256
    %v4258 = vpop.f32.mrb[0].mxu0
    %v4259 = vadd.f32 %v3914, %v4258
    %v4260 = vpop.f32.mrb[0].mxu0
    %4261 = vmatprep.mubr.f32.mxu0 0.0
    %v4262 = vand.u32 %v2544, 4294901760
    %4263 = vmatmul.mubr.f32.gmra.mrb[0].mxu0 %v4262
    %v4264 = vpop.f32.mrb[0].mxu0
    %v4265 = vadd.f32 %v3922, %v4264
    %v4266 = vpop.f32.mrb[0].mxu0
    %4267 = vmatprep.mubr.f32.mxu0 0.0
    %v4268 = vand.u32 %v2547, 4294901760
    %4269 = vmatmul.mubr.f32.gmra.mrb[0].mxu0 %v4268
    %v4270 = vpop.f32.mrb[0].mxu0
    %v4271 = vadd.f32 %v3930, %v4270
    %v4272 = vpop.f32.mrb[0].mxu0
    %4273 = vmatprep.mubr.f32.mxu0 0.0
    %v4274 = vand.u32 %v2550, 4294901760
    %4275 = vmatmul.mubr.f32.gmra.mrb[0].mxu0 %v4274
    %v4276 = vpop.f32.mrb[0].mxu0
    %v4277 = vadd.f32 %v3938, %v4276
    %v4278 = vpop.f32.mrb[0].mxu0
    %4279 = vmatprep.mubr.f32.mxu0 0.0
    %v4280 = vand.u32 %v2553, 4294901760
    %4281 = vmatmul.mubr.f32.gmra.mrb[0].mxu0 %v4280
    %v4282 = vpop.f32.mrb[0].mxu0
    %v4283 = vadd.f32 %v3946, %v4282
    %v4284 = vpop.f32.mrb[0].mxu0
    %4285 = vmatprep.mubr.f32.mxu0 0.0
    %v4286 = vand.u32 %v2556, 4294901760
    %4287 = vmatmul.mubr.f32.gmra.mrb[0].mxu0 %v4286
    %v4288 = vpop.f32.mrb[0].mxu0
    %v4289 = vadd.f32 %v3954, %v4288
    %v4290 = vpop.f32.mrb[0].mxu0
    %4291 = vmatprep.mubr.f32.mxu0 0.0
    %v4292 = vand.u32 %v2559, 4294901760
    %4293 = vmatmul.mubr.f32.gmra.mrb[0].mxu0 %v4292
    %v4294 = vpop.f32.mrb[0].mxu0
    %v4295 = vadd.f32 %v3962, %v4294
    %v4296 = vpop.f32.mrb[0].mxu0
    %4297 = vmatprep.mubr.f32.mxu0 0.0
    %v4298 = vand.u32 %v2562, 4294901760
    %4299 = vmatmul.mubr.f32.gmra.mrb[0].mxu0 %v4298
    %v4300 = vpop.f32.mrb[0].mxu0
    %v4301 = vadd.f32 %v3970, %v4300
    %v4302 = vpop.f32.mrb[0].mxu0
    %4303 = vmatprep.mubr.f32.mxu0 0.0
    %v4304 = vand.u32 %v2565, 4294901760
    %4305 = vmatmul.mubr.f32.gmra.mrb[0].mxu0 %v4304
    %v4306 = vpop.f32.mrb[0].mxu0
    %v4307 = vadd.f32 %v3978, %v4306
    %v4308 = vpop.f32.mrb[0].mxu0
    %4309 = vmatprep.mubr.f32.mxu0 0.0
    %v4310 = vand.u32 %v2568, 4294901760
    %4311 = vmatmul.mubr.f32.gmra.mrb[0].mxu0 %v4310
    %v4312 = vpop.f32.mrb[0].mxu0
    %v4313 = vadd.f32 %v3986, %v4312
    %v4314 = vpop.f32.mrb[0].mxu0
    %4315 = vmatprep.mubr.f32.mxu0 0.0
    %v4316 = vand.u32 %v2571, 4294901760
    %4317 = vmatmul.mubr.f32.gmra.mrb[0].mxu0 %v4316
    %v4318 = vpop.f32.mrb[0].mxu0
    %v4319 = vadd.f32 %v3994, %v4318
    %v4320 = vpop.f32.mrb[0].mxu0
    %4321 = vmatprep.mubr.f32.mxu0 0.0
    %v4322 = vand.u32 %v2574, 4294901760
    %4323 = vmatmul.mubr.f32.gmra.mrb[0].mxu0 %v4322
    %v4324 = vpop.f32.mrb[0].mxu0
    %v4325 = vadd.f32 %v4002, %v4324
    %v4326 = vpop.f32.mrb[0].mxu0
    %4327 = vmatprep.mubr.f32.mxu0 0.0
    %v4328 = vand.u32 %v2577, 4294901760
    %4329 = vmatmul.mubr.f32.gmra.mrb[0].mxu0 %v4328
    %v4330 = vpop.f32.mrb[0].mxu0
    %v4331 = vadd.f32 %v4010, %v4330
    %v4332 = vpop.f32.mrb[0].mxu0
    %4333 = vmatprep.mubr.f32.mxu0 0.0
    %v4334 = vand.u32 %v2580, 4294901760
    %4335 = vmatmul.mubr.f32.gmra.mrb[0].mxu0 %v4334
    %v4336 = vpop.f32.mrb[0].mxu0
    %v4337 = vadd.f32 %v4018, %v4336
    %v4338 = vpop.f32.mrb[0].mxu0
    %4339 = vmatprep.mubr.f32.mxu0 0.0
    %v4340 = vand.u32 %v2583, 4294901760
    %4341 = vmatmul.mubr.f32.gmra.mrb[0].mxu0 %v4340
    %v4342 = vpop.f32.mrb[0].mxu0
    %v4343 = vadd.f32 %v4026, %v4342
    %v4344 = vpop.f32.mrb[0].mxu0
    %4345 = vmatprep.mubr.f32.mxu0 0.0
    %v4346 = vand.u32 %v2586, 4294901760
    %4347 = vmatmul.mubr.f32.gmra.mrb[0].mxu0 %v4346
    %v4348 = vpop.f32.mrb[0].mxu0
    %v4349 = vadd.f32 %v4034, %v4348
    %v4350 = vpop.f32.mrb[0].mxu0
    %4351 = vmatprep.mubr.f32.mxu0 0.0
    %v4352 = vand.u32 %v2589, 4294901760
    %4353 = vmatmul.mubr.f32.gmra.mrb[0].mxu0 %v4352
    %v4354 = vpop.f32.mrb[0].mxu0
    %v4355 = vadd.f32 %v4042, %v4354
    %v4356 = vpop.f32.mrb[0].mxu0
    %4357 = vmatprep.mubr.f32.mxu0 0.0
    %v4358 = vand.u32 %v2592, 4294901760
    %4359 = vmatmul.mubr.f32.gmra.mrb[0].mxu0 %v4358
    %v4360 = vpop.f32.mrb[0].mxu0
    %v4361 = vadd.f32 %v4050, %v4360
    %v4362 = vpop.f32.mrb[0].mxu0
    %4363 = vmatprep.mubr.f32.mxu0 0.0
    %v4364 = vand.u32 %v2595, 4294901760
    %4365 = vmatmul.mubr.f32.gmra.mrb[0].mxu0 %v4364
    %v4366 = vpop.f32.mrb[0].mxu0
    %v4367 = vadd.f32 %v4058, %v4366
    %v4368 = vpop.f32.mrb[0].mxu0
    %4369 = vmatprep.mubr.f32.mxu0 0.0
    %v4370 = vand.u32 %v2598, 4294901760
    %4371 = vmatmul.mubr.f32.gmra.mrb[0].mxu0 %v4370
    %v4372 = vpop.f32.mrb[0].mxu0
    %v4373 = vadd.f32 %v4066, %v4372
    %v4374 = vpop.f32.mrb[0].mxu0
    %4375 = vmatprep.mubr.f32.mxu0 0.0
    %v4376 = vand.u32 %v2601, 4294901760
    %4377 = vmatmul.mubr.f32.gmra.mrb[0].mxu0 %v4376
    %v4378 = vpop.f32.mrb[0].mxu0
    %v4379 = vadd.f32 %v4074, %v4378
    %v4380 = vpop.f32.mrb[0].mxu0
    %4381 = vdwg.mxu0
    %4382 = vmatprep.subr.mxu0 0.0
    %v4383 = vand.u32 %v290, 4294901760
    %4384 = vmatpush1.msra.mxu0 %v4383
    %4385 = vmatprep.subr.mxu0 0.0
    %v4386 = vand.u32 %v291, 4294901760
    %4387 = vmatpush1.msra.mxu0 %v4386
    %4388 = vmatprep.subr.mxu0 0.0
    %v4389 = vand.u32 %v292, 4294901760
    %4390 = vmatpush1.msra.mxu0 %v4389
    %4391 = vmatprep.subr.mxu0 0.0
    %v4392 = vand.u32 %v293, 4294901760
    %4393 = vmatpush1.msra.mxu0 %v4392
    %4394 = vmatprep.subr.mxu0 0.0
    %4395 = vmatpush1.msra.mxu0 0.0
    %4396 = vmatprep.subr.mxu0 0.0
    %4397 = vmatpush1.msra.mxu0 0.0
    %4398 = vmatprep.subr.mxu0 0.0
    %4399 = vmatpush1.msra.mxu0 0.0
    %4400 = vmatprep.subr.mxu0 0.0
    %4401 = vmatpush1.msra.mxu0 0.0
    %4402 = vmatprep.subr.mxu0 0.0
    %4403 = vmatpush1.msra.mxu0 0.0
    %4404 = vmatprep.subr.mxu0 0.0
    %4405 = vmatpush1.msra.mxu0 0.0
    %4406 = vmatprep.subr.mxu0 0.0
    %4407 = vmatpush1.msra.mxu0 0.0
    %4408 = vmatprep.subr.mxu0 0.0
    %4409 = vmatpush1.msra.mxu0 0.0
    %4410 = vmatprep.subr.mxu0 0.0
    %4411 = vmatpush1.msra.mxu0 0.0
    %4412 = vmatprep.subr.mxu0 0.0
    %4413 = vmatpush1.msra.mxu0 0.0
    %4414 = vmatprep.subr.mxu0 0.0
    %4415 = vmatpush1.msra.mxu0 0.0
    %4416 = vmatprep.subr.mxu0 0.0
    %4417 = vmatpush1.msra.mxu0 0.0
    %4418 = vmatprep.subr.mxu0 0.0
    %4419 = vmatpush1.msra.mxu0 0.0
    %4420 = vmatprep.subr.mxu0 0.0
    %4421 = vmatpush1.msra.mxu0 0.0
    %4422 = vmatprep.subr.mxu0 0.0
    %4423 = vmatpush1.msra.mxu0 0.0
    %4424 = vmatprep.subr.mxu0 0.0
    %4425 = vmatpush1.msra.mxu0 0.0
    %4426 = vmatprep.subr.mxu0 0.0
    %4427 = vmatpush1.msra.mxu0 0.0
    %4428 = vmatprep.subr.mxu0 0.0
    %4429 = vmatpush1.msra.mxu0 0.0
    %4430 = vmatprep.subr.mxu0 0.0
    %4431 = vmatpush1.msra.mxu0 0.0
    %4432 = vmatprep.subr.mxu0 0.0
    %4433 = vmatpush1.msra.mxu0 0.0
    %4434 = vmatprep.subr.mxu0 0.0
    %4435 = vmatpush1.msra.mxu0 0.0
    %4436 = vmatprep.subr.mxu0 0.0
    %4437 = vmatpush1.msra.mxu0 0.0
    %4438 = vmatprep.subr.mxu0 0.0
    %4439 = vmatpush1.msra.mxu0 0.0
    %4440 = vmatprep.subr.mxu0 0.0
    %4441 = vmatpush1.msra.mxu0 0.0
    %4442 = vmatprep.subr.mxu0 0.0
    %4443 = vmatpush1.msra.mxu0 0.0
    %4444 = vmatprep.subr.mxu0 0.0
    %4445 = vmatpush1.msra.mxu0 0.0
    %4446 = vmatprep.subr.mxu0 0.0
    %4447 = vmatpush1.msra.mxu0 0.0
    %4448 = vmatprep.subr.mxu0 0.0
    %4449 = vmatpush1.msra.mxu0 0.0
    %4450 = vmatprep.mubr.f32.mxu0 0.0
    %v4451 = vand.u32 %v2490, 4294901760
    %4452 = vmatmul.mubr.f32.gmra.mrb[0].mxu0 %v4451
    %v4453 = vpop.f32.mrb[0].mxu0
    %v4454 = vadd.f32 %v4157, %v4453
    %v4455 = vpop.f32.mrb[0].mxu0
    %4456 = vmatprep.mubr.f32.mxu0 0.0
    %v4457 = vand.u32 %v2493, 4294901760
    %4458 = vmatmul.mubr.f32.gmra.mrb[0].mxu0 %v4457
    %v4459 = vpop.f32.mrb[0].mxu0
    %v4460 = vadd.f32 %v4163, %v4459
    %v4461 = vpop.f32.mrb[0].mxu0
    %4462 = vmatprep.mubr.f32.mxu0 0.0
    %v4463 = vand.u32 %v2496, 4294901760
    %4464 = vmatmul.mubr.f32.gmra.mrb[0].mxu0 %v4463
    %v4465 = vpop.f32.mrb[0].mxu0
    %v4466 = vadd.f32 %v4169, %v4465
    %v4467 = vpop.f32.mrb[0].mxu0
    %4468 = vmatprep.mubr.f32.mxu0 0.0
    %v4469 = vand.u32 %v2499, 4294901760
    %4470 = vmatmul.mubr.f32.gmra.mrb[0].mxu0 %v4469
    %v4471 = vpop.f32.mrb[0].mxu0
    %v4472 = vadd.f32 %v4175, %v4471
    %v4473 = vpop.f32.mrb[0].mxu0
    %4474 = vmatprep.mubr.f32.mxu0 0.0
    %v4475 = vand.u32 %v2502, 4294901760
    %4476 = vmatmul.mubr.f32.gmra.mrb[0].mxu0 %v4475
    %v4477 = vpop.f32.mrb[0].mxu0
    %v4478 = vadd.f32 %v4181, %v4477
    %v4479 = vpop.f32.mrb[0].mxu0
    %4480 = vmatprep.mubr.f32.mxu0 0.0
    %v4481 = vand.u32 %v2505, 4294901760
    %4482 = vmatmul.mubr.f32.gmra.mrb[0].mxu0 %v4481
    %v4483 = vpop.f32.mrb[0].mxu0
    %v4484 = vadd.f32 %v4187, %v4483
    %v4485 = vpop.f32.mrb[0].mxu0
    %4486 = vmatprep.mubr.f32.mxu0 0.0
    %v4487 = vand.u32 %v2508, 4294901760
    %4488 = vmatmul.mubr.f32.gmra.mrb[0].mxu0 %v4487
    %v4489 = vpop.f32.mrb[0].mxu0
    %v4490 = vadd.f32 %v4193, %v4489
    %v4491 = vpop.f32.mrb[0].mxu0
    %4492 = vmatprep.mubr.f32.mxu0 0.0
    %v4493 = vand.u32 %v2511, 4294901760
    %4494 = vmatmul.mubr.f32.gmra.mrb[0].mxu0 %v4493
    %v4495 = vpop.f32.mrb[0].mxu0
    %v4496 = vadd.f32 %v4199, %v4495
    %v4497 = vpop.f32.mrb[0].mxu0
    %4498 = vmatprep.mubr.f32.mxu0 0.0
    %v4499 = vand.u32 %v2514, 4294901760
    %4500 = vmatmul.mubr.f32.gmra.mrb[0].mxu0 %v4499
    %v4501 = vpop.f32.mrb[0].mxu0
    %v4502 = vadd.f32 %v4205, %v4501
    %v4503 = vpop.f32.mrb[0].mxu0
    %4504 = vmatprep.mubr.f32.mxu0 0.0
    %v4505 = vand.u32 %v2517, 4294901760
    %4506 = vmatmul.mubr.f32.gmra.mrb[0].mxu0 %v4505
    %v4507 = vpop.f32.mrb[0].mxu0
    %v4508 = vadd.f32 %v4211, %v4507
    %v4509 = vpop.f32.mrb[0].mxu0
    %4510 = vmatprep.mubr.f32.mxu0 0.0
    %v4511 = vand.u32 %v2520, 4294901760
    %4512 = vmatmul.mubr.f32.gmra.mrb[0].mxu0 %v4511
    %v4513 = vpop.f32.mrb[0].mxu0
    %v4514 = vadd.f32 %v4217, %v4513
    %v4515 = vpop.f32.mrb[0].mxu0
    %4516 = vmatprep.mubr.f32.mxu0 0.0
    %v4517 = vand.u32 %v2523, 4294901760
    %4518 = vmatmul.mubr.f32.gmra.mrb[0].mxu0 %v4517
    %v4519 = vpop.f32.mrb[0].mxu0
    %v4520 = vadd.f32 %v4223, %v4519
    %v4521 = vpop.f32.mrb[0].mxu0
    %4522 = vmatprep.mubr.f32.mxu0 0.0
    %v4523 = vand.u32 %v2526, 4294901760
    %4524 = vmatmul.mubr.f32.gmra.mrb[0].mxu0 %v4523
    %v4525 = vpop.f32.mrb[0].mxu0
    %v4526 = vadd.f32 %v4229, %v4525
    %v4527 = vpop.f32.mrb[0].mxu0
    %4528 = vmatprep.mubr.f32.mxu0 0.0
    %v4529 = vand.u32 %v2529, 4294901760
    %4530 = vmatmul.mubr.f32.gmra.mrb[0].mxu0 %v4529
    %v4531 = vpop.f32.mrb[0].mxu0
    %v4532 = vadd.f32 %v4235, %v4531
    %v4533 = vpop.f32.mrb[0].mxu0
    %4534 = vmatprep.mubr.f32.mxu0 0.0
    %v4535 = vand.u32 %v2532, 4294901760
    %4536 = vmatmul.mubr.f32.gmra.mrb[0].mxu0 %v4535
    %v4537 = vpop.f32.mrb[0].mxu0
    %v4538 = vadd.f32 %v4241, %v4537
    %v4539 = vpop.f32.mrb[0].mxu0
    %4540 = vmatprep.mubr.f32.mxu0 0.0
    %v4541 = vand.u32 %v2535, 4294901760
    %4542 = vmatmul.mubr.f32.gmra.mrb[0].mxu0 %v4541
    %v4543 = vpop.f32.mrb[0].mxu0
    %v4544 = vadd.f32 %v4247, %v4543
    %v4545 = vpop.f32.mrb[0].mxu0
    %4546 = vmatprep.mubr.f32.mxu0 0.0
    %v4547 = vand.u32 %v2538, 4294901760
    %4548 = vmatmul.mubr.f32.gmra.mrb[0].mxu0 %v4547
    %v4549 = vpop.f32.mrb[0].mxu0
    %v4550 = vadd.f32 %v4253, %v4549
    %v4551 = vpop.f32.mrb[0].mxu0
    %4552 = vmatprep.mubr.f32.mxu0 0.0
    %v4553 = vand.u32 %v2541, 4294901760
    %4554 = vmatmul.mubr.f32.gmra.mrb[0].mxu0 %v4553
    %v4555 = vpop.f32.mrb[0].mxu0
    %v4556 = vadd.f32 %v4259, %v4555
    %v4557 = vpop.f32.mrb[0].mxu0
    %4558 = vmatprep.mubr.f32.mxu0 0.0
    %v4559 = vand.u32 %v2544, 4294901760
    %4560 = vmatmul.mubr.f32.gmra.mrb[0].mxu0 %v4559
    %v4561 = vpop.f32.mrb[0].mxu0
    %v4562 = vadd.f32 %v4265, %v4561
    %v4563 = vpop.f32.mrb[0].mxu0
    %4564 = vmatprep.mubr.f32.mxu0 0.0
    %v4565 = vand.u32 %v2547, 4294901760
    %4566 = vmatmul.mubr.f32.gmra.mrb[0].mxu0 %v4565
    %v4567 = vpop.f32.mrb[0].mxu0
    %v4568 = vadd.f32 %v4271, %v4567
    %v4569 = vpop.f32.mrb[0].mxu0
    %4570 = vmatprep.mubr.f32.mxu0 0.0
    %v4571 = vand.u32 %v2550, 4294901760
    %4572 = vmatmul.mubr.f32.gmra.mrb[0].mxu0 %v4571
    %v4573 = vpop.f32.mrb[0].mxu0
    %v4574 = vadd.f32 %v4277, %v4573
    %v4575 = vpop.f32.mrb[0].mxu0
    %4576 = vmatprep.mubr.f32.mxu0 0.0
    %v4577 = vand.u32 %v2553, 4294901760
    %4578 = vmatmul.mubr.f32.gmra.mrb[0].mxu0 %v4577
    %v4579 = vpop.f32.mrb[0].mxu0
    %v4580 = vadd.f32 %v4283, %v4579
    %v4581 = vpop.f32.mrb[0].mxu0
    %4582 = vmatprep.mubr.f32.mxu0 0.0
    %v4583 = vand.u32 %v2556, 4294901760
    %4584 = vmatmul.mubr.f32.gmra.mrb[0].mxu0 %v4583
    %v4585 = vpop.f32.mrb[0].mxu0
    %v4586 = vadd.f32 %v4289, %v4585
    %v4587 = vpop.f32.mrb[0].mxu0
    %4588 = vmatprep.mubr.f32.mxu0 0.0
    %v4589 = vand.u32 %v2559, 4294901760
    %4590 = vmatmul.mubr.f32.gmra.mrb[0].mxu0 %v4589
    %v4591 = vpop.f32.mrb[0].mxu0
    %v4592 = vadd.f32 %v4295, %v4591
    %v4593 = vpop.f32.mrb[0].mxu0
    %4594 = vmatprep.mubr.f32.mxu0 0.0
    %v4595 = vand.u32 %v2562, 4294901760
    %4596 = vmatmul.mubr.f32.gmra.mrb[0].mxu0 %v4595
    %v4597 = vpop.f32.mrb[0].mxu0
    %v4598 = vadd.f32 %v4301, %v4597
    %v4599 = vpop.f32.mrb[0].mxu0
    %4600 = vmatprep.mubr.f32.mxu0 0.0
    %v4601 = vand.u32 %v2565, 4294901760
    %4602 = vmatmul.mubr.f32.gmra.mrb[0].mxu0 %v4601
    %v4603 = vpop.f32.mrb[0].mxu0
    %v4604 = vadd.f32 %v4307, %v4603
    %v4605 = vpop.f32.mrb[0].mxu0
    %4606 = vmatprep.mubr.f32.mxu0 0.0
    %v4607 = vand.u32 %v2568, 4294901760
    %4608 = vmatmul.mubr.f32.gmra.mrb[0].mxu0 %v4607
    %v4609 = vpop.f32.mrb[0].mxu0
    %v4610 = vadd.f32 %v4313, %v4609
    %v4611 = vpop.f32.mrb[0].mxu0
    %4612 = vmatprep.mubr.f32.mxu0 0.0
    %v4613 = vand.u32 %v2571, 4294901760
    %4614 = vmatmul.mubr.f32.gmra.mrb[0].mxu0 %v4613
    %v4615 = vpop.f32.mrb[0].mxu0
    %v4616 = vadd.f32 %v4319, %v4615
    %v4617 = vpop.f32.mrb[0].mxu0
    %4618 = vmatprep.mubr.f32.mxu0 0.0
    %v4619 = vand.u32 %v2574, 4294901760
    %4620 = vmatmul.mubr.f32.gmra.mrb[0].mxu0 %v4619
    %v4621 = vpop.f32.mrb[0].mxu0
    %v4622 = vadd.f32 %v4325, %v4621
    %v4623 = vpop.f32.mrb[0].mxu0
    %4624 = vmatprep.mubr.f32.mxu0 0.0
    %v4625 = vand.u32 %v2577, 4294901760
    %4626 = vmatmul.mubr.f32.gmra.mrb[0].mxu0 %v4625
    %v4627 = vpop.f32.mrb[0].mxu0
    %v4628 = vadd.f32 %v4331, %v4627
    %v4629 = vpop.f32.mrb[0].mxu0
    %4630 = vmatprep.mubr.f32.mxu0 0.0
    %v4631 = vand.u32 %v2580, 4294901760
    %4632 = vmatmul.mubr.f32.gmra.mrb[0].mxu0 %v4631
    %v4633 = vpop.f32.mrb[0].mxu0
    %v4634 = vadd.f32 %v4337, %v4633
    %v4635 = vpop.f32.mrb[0].mxu0
    %4636 = vmatprep.mubr.f32.mxu0 0.0
    %v4637 = vand.u32 %v2583, 4294901760
    %4638 = vmatmul.mubr.f32.gmra.mrb[0].mxu0 %v4637
    %v4639 = vpop.f32.mrb[0].mxu0
    %v4640 = vadd.f32 %v4343, %v4639
    %v4641 = vpop.f32.mrb[0].mxu0
    %4642 = vmatprep.mubr.f32.mxu0 0.0
    %v4643 = vand.u32 %v2586, 4294901760
    %4644 = vmatmul.mubr.f32.gmra.mrb[0].mxu0 %v4643
    %v4645 = vpop.f32.mrb[0].mxu0
    %v4646 = vadd.f32 %v4349, %v4645
    %v4647 = vpop.f32.mrb[0].mxu0
    %4648 = vmatprep.mubr.f32.mxu0 0.0
    %v4649 = vand.u32 %v2589, 4294901760
    %4650 = vmatmul.mubr.f32.gmra.mrb[0].mxu0 %v4649
    %v4651 = vpop.f32.mrb[0].mxu0
    %v4652 = vadd.f32 %v4355, %v4651
    %v4653 = vpop.f32.mrb[0].mxu0
    %4654 = vmatprep.mubr.f32.mxu0 0.0
    %v4655 = vand.u32 %v2592, 4294901760
    %4656 = vmatmul.mubr.f32.gmra.mrb[0].mxu0 %v4655
    %v4657 = vpop.f32.mrb[0].mxu0
    %v4658 = vadd.f32 %v4361, %v4657
    %v4659 = vpop.f32.mrb[0].mxu0
    %4660 = vmatprep.mubr.f32.mxu0 0.0
    %v4661 = vand.u32 %v2595, 4294901760
    %4662 = vmatmul.mubr.f32.gmra.mrb[0].mxu0 %v4661
    %v4663 = vpop.f32.mrb[0].mxu0
    %v4664 = vadd.f32 %v4367, %v4663
    %v4665 = vpop.f32.mrb[0].mxu0
    %4666 = vmatprep.mubr.f32.mxu0 0.0
    %v4667 = vand.u32 %v2598, 4294901760
    %4668 = vmatmul.mubr.f32.gmra.mrb[0].mxu0 %v4667
    %v4669 = vpop.f32.mrb[0].mxu0
    %v4670 = vadd.f32 %v4373, %v4669
    %v4671 = vpop.f32.mrb[0].mxu0
    %4672 = vmatprep.mubr.f32.mxu0 0.0
    %v4673 = vand.u32 %v2601, 4294901760
    %4674 = vmatmul.mubr.f32.gmra.mrb[0].mxu0 %v4673
    %v4675 = vpop.f32.mrb[0].mxu0
    %v4676 = vadd.f32 %v4379, %v4675
    %v4677 = vpop.f32.mrb[0].mxu0
    %4678 = vdwg.mxu0
    %v4679 = vld [vmem:[%s3] sm:$0x1]
    %v4681 = vlaneseq
    %v4682 = vshrl.u32 %v4681, 7
    %v4683 = vsub.s32 0, %v4682
    %v4684 = vrot.slane %v4679, %v4683
    %v4686 = vadd.f32 %v4454, %v4684
    %v4687 = vadd.f32 %v4460, %v4684
    %v4688 = vadd.f32 %v4466, %v4684
    %v4689 = vadd.f32 %v4472, %v4684
    %v4690 = vadd.f32 %v4478, %v4684
    %v4691 = vadd.f32 %v4484, %v4684
    %v4692 = vadd.f32 %v4490, %v4684
    %v4693 = vadd.f32 %v4496, %v4684
    %v4694 = vadd.f32 %v4502, %v4684
    %v4695 = vadd.f32 %v4508, %v4684
    %v4696 = vadd.f32 %v4514, %v4684
    %v4697 = vadd.f32 %v4520, %v4684
    %v4698 = vadd.f32 %v4526, %v4684
    %v4699 = vadd.f32 %v4532, %v4684
    %v4700 = vadd.f32 %v4538, %v4684
    %v4701 = vadd.f32 %v4544, %v4684
    %v4702 = vadd.f32 %v4550, %v4684
    %v4703 = vadd.f32 %v4556, %v4684
    %v4704 = vadd.f32 %v4562, %v4684
    %v4705 = vadd.f32 %v4568, %v4684
    %v4706 = vadd.f32 %v4574, %v4684
    %v4707 = vadd.f32 %v4580, %v4684
    %v4708 = vadd.f32 %v4586, %v4684
    %v4709 = vadd.f32 %v4592, %v4684
    %v4710 = vadd.f32 %v4598, %v4684
    %v4711 = vadd.f32 %v4604, %v4684
    %v4712 = vadd.f32 %v4610, %v4684
    %v4713 = vadd.f32 %v4616, %v4684
    %v4714 = vadd.f32 %v4622, %v4684
    %v4715 = vadd.f32 %v4628, %v4684
    %v4716 = vadd.f32 %v4634, %v4684
    %v4717 = vadd.f32 %v4640, %v4684
    %v4718 = vadd.f32 %v4646, %v4684
    %v4719 = vadd.f32 %v4652, %v4684
    %v4720 = vadd.f32 %v4658, %v4684
    %v4721 = vadd.f32 %v4664, %v4684
    %v4722 = vadd.f32 %v4670, %v4684
    %v4723 = vadd.f32 %v4676, %v4684
    %v4724 = vxor.u32 %v4686, 2147483648
    %v4725 = vxor.u32 %v4687, 2147483648
    %v4726 = vxor.u32 %v4688, 2147483648
    %v4727 = vxor.u32 %v4689, 2147483648
    %v4728 = vxor.u32 %v4690, 2147483648
    %v4729 = vxor.u32 %v4691, 2147483648
    %v4730 = vxor.u32 %v4692, 2147483648
    %v4731 = vxor.u32 %v4693, 2147483648
    %v4732 = vxor.u32 %v4694, 2147483648
    %v4733 = vxor.u32 %v4695, 2147483648
    %v4734 = vxor.u32 %v4696, 2147483648
    %v4735 = vxor.u32 %v4697, 2147483648
    %v4736 = vxor.u32 %v4698, 2147483648
    %v4737 = vxor.u32 %v4699, 2147483648
    %v4738 = vxor.u32 %v4700, 2147483648
    %v4739 = vxor.u32 %v4701, 2147483648
    %v4740 = vxor.u32 %v4702, 2147483648
    %v4741 = vxor.u32 %v4703, 2147483648
    %v4742 = vxor.u32 %v4704, 2147483648
    %v4743 = vxor.u32 %v4705, 2147483648
    %v4744 = vxor.u32 %v4706, 2147483648
    %v4745 = vxor.u32 %v4707, 2147483648
    %v4746 = vxor.u32 %v4708, 2147483648
    %v4747 = vxor.u32 %v4709, 2147483648
    %v4748 = vxor.u32 %v4710, 2147483648
    %v4749 = vxor.u32 %v4711, 2147483648
    %v4750 = vxor.u32 %v4712, 2147483648
    %v4751 = vxor.u32 %v4713, 2147483648
    %v4752 = vxor.u32 %v4714, 2147483648
    %v4753 = vxor.u32 %v4715, 2147483648
    %v4754 = vxor.u32 %v4716, 2147483648
    %v4755 = vxor.u32 %v4717, 2147483648
    %v4756 = vxor.u32 %v4718, 2147483648
    %v4757 = vxor.u32 %v4719, 2147483648
    %v4758 = vxor.u32 %v4720, 2147483648
    %v4759 = vxor.u32 %v4721, 2147483648
    %v4760 = vxor.u32 %v4722, 2147483648
    %v4761 = vxor.u32 %v4723, 2147483648
    %v4762 = vmul.f32 %v4724, 1.442695
    %v4763 = vpow.pop %v4762
    %v4764 = vmul.f32 %v4725, 1.442695
    %v4765 = vpow.pop %v4764
    %v4766 = vmul.f32 %v4726, 1.442695
    %v4767 = vpow.pop %v4766
    %v4768 = vmul.f32 %v4727, 1.442695
    %v4769 = vpow.pop %v4768
    %v4770 = vmul.f32 %v4728, 1.442695
    %v4771 = vpow.pop %v4770
    %v4772 = vmul.f32 %v4729, 1.442695
    %v4773 = vpow.pop %v4772
    %v4774 = vmul.f32 %v4730, 1.442695
    %v4775 = vpow.pop %v4774
    %v4776 = vmul.f32 %v4731, 1.442695
    %v4777 = vpow.pop %v4776
    %v4778 = vmul.f32 %v4732, 1.442695
    %v4779 = vpow.pop %v4778
    %v4780 = vmul.f32 %v4733, 1.442695
    %v4781 = vpow.pop %v4780
    %v4782 = vmul.f32 %v4734, 1.442695
    %v4783 = vpow.pop %v4782
    %v4784 = vmul.f32 %v4735, 1.442695
    %v4785 = vpow.pop %v4784
    %v4786 = vmul.f32 %v4736, 1.442695
    %v4787 = vpow.pop %v4786
    %v4788 = vmul.f32 %v4737, 1.442695
    %v4789 = vpow.pop %v4788
    %v4790 = vmul.f32 %v4738, 1.442695
    %v4791 = vpow.pop %v4790
    %v4792 = vmul.f32 %v4739, 1.442695
    %v4793 = vpow.pop %v4792
    %v4794 = vmul.f32 %v4740, 1.442695
    %v4795 = vpow.pop %v4794
    %v4796 = vmul.f32 %v4741, 1.442695
    %v4797 = vpow.pop %v4796
    %v4798 = vmul.f32 %v4742, 1.442695
    %v4799 = vpow.pop %v4798
    %v4800 = vmul.f32 %v4743, 1.442695
    %v4801 = vpow.pop %v4800
    %v4802 = vmul.f32 %v4744, 1.442695
    %v4803 = vpow.pop %v4802
    %v4804 = vmul.f32 %v4745, 1.442695
    %v4805 = vpow.pop %v4804
    %v4806 = vmul.f32 %v4746, 1.442695
    %v4807 = vpow.pop %v4806
    %v4808 = vmul.f32 %v4747, 1.442695
    %v4809 = vpow.pop %v4808
    %v4810 = vmul.f32 %v4748, 1.442695
    %v4811 = vpow.pop %v4810
    %v4812 = vmul.f32 %v4749, 1.442695
    %v4813 = vpow.pop %v4812
    %v4814 = vmul.f32 %v4750, 1.442695
    %v4815 = vpow.pop %v4814
    %v4816 = vmul.f32 %v4751, 1.442695
    %v4817 = vpow.pop %v4816
    %v4818 = vmul.f32 %v4752, 1.442695
    %v4819 = vpow.pop %v4818
    %v4820 = vmul.f32 %v4753, 1.442695
    %v4821 = vpow.pop %v4820
    %v4822 = vmul.f32 %v4754, 1.442695
    %v4823 = vpow.pop %v4822
    %v4824 = vmul.f32 %v4755, 1.442695
    %v4825 = vpow.pop %v4824
    %v4826 = vmul.f32 %v4756, 1.442695
    %v4827 = vpow.pop %v4826
    %v4828 = vmul.f32 %v4757, 1.442695
    %v4829 = vpow.pop %v4828
    %v4830 = vmul.f32 %v4758, 1.442695
    %v4831 = vpow.pop %v4830
    %v4832 = vmul.f32 %v4759, 1.442695
    %v4833 = vpow.pop %v4832
    %v4834 = vmul.f32 %v4760, 1.442695
    %v4835 = vpow.pop %v4834
    %v4836 = vmul.f32 %v4761, 1.442695
    %v4837 = vpow.pop %v4836
    %v4838 = vadd.f32 %v4763, 1.0
    %v4839 = vadd.f32 %v4765, 1.0
    %v4840 = vadd.f32 %v4767, 1.0
    %v4841 = vadd.f32 %v4769, 1.0
    %v4842 = vadd.f32 %v4771, 1.0
    %v4843 = vadd.f32 %v4773, 1.0
    %v4844 = vadd.f32 %v4775, 1.0
    %v4845 = vadd.f32 %v4777, 1.0
    %v4846 = vadd.f32 %v4779, 1.0
    %v4847 = vadd.f32 %v4781, 1.0
    %v4848 = vadd.f32 %v4783, 1.0
    %v4849 = vadd.f32 %v4785, 1.0
    %v4850 = vadd.f32 %v4787, 1.0
    %v4851 = vadd.f32 %v4789, 1.0
    %v4852 = vadd.f32 %v4791, 1.0
    %v4853 = vadd.f32 %v4793, 1.0
    %v4854 = vadd.f32 %v4795, 1.0
    %v4855 = vadd.f32 %v4797, 1.0
    %v4856 = vadd.f32 %v4799, 1.0
    %v4857 = vadd.f32 %v4801, 1.0
    %v4858 = vadd.f32 %v4803, 1.0
    %v4859 = vadd.f32 %v4805, 1.0
    %v4860 = vadd.f32 %v4807, 1.0
    %v4861 = vadd.f32 %v4809, 1.0
    %v4862 = vadd.f32 %v4811, 1.0
    %v4863 = vadd.f32 %v4813, 1.0
    %v4864 = vadd.f32 %v4815, 1.0
    %v4865 = vadd.f32 %v4817, 1.0
    %v4866 = vadd.f32 %v4819, 1.0
    %v4867 = vadd.f32 %v4821, 1.0
    %v4868 = vadd.f32 %v4823, 1.0
    %v4869 = vadd.f32 %v4825, 1.0
    %v4870 = vadd.f32 %v4827, 1.0
    %v4871 = vadd.f32 %v4829, 1.0
    %v4872 = vadd.f32 %v4831, 1.0
    %v4873 = vadd.f32 %v4833, 1.0
    %v4874 = vadd.f32 %v4835, 1.0
    %v4875 = vadd.f32 %v4837, 1.0
    %v4876 = vrcp.pop %v4838
    %v4877 = vmul.f32 1.0, %v4876
    %v4878 = vrcp.pop %v4839
    %v4879 = vmul.f32 1.0, %v4878
    %v4880 = vrcp.pop %v4840
    %v4881 = vmul.f32 1.0, %v4880
    %v4882 = vrcp.pop %v4841
    %v4883 = vmul.f32 1.0, %v4882
    %v4884 = vrcp.pop %v4842
    %v4885 = vmul.f32 1.0, %v4884
    %v4886 = vrcp.pop %v4843
    %v4887 = vmul.f32 1.0, %v4886
    %v4888 = vrcp.pop %v4844
    %v4889 = vmul.f32 1.0, %v4888
    %v4890 = vrcp.pop %v4845
    %v4891 = vmul.f32 1.0, %v4890
    %v4892 = vrcp.pop %v4846
    %v4893 = vmul.f32 1.0, %v4892
    %v4894 = vrcp.pop %v4847
    %v4895 = vmul.f32 1.0, %v4894
    %v4896 = vrcp.pop %v4848
    %v4897 = vmul.f32 1.0, %v4896
    %v4898 = vrcp.pop %v4849
    %v4899 = vmul.f32 1.0, %v4898
    %v4900 = vrcp.pop %v4850
    %v4901 = vmul.f32 1.0, %v4900
    %v4902 = vrcp.pop %v4851
    %v4903 = vmul.f32 1.0, %v4902
    %v4904 = vrcp.pop %v4852
    %v4905 = vmul.f32 1.0, %v4904
    %v4906 = vrcp.pop %v4853
    %v4907 = vmul.f32 1.0, %v4906
    %v4908 = vrcp.pop %v4854
    %v4909 = vmul.f32 1.0, %v4908
    %v4910 = vrcp.pop %v4855
    %v4911 = vmul.f32 1.0, %v4910
    %v4912 = vrcp.pop %v4856
    %v4913 = vmul.f32 1.0, %v4912
    %v4914 = vrcp.pop %v4857
    %v4915 = vmul.f32 1.0, %v4914
    %v4916 = vrcp.pop %v4858
    %v4917 = vmul.f32 1.0, %v4916
    %v4918 = vrcp.pop %v4859
    %v4919 = vmul.f32 1.0, %v4918
    %v4920 = vrcp.pop %v4860
    %v4921 = vmul.f32 1.0, %v4920
    %v4922 = vrcp.pop %v4861
    %v4923 = vmul.f32 1.0, %v4922
    %v4924 = vrcp.pop %v4862
    %v4925 = vmul.f32 1.0, %v4924
    %v4926 = vrcp.pop %v4863
    %v4927 = vmul.f32 1.0, %v4926
    %v4928 = vrcp.pop %v4864
    %v4929 = vmul.f32 1.0, %v4928
    %v4930 = vrcp.pop %v4865
    %v4931 = vmul.f32 1.0, %v4930
    %v4932 = vrcp.pop %v4866
    %v4933 = vmul.f32 1.0, %v4932
    %v4934 = vrcp.pop %v4867
    %v4935 = vmul.f32 1.0, %v4934
    %v4936 = vrcp.pop %v4868
    %v4937 = vmul.f32 1.0, %v4936
    %v4938 = vrcp.pop %v4869
    %v4939 = vmul.f32 1.0, %v4938
    %v4940 = vrcp.pop %v4870
    %v4941 = vmul.f32 1.0, %v4940
    %v4942 = vrcp.pop %v4871
    %v4943 = vmul.f32 1.0, %v4942
    %v4944 = vrcp.pop %v4872
    %v4945 = vmul.f32 1.0, %v4944
    %v4946 = vrcp.pop %v4873
    %v4947 = vmul.f32 1.0, %v4946
    %v4948 = vrcp.pop %v4874
    %v4949 = vmul.f32 1.0, %v4948
    %v4950 = vrcp.pop %v4875
    %v4951 = vmul.f32 1.0, %v4950
    %v4952 = vld [vmem:[%s4] sm:$0xff]
    %v4953 = vld [vmem:[%s4 + $0x8] sm:$0xff]
    %v4954 = vld [vmem:[%s4 + $0x10] sm:$0xff]
    %v4955 = vld [vmem:[%s4 + $0x18] sm:$0xff]
    %v4956 = vld [vmem:[%s5] sm:$0x1]
    %v4958 = vlaneseq
    %v4959 = vshrl.u32 %v4958, 7
    %v4960 = vsub.s32 0, %v4959
    %v4961 = vrot.slane %v4956, %v4960
    %v4964 = vsel %vm298, %v4877, 0
    %v4967 = vsel %vm298, %v4879, 0
    %v4970 = vsel %vm298, %v4881, 0
    %v4973 = vsel %vm298, %v4883, 0
    %v4976 = vsel %vm298, %v4885, 0
    %v4979 = vsel %vm298, %v4887, 0
    %v4982 = vsel %vm298, %v4889, 0
    %v4985 = vsel %vm298, %v4891, 0
    %v4988 = vsel %vm298, %v4893, 0
    %v4991 = vsel %vm298, %v4895, 0
    %v4994 = vsel %vm298, %v4897, 0
    %v4997 = vsel %vm298, %v4899, 0
    %v5000 = vsel %vm298, %v4901, 0
    %v5003 = vsel %vm298, %v4903, 0
    %v5006 = vsel %vm298, %v4905, 0
    %v5009 = vsel %vm298, %v4907, 0
    %v5012 = vsel %vm298, %v4909, 0
    %v5015 = vsel %vm298, %v4911, 0
    %v5018 = vsel %vm298, %v4913, 0
    %v5021 = vsel %vm298, %v4915, 0
    %v5024 = vsel %vm298, %v4917, 0
    %v5027 = vsel %vm298, %v4919, 0
    %v5030 = vsel %vm298, %v4921, 0
    %v5033 = vsel %vm298, %v4923, 0
    %v5036 = vsel %vm298, %v4925, 0
    %v5039 = vsel %vm298, %v4927, 0
    %v5042 = vsel %vm298, %v4929, 0
    %v5045 = vsel %vm298, %v4931, 0
    %v5048 = vsel %vm298, %v4933, 0
    %v5051 = vsel %vm298, %v4935, 0
    %v5054 = vsel %vm298, %v4937, 0
    %v5057 = vsel %vm298, %v4939, 0
    %v5060 = vsel %vm298, %v4941, 0
    %v5063 = vsel %vm298, %v4943, 0
    %v5066 = vsel %vm298, %v4945, 0
    %v5069 = vsel %vm298, %v4947, 0
    %v5072 = vsel %vm298, %v4949, 0
    %v5075 = vsel %vm298, %v4951, 0
    %5077 = vmatprep.subr.mxu0 0.0
    %v5078 = vand.u32 %v4952, 4294901760
    %5079 = vmatpush1.msra.mxu0 %v5078
    %5080 = vmatprep.subr.mxu0 0.0
    %v5081 = vand.u32 %v4953, 4294901760
    %5082 = vmatpush1.msra.mxu0 %v5081
    %5083 = vmatprep.subr.mxu0 0.0
    %v5084 = vand.u32 %v4954, 4294901760
    %5085 = vmatpush1.msra.mxu0 %v5084
    %5086 = vmatprep.subr.mxu0 0.0
    %v5087 = vand.u32 %v4955, 4294901760
    %5088 = vmatpush1.msra.mxu0 %v5087
    %5089 = vmatprep.subr.mxu0 0.0
    %5090 = vmatpush1.msra.mxu0 0.0
    %5091 = vmatprep.subr.mxu0 0.0
    %5092 = vmatpush1.msra.mxu0 0.0
    %5093 = vmatprep.subr.mxu0 0.0
    %5094 = vmatpush1.msra.mxu0 0.0
    %5095 = vmatprep.subr.mxu0 0.0
    %5096 = vmatpush1.msra.mxu0 0.0
    %5097 = vmatprep.subr.mxu0 0.0
    %5098 = vmatpush1.msra.mxu0 0.0
    %5099 = vmatprep.subr.mxu0 0.0
    %5100 = vmatpush1.msra.mxu0 0.0
    %5101 = vmatprep.subr.mxu0 0.0
    %5102 = vmatpush1.msra.mxu0 0.0
    %5103 = vmatprep.subr.mxu0 0.0
    %5104 = vmatpush1.msra.mxu0 0.0
    %5105 = vmatprep.subr.mxu0 0.0
    %5106 = vmatpush1.msra.mxu0 0.0
    %5107 = vmatprep.subr.mxu0 0.0
    %5108 = vmatpush1.msra.mxu0 0.0
    %5109 = vmatprep.subr.mxu0 0.0
    %5110 = vmatpush1.msra.mxu0 0.0
    %5111 = vmatprep.subr.mxu0 0.0
    %5112 = vmatpush1.msra.mxu0 0.0
    %5113 = vmatprep.subr.mxu0 0.0
    %5114 = vmatpush1.msra.mxu0 0.0
    %5115 = vmatprep.subr.mxu0 0.0
    %5116 = vmatpush1.msra.mxu0 0.0
    %5117 = vmatprep.subr.mxu0 0.0
    %5118 = vmatpush1.msra.mxu0 0.0
    %5119 = vmatprep.subr.mxu0 0.0
    %5120 = vmatpush1.msra.mxu0 0.0
    %5121 = vmatprep.subr.mxu0 0.0
    %5122 = vmatpush1.msra.mxu0 0.0
    %5123 = vmatprep.subr.mxu0 0.0
    %5124 = vmatpush1.msra.mxu0 0.0
    %5125 = vmatprep.subr.mxu0 0.0
    %5126 = vmatpush1.msra.mxu0 0.0
    %5127 = vmatprep.subr.mxu0 0.0
    %5128 = vmatpush1.msra.mxu0 0.0
    %5129 = vmatprep.subr.mxu0 0.0
    %5130 = vmatpush1.msra.mxu0 0.0
    %5131 = vmatprep.subr.mxu0 0.0
    %5132 = vmatpush1.msra.mxu0 0.0
    %5133 = vmatprep.subr.mxu0 0.0
    %5134 = vmatpush1.msra.mxu0 0.0
    %5135 = vmatprep.subr.mxu0 0.0
    %5136 = vmatpush1.msra.mxu0 0.0
    %5137 = vmatprep.subr.mxu0 0.0
    %5138 = vmatpush1.msra.mxu0 0.0
    %5139 = vmatprep.subr.mxu0 0.0
    %5140 = vmatpush1.msra.mxu0 0.0
    %5141 = vmatprep.subr.mxu0 0.0
    %5142 = vmatpush1.msra.mxu0 0.0
    %5143 = vmatprep.subr.mxu0 0.0
    %5144 = vmatpush1.msra.mxu0 0.0
    %5145 = vmatprep.mubr.f32.mxu0 0.0
    %v5146 = vand.u32 %v4964, 4294901760
    %v5147 = vsub.f32 %v4964, %v5146
    %v5148 = vand.u32 %v5147, 4294901760
    %v5149 = vsub.f32 %v5147, %v5148
    %v5150 = vand.u32 %v5149, 4294901760
    %5151 = vmatmul.mubr.f32.gmra.mrb[0].mxu0 %v5150
    %v5152 = vpop.f32.mrb[0].mxu0
    %v5153 = vadd.f32 %v4961, %v5152
    %v5154 = vpop.f32.mrb[0].mxu0
    %5155 = vmatprep.mubr.f32.mxu0 0.0
    %v5156 = vand.u32 %v4967, 4294901760
    %v5157 = vsub.f32 %v4967, %v5156
    %v5158 = vand.u32 %v5157, 4294901760
    %v5159 = vsub.f32 %v5157, %v5158
    %v5160 = vand.u32 %v5159, 4294901760
    %5161 = vmatmul.mubr.f32.gmra.mrb[0].mxu0 %v5160
    %v5162 = vpop.f32.mrb[0].mxu0
    %v5163 = vadd.f32 %v4961, %v5162
    %v5164 = vpop.f32.mrb[0].mxu0
    %5165 = vmatprep.mubr.f32.mxu0 0.0
    %v5166 = vand.u32 %v4970, 4294901760
    %v5167 = vsub.f32 %v4970, %v5166
    %v5168 = vand.u32 %v5167, 4294901760
    %v5169 = vsub.f32 %v5167, %v5168
    %v5170 = vand.u32 %v5169, 4294901760
    %5171 = vmatmul.mubr.f32.gmra.mrb[0].mxu0 %v5170
    %v5172 = vpop.f32.mrb[0].mxu0
    %v5173 = vadd.f32 %v4961, %v5172
    %v5174 = vpop.f32.mrb[0].mxu0
    %5175 = vmatprep.mubr.f32.mxu0 0.0
    %v5176 = vand.u32 %v4973, 4294901760
    %v5177 = vsub.f32 %v4973, %v5176
    %v5178 = vand.u32 %v5177, 4294901760
    %v5179 = vsub.f32 %v5177, %v5178
    %v5180 = vand.u32 %v5179, 4294901760
    %5181 = vmatmul.mubr.f32.gmra.mrb[0].mxu0 %v5180
    %v5182 = vpop.f32.mrb[0].mxu0
    %v5183 = vadd.f32 %v4961, %v5182
    %v5184 = vpop.f32.mrb[0].mxu0
    %5185 = vmatprep.mubr.f32.mxu0 0.0
    %v5186 = vand.u32 %v4976, 4294901760
    %v5187 = vsub.f32 %v4976, %v5186
    %v5188 = vand.u32 %v5187, 4294901760
    %v5189 = vsub.f32 %v5187, %v5188
    %v5190 = vand.u32 %v5189, 4294901760
    %5191 = vmatmul.mubr.f32.gmra.mrb[0].mxu0 %v5190
    %v5192 = vpop.f32.mrb[0].mxu0
    %v5193 = vadd.f32 %v4961, %v5192
    %v5194 = vpop.f32.mrb[0].mxu0
    %5195 = vmatprep.mubr.f32.mxu0 0.0
    %v5196 = vand.u32 %v4979, 4294901760
    %v5197 = vsub.f32 %v4979, %v5196
    %v5198 = vand.u32 %v5197, 4294901760
    %v5199 = vsub.f32 %v5197, %v5198
    %v5200 = vand.u32 %v5199, 4294901760
    %5201 = vmatmul.mubr.f32.gmra.mrb[0].mxu0 %v5200
    %v5202 = vpop.f32.mrb[0].mxu0
    %v5203 = vadd.f32 %v4961, %v5202
    %v5204 = vpop.f32.mrb[0].mxu0
    %5205 = vmatprep.mubr.f32.mxu0 0.0
    %v5206 = vand.u32 %v4982, 4294901760
    %v5207 = vsub.f32 %v4982, %v5206
    %v5208 = vand.u32 %v5207, 4294901760
    %v5209 = vsub.f32 %v5207, %v5208
    %v5210 = vand.u32 %v5209, 4294901760
    %5211 = vmatmul.mubr.f32.gmra.mrb[0].mxu0 %v5210
    %v5212 = vpop.f32.mrb[0].mxu0
    %v5213 = vadd.f32 %v4961, %v5212
    %v5214 = vpop.f32.mrb[0].mxu0
    %5215 = vmatprep.mubr.f32.mxu0 0.0
    %v5216 = vand.u32 %v4985, 4294901760
    %v5217 = vsub.f32 %v4985, %v5216
    %v5218 = vand.u32 %v5217, 4294901760
    %v5219 = vsub.f32 %v5217, %v5218
    %v5220 = vand.u32 %v5219, 4294901760
    %5221 = vmatmul.mubr.f32.gmra.mrb[0].mxu0 %v5220
    %v5222 = vpop.f32.mrb[0].mxu0
    %v5223 = vadd.f32 %v4961, %v5222
    %v5224 = vpop.f32.mrb[0].mxu0
    %5225 = vmatprep.mubr.f32.mxu0 0.0
    %v5226 = vand.u32 %v4988, 4294901760
    %v5227 = vsub.f32 %v4988, %v5226
    %v5228 = vand.u32 %v5227, 4294901760
    %v5229 = vsub.f32 %v5227, %v5228
    %v5230 = vand.u32 %v5229, 4294901760
    %5231 = vmatmul.mubr.f32.gmra.mrb[0].mxu0 %v5230
    %v5232 = vpop.f32.mrb[0].mxu0
    %v5233 = vadd.f32 %v4961, %v5232
    %v5234 = vpop.f32.mrb[0].mxu0
    %5235 = vmatprep.mubr.f32.mxu0 0.0
    %v5236 = vand.u32 %v4991, 4294901760
    %v5237 = vsub.f32 %v4991, %v5236
    %v5238 = vand.u32 %v5237, 4294901760
    %v5239 = vsub.f32 %v5237, %v5238
    %v5240 = vand.u32 %v5239, 4294901760
    %5241 = vmatmul.mubr.f32.gmra.mrb[0].mxu0 %v5240
    %v5242 = vpop.f32.mrb[0].mxu0
    %v5243 = vadd.f32 %v4961, %v5242
    %v5244 = vpop.f32.mrb[0].mxu0
    %5245 = vmatprep.mubr.f32.mxu0 0.0
    %v5246 = vand.u32 %v4994, 4294901760
    %v5247 = vsub.f32 %v4994, %v5246
    %v5248 = vand.u32 %v5247, 4294901760
    %v5249 = vsub.f32 %v5247, %v5248
    %v5250 = vand.u32 %v5249, 4294901760
    %5251 = vmatmul.mubr.f32.gmra.mrb[0].mxu0 %v5250
    %v5252 = vpop.f32.mrb[0].mxu0
    %v5253 = vadd.f32 %v4961, %v5252
    %v5254 = vpop.f32.mrb[0].mxu0
    %5255 = vmatprep.mubr.f32.mxu0 0.0
    %v5256 = vand.u32 %v4997, 4294901760
    %v5257 = vsub.f32 %v4997, %v5256
    %v5258 = vand.u32 %v5257, 4294901760
    %v5259 = vsub.f32 %v5257, %v5258
    %v5260 = vand.u32 %v5259, 4294901760
    %5261 = vmatmul.mubr.f32.gmra.mrb[0].mxu0 %v5260
    %v5262 = vpop.f32.mrb[0].mxu0
    %v5263 = vadd.f32 %v4961, %v5262
    %v5264 = vpop.f32.mrb[0].mxu0
    %5265 = vmatprep.mubr.f32.mxu0 0.0
    %v5266 = vand.u32 %v5000, 4294901760
    %v5267 = vsub.f32 %v5000, %v5266
    %v5268 = vand.u32 %v5267, 4294901760
    %v5269 = vsub.f32 %v5267, %v5268
    %v5270 = vand.u32 %v5269, 4294901760
    %5271 = vmatmul.mubr.f32.gmra.mrb[0].mxu0 %v5270
    %v5272 = vpop.f32.mrb[0].mxu0
    %v5273 = vadd.f32 %v4961, %v5272
    %v5274 = vpop.f32.mrb[0].mxu0
    %5275 = vmatprep.mubr.f32.mxu0 0.0
    %v5276 = vand.u32 %v5003, 4294901760
    %v5277 = vsub.f32 %v5003, %v5276
    %v5278 = vand.u32 %v5277, 4294901760
    %v5279 = vsub.f32 %v5277, %v5278
    %v5280 = vand.u32 %v5279, 4294901760
    %5281 = vmatmul.mubr.f32.gmra.mrb[0].mxu0 %v5280
    %v5282 = vpop.f32.mrb[0].mxu0
    %v5283 = vadd.f32 %v4961, %v5282
    %v5284 = vpop.f32.mrb[0].mxu0
    %5285 = vmatprep.mubr.f32.mxu0 0.0
    %v5286 = vand.u32 %v5006, 4294901760
    %v5287 = vsub.f32 %v5006, %v5286
    %v5288 = vand.u32 %v5287, 4294901760
    %v5289 = vsub.f32 %v5287, %v5288
    %v5290 = vand.u32 %v5289, 4294901760
    %5291 = vmatmul.mubr.f32.gmra.mrb[0].mxu0 %v5290
    %v5292 = vpop.f32.mrb[0].mxu0
    %v5293 = vadd.f32 %v4961, %v5292
    %v5294 = vpop.f32.mrb[0].mxu0
    %5295 = vmatprep.mubr.f32.mxu0 0.0
    %v5296 = vand.u32 %v5009, 4294901760
    %v5297 = vsub.f32 %v5009, %v5296
    %v5298 = vand.u32 %v5297, 4294901760
    %v5299 = vsub.f32 %v5297, %v5298
    %v5300 = vand.u32 %v5299, 4294901760
    %5301 = vmatmul.mubr.f32.gmra.mrb[0].mxu0 %v5300
    %v5302 = vpop.f32.mrb[0].mxu0
    %v5303 = vadd.f32 %v4961, %v5302
    %v5304 = vpop.f32.mrb[0].mxu0
    %5305 = vmatprep.mubr.f32.mxu0 0.0
    %v5306 = vand.u32 %v5012, 4294901760
    %v5307 = vsub.f32 %v5012, %v5306
    %v5308 = vand.u32 %v5307, 4294901760
    %v5309 = vsub.f32 %v5307, %v5308
    %v5310 = vand.u32 %v5309, 4294901760
    %5311 = vmatmul.mubr.f32.gmra.mrb[0].mxu0 %v5310
    %v5312 = vpop.f32.mrb[0].mxu0
    %v5313 = vadd.f32 %v4961, %v5312
    %v5314 = vpop.f32.mrb[0].mxu0
    %5315 = vmatprep.mubr.f32.mxu0 0.0
    %v5316 = vand.u32 %v5015, 4294901760
    %v5317 = vsub.f32 %v5015, %v5316
    %v5318 = vand.u32 %v5317, 4294901760
    %v5319 = vsub.f32 %v5317, %v5318
    %v5320 = vand.u32 %v5319, 4294901760
    %5321 = vmatmul.mubr.f32.gmra.mrb[0].mxu0 %v5320
    %v5322 = vpop.f32.mrb[0].mxu0
    %v5323 = vadd.f32 %v4961, %v5322
    %v5324 = vpop.f32.mrb[0].mxu0
    %5325 = vmatprep.mubr.f32.mxu0 0.0
    %v5326 = vand.u32 %v5018, 4294901760
    %v5327 = vsub.f32 %v5018, %v5326
    %v5328 = vand.u32 %v5327, 4294901760
    %v5329 = vsub.f32 %v5327, %v5328
    %v5330 = vand.u32 %v5329, 4294901760
    %5331 = vmatmul.mubr.f32.gmra.mrb[0].mxu0 %v5330
    %v5332 = vpop.f32.mrb[0].mxu0
    %v5333 = vadd.f32 %v4961, %v5332
    %v5334 = vpop.f32.mrb[0].mxu0
    %5335 = vmatprep.mubr.f32.mxu0 0.0
    %v5336 = vand.u32 %v5021, 4294901760
    %v5337 = vsub.f32 %v5021, %v5336
    %v5338 = vand.u32 %v5337, 4294901760
    %v5339 = vsub.f32 %v5337, %v5338
    %v5340 = vand.u32 %v5339, 4294901760
    %5341 = vmatmul.mubr.f32.gmra.mrb[0].mxu0 %v5340
    %v5342 = vpop.f32.mrb[0].mxu0
    %v5343 = vadd.f32 %v4961, %v5342
    %v5344 = vpop.f32.mrb[0].mxu0
    %5345 = vmatprep.mubr.f32.mxu0 0.0
    %v5346 = vand.u32 %v5024, 4294901760
    %v5347 = vsub.f32 %v5024, %v5346
    %v5348 = vand.u32 %v5347, 4294901760
    %v5349 = vsub.f32 %v5347, %v5348
    %v5350 = vand.u32 %v5349, 4294901760
    %5351 = vmatmul.mubr.f32.gmra.mrb[0].mxu0 %v5350
    %v5352 = vpop.f32.mrb[0].mxu0
    %v5353 = vadd.f32 %v4961, %v5352
    %v5354 = vpop.f32.mrb[0].mxu0
    %5355 = vmatprep.mubr.f32.mxu0 0.0
    %v5356 = vand.u32 %v5027, 4294901760
    %v5357 = vsub.f32 %v5027, %v5356
    %v5358 = vand.u32 %v5357, 4294901760
    %v5359 = vsub.f32 %v5357, %v5358
    %v5360 = vand.u32 %v5359, 4294901760
    %5361 = vmatmul.mubr.f32.gmra.mrb[0].mxu0 %v5360
    %v5362 = vpop.f32.mrb[0].mxu0
    %v5363 = vadd.f32 %v4961, %v5362
    %v5364 = vpop.f32.mrb[0].mxu0
    %5365 = vmatprep.mubr.f32.mxu0 0.0
    %v5366 = vand.u32 %v5030, 4294901760
    %v5367 = vsub.f32 %v5030, %v5366
    %v5368 = vand.u32 %v5367, 4294901760
    %v5369 = vsub.f32 %v5367, %v5368
    %v5370 = vand.u32 %v5369, 4294901760
    %5371 = vmatmul.mubr.f32.gmra.mrb[0].mxu0 %v5370
    %v5372 = vpop.f32.mrb[0].mxu0
    %v5373 = vadd.f32 %v4961, %v5372
    %v5374 = vpop.f32.mrb[0].mxu0
    %5375 = vmatprep.mubr.f32.mxu0 0.0
    %v5376 = vand.u32 %v5033, 4294901760
    %v5377 = vsub.f32 %v5033, %v5376
    %v5378 = vand.u32 %v5377, 4294901760
    %v5379 = vsub.f32 %v5377, %v5378
    %v5380 = vand.u32 %v5379, 4294901760
    %5381 = vmatmul.mubr.f32.gmra.mrb[0].mxu0 %v5380
    %v5382 = vpop.f32.mrb[0].mxu0
    %v5383 = vadd.f32 %v4961, %v5382
    %v5384 = vpop.f32.mrb[0].mxu0
    %5385 = vmatprep.mubr.f32.mxu0 0.0
    %v5386 = vand.u32 %v5036, 4294901760
    %v5387 = vsub.f32 %v5036, %v5386
    %v5388 = vand.u32 %v5387, 4294901760
    %v5389 = vsub.f32 %v5387, %v5388
    %v5390 = vand.u32 %v5389, 4294901760
    %5391 = vmatmul.mubr.f32.gmra.mrb[0].mxu0 %v5390
    %v5392 = vpop.f32.mrb[0].mxu0
    %v5393 = vadd.f32 %v4961, %v5392
    %v5394 = vpop.f32.mrb[0].mxu0
    %5395 = vmatprep.mubr.f32.mxu0 0.0
    %v5396 = vand.u32 %v5039, 4294901760
    %v5397 = vsub.f32 %v5039, %v5396
    %v5398 = vand.u32 %v5397, 4294901760
    %v5399 = vsub.f32 %v5397, %v5398
    %v5400 = vand.u32 %v5399, 4294901760
    %5401 = vmatmul.mubr.f32.gmra.mrb[0].mxu0 %v5400
    %v5402 = vpop.f32.mrb[0].mxu0
    %v5403 = vadd.f32 %v4961, %v5402
    %v5404 = vpop.f32.mrb[0].mxu0
    %5405 = vmatprep.mubr.f32.mxu0 0.0
    %v5406 = vand.u32 %v5042, 4294901760
    %v5407 = vsub.f32 %v5042, %v5406
    %v5408 = vand.u32 %v5407, 4294901760
    %v5409 = vsub.f32 %v5407, %v5408
    %v5410 = vand.u32 %v5409, 4294901760
    %5411 = vmatmul.mubr.f32.gmra.mrb[0].mxu0 %v5410
    %v5412 = vpop.f32.mrb[0].mxu0
    %v5413 = vadd.f32 %v4961, %v5412
    %v5414 = vpop.f32.mrb[0].mxu0
    %5415 = vmatprep.mubr.f32.mxu0 0.0
    %v5416 = vand.u32 %v5045, 4294901760
    %v5417 = vsub.f32 %v5045, %v5416
    %v5418 = vand.u32 %v5417, 4294901760
    %v5419 = vsub.f32 %v5417, %v5418
    %v5420 = vand.u32 %v5419, 4294901760
    %5421 = vmatmul.mubr.f32.gmra.mrb[0].mxu0 %v5420
    %v5422 = vpop.f32.mrb[0].mxu0
    %v5423 = vadd.f32 %v4961, %v5422
    %v5424 = vpop.f32.mrb[0].mxu0
    %5425 = vmatprep.mubr.f32.mxu0 0.0
    %v5426 = vand.u32 %v5048, 4294901760
    %v5427 = vsub.f32 %v5048, %v5426
    %v5428 = vand.u32 %v5427, 4294901760
    %v5429 = vsub.f32 %v5427, %v5428
    %v5430 = vand.u32 %v5429, 4294901760
    %5431 = vmatmul.mubr.f32.gmra.mrb[0].mxu0 %v5430
    %v5432 = vpop.f32.mrb[0].mxu0
    %v5433 = vadd.f32 %v4961, %v5432
    %v5434 = vpop.f32.mrb[0].mxu0
    %5435 = vmatprep.mubr.f32.mxu0 0.0
    %v5436 = vand.u32 %v5051, 4294901760
    %v5437 = vsub.f32 %v5051, %v5436
    %v5438 = vand.u32 %v5437, 4294901760
    %v5439 = vsub.f32 %v5437, %v5438
    %v5440 = vand.u32 %v5439, 4294901760
    %5441 = vmatmul.mubr.f32.gmra.mrb[0].mxu0 %v5440
    %v5442 = vpop.f32.mrb[0].mxu0
    %v5443 = vadd.f32 %v4961, %v5442
    %v5444 = vpop.f32.mrb[0].mxu0
    %5445 = vmatprep.mubr.f32.mxu0 0.0
    %v5446 = vand.u32 %v5054, 4294901760
    %v5447 = vsub.f32 %v5054, %v5446
    %v5448 = vand.u32 %v5447, 4294901760
    %v5449 = vsub.f32 %v5447, %v5448
    %v5450 = vand.u32 %v5449, 4294901760
    %5451 = vmatmul.mubr.f32.gmra.mrb[0].mxu0 %v5450
    %v5452 = vpop.f32.mrb[0].mxu0
    %v5453 = vadd.f32 %v4961, %v5452
    %v5454 = vpop.f32.mrb[0].mxu0
    %5455 = vmatprep.mubr.f32.mxu0 0.0
    %v5456 = vand.u32 %v5057, 4294901760
    %v5457 = vsub.f32 %v5057, %v5456
    %v5458 = vand.u32 %v5457, 4294901760
    %v5459 = vsub.f32 %v5457, %v5458
    %v5460 = vand.u32 %v5459, 4294901760
    %5461 = vmatmul.mubr.f32.gmra.mrb[0].mxu0 %v5460
    %v5462 = vpop.f32.mrb[0].mxu0
    %v5463 = vadd.f32 %v4961, %v5462
    %v5464 = vpop.f32.mrb[0].mxu0
    %5465 = vmatprep.mubr.f32.mxu0 0.0
    %v5466 = vand.u32 %v5060, 4294901760
    %v5467 = vsub.f32 %v5060, %v5466
    %v5468 = vand.u32 %v5467, 4294901760
    %v5469 = vsub.f32 %v5467, %v5468
    %v5470 = vand.u32 %v5469, 4294901760
    %5471 = vmatmul.mubr.f32.gmra.mrb[0].mxu0 %v5470
    %v5472 = vpop.f32.mrb[0].mxu0
    %v5473 = vadd.f32 %v4961, %v5472
    %v5474 = vpop.f32.mrb[0].mxu0
    %5475 = vmatprep.mubr.f32.mxu0 0.0
    %v5476 = vand.u32 %v5063, 4294901760
    %v5477 = vsub.f32 %v5063, %v5476
    %v5478 = vand.u32 %v5477, 4294901760
    %v5479 = vsub.f32 %v5477, %v5478
    %v5480 = vand.u32 %v5479, 4294901760
    %5481 = vmatmul.mubr.f32.gmra.mrb[0].mxu0 %v5480
    %v5482 = vpop.f32.mrb[0].mxu0
    %v5483 = vadd.f32 %v4961, %v5482
    %v5484 = vpop.f32.mrb[0].mxu0
    %5485 = vmatprep.mubr.f32.mxu0 0.0
    %v5486 = vand.u32 %v5066, 4294901760
    %v5487 = vsub.f32 %v5066, %v5486
    %v5488 = vand.u32 %v5487, 4294901760
    %v5489 = vsub.f32 %v5487, %v5488
    %v5490 = vand.u32 %v5489, 4294901760
    %5491 = vmatmul.mubr.f32.gmra.mrb[0].mxu0 %v5490
    %v5492 = vpop.f32.mrb[0].mxu0
    %v5493 = vadd.f32 %v4961, %v5492
    %v5494 = vpop.f32.mrb[0].mxu0
    %5495 = vmatprep.mubr.f32.mxu0 0.0
    %v5496 = vand.u32 %v5069, 4294901760
    %v5497 = vsub.f32 %v5069, %v5496
    %v5498 = vand.u32 %v5497, 4294901760
    %v5499 = vsub.f32 %v5497, %v5498
    %v5500 = vand.u32 %v5499, 4294901760
    %5501 = vmatmul.mubr.f32.gmra.mrb[0].mxu0 %v5500
    %v5502 = vpop.f32.mrb[0].mxu0
    %v5503 = vadd.f32 %v4961, %v5502
    %v5504 = vpop.f32.mrb[0].mxu0
    %5505 = vmatprep.mubr.f32.mxu0 0.0
    %v5506 = vand.u32 %v5072, 4294901760
    %v5507 = vsub.f32 %v5072, %v5506
    %v5508 = vand.u32 %v5507, 4294901760
    %v5509 = vsub.f32 %v5507, %v5508
    %v5510 = vand.u32 %v5509, 4294901760
    %5511 = vmatmul.mubr.f32.gmra.mrb[0].mxu0 %v5510
    %v5512 = vpop.f32.mrb[0].mxu0
    %v5513 = vadd.f32 %v4961, %v5512
    %v5514 = vpop.f32.mrb[0].mxu0
    %5515 = vmatprep.mubr.f32.mxu0 0.0
    %v5516 = vand.u32 %v5075, 4294901760
    %v5517 = vsub.f32 %v5075, %v5516
    %v5518 = vand.u32 %v5517, 4294901760
    %v5519 = vsub.f32 %v5517, %v5518
    %v5520 = vand.u32 %v5519, 4294901760
    %5521 = vmatmul.mubr.f32.gmra.mrb[0].mxu0 %v5520
    %v5522 = vpop.f32.mrb[0].mxu0
    %v5523 = vadd.f32 %v4961, %v5522
    %v5524 = vpop.f32.mrb[0].mxu0
    %5525 = vdwg.mxu0
    %5526 = vmatprep.subr.mxu0 0.0
    %v5527 = vand.u32 %v4952, 4294901760
    %v5528 = vsub.f32 %v4952, %v5527
    %v5529 = vand.u32 %v5528, 4294901760
    %v5530 = vsub.f32 %v5528, %v5529
    %v5531 = vand.u32 %v5530, 4294901760
    %5532 = vmatpush1.msra.mxu0 %v5531
    %5533 = vmatprep.subr.mxu0 0.0
    %v5534 = vand.u32 %v4953, 4294901760
    %v5535 = vsub.f32 %v4953, %v5534
    %v5536 = vand.u32 %v5535, 4294901760
    %v5537 = vsub.f32 %v5535, %v5536
    %v5538 = vand.u32 %v5537, 4294901760
    %5539 = vmatpush1.msra.mxu0 %v5538
    %5540 = vmatprep.subr.mxu0 0.0
    %v5541 = vand.u32 %v4954, 4294901760
    %v5542 = vsub.f32 %v4954, %v5541
    %v5543 = vand.u32 %v5542, 4294901760
    %v5544 = vsub.f32 %v5542, %v5543
    %v5545 = vand.u32 %v5544, 4294901760
    %5546 = vmatpush1.msra.mxu0 %v5545
    %5547 = vmatprep.subr.mxu0 0.0
    %v5548 = vand.u32 %v4955, 4294901760
    %v5549 = vsub.f32 %v4955, %v5548
    %v5550 = vand.u32 %v5549, 4294901760
    %v5551 = vsub.f32 %v5549, %v5550
    %v5552 = vand.u32 %v5551, 4294901760
    %5553 = vmatpush1.msra.mxu0 %v5552
    %5554 = vmatprep.subr.mxu0 0.0
    %5555 = vmatpush1.msra.mxu0 0.0
    %5556 = vmatprep.subr.mxu0 0.0
    %5557 = vmatpush1.msra.mxu0 0.0
    %5558 = vmatprep.subr.mxu0 0.0
    %5559 = vmatpush1.msra.mxu0 0.0
    %5560 = vmatprep.subr.mxu0 0.0
    %5561 = vmatpush1.msra.mxu0 0.0
    %5562 = vmatprep.subr.mxu0 0.0
    %5563 = vmatpush1.msra.mxu0 0.0
    %5564 = vmatprep.subr.mxu0 0.0
    %5565 = vmatpush1.msra.mxu0 0.0
    %5566 = vmatprep.subr.mxu0 0.0
    %5567 = vmatpush1.msra.mxu0 0.0
    %5568 = vmatprep.subr.mxu0 0.0
    %5569 = vmatpush1.msra.mxu0 0.0
    %5570 = vmatprep.subr.mxu0 0.0
    %5571 = vmatpush1.msra.mxu0 0.0
    %5572 = vmatprep.subr.mxu0 0.0
    %5573 = vmatpush1.msra.mxu0 0.0
    %5574 = vmatprep.subr.mxu0 0.0
    %5575 = vmatpush1.msra.mxu0 0.0
    %5576 = vmatprep.subr.mxu0 0.0
    %5577 = vmatpush1.msra.mxu0 0.0
    %5578 = vmatprep.subr.mxu0 0.0
    %5579 = vmatpush1.msra.mxu0 0.0
    %5580 = vmatprep.subr.mxu0 0.0
    %5581 = vmatpush1.msra.mxu0 0.0
    %5582 = vmatprep.subr.mxu0 0.0
    %5583 = vmatpush1.msra.mxu0 0.0
    %5584 = vmatprep.subr.mxu0 0.0
    %5585 = vmatpush1.msra.mxu0 0.0
    %5586 = vmatprep.subr.mxu0 0.0
    %5587 = vmatpush1.msra.mxu0 0.0
    %5588 = vmatprep.subr.mxu0 0.0
    %5589 = vmatpush1.msra.mxu0 0.0
    %5590 = vmatprep.subr.mxu0 0.0
    %5591 = vmatpush1.msra.mxu0 0.0
    %5592 = vmatprep.subr.mxu0 0.0
    %5593 = vmatpush1.msra.mxu0 0.0
    %5594 = vmatprep.subr.mxu0 0.0
    %5595 = vmatpush1.msra.mxu0 0.0
    %5596 = vmatprep.subr.mxu0 0.0
    %5597 = vmatpush1.msra.mxu0 0.0
    %5598 = vmatprep.subr.mxu0 0.0
    %5599 = vmatpush1.msra.mxu0 0.0
    %5600 = vmatprep.subr.mxu0 0.0
    %5601 = vmatpush1.msra.mxu0 0.0
    %5602 = vmatprep.subr.mxu0 0.0
    %5603 = vmatpush1.msra.mxu0 0.0
    %5604 = vmatprep.subr.mxu0 0.0
    %5605 = vmatpush1.msra.mxu0 0.0
    %5606 = vmatprep.subr.mxu0 0.0
    %5607 = vmatpush1.msra.mxu0 0.0
    %5608 = vmatprep.subr.mxu0 0.0
    %5609 = vmatpush1.msra.mxu0 0.0
    %5610 = vmatprep.mubr.f32.mxu0 0.0
    %v5611 = vand.u32 %v4964, 4294901760
    %5612 = vmatmul.mubr.f32.gmra.mrb[0].mxu0 %v5611
    %v5613 = vpop.f32.mrb[0].mxu0
    %v5614 = vadd.f32 %v5153, %v5613
    %v5615 = vpop.f32.mrb[0].mxu0
    %5616 = vmatprep.mubr.f32.mxu0 0.0
    %v5617 = vand.u32 %v4967, 4294901760
    %5618 = vmatmul.mubr.f32.gmra.mrb[0].mxu0 %v5617
    %v5619 = vpop.f32.mrb[0].mxu0
    %v5620 = vadd.f32 %v5163, %v5619
    %v5621 = vpop.f32.mrb[0].mxu0
    %5622 = vmatprep.mubr.f32.mxu0 0.0
    %v5623 = vand.u32 %v4970, 4294901760
    %5624 = vmatmul.mubr.f32.gmra.mrb[0].mxu0 %v5623
    %v5625 = vpop.f32.mrb[0].mxu0
    %v5626 = vadd.f32 %v5173, %v5625
    %v5627 = vpop.f32.mrb[0].mxu0
    %5628 = vmatprep.mubr.f32.mxu0 0.0
    %v5629 = vand.u32 %v4973, 4294901760
    %5630 = vmatmul.mubr.f32.gmra.mrb[0].mxu0 %v5629
    %v5631 = vpop.f32.mrb[0].mxu0
    %v5632 = vadd.f32 %v5183, %v5631
    %v5633 = vpop.f32.mrb[0].mxu0
    %5634 = vmatprep.mubr.f32.mxu0 0.0
    %v5635 = vand.u32 %v4976, 4294901760
    %5636 = vmatmul.mubr.f32.gmra.mrb[0].mxu0 %v5635
    %v5637 = vpop.f32.mrb[0].mxu0
    %v5638 = vadd.f32 %v5193, %v5637
    %v5639 = vpop.f32.mrb[0].mxu0
    %5640 = vmatprep.mubr.f32.mxu0 0.0
    %v5641 = vand.u32 %v4979, 4294901760
    %5642 = vmatmul.mubr.f32.gmra.mrb[0].mxu0 %v5641
    %v5643 = vpop.f32.mrb[0].mxu0
    %v5644 = vadd.f32 %v5203, %v5643
    %v5645 = vpop.f32.mrb[0].mxu0
    %5646 = vmatprep.mubr.f32.mxu0 0.0
    %v5647 = vand.u32 %v4982, 4294901760
    %5648 = vmatmul.mubr.f32.gmra.mrb[0].mxu0 %v5647
    %v5649 = vpop.f32.mrb[0].mxu0
    %v5650 = vadd.f32 %v5213, %v5649
    %v5651 = vpop.f32.mrb[0].mxu0
    %5652 = vmatprep.mubr.f32.mxu0 0.0
    %v5653 = vand.u32 %v4985, 4294901760
    %5654 = vmatmul.mubr.f32.gmra.mrb[0].mxu0 %v5653
    %v5655 = vpop.f32.mrb[0].mxu0
    %v5656 = vadd.f32 %v5223, %v5655
    %v5657 = vpop.f32.mrb[0].mxu0
    %5658 = vmatprep.mubr.f32.mxu0 0.0
    %v5659 = vand.u32 %v4988, 4294901760
    %5660 = vmatmul.mubr.f32.gmra.mrb[0].mxu0 %v5659
    %v5661 = vpop.f32.mrb[0].mxu0
    %v5662 = vadd.f32 %v5233, %v5661
    %v5663 = vpop.f32.mrb[0].mxu0
    %5664 = vmatprep.mubr.f32.mxu0 0.0
    %v5665 = vand.u32 %v4991, 4294901760
    %5666 = vmatmul.mubr.f32.gmra.mrb[0].mxu0 %v5665
    %v5667 = vpop.f32.mrb[0].mxu0
    %v5668 = vadd.f32 %v5243, %v5667
    %v5669 = vpop.f32.mrb[0].mxu0
    %5670 = vmatprep.mubr.f32.mxu0 0.0
    %v5671 = vand.u32 %v4994, 4294901760
    %5672 = vmatmul.mubr.f32.gmra.mrb[0].mxu0 %v5671
    %v5673 = vpop.f32.mrb[0].mxu0
    %v5674 = vadd.f32 %v5253, %v5673
    %v5675 = vpop.f32.mrb[0].mxu0
    %5676 = vmatprep.mubr.f32.mxu0 0.0
    %v5677 = vand.u32 %v4997, 4294901760
    %5678 = vmatmul.mubr.f32.gmra.mrb[0].mxu0 %v5677
    %v5679 = vpop.f32.mrb[0].mxu0
    %v5680 = vadd.f32 %v5263, %v5679
    %v5681 = vpop.f32.mrb[0].mxu0
    %5682 = vmatprep.mubr.f32.mxu0 0.0
    %v5683 = vand.u32 %v5000, 4294901760
    %5684 = vmatmul.mubr.f32.gmra.mrb[0].mxu0 %v5683
    %v5685 = vpop.f32.mrb[0].mxu0
    %v5686 = vadd.f32 %v5273, %v5685
    %v5687 = vpop.f32.mrb[0].mxu0
    %5688 = vmatprep.mubr.f32.mxu0 0.0
    %v5689 = vand.u32 %v5003, 4294901760
    %5690 = vmatmul.mubr.f32.gmra.mrb[0].mxu0 %v5689
    %v5691 = vpop.f32.mrb[0].mxu0
    %v5692 = vadd.f32 %v5283, %v5691
    %v5693 = vpop.f32.mrb[0].mxu0
    %5694 = vmatprep.mubr.f32.mxu0 0.0
    %v5695 = vand.u32 %v5006, 4294901760
    %5696 = vmatmul.mubr.f32.gmra.mrb[0].mxu0 %v5695
    %v5697 = vpop.f32.mrb[0].mxu0
    %v5698 = vadd.f32 %v5293, %v5697
    %v5699 = vpop.f32.mrb[0].mxu0
    %5700 = vmatprep.mubr.f32.mxu0 0.0
    %v5701 = vand.u32 %v5009, 4294901760
    %5702 = vmatmul.mubr.f32.gmra.mrb[0].mxu0 %v5701
    %v5703 = vpop.f32.mrb[0].mxu0
    %v5704 = vadd.f32 %v5303, %v5703
    %v5705 = vpop.f32.mrb[0].mxu0
    %5706 = vmatprep.mubr.f32.mxu0 0.0
    %v5707 = vand.u32 %v5012, 4294901760
    %5708 = vmatmul.mubr.f32.gmra.mrb[0].mxu0 %v5707
    %v5709 = vpop.f32.mrb[0].mxu0
    %v5710 = vadd.f32 %v5313, %v5709
    %v5711 = vpop.f32.mrb[0].mxu0
    %5712 = vmatprep.mubr.f32.mxu0 0.0
    %v5713 = vand.u32 %v5015, 4294901760
    %5714 = vmatmul.mubr.f32.gmra.mrb[0].mxu0 %v5713
    %v5715 = vpop.f32.mrb[0].mxu0
    %v5716 = vadd.f32 %v5323, %v5715
    %v5717 = vpop.f32.mrb[0].mxu0
    %5718 = vmatprep.mubr.f32.mxu0 0.0
    %v5719 = vand.u32 %v5018, 4294901760
    %5720 = vmatmul.mubr.f32.gmra.mrb[0].mxu0 %v5719
    %v5721 = vpop.f32.mrb[0].mxu0
    %v5722 = vadd.f32 %v5333, %v5721
    %v5723 = vpop.f32.mrb[0].mxu0
    %5724 = vmatprep.mubr.f32.mxu0 0.0
    %v5725 = vand.u32 %v5021, 4294901760
    %5726 = vmatmul.mubr.f32.gmra.mrb[0].mxu0 %v5725
    %v5727 = vpop.f32.mrb[0].mxu0
    %v5728 = vadd.f32 %v5343, %v5727
    %v5729 = vpop.f32.mrb[0].mxu0
    %5730 = vmatprep.mubr.f32.mxu0 0.0
    %v5731 = vand.u32 %v5024, 4294901760
    %5732 = vmatmul.mubr.f32.gmra.mrb[0].mxu0 %v5731
    %v5733 = vpop.f32.mrb[0].mxu0
    %v5734 = vadd.f32 %v5353, %v5733
    %v5735 = vpop.f32.mrb[0].mxu0
    %5736 = vmatprep.mubr.f32.mxu0 0.0
    %v5737 = vand.u32 %v5027, 4294901760
    %5738 = vmatmul.mubr.f32.gmra.mrb[0].mxu0 %v5737
    %v5739 = vpop.f32.mrb[0].mxu0
    %v5740 = vadd.f32 %v5363, %v5739
    %v5741 = vpop.f32.mrb[0].mxu0
    %5742 = vmatprep.mubr.f32.mxu0 0.0
    %v5743 = vand.u32 %v5030, 4294901760
    %5744 = vmatmul.mubr.f32.gmra.mrb[0].mxu0 %v5743
    %v5745 = vpop.f32.mrb[0].mxu0
    %v5746 = vadd.f32 %v5373, %v5745
    %v5747 = vpop.f32.mrb[0].mxu0
    %5748 = vmatprep.mubr.f32.mxu0 0.0
    %v5749 = vand.u32 %v5033, 4294901760
    %5750 = vmatmul.mubr.f32.gmra.mrb[0].mxu0 %v5749
    %v5751 = vpop.f32.mrb[0].mxu0
    %v5752 = vadd.f32 %v5383, %v5751
    %v5753 = vpop.f32.mrb[0].mxu0
    %5754 = vmatprep.mubr.f32.mxu0 0.0
    %v5755 = vand.u32 %v5036, 4294901760
    %5756 = vmatmul.mubr.f32.gmra.mrb[0].mxu0 %v5755
    %v5757 = vpop.f32.mrb[0].mxu0
    %v5758 = vadd.f32 %v5393, %v5757
    %v5759 = vpop.f32.mrb[0].mxu0
    %5760 = vmatprep.mubr.f32.mxu0 0.0
    %v5761 = vand.u32 %v5039, 4294901760
    %5762 = vmatmul.mubr.f32.gmra.mrb[0].mxu0 %v5761
    %v5763 = vpop.f32.mrb[0].mxu0
    %v5764 = vadd.f32 %v5403, %v5763
    %v5765 = vpop.f32.mrb[0].mxu0
    %5766 = vmatprep.mubr.f32.mxu0 0.0
    %v5767 = vand.u32 %v5042, 4294901760
    %5768 = vmatmul.mubr.f32.gmra.mrb[0].mxu0 %v5767
    %v5769 = vpop.f32.mrb[0].mxu0
    %v5770 = vadd.f32 %v5413, %v5769
    %v5771 = vpop.f32.mrb[0].mxu0
    %5772 = vmatprep.mubr.f32.mxu0 0.0
    %v5773 = vand.u32 %v5045, 4294901760
    %5774 = vmatmul.mubr.f32.gmra.mrb[0].mxu0 %v5773
    %v5775 = vpop.f32.mrb[0].mxu0
    %v5776 = vadd.f32 %v5423, %v5775
    %v5777 = vpop.f32.mrb[0].mxu0
    %5778 = vmatprep.mubr.f32.mxu0 0.0
    %v5779 = vand.u32 %v5048, 4294901760
    %5780 = vmatmul.mubr.f32.gmra.mrb[0].mxu0 %v5779
    %v5781 = vpop.f32.mrb[0].mxu0
    %v5782 = vadd.f32 %v5433, %v5781
    %v5783 = vpop.f32.mrb[0].mxu0
    %5784 = vmatprep.mubr.f32.mxu0 0.0
    %v5785 = vand.u32 %v5051, 4294901760
    %5786 = vmatmul.mubr.f32.gmra.mrb[0].mxu0 %v5785
    %v5787 = vpop.f32.mrb[0].mxu0
    %v5788 = vadd.f32 %v5443, %v5787
    %v5789 = vpop.f32.mrb[0].mxu0
    %5790 = vmatprep.mubr.f32.mxu0 0.0
    %v5791 = vand.u32 %v5054, 4294901760
    %5792 = vmatmul.mubr.f32.gmra.mrb[0].mxu0 %v5791
    %v5793 = vpop.f32.mrb[0].mxu0
    %v5794 = vadd.f32 %v5453, %v5793
    %v5795 = vpop.f32.mrb[0].mxu0
    %5796 = vmatprep.mubr.f32.mxu0 0.0
    %v5797 = vand.u32 %v5057, 4294901760
    %5798 = vmatmul.mubr.f32.gmra.mrb[0].mxu0 %v5797
    %v5799 = vpop.f32.mrb[0].mxu0
    %v5800 = vadd.f32 %v5463, %v5799
    %v5801 = vpop.f32.mrb[0].mxu0
    %5802 = vmatprep.mubr.f32.mxu0 0.0
    %v5803 = vand.u32 %v5060, 4294901760
    %5804 = vmatmul.mubr.f32.gmra.mrb[0].mxu0 %v5803
    %v5805 = vpop.f32.mrb[0].mxu0
    %v5806 = vadd.f32 %v5473, %v5805
    %v5807 = vpop.f32.mrb[0].mxu0
    %5808 = vmatprep.mubr.f32.mxu0 0.0
    %v5809 = vand.u32 %v5063, 4294901760
    %5810 = vmatmul.mubr.f32.gmra.mrb[0].mxu0 %v5809
    %v5811 = vpop.f32.mrb[0].mxu0
    %v5812 = vadd.f32 %v5483, %v5811
    %v5813 = vpop.f32.mrb[0].mxu0
    %5814 = vmatprep.mubr.f32.mxu0 0.0
    %v5815 = vand.u32 %v5066, 4294901760
    %5816 = vmatmul.mubr.f32.gmra.mrb[0].mxu0 %v5815
    %v5817 = vpop.f32.mrb[0].mxu0
    %v5818 = vadd.f32 %v5493, %v5817
    %v5819 = vpop.f32.mrb[0].mxu0
    %5820 = vmatprep.mubr.f32.mxu0 0.0
    %v5821 = vand.u32 %v5069, 4294901760
    %5822 = vmatmul.mubr.f32.gmra.mrb[0].mxu0 %v5821
    %v5823 = vpop.f32.mrb[0].mxu0
    %v5824 = vadd.f32 %v5503, %v5823
    %v5825 = vpop.f32.mrb[0].mxu0
    %5826 = vmatprep.mubr.f32.mxu0 0.0
    %v5827 = vand.u32 %v5072, 4294901760
    %5828 = vmatmul.mubr.f32.gmra.mrb[0].mxu0 %v5827
    %v5829 = vpop.f32.mrb[0].mxu0
    %v5830 = vadd.f32 %v5513, %v5829
    %v5831 = vpop.f32.mrb[0].mxu0
    %5832 = vmatprep.mubr.f32.mxu0 0.0
    %v5833 = vand.u32 %v5075, 4294901760
    %5834 = vmatmul.mubr.f32.gmra.mrb[0].mxu0 %v5833
    %v5835 = vpop.f32.mrb[0].mxu0
    %v5836 = vadd.f32 %v5523, %v5835
    %v5837 = vpop.f32.mrb[0].mxu0
    %5838 = vdwg.mxu0
    %5839 = vmatprep.subr.mxu0 0.0
    %v5840 = vand.u32 %v4952, 4294901760
    %v5841 = vsub.f32 %v4952, %v5840
    %5842 = vmatpush1.msra.mxu0 %v5841
    %5843 = vmatprep.subr.mxu0 0.0
    %v5844 = vand.u32 %v4953, 4294901760
    %v5845 = vsub.f32 %v4953, %v5844
    %5846 = vmatpush1.msra.mxu0 %v5845
    %5847 = vmatprep.subr.mxu0 0.0
    %v5848 = vand.u32 %v4954, 4294901760
    %v5849 = vsub.f32 %v4954, %v5848
    %5850 = vmatpush1.msra.mxu0 %v5849
    %5851 = vmatprep.subr.mxu0 0.0
    %v5852 = vand.u32 %v4955, 4294901760
    %v5853 = vsub.f32 %v4955, %v5852
    %5854 = vmatpush1.msra.mxu0 %v5853
    %5855 = vmatprep.subr.mxu0 0.0
    %5856 = vmatpush1.msra.mxu0 0.0
    %5857 = vmatprep.subr.mxu0 0.0
    %5858 = vmatpush1.msra.mxu0 0.0
    %5859 = vmatprep.subr.mxu0 0.0
    %5860 = vmatpush1.msra.mxu0 0.0
    %5861 = vmatprep.subr.mxu0 0.0
    %5862 = vmatpush1.msra.mxu0 0.0
    %5863 = vmatprep.subr.mxu0 0.0
    %5864 = vmatpush1.msra.mxu0 0.0
    %5865 = vmatprep.subr.mxu0 0.0
    %5866 = vmatpush1.msra.mxu0 0.0
    %5867 = vmatprep.subr.mxu0 0.0
    %5868 = vmatpush1.msra.mxu0 0.0
    %5869 = vmatprep.subr.mxu0 0.0
    %5870 = vmatpush1.msra.mxu0 0.0
    %5871 = vmatprep.subr.mxu0 0.0
    %5872 = vmatpush1.msra.mxu0 0.0
    %5873 = vmatprep.subr.mxu0 0.0
    %5874 = vmatpush1.msra.mxu0 0.0
    %5875 = vmatprep.subr.mxu0 0.0
    %5876 = vmatpush1.msra.mxu0 0.0
    %5877 = vmatprep.subr.mxu0 0.0
    %5878 = vmatpush1.msra.mxu0 0.0
    %5879 = vmatprep.subr.mxu0 0.0
    %5880 = vmatpush1.msra.mxu0 0.0
    %5881 = vmatprep.subr.mxu0 0.0
    %5882 = vmatpush1.msra.mxu0 0.0
    %5883 = vmatprep.subr.mxu0 0.0
    %5884 = vmatpush1.msra.mxu0 0.0
    %5885 = vmatprep.subr.mxu0 0.0
    %5886 = vmatpush1.msra.mxu0 0.0
    %5887 = vmatprep.subr.mxu0 0.0
    %5888 = vmatpush1.msra.mxu0 0.0
    %5889 = vmatprep.subr.mxu0 0.0
    %5890 = vmatpush1.msra.mxu0 0.0
    %5891 = vmatprep.subr.mxu0 0.0
    %5892 = vmatpush1.msra.mxu0 0.0
    %5893 = vmatprep.subr.mxu0 0.0
    %5894 = vmatpush1.msra.mxu0 0.0
    %5895 = vmatprep.subr.mxu0 0.0
    %5896 = vmatpush1.msra.mxu0 0.0
    %5897 = vmatprep.subr.mxu0 0.0
    %5898 = vmatpush1.msra.mxu0 0.0
    %5899 = vmatprep.subr.mxu0 0.0
    %5900 = vmatpush1.msra.mxu0 0.0
    %5901 = vmatprep.subr.mxu0 0.0
    %5902 = vmatpush1.msra.mxu0 0.0
    %5903 = vmatprep.subr.mxu0 0.0
    %5904 = vmatpush1.msra.mxu0 0.0
    %5905 = vmatprep.subr.mxu0 0.0
    %5906 = vmatpush1.msra.mxu0 0.0
    %5907 = vmatprep.subr.mxu0 0.0
    %5908 = vmatpush1.msra.mxu0 0.0
    %5909 = vmatprep.subr.mxu0 0.0
    %5910 = vmatpush1.msra.mxu0 0.0
    %5911 = vmatprep.mubr.f32.mxu0 0.0
    %v5912 = vand.u32 %v4964, 4294901760
    %v5913 = vsub.f32 %v4964, %v5912
    %5914 = vmatmul.mubr.f32.gmra.mrb[0].mxu0 %v5913
    %v5915 = vpop.f32.mrb[0].mxu0
    %v5916 = vadd.f32 %v5614, %v5915
    %v5917 = vpop.f32.mrb[0].mxu0
    %5918 = vmatprep.mubr.f32.mxu0 0.0
    %v5919 = vand.u32 %v4967, 4294901760
    %v5920 = vsub.f32 %v4967, %v5919
    %5921 = vmatmul.mubr.f32.gmra.mrb[0].mxu0 %v5920
    %v5922 = vpop.f32.mrb[0].mxu0
    %v5923 = vadd.f32 %v5620, %v5922
    %v5924 = vpop.f32.mrb[0].mxu0
    %5925 = vmatprep.mubr.f32.mxu0 0.0
    %v5926 = vand.u32 %v4970, 4294901760
    %v5927 = vsub.f32 %v4970, %v5926
    %5928 = vmatmul.mubr.f32.gmra.mrb[0].mxu0 %v5927
    %v5929 = vpop.f32.mrb[0].mxu0
    %v5930 = vadd.f32 %v5626, %v5929
    %v5931 = vpop.f32.mrb[0].mxu0
    %5932 = vmatprep.mubr.f32.mxu0 0.0
    %v5933 = vand.u32 %v4973, 4294901760
    %v5934 = vsub.f32 %v4973, %v5933
    %5935 = vmatmul.mubr.f32.gmra.mrb[0].mxu0 %v5934
    %v5936 = vpop.f32.mrb[0].mxu0
    %v5937 = vadd.f32 %v5632, %v5936
    %v5938 = vpop.f32.mrb[0].mxu0
    %5939 = vmatprep.mubr.f32.mxu0 0.0
    %v5940 = vand.u32 %v4976, 4294901760
    %v5941 = vsub.f32 %v4976, %v5940
    %5942 = vmatmul.mubr.f32.gmra.mrb[0].mxu0 %v5941
    %v5943 = vpop.f32.mrb[0].mxu0
    %v5944 = vadd.f32 %v5638, %v5943
    %v5945 = vpop.f32.mrb[0].mxu0
    %5946 = vmatprep.mubr.f32.mxu0 0.0
    %v5947 = vand.u32 %v4979, 4294901760
    %v5948 = vsub.f32 %v4979, %v5947
    %5949 = vmatmul.mubr.f32.gmra.mrb[0].mxu0 %v5948
    %v5950 = vpop.f32.mrb[0].mxu0
    %v5951 = vadd.f32 %v5644, %v5950
    %v5952 = vpop.f32.mrb[0].mxu0
    %5953 = vmatprep.mubr.f32.mxu0 0.0
    %v5954 = vand.u32 %v4982, 4294901760
    %v5955 = vsub.f32 %v4982, %v5954
    %5956 = vmatmul.mubr.f32.gmra.mrb[0].mxu0 %v5955
    %v5957 = vpop.f32.mrb[0].mxu0
    %v5958 = vadd.f32 %v5650, %v5957
    %v5959 = vpop.f32.mrb[0].mxu0
    %5960 = vmatprep.mubr.f32.mxu0 0.0
    %v5961 = vand.u32 %v4985, 4294901760
    %v5962 = vsub.f32 %v4985, %v5961
    %5963 = vmatmul.mubr.f32.gmra.mrb[0].mxu0 %v5962
    %v5964 = vpop.f32.mrb[0].mxu0
    %v5965 = vadd.f32 %v5656, %v5964
    %v5966 = vpop.f32.mrb[0].mxu0
    %5967 = vmatprep.mubr.f32.mxu0 0.0
    %v5968 = vand.u32 %v4988, 4294901760
    %v5969 = vsub.f32 %v4988, %v5968
    %5970 = vmatmul.mubr.f32.gmra.mrb[0].mxu0 %v5969
    %v5971 = vpop.f32.mrb[0].mxu0
    %v5972 = vadd.f32 %v5662, %v5971
    %v5973 = vpop.f32.mrb[0].mxu0
    %5974 = vmatprep.mubr.f32.mxu0 0.0
    %v5975 = vand.u32 %v4991, 4294901760
    %v5976 = vsub.f32 %v4991, %v5975
    %5977 = vmatmul.mubr.f32.gmra.mrb[0].mxu0 %v5976
    %v5978 = vpop.f32.mrb[0].mxu0
    %v5979 = vadd.f32 %v5668, %v5978
    %v5980 = vpop.f32.mrb[0].mxu0
    %5981 = vmatprep.mubr.f32.mxu0 0.0
    %v5982 = vand.u32 %v4994, 4294901760
    %v5983 = vsub.f32 %v4994, %v5982
    %5984 = vmatmul.mubr.f32.gmra.mrb[0].mxu0 %v5983
    %v5985 = vpop.f32.mrb[0].mxu0
    %v5986 = vadd.f32 %v5674, %v5985
    %v5987 = vpop.f32.mrb[0].mxu0
    %5988 = vmatprep.mubr.f32.mxu0 0.0
    %v5989 = vand.u32 %v4997, 4294901760
    %v5990 = vsub.f32 %v4997, %v5989
    %5991 = vmatmul.mubr.f32.gmra.mrb[0].mxu0 %v5990
    %v5992 = vpop.f32.mrb[0].mxu0
    %v5993 = vadd.f32 %v5680, %v5992
    %v5994 = vpop.f32.mrb[0].mxu0
    %5995 = vmatprep.mubr.f32.mxu0 0.0
    %v5996 = vand.u32 %v5000, 4294901760
    %v5997 = vsub.f32 %v5000, %v5996
    %5998 = vmatmul.mubr.f32.gmra.mrb[0].mxu0 %v5997
    %v5999 = vpop.f32.mrb[0].mxu0
    %v6000 = vadd.f32 %v5686, %v5999
    %v6001 = vpop.f32.mrb[0].mxu0
    %6002 = vmatprep.mubr.f32.mxu0 0.0
    %v6003 = vand.u32 %v5003, 4294901760
    %v6004 = vsub.f32 %v5003, %v6003
    %6005 = vmatmul.mubr.f32.gmra.mrb[0].mxu0 %v6004
    %v6006 = vpop.f32.mrb[0].mxu0
    %v6007 = vadd.f32 %v5692, %v6006
    %v6008 = vpop.f32.mrb[0].mxu0
    %6009 = vmatprep.mubr.f32.mxu0 0.0
    %v6010 = vand.u32 %v5006, 4294901760
    %v6011 = vsub.f32 %v5006, %v6010
    %6012 = vmatmul.mubr.f32.gmra.mrb[0].mxu0 %v6011
    %v6013 = vpop.f32.mrb[0].mxu0
    %v6014 = vadd.f32 %v5698, %v6013
    %v6015 = vpop.f32.mrb[0].mxu0
    %6016 = vmatprep.mubr.f32.mxu0 0.0
    %v6017 = vand.u32 %v5009, 4294901760
    %v6018 = vsub.f32 %v5009, %v6017
    %6019 = vmatmul.mubr.f32.gmra.mrb[0].mxu0 %v6018
    %v6020 = vpop.f32.mrb[0].mxu0
    %v6021 = vadd.f32 %v5704, %v6020
    %v6022 = vpop.f32.mrb[0].mxu0
    %6023 = vmatprep.mubr.f32.mxu0 0.0
    %v6024 = vand.u32 %v5012, 4294901760
    %v6025 = vsub.f32 %v5012, %v6024
    %6026 = vmatmul.mubr.f32.gmra.mrb[0].mxu0 %v6025
    %v6027 = vpop.f32.mrb[0].mxu0
    %v6028 = vadd.f32 %v5710, %v6027
    %v6029 = vpop.f32.mrb[0].mxu0
    %6030 = vmatprep.mubr.f32.mxu0 0.0
    %v6031 = vand.u32 %v5015, 4294901760
    %v6032 = vsub.f32 %v5015, %v6031
    %6033 = vmatmul.mubr.f32.gmra.mrb[0].mxu0 %v6032
    %v6034 = vpop.f32.mrb[0].mxu0
    %v6035 = vadd.f32 %v5716, %v6034
    %v6036 = vpop.f32.mrb[0].mxu0
    %6037 = vmatprep.mubr.f32.mxu0 0.0
    %v6038 = vand.u32 %v5018, 4294901760
    %v6039 = vsub.f32 %v5018, %v6038
    %6040 = vmatmul.mubr.f32.gmra.mrb[0].mxu0 %v6039
    %v6041 = vpop.f32.mrb[0].mxu0
    %v6042 = vadd.f32 %v5722, %v6041
    %v6043 = vpop.f32.mrb[0].mxu0
    %6044 = vmatprep.mubr.f32.mxu0 0.0
    %v6045 = vand.u32 %v5021, 4294901760
    %v6046 = vsub.f32 %v5021, %v6045
    %6047 = vmatmul.mubr.f32.gmra.mrb[0].mxu0 %v6046
    %v6048 = vpop.f32.mrb[0].mxu0
    %v6049 = vadd.f32 %v5728, %v6048
    %v6050 = vpop.f32.mrb[0].mxu0
    %6051 = vmatprep.mubr.f32.mxu0 0.0
    %v6052 = vand.u32 %v5024, 4294901760
    %v6053 = vsub.f32 %v5024, %v6052
    %6054 = vmatmul.mubr.f32.gmra.mrb[0].mxu0 %v6053
    %v6055 = vpop.f32.mrb[0].mxu0
    %v6056 = vadd.f32 %v5734, %v6055
    %v6057 = vpop.f32.mrb[0].mxu0
    %6058 = vmatprep.mubr.f32.mxu0 0.0
    %v6059 = vand.u32 %v5027, 4294901760
    %v6060 = vsub.f32 %v5027, %v6059
    %6061 = vmatmul.mubr.f32.gmra.mrb[0].mxu0 %v6060
    %v6062 = vpop.f32.mrb[0].mxu0
    %v6063 = vadd.f32 %v5740, %v6062
    %v6064 = vpop.f32.mrb[0].mxu0
    %6065 = vmatprep.mubr.f32.mxu0 0.0
    %v6066 = vand.u32 %v5030, 4294901760
    %v6067 = vsub.f32 %v5030, %v6066
    %6068 = vmatmul.mubr.f32.gmra.mrb[0].mxu0 %v6067
    %v6069 = vpop.f32.mrb[0].mxu0
    %v6070 = vadd.f32 %v5746, %v6069
    %v6071 = vpop.f32.mrb[0].mxu0
    %6072 = vmatprep.mubr.f32.mxu0 0.0
    %v6073 = vand.u32 %v5033, 4294901760
    %v6074 = vsub.f32 %v5033, %v6073
    %6075 = vmatmul.mubr.f32.gmra.mrb[0].mxu0 %v6074
    %v6076 = vpop.f32.mrb[0].mxu0
    %v6077 = vadd.f32 %v5752, %v6076
    %v6078 = vpop.f32.mrb[0].mxu0
    %6079 = vmatprep.mubr.f32.mxu0 0.0
    %v6080 = vand.u32 %v5036, 4294901760
    %v6081 = vsub.f32 %v5036, %v6080
    %6082 = vmatmul.mubr.f32.gmra.mrb[0].mxu0 %v6081
    %v6083 = vpop.f32.mrb[0].mxu0
    %v6084 = vadd.f32 %v5758, %v6083
    %v6085 = vpop.f32.mrb[0].mxu0
    %6086 = vmatprep.mubr.f32.mxu0 0.0
    %v6087 = vand.u32 %v5039, 4294901760
    %v6088 = vsub.f32 %v5039, %v6087
    %6089 = vmatmul.mubr.f32.gmra.mrb[0].mxu0 %v6088
    %v6090 = vpop.f32.mrb[0].mxu0
    %v6091 = vadd.f32 %v5764, %v6090
    %v6092 = vpop.f32.mrb[0].mxu0
    %6093 = vmatprep.mubr.f32.mxu0 0.0
    %v6094 = vand.u32 %v5042, 4294901760
    %v6095 = vsub.f32 %v5042, %v6094
    %6096 = vmatmul.mubr.f32.gmra.mrb[0].mxu0 %v6095
    %v6097 = vpop.f32.mrb[0].mxu0
    %v6098 = vadd.f32 %v5770, %v6097
    %v6099 = vpop.f32.mrb[0].mxu0
    %6100 = vmatprep.mubr.f32.mxu0 0.0
    %v6101 = vand.u32 %v5045, 4294901760
    %v6102 = vsub.f32 %v5045, %v6101
    %6103 = vmatmul.mubr.f32.gmra.mrb[0].mxu0 %v6102
    %v6104 = vpop.f32.mrb[0].mxu0
    %v6105 = vadd.f32 %v5776, %v6104
    %v6106 = vpop.f32.mrb[0].mxu0
    %6107 = vmatprep.mubr.f32.mxu0 0.0
    %v6108 = vand.u32 %v5048, 4294901760
    %v6109 = vsub.f32 %v5048, %v6108
    %6110 = vmatmul.mubr.f32.gmra.mrb[0].mxu0 %v6109
    %v6111 = vpop.f32.mrb[0].mxu0
    %v6112 = vadd.f32 %v5782, %v6111
    %v6113 = vpop.f32.mrb[0].mxu0
    %6114 = vmatprep.mubr.f32.mxu0 0.0
    %v6115 = vand.u32 %v5051, 4294901760
    %v6116 = vsub.f32 %v5051, %v6115
    %6117 = vmatmul.mubr.f32.gmra.mrb[0].mxu0 %v6116
    %v6118 = vpop.f32.mrb[0].mxu0
    %v6119 = vadd.f32 %v5788, %v6118
    %v6120 = vpop.f32.mrb[0].mxu0
    %6121 = vmatprep.mubr.f32.mxu0 0.0
    %v6122 = vand.u32 %v5054, 4294901760
    %v6123 = vsub.f32 %v5054, %v6122
    %6124 = vmatmul.mubr.f32.gmra.mrb[0].mxu0 %v6123
    %v6125 = vpop.f32.mrb[0].mxu0
    %v6126 = vadd.f32 %v5794, %v6125
    %v6127 = vpop.f32.mrb[0].mxu0
    %6128 = vmatprep.mubr.f32.mxu0 0.0
    %v6129 = vand.u32 %v5057, 4294901760
    %v6130 = vsub.f32 %v5057, %v6129
    %6131 = vmatmul.mubr.f32.gmra.mrb[0].mxu0 %v6130
    %v6132 = vpop.f32.mrb[0].mxu0
    %v6133 = vadd.f32 %v5800, %v6132
    %v6134 = vpop.f32.mrb[0].mxu0
    %6135 = vmatprep.mubr.f32.mxu0 0.0
    %v6136 = vand.u32 %v5060, 4294901760
    %v6137 = vsub.f32 %v5060, %v6136
    %6138 = vmatmul.mubr.f32.gmra.mrb[0].mxu0 %v6137
    %v6139 = vpop.f32.mrb[0].mxu0
    %v6140 = vadd.f32 %v5806, %v6139
    %v6141 = vpop.f32.mrb[0].mxu0
    %6142 = vmatprep.mubr.f32.mxu0 0.0
    %v6143 = vand.u32 %v5063, 4294901760
    %v6144 = vsub.f32 %v5063, %v6143
    %6145 = vmatmul.mubr.f32.gmra.mrb[0].mxu0 %v6144
    %v6146 = vpop.f32.mrb[0].mxu0
    %v6147 = vadd.f32 %v5812, %v6146
    %v6148 = vpop.f32.mrb[0].mxu0
    %6149 = vmatprep.mubr.f32.mxu0 0.0
    %v6150 = vand.u32 %v5066, 4294901760
    %v6151 = vsub.f32 %v5066, %v6150
    %6152 = vmatmul.mubr.f32.gmra.mrb[0].mxu0 %v6151
    %v6153 = vpop.f32.mrb[0].mxu0
    %v6154 = vadd.f32 %v5818, %v6153
    %v6155 = vpop.f32.mrb[0].mxu0
    %6156 = vmatprep.mubr.f32.mxu0 0.0
    %v6157 = vand.u32 %v5069, 4294901760
    %v6158 = vsub.f32 %v5069, %v6157
    %6159 = vmatmul.mubr.f32.gmra.mrb[0].mxu0 %v6158
    %v6160 = vpop.f32.mrb[0].mxu0
    %v6161 = vadd.f32 %v5824, %v6160
    %v6162 = vpop.f32.mrb[0].mxu0
    %6163 = vmatprep.mubr.f32.mxu0 0.0
    %v6164 = vand.u32 %v5072, 4294901760
    %v6165 = vsub.f32 %v5072, %v6164
    %6166 = vmatmul.mubr.f32.gmra.mrb[0].mxu0 %v6165
    %v6167 = vpop.f32.mrb[0].mxu0
    %v6168 = vadd.f32 %v5830, %v6167
    %v6169 = vpop.f32.mrb[0].mxu0
    %6170 = vmatprep.mubr.f32.mxu0 0.0
    %v6171 = vand.u32 %v5075, 4294901760
    %v6172 = vsub.f32 %v5075, %v6171
    %6173 = vmatmul.mubr.f32.gmra.mrb[0].mxu0 %v6172
    %v6174 = vpop.f32.mrb[0].mxu0
    %v6175 = vadd.f32 %v5836, %v6174
    %v6176 = vpop.f32.mrb[0].mxu0
    %6177 = vdwg.mxu0
    %6178 = vmatprep.subr.mxu0 0.0
    %v6179 = vand.u32 %v4952, 4294901760
    %6180 = vmatpush1.msra.mxu0 %v6179
    %6181 = vmatprep.subr.mxu0 0.0
    %v6182 = vand.u32 %v4953, 4294901760
    %6183 = vmatpush1.msra.mxu0 %v6182
    %6184 = vmatprep.subr.mxu0 0.0
    %v6185 = vand.u32 %v4954, 4294901760
    %6186 = vmatpush1.msra.mxu0 %v6185
    %6187 = vmatprep.subr.mxu0 0.0
    %v6188 = vand.u32 %v4955, 4294901760
    %6189 = vmatpush1.msra.mxu0 %v6188
    %6190 = vmatprep.subr.mxu0 0.0
    %6191 = vmatpush1.msra.mxu0 0.0
    %6192 = vmatprep.subr.mxu0 0.0
    %6193 = vmatpush1.msra.mxu0 0.0
    %6194 = vmatprep.subr.mxu0 0.0
    %6195 = vmatpush1.msra.mxu0 0.0
    %6196 = vmatprep.subr.mxu0 0.0
    %6197 = vmatpush1.msra.mxu0 0.0
    %6198 = vmatprep.subr.mxu0 0.0
    %6199 = vmatpush1.msra.mxu0 0.0
    %6200 = vmatprep.subr.mxu0 0.0
    %6201 = vmatpush1.msra.mxu0 0.0
    %6202 = vmatprep.subr.mxu0 0.0
    %6203 = vmatpush1.msra.mxu0 0.0
    %6204 = vmatprep.subr.mxu0 0.0
    %6205 = vmatpush1.msra.mxu0 0.0
    %6206 = vmatprep.subr.mxu0 0.0
    %6207 = vmatpush1.msra.mxu0 0.0
    %6208 = vmatprep.subr.mxu0 0.0
    %6209 = vmatpush1.msra.mxu0 0.0
    %6210 = vmatprep.subr.mxu0 0.0
    %6211 = vmatpush1.msra.mxu0 0.0
    %6212 = vmatprep.subr.mxu0 0.0
    %6213 = vmatpush1.msra.mxu0 0.0
    %6214 = vmatprep.subr.mxu0 0.0
    %6215 = vmatpush1.msra.mxu0 0.0
    %6216 = vmatprep.subr.mxu0 0.0
    %6217 = vmatpush1.msra.mxu0 0.0
    %6218 = vmatprep.subr.mxu0 0.0
    %6219 = vmatpush1.msra.mxu0 0.0
    %6220 = vmatprep.subr.mxu0 0.0
    %6221 = vmatpush1.msra.mxu0 0.0
    %6222 = vmatprep.subr.mxu0 0.0
    %6223 = vmatpush1.msra.mxu0 0.0
    %6224 = vmatprep.subr.mxu0 0.0
    %6225 = vmatpush1.msra.mxu0 0.0
    %6226 = vmatprep.subr.mxu0 0.0
    %6227 = vmatpush1.msra.mxu0 0.0
    %6228 = vmatprep.subr.mxu0 0.0
    %6229 = vmatpush1.msra.mxu0 0.0
    %6230 = vmatprep.subr.mxu0 0.0
    %6231 = vmatpush1.msra.mxu0 0.0
    %6232 = vmatprep.subr.mxu0 0.0
    %6233 = vmatpush1.msra.mxu0 0.0
    %6234 = vmatprep.subr.mxu0 0.0
    %6235 = vmatpush1.msra.mxu0 0.0
    %6236 = vmatprep.subr.mxu0 0.0
    %6237 = vmatpush1.msra.mxu0 0.0
    %6238 = vmatprep.subr.mxu0 0.0
    %6239 = vmatpush1.msra.mxu0 0.0
    %6240 = vmatprep.subr.mxu0 0.0
    %6241 = vmatpush1.msra.mxu0 0.0
    %6242 = vmatprep.subr.mxu0 0.0
    %6243 = vmatpush1.msra.mxu0 0.0
    %6244 = vmatprep.subr.mxu0 0.0
    %6245 = vmatpush1.msra.mxu0 0.0
    %6246 = vmatprep.mubr.f32.mxu0 0.0
    %v6247 = vand.u32 %v4964, 4294901760
    %v6248 = vsub.f32 %v4964, %v6247
    %v6249 = vand.u32 %v6248, 4294901760
    %6250 = vmatmul.mubr.f32.gmra.mrb[0].mxu0 %v6249
    %v6251 = vpop.f32.mrb[0].mxu0
    %v6252 = vadd.f32 %v5916, %v6251
    %v6253 = vpop.f32.mrb[0].mxu0
    %6254 = vmatprep.mubr.f32.mxu0 0.0
    %v6255 = vand.u32 %v4967, 4294901760
    %v6256 = vsub.f32 %v4967, %v6255
    %v6257 = vand.u32 %v6256, 4294901760
    %6258 = vmatmul.mubr.f32.gmra.mrb[0].mxu0 %v6257
    %v6259 = vpop.f32.mrb[0].mxu0
    %v6260 = vadd.f32 %v5923, %v6259
    %v6261 = vpop.f32.mrb[0].mxu0
    %6262 = vmatprep.mubr.f32.mxu0 0.0
    %v6263 = vand.u32 %v4970, 4294901760
    %v6264 = vsub.f32 %v4970, %v6263
    %v6265 = vand.u32 %v6264, 4294901760
    %6266 = vmatmul.mubr.f32.gmra.mrb[0].mxu0 %v6265
    %v6267 = vpop.f32.mrb[0].mxu0
    %v6268 = vadd.f32 %v5930, %v6267
    %v6269 = vpop.f32.mrb[0].mxu0
    %6270 = vmatprep.mubr.f32.mxu0 0.0
    %v6271 = vand.u32 %v4973, 4294901760
    %v6272 = vsub.f32 %v4973, %v6271
    %v6273 = vand.u32 %v6272, 4294901760
    %6274 = vmatmul.mubr.f32.gmra.mrb[0].mxu0 %v6273
    %v6275 = vpop.f32.mrb[0].mxu0
    %v6276 = vadd.f32 %v5937, %v6275
    %v6277 = vpop.f32.mrb[0].mxu0
    %6278 = vmatprep.mubr.f32.mxu0 0.0
    %v6279 = vand.u32 %v4976, 4294901760
    %v6280 = vsub.f32 %v4976, %v6279
    %v6281 = vand.u32 %v6280, 4294901760
    %6282 = vmatmul.mubr.f32.gmra.mrb[0].mxu0 %v6281
    %v6283 = vpop.f32.mrb[0].mxu0
    %v6284 = vadd.f32 %v5944, %v6283
    %v6285 = vpop.f32.mrb[0].mxu0
    %6286 = vmatprep.mubr.f32.mxu0 0.0
    %v6287 = vand.u32 %v4979, 4294901760
    %v6288 = vsub.f32 %v4979, %v6287
    %v6289 = vand.u32 %v6288, 4294901760
    %6290 = vmatmul.mubr.f32.gmra.mrb[0].mxu0 %v6289
    %v6291 = vpop.f32.mrb[0].mxu0
    %v6292 = vadd.f32 %v5951, %v6291
    %v6293 = vpop.f32.mrb[0].mxu0
    %6294 = vmatprep.mubr.f32.mxu0 0.0
    %v6295 = vand.u32 %v4982, 4294901760
    %v6296 = vsub.f32 %v4982, %v6295
    %v6297 = vand.u32 %v6296, 4294901760
    %6298 = vmatmul.mubr.f32.gmra.mrb[0].mxu0 %v6297
    %v6299 = vpop.f32.mrb[0].mxu0
    %v6300 = vadd.f32 %v5958, %v6299
    %v6301 = vpop.f32.mrb[0].mxu0
    %6302 = vmatprep.mubr.f32.mxu0 0.0
    %v6303 = vand.u32 %v4985, 4294901760
    %v6304 = vsub.f32 %v4985, %v6303
    %v6305 = vand.u32 %v6304, 4294901760
    %6306 = vmatmul.mubr.f32.gmra.mrb[0].mxu0 %v6305
    %v6307 = vpop.f32.mrb[0].mxu0
    %v6308 = vadd.f32 %v5965, %v6307
    %v6309 = vpop.f32.mrb[0].mxu0
    %6310 = vmatprep.mubr.f32.mxu0 0.0
    %v6311 = vand.u32 %v4988, 4294901760
    %v6312 = vsub.f32 %v4988, %v6311
    %v6313 = vand.u32 %v6312, 4294901760
    %6314 = vmatmul.mubr.f32.gmra.mrb[0].mxu0 %v6313
    %v6315 = vpop.f32.mrb[0].mxu0
    %v6316 = vadd.f32 %v5972, %v6315
    %v6317 = vpop.f32.mrb[0].mxu0
    %6318 = vmatprep.mubr.f32.mxu0 0.0
    %v6319 = vand.u32 %v4991, 4294901760
    %v6320 = vsub.f32 %v4991, %v6319
    %v6321 = vand.u32 %v6320, 4294901760
    %6322 = vmatmul.mubr.f32.gmra.mrb[0].mxu0 %v6321
    %v6323 = vpop.f32.mrb[0].mxu0
    %v6324 = vadd.f32 %v5979, %v6323
    %v6325 = vpop.f32.mrb[0].mxu0
    %6326 = vmatprep.mubr.f32.mxu0 0.0
    %v6327 = vand.u32 %v4994, 4294901760
    %v6328 = vsub.f32 %v4994, %v6327
    %v6329 = vand.u32 %v6328, 4294901760
    %6330 = vmatmul.mubr.f32.gmra.mrb[0].mxu0 %v6329
    %v6331 = vpop.f32.mrb[0].mxu0
    %v6332 = vadd.f32 %v5986, %v6331
    %v6333 = vpop.f32.mrb[0].mxu0
    %6334 = vmatprep.mubr.f32.mxu0 0.0
    %v6335 = vand.u32 %v4997, 4294901760
    %v6336 = vsub.f32 %v4997, %v6335
    %v6337 = vand.u32 %v6336, 4294901760
    %6338 = vmatmul.mubr.f32.gmra.mrb[0].mxu0 %v6337
    %v6339 = vpop.f32.mrb[0].mxu0
    %v6340 = vadd.f32 %v5993, %v6339
    %v6341 = vpop.f32.mrb[0].mxu0
    %6342 = vmatprep.mubr.f32.mxu0 0.0
    %v6343 = vand.u32 %v5000, 4294901760
    %v6344 = vsub.f32 %v5000, %v6343
    %v6345 = vand.u32 %v6344, 4294901760
    %6346 = vmatmul.mubr.f32.gmra.mrb[0].mxu0 %v6345
    %v6347 = vpop.f32.mrb[0].mxu0
    %v6348 = vadd.f32 %v6000, %v6347
    %v6349 = vpop.f32.mrb[0].mxu0
    %6350 = vmatprep.mubr.f32.mxu0 0.0
    %v6351 = vand.u32 %v5003, 4294901760
    %v6352 = vsub.f32 %v5003, %v6351
    %v6353 = vand.u32 %v6352, 4294901760
    %6354 = vmatmul.mubr.f32.gmra.mrb[0].mxu0 %v6353
    %v6355 = vpop.f32.mrb[0].mxu0
    %v6356 = vadd.f32 %v6007, %v6355
    %v6357 = vpop.f32.mrb[0].mxu0
    %6358 = vmatprep.mubr.f32.mxu0 0.0
    %v6359 = vand.u32 %v5006, 4294901760
    %v6360 = vsub.f32 %v5006, %v6359
    %v6361 = vand.u32 %v6360, 4294901760
    %6362 = vmatmul.mubr.f32.gmra.mrb[0].mxu0 %v6361
    %v6363 = vpop.f32.mrb[0].mxu0
    %v6364 = vadd.f32 %v6014, %v6363
    %v6365 = vpop.f32.mrb[0].mxu0
    %6366 = vmatprep.mubr.f32.mxu0 0.0
    %v6367 = vand.u32 %v5009, 4294901760
    %v6368 = vsub.f32 %v5009, %v6367
    %v6369 = vand.u32 %v6368, 4294901760
    %6370 = vmatmul.mubr.f32.gmra.mrb[0].mxu0 %v6369
    %v6371 = vpop.f32.mrb[0].mxu0
    %v6372 = vadd.f32 %v6021, %v6371
    %v6373 = vpop.f32.mrb[0].mxu0
    %6374 = vmatprep.mubr.f32.mxu0 0.0
    %v6375 = vand.u32 %v5012, 4294901760
    %v6376 = vsub.f32 %v5012, %v6375
    %v6377 = vand.u32 %v6376, 4294901760
    %6378 = vmatmul.mubr.f32.gmra.mrb[0].mxu0 %v6377
    %v6379 = vpop.f32.mrb[0].mxu0
    %v6380 = vadd.f32 %v6028, %v6379
    %v6381 = vpop.f32.mrb[0].mxu0
    %6382 = vmatprep.mubr.f32.mxu0 0.0
    %v6383 = vand.u32 %v5015, 4294901760
    %v6384 = vsub.f32 %v5015, %v6383
    %v6385 = vand.u32 %v6384, 4294901760
    %6386 = vmatmul.mubr.f32.gmra.mrb[0].mxu0 %v6385
    %v6387 = vpop.f32.mrb[0].mxu0
    %v6388 = vadd.f32 %v6035, %v6387
    %v6389 = vpop.f32.mrb[0].mxu0
    %6390 = vmatprep.mubr.f32.mxu0 0.0
    %v6391 = vand.u32 %v5018, 4294901760
    %v6392 = vsub.f32 %v5018, %v6391
    %v6393 = vand.u32 %v6392, 4294901760
    %6394 = vmatmul.mubr.f32.gmra.mrb[0].mxu0 %v6393
    %v6395 = vpop.f32.mrb[0].mxu0
    %v6396 = vadd.f32 %v6042, %v6395
    %v6397 = vpop.f32.mrb[0].mxu0
    %6398 = vmatprep.mubr.f32.mxu0 0.0
    %v6399 = vand.u32 %v5021, 4294901760
    %v6400 = vsub.f32 %v5021, %v6399
    %v6401 = vand.u32 %v6400, 4294901760
    %6402 = vmatmul.mubr.f32.gmra.mrb[0].mxu0 %v6401
    %v6403 = vpop.f32.mrb[0].mxu0
    %v6404 = vadd.f32 %v6049, %v6403
    %v6405 = vpop.f32.mrb[0].mxu0
    %6406 = vmatprep.mubr.f32.mxu0 0.0
    %v6407 = vand.u32 %v5024, 4294901760
    %v6408 = vsub.f32 %v5024, %v6407
    %v6409 = vand.u32 %v6408, 4294901760
    %6410 = vmatmul.mubr.f32.gmra.mrb[0].mxu0 %v6409
    %v6411 = vpop.f32.mrb[0].mxu0
    %v6412 = vadd.f32 %v6056, %v6411
    %v6413 = vpop.f32.mrb[0].mxu0
    %6414 = vmatprep.mubr.f32.mxu0 0.0
    %v6415 = vand.u32 %v5027, 4294901760
    %v6416 = vsub.f32 %v5027, %v6415
    %v6417 = vand.u32 %v6416, 4294901760
    %6418 = vmatmul.mubr.f32.gmra.mrb[0].mxu0 %v6417
    %v6419 = vpop.f32.mrb[0].mxu0
    %v6420 = vadd.f32 %v6063, %v6419
    %v6421 = vpop.f32.mrb[0].mxu0
    %6422 = vmatprep.mubr.f32.mxu0 0.0
    %v6423 = vand.u32 %v5030, 4294901760
    %v6424 = vsub.f32 %v5030, %v6423
    %v6425 = vand.u32 %v6424, 4294901760
    %6426 = vmatmul.mubr.f32.gmra.mrb[0].mxu0 %v6425
    %v6427 = vpop.f32.mrb[0].mxu0
    %v6428 = vadd.f32 %v6070, %v6427
    %v6429 = vpop.f32.mrb[0].mxu0
    %6430 = vmatprep.mubr.f32.mxu0 0.0
    %v6431 = vand.u32 %v5033, 4294901760
    %v6432 = vsub.f32 %v5033, %v6431
    %v6433 = vand.u32 %v6432, 4294901760
    %6434 = vmatmul.mubr.f32.gmra.mrb[0].mxu0 %v6433
    %v6435 = vpop.f32.mrb[0].mxu0
    %v6436 = vadd.f32 %v6077, %v6435
    %v6437 = vpop.f32.mrb[0].mxu0
    %6438 = vmatprep.mubr.f32.mxu0 0.0
    %v6439 = vand.u32 %v5036, 4294901760
    %v6440 = vsub.f32 %v5036, %v6439
    %v6441 = vand.u32 %v6440, 4294901760
    %6442 = vmatmul.mubr.f32.gmra.mrb[0].mxu0 %v6441
    %v6443 = vpop.f32.mrb[0].mxu0
    %v6444 = vadd.f32 %v6084, %v6443
    %v6445 = vpop.f32.mrb[0].mxu0
    %6446 = vmatprep.mubr.f32.mxu0 0.0
    %v6447 = vand.u32 %v5039, 4294901760
    %v6448 = vsub.f32 %v5039, %v6447
    %v6449 = vand.u32 %v6448, 4294901760
    %6450 = vmatmul.mubr.f32.gmra.mrb[0].mxu0 %v6449
    %v6451 = vpop.f32.mrb[0].mxu0
    %v6452 = vadd.f32 %v6091, %v6451
    %v6453 = vpop.f32.mrb[0].mxu0
    %6454 = vmatprep.mubr.f32.mxu0 0.0
    %v6455 = vand.u32 %v5042, 4294901760
    %v6456 = vsub.f32 %v5042, %v6455
    %v6457 = vand.u32 %v6456, 4294901760
    %6458 = vmatmul.mubr.f32.gmra.mrb[0].mxu0 %v6457
    %v6459 = vpop.f32.mrb[0].mxu0
    %v6460 = vadd.f32 %v6098, %v6459
    %v6461 = vpop.f32.mrb[0].mxu0
    %6462 = vmatprep.mubr.f32.mxu0 0.0
    %v6463 = vand.u32 %v5045, 4294901760
    %v6464 = vsub.f32 %v5045, %v6463
    %v6465 = vand.u32 %v6464, 4294901760
    %6466 = vmatmul.mubr.f32.gmra.mrb[0].mxu0 %v6465
    %v6467 = vpop.f32.mrb[0].mxu0
    %v6468 = vadd.f32 %v6105, %v6467
    %v6469 = vpop.f32.mrb[0].mxu0
    %6470 = vmatprep.mubr.f32.mxu0 0.0
    %v6471 = vand.u32 %v5048, 4294901760
    %v6472 = vsub.f32 %v5048, %v6471
    %v6473 = vand.u32 %v6472, 4294901760
    %6474 = vmatmul.mubr.f32.gmra.mrb[0].mxu0 %v6473
    %v6475 = vpop.f32.mrb[0].mxu0
    %v6476 = vadd.f32 %v6112, %v6475
    %v6477 = vpop.f32.mrb[0].mxu0
    %6478 = vmatprep.mubr.f32.mxu0 0.0
    %v6479 = vand.u32 %v5051, 4294901760
    %v6480 = vsub.f32 %v5051, %v6479
    %v6481 = vand.u32 %v6480, 4294901760
    %6482 = vmatmul.mubr.f32.gmra.mrb[0].mxu0 %v6481
    %v6483 = vpop.f32.mrb[0].mxu0
    %v6484 = vadd.f32 %v6119, %v6483
    %v6485 = vpop.f32.mrb[0].mxu0
    %6486 = vmatprep.mubr.f32.mxu0 0.0
    %v6487 = vand.u32 %v5054, 4294901760
    %v6488 = vsub.f32 %v5054, %v6487
    %v6489 = vand.u32 %v6488, 4294901760
    %6490 = vmatmul.mubr.f32.gmra.mrb[0].mxu0 %v6489
    %v6491 = vpop.f32.mrb[0].mxu0
    %v6492 = vadd.f32 %v6126, %v6491
    %v6493 = vpop.f32.mrb[0].mxu0
    %6494 = vmatprep.mubr.f32.mxu0 0.0
    %v6495 = vand.u32 %v5057, 4294901760
    %v6496 = vsub.f32 %v5057, %v6495
    %v6497 = vand.u32 %v6496, 4294901760
    %6498 = vmatmul.mubr.f32.gmra.mrb[0].mxu0 %v6497
    %v6499 = vpop.f32.mrb[0].mxu0
    %v6500 = vadd.f32 %v6133, %v6499
    %v6501 = vpop.f32.mrb[0].mxu0
    %6502 = vmatprep.mubr.f32.mxu0 0.0
    %v6503 = vand.u32 %v5060, 4294901760
    %v6504 = vsub.f32 %v5060, %v6503
    %v6505 = vand.u32 %v6504, 4294901760
    %6506 = vmatmul.mubr.f32.gmra.mrb[0].mxu0 %v6505
    %v6507 = vpop.f32.mrb[0].mxu0
    %v6508 = vadd.f32 %v6140, %v6507
    %v6509 = vpop.f32.mrb[0].mxu0
    %6510 = vmatprep.mubr.f32.mxu0 0.0
    %v6511 = vand.u32 %v5063, 4294901760
    %v6512 = vsub.f32 %v5063, %v6511
    %v6513 = vand.u32 %v6512, 4294901760
    %6514 = vmatmul.mubr.f32.gmra.mrb[0].mxu0 %v6513
    %v6515 = vpop.f32.mrb[0].mxu0
    %v6516 = vadd.f32 %v6147, %v6515
    %v6517 = vpop.f32.mrb[0].mxu0
    %6518 = vmatprep.mubr.f32.mxu0 0.0
    %v6519 = vand.u32 %v5066, 4294901760
    %v6520 = vsub.f32 %v5066, %v6519
    %v6521 = vand.u32 %v6520, 4294901760
    %6522 = vmatmul.mubr.f32.gmra.mrb[0].mxu0 %v6521
    %v6523 = vpop.f32.mrb[0].mxu0
    %v6524 = vadd.f32 %v6154, %v6523
    %v6525 = vpop.f32.mrb[0].mxu0
    %6526 = vmatprep.mubr.f32.mxu0 0.0
    %v6527 = vand.u32 %v5069, 4294901760
    %v6528 = vsub.f32 %v5069, %v6527
    %v6529 = vand.u32 %v6528, 4294901760
    %6530 = vmatmul.mubr.f32.gmra.mrb[0].mxu0 %v6529
    %v6531 = vpop.f32.mrb[0].mxu0
    %v6532 = vadd.f32 %v6161, %v6531
    %v6533 = vpop.f32.mrb[0].mxu0
    %6534 = vmatprep.mubr.f32.mxu0 0.0
    %v6535 = vand.u32 %v5072, 4294901760
    %v6536 = vsub.f32 %v5072, %v6535
    %v6537 = vand.u32 %v6536, 4294901760
    %6538 = vmatmul.mubr.f32.gmra.mrb[0].mxu0 %v6537
    %v6539 = vpop.f32.mrb[0].mxu0
    %v6540 = vadd.f32 %v6168, %v6539
    %v6541 = vpop.f32.mrb[0].mxu0
    %6542 = vmatprep.mubr.f32.mxu0 0.0
    %v6543 = vand.u32 %v5075, 4294901760
    %v6544 = vsub.f32 %v5075, %v6543
    %v6545 = vand.u32 %v6544, 4294901760
    %6546 = vmatmul.mubr.f32.gmra.mrb[0].mxu0 %v6545
    %v6547 = vpop.f32.mrb[0].mxu0
    %v6548 = vadd.f32 %v6175, %v6547
    %v6549 = vpop.f32.mrb[0].mxu0
    %6550 = vdwg.mxu0
    %6551 = vmatprep.subr.mxu0 0.0
    %v6552 = vand.u32 %v4952, 4294901760
    %v6553 = vsub.f32 %v4952, %v6552
    %v6554 = vand.u32 %v6553, 4294901760
    %6555 = vmatpush1.msra.mxu0 %v6554
    %6556 = vmatprep.subr.mxu0 0.0
    %v6557 = vand.u32 %v4953, 4294901760
    %v6558 = vsub.f32 %v4953, %v6557
    %v6559 = vand.u32 %v6558, 4294901760
    %6560 = vmatpush1.msra.mxu0 %v6559
    %6561 = vmatprep.subr.mxu0 0.0
    %v6562 = vand.u32 %v4954, 4294901760
    %v6563 = vsub.f32 %v4954, %v6562
    %v6564 = vand.u32 %v6563, 4294901760
    %6565 = vmatpush1.msra.mxu0 %v6564
    %6566 = vmatprep.subr.mxu0 0.0
    %v6567 = vand.u32 %v4955, 4294901760
    %v6568 = vsub.f32 %v4955, %v6567
    %v6569 = vand.u32 %v6568, 4294901760
    %6570 = vmatpush1.msra.mxu0 %v6569
    %6571 = vmatprep.subr.mxu0 0.0
    %6572 = vmatpush1.msra.mxu0 0.0
    %6573 = vmatprep.subr.mxu0 0.0
    %6574 = vmatpush1.msra.mxu0 0.0
    %6575 = vmatprep.subr.mxu0 0.0
    %6576 = vmatpush1.msra.mxu0 0.0
    %6577 = vmatprep.subr.mxu0 0.0
    %6578 = vmatpush1.msra.mxu0 0.0
    %6579 = vmatprep.subr.mxu0 0.0
    %6580 = vmatpush1.msra.mxu0 0.0
    %6581 = vmatprep.subr.mxu0 0.0
    %6582 = vmatpush1.msra.mxu0 0.0
    %6583 = vmatprep.subr.mxu0 0.0
    %6584 = vmatpush1.msra.mxu0 0.0
    %6585 = vmatprep.subr.mxu0 0.0
    %6586 = vmatpush1.msra.mxu0 0.0
    %6587 = vmatprep.subr.mxu0 0.0
    %6588 = vmatpush1.msra.mxu0 0.0
    %6589 = vmatprep.subr.mxu0 0.0
    %6590 = vmatpush1.msra.mxu0 0.0
    %6591 = vmatprep.subr.mxu0 0.0
    %6592 = vmatpush1.msra.mxu0 0.0
    %6593 = vmatprep.subr.mxu0 0.0
    %6594 = vmatpush1.msra.mxu0 0.0
    %6595 = vmatprep.subr.mxu0 0.0
    %6596 = vmatpush1.msra.mxu0 0.0
    %6597 = vmatprep.subr.mxu0 0.0
    %6598 = vmatpush1.msra.mxu0 0.0
    %6599 = vmatprep.subr.mxu0 0.0
    %6600 = vmatpush1.msra.mxu0 0.0
    %6601 = vmatprep.subr.mxu0 0.0
    %6602 = vmatpush1.msra.mxu0 0.0
    %6603 = vmatprep.subr.mxu0 0.0
    %6604 = vmatpush1.msra.mxu0 0.0
    %6605 = vmatprep.subr.mxu0 0.0
    %6606 = vmatpush1.msra.mxu0 0.0
    %6607 = vmatprep.subr.mxu0 0.0
    %6608 = vmatpush1.msra.mxu0 0.0
    %6609 = vmatprep.subr.mxu0 0.0
    %6610 = vmatpush1.msra.mxu0 0.0
    %6611 = vmatprep.subr.mxu0 0.0
    %6612 = vmatpush1.msra.mxu0 0.0
    %6613 = vmatprep.subr.mxu0 0.0
    %6614 = vmatpush1.msra.mxu0 0.0
    %6615 = vmatprep.subr.mxu0 0.0
    %6616 = vmatpush1.msra.mxu0 0.0
    %6617 = vmatprep.subr.mxu0 0.0
    %6618 = vmatpush1.msra.mxu0 0.0
    %6619 = vmatprep.subr.mxu0 0.0
    %6620 = vmatpush1.msra.mxu0 0.0
    %6621 = vmatprep.subr.mxu0 0.0
    %6622 = vmatpush1.msra.mxu0 0.0
    %6623 = vmatprep.subr.mxu0 0.0
    %6624 = vmatpush1.msra.mxu0 0.0
    %6625 = vmatprep.subr.mxu0 0.0
    %6626 = vmatpush1.msra.mxu0 0.0
    %6627 = vmatprep.mubr.f32.mxu0 0.0
    %v6628 = vand.u32 %v4964, 4294901760
    %6629 = vmatmul.mubr.f32.gmra.mrb[0].mxu0 %v6628
    %v6630 = vpop.f32.mrb[0].mxu0
    %v6631 = vadd.f32 %v6252, %v6630
    %v6632 = vpop.f32.mrb[0].mxu0
    %6633 = vmatprep.mubr.f32.mxu0 0.0
    %v6634 = vand.u32 %v4967, 4294901760
    %6635 = vmatmul.mubr.f32.gmra.mrb[0].mxu0 %v6634
    %v6636 = vpop.f32.mrb[0].mxu0
    %v6637 = vadd.f32 %v6260, %v6636
    %v6638 = vpop.f32.mrb[0].mxu0
    %6639 = vmatprep.mubr.f32.mxu0 0.0
    %v6640 = vand.u32 %v4970, 4294901760
    %6641 = vmatmul.mubr.f32.gmra.mrb[0].mxu0 %v6640
    %v6642 = vpop.f32.mrb[0].mxu0
    %v6643 = vadd.f32 %v6268, %v6642
    %v6644 = vpop.f32.mrb[0].mxu0
    %6645 = vmatprep.mubr.f32.mxu0 0.0
    %v6646 = vand.u32 %v4973, 4294901760
    %6647 = vmatmul.mubr.f32.gmra.mrb[0].mxu0 %v6646
    %v6648 = vpop.f32.mrb[0].mxu0
    %v6649 = vadd.f32 %v6276, %v6648
    %v6650 = vpop.f32.mrb[0].mxu0
    %6651 = vmatprep.mubr.f32.mxu0 0.0
    %v6652 = vand.u32 %v4976, 4294901760
    %6653 = vmatmul.mubr.f32.gmra.mrb[0].mxu0 %v6652
    %v6654 = vpop.f32.mrb[0].mxu0
    %v6655 = vadd.f32 %v6284, %v6654
    %v6656 = vpop.f32.mrb[0].mxu0
    %6657 = vmatprep.mubr.f32.mxu0 0.0
    %v6658 = vand.u32 %v4979, 4294901760
    %6659 = vmatmul.mubr.f32.gmra.mrb[0].mxu0 %v6658
    %v6660 = vpop.f32.mrb[0].mxu0
    %v6661 = vadd.f32 %v6292, %v6660
    %v6662 = vpop.f32.mrb[0].mxu0
    %6663 = vmatprep.mubr.f32.mxu0 0.0
    %v6664 = vand.u32 %v4982, 4294901760
    %6665 = vmatmul.mubr.f32.gmra.mrb[0].mxu0 %v6664
    %v6666 = vpop.f32.mrb[0].mxu0
    %v6667 = vadd.f32 %v6300, %v6666
    %v6668 = vpop.f32.mrb[0].mxu0
    %6669 = vmatprep.mubr.f32.mxu0 0.0
    %v6670 = vand.u32 %v4985, 4294901760
    %6671 = vmatmul.mubr.f32.gmra.mrb[0].mxu0 %v6670
    %v6672 = vpop.f32.mrb[0].mxu0
    %v6673 = vadd.f32 %v6308, %v6672
    %v6674 = vpop.f32.mrb[0].mxu0
    %6675 = vmatprep.mubr.f32.mxu0 0.0
    %v6676 = vand.u32 %v4988, 4294901760
    %6677 = vmatmul.mubr.f32.gmra.mrb[0].mxu0 %v6676
    %v6678 = vpop.f32.mrb[0].mxu0
    %v6679 = vadd.f32 %v6316, %v6678
    %v6680 = vpop.f32.mrb[0].mxu0
    %6681 = vmatprep.mubr.f32.mxu0 0.0
    %v6682 = vand.u32 %v4991, 4294901760
    %6683 = vmatmul.mubr.f32.gmra.mrb[0].mxu0 %v6682
    %v6684 = vpop.f32.mrb[0].mxu0
    %v6685 = vadd.f32 %v6324, %v6684
    %v6686 = vpop.f32.mrb[0].mxu0
    %6687 = vmatprep.mubr.f32.mxu0 0.0
    %v6688 = vand.u32 %v4994, 4294901760
    %6689 = vmatmul.mubr.f32.gmra.mrb[0].mxu0 %v6688
    %v6690 = vpop.f32.mrb[0].mxu0
    %v6691 = vadd.f32 %v6332, %v6690
    %v6692 = vpop.f32.mrb[0].mxu0
    %6693 = vmatprep.mubr.f32.mxu0 0.0
    %v6694 = vand.u32 %v4997, 4294901760
    %6695 = vmatmul.mubr.f32.gmra.mrb[0].mxu0 %v6694
    %v6696 = vpop.f32.mrb[0].mxu0
    %v6697 = vadd.f32 %v6340, %v6696
    %v6698 = vpop.f32.mrb[0].mxu0
    %6699 = vmatprep.mubr.f32.mxu0 0.0
    %v6700 = vand.u32 %v5000, 4294901760
    %6701 = vmatmul.mubr.f32.gmra.mrb[0].mxu0 %v6700
    %v6702 = vpop.f32.mrb[0].mxu0
    %v6703 = vadd.f32 %v6348, %v6702
    %v6704 = vpop.f32.mrb[0].mxu0
    %6705 = vmatprep.mubr.f32.mxu0 0.0
    %v6706 = vand.u32 %v5003, 4294901760
    %6707 = vmatmul.mubr.f32.gmra.mrb[0].mxu0 %v6706
    %v6708 = vpop.f32.mrb[0].mxu0
    %v6709 = vadd.f32 %v6356, %v6708
    %v6710 = vpop.f32.mrb[0].mxu0
    %6711 = vmatprep.mubr.f32.mxu0 0.0
    %v6712 = vand.u32 %v5006, 4294901760
    %6713 = vmatmul.mubr.f32.gmra.mrb[0].mxu0 %v6712
    %v6714 = vpop.f32.mrb[0].mxu0
    %v6715 = vadd.f32 %v6364, %v6714
    %v6716 = vpop.f32.mrb[0].mxu0
    %6717 = vmatprep.mubr.f32.mxu0 0.0
    %v6718 = vand.u32 %v5009, 4294901760
    %6719 = vmatmul.mubr.f32.gmra.mrb[0].mxu0 %v6718
    %v6720 = vpop.f32.mrb[0].mxu0
    %v6721 = vadd.f32 %v6372, %v6720
    %v6722 = vpop.f32.mrb[0].mxu0
    %6723 = vmatprep.mubr.f32.mxu0 0.0
    %v6724 = vand.u32 %v5012, 4294901760
    %6725 = vmatmul.mubr.f32.gmra.mrb[0].mxu0 %v6724
    %v6726 = vpop.f32.mrb[0].mxu0
    %v6727 = vadd.f32 %v6380, %v6726
    %v6728 = vpop.f32.mrb[0].mxu0
    %6729 = vmatprep.mubr.f32.mxu0 0.0
    %v6730 = vand.u32 %v5015, 4294901760
    %6731 = vmatmul.mubr.f32.gmra.mrb[0].mxu0 %v6730
    %v6732 = vpop.f32.mrb[0].mxu0
    %v6733 = vadd.f32 %v6388, %v6732
    %v6734 = vpop.f32.mrb[0].mxu0
    %6735 = vmatprep.mubr.f32.mxu0 0.0
    %v6736 = vand.u32 %v5018, 4294901760
    %6737 = vmatmul.mubr.f32.gmra.mrb[0].mxu0 %v6736
    %v6738 = vpop.f32.mrb[0].mxu0
    %v6739 = vadd.f32 %v6396, %v6738
    %v6740 = vpop.f32.mrb[0].mxu0
    %6741 = vmatprep.mubr.f32.mxu0 0.0
    %v6742 = vand.u32 %v5021, 4294901760
    %6743 = vmatmul.mubr.f32.gmra.mrb[0].mxu0 %v6742
    %v6744 = vpop.f32.mrb[0].mxu0
    %v6745 = vadd.f32 %v6404, %v6744
    %v6746 = vpop.f32.mrb[0].mxu0
    %6747 = vmatprep.mubr.f32.mxu0 0.0
    %v6748 = vand.u32 %v5024, 4294901760
    %6749 = vmatmul.mubr.f32.gmra.mrb[0].mxu0 %v6748
    %v6750 = vpop.f32.mrb[0].mxu0
    %v6751 = vadd.f32 %v6412, %v6750
    %v6752 = vpop.f32.mrb[0].mxu0
    %6753 = vmatprep.mubr.f32.mxu0 0.0
    %v6754 = vand.u32 %v5027, 4294901760
    %6755 = vmatmul.mubr.f32.gmra.mrb[0].mxu0 %v6754
    %v6756 = vpop.f32.mrb[0].mxu0
    %v6757 = vadd.f32 %v6420, %v6756
    %v6758 = vpop.f32.mrb[0].mxu0
    %6759 = vmatprep.mubr.f32.mxu0 0.0
    %v6760 = vand.u32 %v5030, 4294901760
    %6761 = vmatmul.mubr.f32.gmra.mrb[0].mxu0 %v6760
    %v6762 = vpop.f32.mrb[0].mxu0
    %v6763 = vadd.f32 %v6428, %v6762
    %v6764 = vpop.f32.mrb[0].mxu0
    %6765 = vmatprep.mubr.f32.mxu0 0.0
    %v6766 = vand.u32 %v5033, 4294901760
    %6767 = vmatmul.mubr.f32.gmra.mrb[0].mxu0 %v6766
    %v6768 = vpop.f32.mrb[0].mxu0
    %v6769 = vadd.f32 %v6436, %v6768
    %v6770 = vpop.f32.mrb[0].mxu0
    %6771 = vmatprep.mubr.f32.mxu0 0.0
    %v6772 = vand.u32 %v5036, 4294901760
    %6773 = vmatmul.mubr.f32.gmra.mrb[0].mxu0 %v6772
    %v6774 = vpop.f32.mrb[0].mxu0
    %v6775 = vadd.f32 %v6444, %v6774
    %v6776 = vpop.f32.mrb[0].mxu0
    %6777 = vmatprep.mubr.f32.mxu0 0.0
    %v6778 = vand.u32 %v5039, 4294901760
    %6779 = vmatmul.mubr.f32.gmra.mrb[0].mxu0 %v6778
    %v6780 = vpop.f32.mrb[0].mxu0
    %v6781 = vadd.f32 %v6452, %v6780
    %v6782 = vpop.f32.mrb[0].mxu0
    %6783 = vmatprep.mubr.f32.mxu0 0.0
    %v6784 = vand.u32 %v5042, 4294901760
    %6785 = vmatmul.mubr.f32.gmra.mrb[0].mxu0 %v6784
    %v6786 = vpop.f32.mrb[0].mxu0
    %v6787 = vadd.f32 %v6460, %v6786
    %v6788 = vpop.f32.mrb[0].mxu0
    %6789 = vmatprep.mubr.f32.mxu0 0.0
    %v6790 = vand.u32 %v5045, 4294901760
    %6791 = vmatmul.mubr.f32.gmra.mrb[0].mxu0 %v6790
    %v6792 = vpop.f32.mrb[0].mxu0
    %v6793 = vadd.f32 %v6468, %v6792
    %v6794 = vpop.f32.mrb[0].mxu0
    %6795 = vmatprep.mubr.f32.mxu0 0.0
    %v6796 = vand.u32 %v5048, 4294901760
    %6797 = vmatmul.mubr.f32.gmra.mrb[0].mxu0 %v6796
    %v6798 = vpop.f32.mrb[0].mxu0
    %v6799 = vadd.f32 %v6476, %v6798
    %v6800 = vpop.f32.mrb[0].mxu0
    %6801 = vmatprep.mubr.f32.mxu0 0.0
    %v6802 = vand.u32 %v5051, 4294901760
    %6803 = vmatmul.mubr.f32.gmra.mrb[0].mxu0 %v6802
    %v6804 = vpop.f32.mrb[0].mxu0
    %v6805 = vadd.f32 %v6484, %v6804
    %v6806 = vpop.f32.mrb[0].mxu0
    %6807 = vmatprep.mubr.f32.mxu0 0.0
    %v6808 = vand.u32 %v5054, 4294901760
    %6809 = vmatmul.mubr.f32.gmra.mrb[0].mxu0 %v6808
    %v6810 = vpop.f32.mrb[0].mxu0
    %v6811 = vadd.f32 %v6492, %v6810
    %v6812 = vpop.f32.mrb[0].mxu0
    %6813 = vmatprep.mubr.f32.mxu0 0.0
    %v6814 = vand.u32 %v5057, 4294901760
    %6815 = vmatmul.mubr.f32.gmra.mrb[0].mxu0 %v6814
    %v6816 = vpop.f32.mrb[0].mxu0
    %v6817 = vadd.f32 %v6500, %v6816
    %v6818 = vpop.f32.mrb[0].mxu0
    %6819 = vmatprep.mubr.f32.mxu0 0.0
    %v6820 = vand.u32 %v5060, 4294901760
    %6821 = vmatmul.mubr.f32.gmra.mrb[0].mxu0 %v6820
    %v6822 = vpop.f32.mrb[0].mxu0
    %v6823 = vadd.f32 %v6508, %v6822
    %v6824 = vpop.f32.mrb[0].mxu0
    %6825 = vmatprep.mubr.f32.mxu0 0.0
    %v6826 = vand.u32 %v5063, 4294901760
    %6827 = vmatmul.mubr.f32.gmra.mrb[0].mxu0 %v6826
    %v6828 = vpop.f32.mrb[0].mxu0
    %v6829 = vadd.f32 %v6516, %v6828
    %v6830 = vpop.f32.mrb[0].mxu0
    %6831 = vmatprep.mubr.f32.mxu0 0.0
    %v6832 = vand.u32 %v5066, 4294901760
    %6833 = vmatmul.mubr.f32.gmra.mrb[0].mxu0 %v6832
    %v6834 = vpop.f32.mrb[0].mxu0
    %v6835 = vadd.f32 %v6524, %v6834
    %v6836 = vpop.f32.mrb[0].mxu0
    %6837 = vmatprep.mubr.f32.mxu0 0.0
    %v6838 = vand.u32 %v5069, 4294901760
    %6839 = vmatmul.mubr.f32.gmra.mrb[0].mxu0 %v6838
    %v6840 = vpop.f32.mrb[0].mxu0
    %v6841 = vadd.f32 %v6532, %v6840
    %v6842 = vpop.f32.mrb[0].mxu0
    %6843 = vmatprep.mubr.f32.mxu0 0.0
    %v6844 = vand.u32 %v5072, 4294901760
    %6845 = vmatmul.mubr.f32.gmra.mrb[0].mxu0 %v6844
    %v6846 = vpop.f32.mrb[0].mxu0
    %v6847 = vadd.f32 %v6540, %v6846
    %v6848 = vpop.f32.mrb[0].mxu0
    %6849 = vmatprep.mubr.f32.mxu0 0.0
    %v6850 = vand.u32 %v5075, 4294901760
    %6851 = vmatmul.mubr.f32.gmra.mrb[0].mxu0 %v6850
    %v6852 = vpop.f32.mrb[0].mxu0
    %v6853 = vadd.f32 %v6548, %v6852
    %v6854 = vpop.f32.mrb[0].mxu0
    %6855 = vdwg.mxu0
    %6856 = vmatprep.subr.mxu0 0.0
    %v6857 = vand.u32 %v4952, 4294901760
    %6858 = vmatpush1.msra.mxu0 %v6857
    %6859 = vmatprep.subr.mxu0 0.0
    %v6860 = vand.u32 %v4953, 4294901760
    %6861 = vmatpush1.msra.mxu0 %v6860
    %6862 = vmatprep.subr.mxu0 0.0
    %v6863 = vand.u32 %v4954, 4294901760
    %6864 = vmatpush1.msra.mxu0 %v6863
    %6865 = vmatprep.subr.mxu0 0.0
    %v6866 = vand.u32 %v4955, 4294901760
    %6867 = vmatpush1.msra.mxu0 %v6866
    %6868 = vmatprep.subr.mxu0 0.0
    %6869 = vmatpush1.msra.mxu0 0.0
    %6870 = vmatprep.subr.mxu0 0.0
    %6871 = vmatpush1.msra.mxu0 0.0
    %6872 = vmatprep.subr.mxu0 0.0
    %6873 = vmatpush1.msra.mxu0 0.0
    %6874 = vmatprep.subr.mxu0 0.0
    %6875 = vmatpush1.msra.mxu0 0.0
    %6876 = vmatprep.subr.mxu0 0.0
    %6877 = vmatpush1.msra.mxu0 0.0
    %6878 = vmatprep.subr.mxu0 0.0
    %6879 = vmatpush1.msra.mxu0 0.0
    %6880 = vmatprep.subr.mxu0 0.0
    %6881 = vmatpush1.msra.mxu0 0.0
    %6882 = vmatprep.subr.mxu0 0.0
    %6883 = vmatpush1.msra.mxu0 0.0
    %6884 = vmatprep.subr.mxu0 0.0
    %6885 = vmatpush1.msra.mxu0 0.0
    %6886 = vmatprep.subr.mxu0 0.0
    %6887 = vmatpush1.msra.mxu0 0.0
    %6888 = vmatprep.subr.mxu0 0.0
    %6889 = vmatpush1.msra.mxu0 0.0
    %6890 = vmatprep.subr.mxu0 0.0
    %6891 = vmatpush1.msra.mxu0 0.0
    %6892 = vmatprep.subr.mxu0 0.0
    %6893 = vmatpush1.msra.mxu0 0.0
    %6894 = vmatprep.subr.mxu0 0.0
    %6895 = vmatpush1.msra.mxu0 0.0
    %6896 = vmatprep.subr.mxu0 0.0
    %6897 = vmatpush1.msra.mxu0 0.0
    %6898 = vmatprep.subr.mxu0 0.0
    %6899 = vmatpush1.msra.mxu0 0.0
    %6900 = vmatprep.subr.mxu0 0.0
    %6901 = vmatpush1.msra.mxu0 0.0
    %6902 = vmatprep.subr.mxu0 0.0
    %6903 = vmatpush1.msra.mxu0 0.0
    %6904 = vmatprep.subr.mxu0 0.0
    %6905 = vmatpush1.msra.mxu0 0.0
    %6906 = vmatprep.subr.mxu0 0.0
    %6907 = vmatpush1.msra.mxu0 0.0
    %6908 = vmatprep.subr.mxu0 0.0
    %6909 = vmatpush1.msra.mxu0 0.0
    %6910 = vmatprep.subr.mxu0 0.0
    %6911 = vmatpush1.msra.mxu0 0.0
    %6912 = vmatprep.subr.mxu0 0.0
    %6913 = vmatpush1.msra.mxu0 0.0
    %6914 = vmatprep.subr.mxu0 0.0
    %6915 = vmatpush1.msra.mxu0 0.0
    %6916 = vmatprep.subr.mxu0 0.0
    %6917 = vmatpush1.msra.mxu0 0.0
    %6918 = vmatprep.subr.mxu0 0.0
    %6919 = vmatpush1.msra.mxu0 0.0
    %6920 = vmatprep.subr.mxu0 0.0
    %6921 = vmatpush1.msra.mxu0 0.0
    %6922 = vmatprep.subr.mxu0 0.0
    %6923 = vmatpush1.msra.mxu0 0.0
    %6924 = vmatprep.mubr.f32.mxu0 0.0
    %v6925 = vand.u32 %v4964, 4294901760
    %6926 = vmatmul.mubr.f32.gmra.mrb[0].mxu0 %v6925
    %v6927 = vpop.f32.mrb[0].mxu0
    %v6928 = vadd.f32 %v6631, %v6927
    %v6929 = vpop.f32.mrb[0].mxu0
    %6930 = vmatprep.mubr.f32.mxu0 0.0
    %v6931 = vand.u32 %v4967, 4294901760
    %6932 = vmatmul.mubr.f32.gmra.mrb[0].mxu0 %v6931
    %v6933 = vpop.f32.mrb[0].mxu0
    %v6934 = vadd.f32 %v6637, %v6933
    %v6935 = vpop.f32.mrb[0].mxu0
    %6936 = vmatprep.mubr.f32.mxu0 0.0
    %v6937 = vand.u32 %v4970, 4294901760
    %6938 = vmatmul.mubr.f32.gmra.mrb[0].mxu0 %v6937
    %v6939 = vpop.f32.mrb[0].mxu0
    %v6940 = vadd.f32 %v6643, %v6939
    %v6941 = vpop.f32.mrb[0].mxu0
    %6942 = vmatprep.mubr.f32.mxu0 0.0
    %v6943 = vand.u32 %v4973, 4294901760
    %6944 = vmatmul.mubr.f32.gmra.mrb[0].mxu0 %v6943
    %v6945 = vpop.f32.mrb[0].mxu0
    %v6946 = vadd.f32 %v6649, %v6945
    %v6947 = vpop.f32.mrb[0].mxu0
    %6948 = vmatprep.mubr.f32.mxu0 0.0
    %v6949 = vand.u32 %v4976, 4294901760
    %6950 = vmatmul.mubr.f32.gmra.mrb[0].mxu0 %v6949
    %v6951 = vpop.f32.mrb[0].mxu0
    %v6952 = vadd.f32 %v6655, %v6951
    %v6953 = vpop.f32.mrb[0].mxu0
    %6954 = vmatprep.mubr.f32.mxu0 0.0
    %v6955 = vand.u32 %v4979, 4294901760
    %6956 = vmatmul.mubr.f32.gmra.mrb[0].mxu0 %v6955
    %v6957 = vpop.f32.mrb[0].mxu0
    %v6958 = vadd.f32 %v6661, %v6957
    %v6959 = vpop.f32.mrb[0].mxu0
    %6960 = vmatprep.mubr.f32.mxu0 0.0
    %v6961 = vand.u32 %v4982, 4294901760
    %6962 = vmatmul.mubr.f32.gmra.mrb[0].mxu0 %v6961
    %v6963 = vpop.f32.mrb[0].mxu0
    %v6964 = vadd.f32 %v6667, %v6963
    %v6965 = vpop.f32.mrb[0].mxu0
    %6966 = vmatprep.mubr.f32.mxu0 0.0
    %v6967 = vand.u32 %v4985, 4294901760
    %6968 = vmatmul.mubr.f32.gmra.mrb[0].mxu0 %v6967
    %v6969 = vpop.f32.mrb[0].mxu0
    %v6970 = vadd.f32 %v6673, %v6969
    %v6971 = vpop.f32.mrb[0].mxu0
    %6972 = vmatprep.mubr.f32.mxu0 0.0
    %v6973 = vand.u32 %v4988, 4294901760
    %6974 = vmatmul.mubr.f32.gmra.mrb[0].mxu0 %v6973
    %v6975 = vpop.f32.mrb[0].mxu0
    %v6976 = vadd.f32 %v6679, %v6975
    %v6977 = vpop.f32.mrb[0].mxu0
    %6978 = vmatprep.mubr.f32.mxu0 0.0
    %v6979 = vand.u32 %v4991, 4294901760
    %6980 = vmatmul.mubr.f32.gmra.mrb[0].mxu0 %v6979
    %v6981 = vpop.f32.mrb[0].mxu0
    %v6982 = vadd.f32 %v6685, %v6981
    %v6983 = vpop.f32.mrb[0].mxu0
    %6984 = vmatprep.mubr.f32.mxu0 0.0
    %v6985 = vand.u32 %v4994, 4294901760
    %6986 = vmatmul.mubr.f32.gmra.mrb[0].mxu0 %v6985
    %v6987 = vpop.f32.mrb[0].mxu0
    %v6988 = vadd.f32 %v6691, %v6987
    %v6989 = vpop.f32.mrb[0].mxu0
    %6990 = vmatprep.mubr.f32.mxu0 0.0
    %v6991 = vand.u32 %v4997, 4294901760
    %6992 = vmatmul.mubr.f32.gmra.mrb[0].mxu0 %v6991
    %v6993 = vpop.f32.mrb[0].mxu0
    %v6994 = vadd.f32 %v6697, %v6993
    %v6995 = vpop.f32.mrb[0].mxu0
    %6996 = vmatprep.mubr.f32.mxu0 0.0
    %v6997 = vand.u32 %v5000, 4294901760
    %6998 = vmatmul.mubr.f32.gmra.mrb[0].mxu0 %v6997
    %v6999 = vpop.f32.mrb[0].mxu0
    %v7000 = vadd.f32 %v6703, %v6999
    %v7001 = vpop.f32.mrb[0].mxu0
    %7002 = vmatprep.mubr.f32.mxu0 0.0
    %v7003 = vand.u32 %v5003, 4294901760
    %7004 = vmatmul.mubr.f32.gmra.mrb[0].mxu0 %v7003
    %v7005 = vpop.f32.mrb[0].mxu0
    %v7006 = vadd.f32 %v6709, %v7005
    %v7007 = vpop.f32.mrb[0].mxu0
    %7008 = vmatprep.mubr.f32.mxu0 0.0
    %v7009 = vand.u32 %v5006, 4294901760
    %7010 = vmatmul.mubr.f32.gmra.mrb[0].mxu0 %v7009
    %v7011 = vpop.f32.mrb[0].mxu0
    %v7012 = vadd.f32 %v6715, %v7011
    %v7013 = vpop.f32.mrb[0].mxu0
    %7014 = vmatprep.mubr.f32.mxu0 0.0
    %v7015 = vand.u32 %v5009, 4294901760
    %7016 = vmatmul.mubr.f32.gmra.mrb[0].mxu0 %v7015
    %v7017 = vpop.f32.mrb[0].mxu0
    %v7018 = vadd.f32 %v6721, %v7017
    %v7019 = vpop.f32.mrb[0].mxu0
    %7020 = vmatprep.mubr.f32.mxu0 0.0
    %v7021 = vand.u32 %v5012, 4294901760
    %7022 = vmatmul.mubr.f32.gmra.mrb[0].mxu0 %v7021
    %v7023 = vpop.f32.mrb[0].mxu0
    %v7024 = vadd.f32 %v6727, %v7023
    %v7025 = vpop.f32.mrb[0].mxu0
    %7026 = vmatprep.mubr.f32.mxu0 0.0
    %v7027 = vand.u32 %v5015, 4294901760
    %7028 = vmatmul.mubr.f32.gmra.mrb[0].mxu0 %v7027
    %v7029 = vpop.f32.mrb[0].mxu0
    %v7030 = vadd.f32 %v6733, %v7029
    %v7031 = vpop.f32.mrb[0].mxu0
    %7032 = vmatprep.mubr.f32.mxu0 0.0
    %v7033 = vand.u32 %v5018, 4294901760
    %7034 = vmatmul.mubr.f32.gmra.mrb[0].mxu0 %v7033
    %v7035 = vpop.f32.mrb[0].mxu0
    %v7036 = vadd.f32 %v6739, %v7035
    %v7037 = vpop.f32.mrb[0].mxu0
    %7038 = vmatprep.mubr.f32.mxu0 0.0
    %v7039 = vand.u32 %v5021, 4294901760
    %7040 = vmatmul.mubr.f32.gmra.mrb[0].mxu0 %v7039
    %v7041 = vpop.f32.mrb[0].mxu0
    %v7042 = vadd.f32 %v6745, %v7041
    %v7043 = vpop.f32.mrb[0].mxu0
    %7044 = vmatprep.mubr.f32.mxu0 0.0
    %v7045 = vand.u32 %v5024, 4294901760
    %7046 = vmatmul.mubr.f32.gmra.mrb[0].mxu0 %v7045
    %v7047 = vpop.f32.mrb[0].mxu0
    %v7048 = vadd.f32 %v6751, %v7047
    %v7049 = vpop.f32.mrb[0].mxu0
    %7050 = vmatprep.mubr.f32.mxu0 0.0
    %v7051 = vand.u32 %v5027, 4294901760
    %7052 = vmatmul.mubr.f32.gmra.mrb[0].mxu0 %v7051
    %v7053 = vpop.f32.mrb[0].mxu0
    %v7054 = vadd.f32 %v6757, %v7053
    %v7055 = vpop.f32.mrb[0].mxu0
    %7056 = vmatprep.mubr.f32.mxu0 0.0
    %v7057 = vand.u32 %v5030, 4294901760
    %7058 = vmatmul.mubr.f32.gmra.mrb[0].mxu0 %v7057
    %v7059 = vpop.f32.mrb[0].mxu0
    %v7060 = vadd.f32 %v6763, %v7059
    %v7061 = vpop.f32.mrb[0].mxu0
    %7062 = vmatprep.mubr.f32.mxu0 0.0
    %v7063 = vand.u32 %v5033, 4294901760
    %7064 = vmatmul.mubr.f32.gmra.mrb[0].mxu0 %v7063
    %v7065 = vpop.f32.mrb[0].mxu0
    %v7066 = vadd.f32 %v6769, %v7065
    %v7067 = vpop.f32.mrb[0].mxu0
    %7068 = vmatprep.mubr.f32.mxu0 0.0
    %v7069 = vand.u32 %v5036, 4294901760
    %7070 = vmatmul.mubr.f32.gmra.mrb[0].mxu0 %v7069
    %v7071 = vpop.f32.mrb[0].mxu0
    %v7072 = vadd.f32 %v6775, %v7071
    %v7073 = vpop.f32.mrb[0].mxu0
    %7074 = vmatprep.mubr.f32.mxu0 0.0
    %v7075 = vand.u32 %v5039, 4294901760
    %7076 = vmatmul.mubr.f32.gmra.mrb[0].mxu0 %v7075
    %v7077 = vpop.f32.mrb[0].mxu0
    %v7078 = vadd.f32 %v6781, %v7077
    %v7079 = vpop.f32.mrb[0].mxu0
    %7080 = vmatprep.mubr.f32.mxu0 0.0
    %v7081 = vand.u32 %v5042, 4294901760
    %7082 = vmatmul.mubr.f32.gmra.mrb[0].mxu0 %v7081
    %v7083 = vpop.f32.mrb[0].mxu0
    %v7084 = vadd.f32 %v6787, %v7083
    %v7085 = vpop.f32.mrb[0].mxu0
    %7086 = vmatprep.mubr.f32.mxu0 0.0
    %v7087 = vand.u32 %v5045, 4294901760
    %7088 = vmatmul.mubr.f32.gmra.mrb[0].mxu0 %v7087
    %v7089 = vpop.f32.mrb[0].mxu0
    %v7090 = vadd.f32 %v6793, %v7089
    %v7091 = vpop.f32.mrb[0].mxu0
    %7092 = vmatprep.mubr.f32.mxu0 0.0
    %v7093 = vand.u32 %v5048, 4294901760
    %7094 = vmatmul.mubr.f32.gmra.mrb[0].mxu0 %v7093
    %v7095 = vpop.f32.mrb[0].mxu0
    %v7096 = vadd.f32 %v6799, %v7095
    %v7097 = vpop.f32.mrb[0].mxu0
    %7098 = vmatprep.mubr.f32.mxu0 0.0
    %v7099 = vand.u32 %v5051, 4294901760
    %7100 = vmatmul.mubr.f32.gmra.mrb[0].mxu0 %v7099
    %v7101 = vpop.f32.mrb[0].mxu0
    %v7102 = vadd.f32 %v6805, %v7101
    %v7103 = vpop.f32.mrb[0].mxu0
    %7104 = vmatprep.mubr.f32.mxu0 0.0
    %v7105 = vand.u32 %v5054, 4294901760
    %7106 = vmatmul.mubr.f32.gmra.mrb[0].mxu0 %v7105
    %v7107 = vpop.f32.mrb[0].mxu0
    %v7108 = vadd.f32 %v6811, %v7107
    %v7109 = vpop.f32.mrb[0].mxu0
    %7110 = vmatprep.mubr.f32.mxu0 0.0
    %v7111 = vand.u32 %v5057, 4294901760
    %7112 = vmatmul.mubr.f32.gmra.mrb[0].mxu0 %v7111
    %v7113 = vpop.f32.mrb[0].mxu0
    %v7114 = vadd.f32 %v6817, %v7113
    %v7115 = vpop.f32.mrb[0].mxu0
    %7116 = vmatprep.mubr.f32.mxu0 0.0
    %v7117 = vand.u32 %v5060, 4294901760
    %7118 = vmatmul.mubr.f32.gmra.mrb[0].mxu0 %v7117
    %v7119 = vpop.f32.mrb[0].mxu0
    %v7120 = vadd.f32 %v6823, %v7119
    %v7121 = vpop.f32.mrb[0].mxu0
    %7122 = vmatprep.mubr.f32.mxu0 0.0
    %v7123 = vand.u32 %v5063, 4294901760
    %7124 = vmatmul.mubr.f32.gmra.mrb[0].mxu0 %v7123
    %v7125 = vpop.f32.mrb[0].mxu0
    %v7126 = vadd.f32 %v6829, %v7125
    %v7127 = vpop.f32.mrb[0].mxu0
    %7128 = vmatprep.mubr.f32.mxu0 0.0
    %v7129 = vand.u32 %v5066, 4294901760
    %7130 = vmatmul.mubr.f32.gmra.mrb[0].mxu0 %v7129
    %v7131 = vpop.f32.mrb[0].mxu0
    %v7132 = vadd.f32 %v6835, %v7131
    %v7133 = vpop.f32.mrb[0].mxu0
    %7134 = vmatprep.mubr.f32.mxu0 0.0
    %v7135 = vand.u32 %v5069, 4294901760
    %7136 = vmatmul.mubr.f32.gmra.mrb[0].mxu0 %v7135
    %v7137 = vpop.f32.mrb[0].mxu0
    %v7138 = vadd.f32 %v6841, %v7137
    %v7139 = vpop.f32.mrb[0].mxu0
    %7140 = vmatprep.mubr.f32.mxu0 0.0
    %v7141 = vand.u32 %v5072, 4294901760
    %7142 = vmatmul.mubr.f32.gmra.mrb[0].mxu0 %v7141
    %v7143 = vpop.f32.mrb[0].mxu0
    %v7144 = vadd.f32 %v6847, %v7143
    %v7145 = vpop.f32.mrb[0].mxu0
    %7146 = vmatprep.mubr.f32.mxu0 0.0
    %v7147 = vand.u32 %v5075, 4294901760
    %7148 = vmatmul.mubr.f32.gmra.mrb[0].mxu0 %v7147
    %v7149 = vpop.f32.mrb[0].mxu0
    %v7150 = vadd.f32 %v6853, %v7149
    %v7151 = vpop.f32.mrb[0].mxu0
    %7152 = vdwg.mxu0
    %7153 = vmax.xlane.f32.xlu0 %v6928
    %v7154 = vpop.xlane.xlu0 %7153
    %7155 = vmax.xlane.f32.xlu0 %v6934
    %v7156 = vpop.xlane.xlu0 %7155
    %7157 = vmax.xlane.f32.xlu0 %v6940
    %v7158 = vpop.xlane.xlu0 %7157
    %7159 = vmax.xlane.f32.xlu0 %v6946
    %v7160 = vpop.xlane.xlu0 %7159
    %7161 = vmax.xlane.f32.xlu0 %v6952
    %v7162 = vpop.xlane.xlu0 %7161
    %7163 = vmax.xlane.f32.xlu0 %v6958
    %v7164 = vpop.xlane.xlu0 %7163
    %7165 = vmax.xlane.f32.xlu0 %v6964
    %v7166 = vpop.xlane.xlu0 %7165
    %7167 = vmax.xlane.f32.xlu0 %v6970
    %v7168 = vpop.xlane.xlu0 %7167
    %7169 = vmax.xlane.f32.xlu0 %v6976
    %v7170 = vpop.xlane.xlu0 %7169
    %7171 = vmax.xlane.f32.xlu0 %v6982
    %v7172 = vpop.xlane.xlu0 %7171
    %7173 = vmax.xlane.f32.xlu0 %v6988
    %v7174 = vpop.xlane.xlu0 %7173
    %7175 = vmax.xlane.f32.xlu0 %v6994
    %v7176 = vpop.xlane.xlu0 %7175
    %7177 = vmax.xlane.f32.xlu0 %v7000
    %v7178 = vpop.xlane.xlu0 %7177
    %7179 = vmax.xlane.f32.xlu0 %v7006
    %v7180 = vpop.xlane.xlu0 %7179
    %7181 = vmax.xlane.f32.xlu0 %v7012
    %v7182 = vpop.xlane.xlu0 %7181
    %7183 = vmax.xlane.f32.xlu0 %v7018
    %v7184 = vpop.xlane.xlu0 %7183
    %7185 = vmax.xlane.f32.xlu0 %v7024
    %v7186 = vpop.xlane.xlu0 %7185
    %7187 = vmax.xlane.f32.xlu0 %v7030
    %v7188 = vpop.xlane.xlu0 %7187
    %7189 = vmax.xlane.f32.xlu0 %v7036
    %v7190 = vpop.xlane.xlu0 %7189
    %7191 = vmax.xlane.f32.xlu0 %v7042
    %v7192 = vpop.xlane.xlu0 %7191
    %7193 = vmax.xlane.f32.xlu0 %v7048
    %v7194 = vpop.xlane.xlu0 %7193
    %7195 = vmax.xlane.f32.xlu0 %v7054
    %v7196 = vpop.xlane.xlu0 %7195
    %7197 = vmax.xlane.f32.xlu0 %v7060
    %v7198 = vpop.xlane.xlu0 %7197
    %7199 = vmax.xlane.f32.xlu0 %v7066
    %v7200 = vpop.xlane.xlu0 %7199
    %7201 = vmax.xlane.f32.xlu0 %v7072
    %v7202 = vpop.xlane.xlu0 %7201
    %7203 = vmax.xlane.f32.xlu0 %v7078
    %v7204 = vpop.xlane.xlu0 %7203
    %7205 = vmax.xlane.f32.xlu0 %v7084
    %v7206 = vpop.xlane.xlu0 %7205
    %7207 = vmax.xlane.f32.xlu0 %v7090
    %v7208 = vpop.xlane.xlu0 %7207
    %7209 = vmax.xlane.f32.xlu0 %v7096
    %v7210 = vpop.xlane.xlu0 %7209
    %7211 = vmax.xlane.f32.xlu0 %v7102
    %v7212 = vpop.xlane.xlu0 %7211
    %7213 = vmax.xlane.f32.xlu0 %v7108
    %v7214 = vpop.xlane.xlu0 %7213
    %7215 = vmax.xlane.f32.xlu0 %v7114
    %v7216 = vpop.xlane.xlu0 %7215
    %7217 = vmax.xlane.f32.xlu0 %v7120
    %v7218 = vpop.xlane.xlu0 %7217
    %7219 = vmax.xlane.f32.xlu0 %v7126
    %v7220 = vpop.xlane.xlu0 %7219
    %7221 = vmax.xlane.f32.xlu0 %v7132
    %v7222 = vpop.xlane.xlu0 %7221
    %7223 = vmax.xlane.f32.xlu0 %v7138
    %v7224 = vpop.xlane.xlu0 %7223
    %7225 = vmax.xlane.f32.xlu0 %v7144
    %v7226 = vpop.xlane.xlu0 %7225
    %7227 = vmax.xlane.f32.xlu0 %v7150
    %v7228 = vpop.xlane.xlu0 %7227
    %v7229 = vsub.f32 %v6928, %v7154
    %v7230 = vsub.f32 %v6934, %v7156
    %v7231 = vsub.f32 %v6940, %v7158
    %v7232 = vsub.f32 %v6946, %v7160
    %v7233 = vsub.f32 %v6952, %v7162
    %v7234 = vsub.f32 %v6958, %v7164
    %v7235 = vsub.f32 %v6964, %v7166
    %v7236 = vsub.f32 %v6970, %v7168
    %v7237 = vsub.f32 %v6976, %v7170
    %v7238 = vsub.f32 %v6982, %v7172
    %v7239 = vsub.f32 %v6988, %v7174
    %v7240 = vsub.f32 %v6994, %v7176
    %v7241 = vsub.f32 %v7000, %v7178
    %v7242 = vsub.f32 %v7006, %v7180
    %v7243 = vsub.f32 %v7012, %v7182
    %v7244 = vsub.f32 %v7018, %v7184
    %v7245 = vsub.f32 %v7024, %v7186
    %v7246 = vsub.f32 %v7030, %v7188
    %v7247 = vsub.f32 %v7036, %v7190
    %v7248 = vsub.f32 %v7042, %v7192
    %v7249 = vsub.f32 %v7048, %v7194
    %v7250 = vsub.f32 %v7054, %v7196
    %v7251 = vsub.f32 %v7060, %v7198
    %v7252 = vsub.f32 %v7066, %v7200
    %v7253 = vsub.f32 %v7072, %v7202
    %v7254 = vsub.f32 %v7078, %v7204
    %v7255 = vsub.f32 %v7084, %v7206
    %v7256 = vsub.f32 %v7090, %v7208
    %v7257 = vsub.f32 %v7096, %v7210
    %v7258 = vsub.f32 %v7102, %v7212
    %v7259 = vsub.f32 %v7108, %v7214
    %v7260 = vsub.f32 %v7114, %v7216
    %v7261 = vsub.f32 %v7120, %v7218
    %v7262 = vsub.f32 %v7126, %v7220
    %v7263 = vsub.f32 %v7132, %v7222
    %v7264 = vsub.f32 %v7138, %v7224
    %v7265 = vsub.f32 %v7144, %v7226
    %v7266 = vsub.f32 %v7150, %v7228
    %v7267 = vmul.f32 %v7229, 1.442695
    %v7268 = vpow.pop %v7267
    %v7269 = vmul.f32 %v7230, 1.442695
    %v7270 = vpow.pop %v7269
    %v7271 = vmul.f32 %v7231, 1.442695
    %v7272 = vpow.pop %v7271
    %v7273 = vmul.f32 %v7232, 1.442695
    %v7274 = vpow.pop %v7273
    %v7275 = vmul.f32 %v7233, 1.442695
    %v7276 = vpow.pop %v7275
    %v7277 = vmul.f32 %v7234, 1.442695
    %v7278 = vpow.pop %v7277
    %v7279 = vmul.f32 %v7235, 1.442695
    %v7280 = vpow.pop %v7279
    %v7281 = vmul.f32 %v7236, 1.442695
    %v7282 = vpow.pop %v7281
    %v7283 = vmul.f32 %v7237, 1.442695
    %v7284 = vpow.pop %v7283
    %v7285 = vmul.f32 %v7238, 1.442695
    %v7286 = vpow.pop %v7285
    %v7287 = vmul.f32 %v7239, 1.442695
    %v7288 = vpow.pop %v7287
    %v7289 = vmul.f32 %v7240, 1.442695
    %v7290 = vpow.pop %v7289
    %v7291 = vmul.f32 %v7241, 1.442695
    %v7292 = vpow.pop %v7291
    %v7293 = vmul.f32 %v7242, 1.442695
    %v7294 = vpow.pop %v7293
    %v7295 = vmul.f32 %v7243, 1.442695
    %v7296 = vpow.pop %v7295
    %v7297 = vmul.f32 %v7244, 1.442695
    %v7298 = vpow.pop %v7297
    %v7299 = vmul.f32 %v7245, 1.442695
    %v7300 = vpow.pop %v7299
    %v7301 = vmul.f32 %v7246, 1.442695
    %v7302 = vpow.pop %v7301
    %v7303 = vmul.f32 %v7247, 1.442695
    %v7304 = vpow.pop %v7303
    %v7305 = vmul.f32 %v7248, 1.442695
    %v7306 = vpow.pop %v7305
    %v7307 = vmul.f32 %v7249, 1.442695
    %v7308 = vpow.pop %v7307
    %v7309 = vmul.f32 %v7250, 1.442695
    %v7310 = vpow.pop %v7309
    %v7311 = vmul.f32 %v7251, 1.442695
    %v7312 = vpow.pop %v7311
    %v7313 = vmul.f32 %v7252, 1.442695
    %v7314 = vpow.pop %v7313
    %v7315 = vmul.f32 %v7253, 1.442695
    %v7316 = vpow.pop %v7315
    %v7317 = vmul.f32 %v7254, 1.442695
    %v7318 = vpow.pop %v7317
    %v7319 = vmul.f32 %v7255, 1.442695
    %v7320 = vpow.pop %v7319
    %v7321 = vmul.f32 %v7256, 1.442695
    %v7322 = vpow.pop %v7321
    %v7323 = vmul.f32 %v7257, 1.442695
    %v7324 = vpow.pop %v7323
    %v7325 = vmul.f32 %v7258, 1.442695
    %v7326 = vpow.pop %v7325
    %v7327 = vmul.f32 %v7259, 1.442695
    %v7328 = vpow.pop %v7327
    %v7329 = vmul.f32 %v7260, 1.442695
    %v7330 = vpow.pop %v7329
    %v7331 = vmul.f32 %v7261, 1.442695
    %v7332 = vpow.pop %v7331
    %v7333 = vmul.f32 %v7262, 1.442695
    %v7334 = vpow.pop %v7333
    %v7335 = vmul.f32 %v7263, 1.442695
    %v7336 = vpow.pop %v7335
    %v7337 = vmul.f32 %v7264, 1.442695
    %v7338 = vpow.pop %v7337
    %v7339 = vmul.f32 %v7265, 1.442695
    %v7340 = vpow.pop %v7339
    %v7341 = vmul.f32 %v7266, 1.442695
    %v7342 = vpow.pop %v7341
    %7343 = vadd.xlane.f32.xlu0 %v7268
    %v7344 = vpop.xlane.xlu0 %7343
    %7345 = vadd.xlane.f32.xlu0 %v7270
    %v7346 = vpop.xlane.xlu0 %7345
    %7347 = vadd.xlane.f32.xlu0 %v7272
    %v7348 = vpop.xlane.xlu0 %7347
    %7349 = vadd.xlane.f32.xlu0 %v7274
    %v7350 = vpop.xlane.xlu0 %7349
    %7351 = vadd.xlane.f32.xlu0 %v7276
    %v7352 = vpop.xlane.xlu0 %7351
    %7353 = vadd.xlane.f32.xlu0 %v7278
    %v7354 = vpop.xlane.xlu0 %7353
    %7355 = vadd.xlane.f32.xlu0 %v7280
    %v7356 = vpop.xlane.xlu0 %7355
    %7357 = vadd.xlane.f32.xlu0 %v7282
    %v7358 = vpop.xlane.xlu0 %7357
    %7359 = vadd.xlane.f32.xlu0 %v7284
    %v7360 = vpop.xlane.xlu0 %7359
    %7361 = vadd.xlane.f32.xlu0 %v7286
    %v7362 = vpop.xlane.xlu0 %7361
    %7363 = vadd.xlane.f32.xlu0 %v7288
    %v7364 = vpop.xlane.xlu0 %7363
    %7365 = vadd.xlane.f32.xlu0 %v7290
    %v7366 = vpop.xlane.xlu0 %7365
    %7367 = vadd.xlane.f32.xlu0 %v7292
    %v7368 = vpop.xlane.xlu0 %7367
    %7369 = vadd.xlane.f32.xlu0 %v7294
    %v7370 = vpop.xlane.xlu0 %7369
    %7371 = vadd.xlane.f32.xlu0 %v7296
    %v7372 = vpop.xlane.xlu0 %7371
    %7373 = vadd.xlane.f32.xlu0 %v7298
    %v7374 = vpop.xlane.xlu0 %7373
    %7375 = vadd.xlane.f32.xlu0 %v7300
    %v7376 = vpop.xlane.xlu0 %7375
    %7377 = vadd.xlane.f32.xlu0 %v7302
    %v7378 = vpop.xlane.xlu0 %7377
    %7379 = vadd.xlane.f32.xlu0 %v7304
    %v7380 = vpop.xlane.xlu0 %7379
    %7381 = vadd.xlane.f32.xlu0 %v7306
    %v7382 = vpop.xlane.xlu0 %7381
    %7383 = vadd.xlane.f32.xlu0 %v7308
    %v7384 = vpop.xlane.xlu0 %7383
    %7385 = vadd.xlane.f32.xlu0 %v7310
    %v7386 = vpop.xlane.xlu0 %7385
    %7387 = vadd.xlane.f32.xlu0 %v7312
    %v7388 = vpop.xlane.xlu0 %7387
    %7389 = vadd.xlane.f32.xlu0 %v7314
    %v7390 = vpop.xlane.xlu0 %7389
    %7391 = vadd.xlane.f32.xlu0 %v7316
    %v7392 = vpop.xlane.xlu0 %7391
    %7393 = vadd.xlane.f32.xlu0 %v7318
    %v7394 = vpop.xlane.xlu0 %7393
    %7395 = vadd.xlane.f32.xlu0 %v7320
    %v7396 = vpop.xlane.xlu0 %7395
    %7397 = vadd.xlane.f32.xlu0 %v7322
    %v7398 = vpop.xlane.xlu0 %7397
    %7399 = vadd.xlane.f32.xlu0 %v7324
    %v7400 = vpop.xlane.xlu0 %7399
    %7401 = vadd.xlane.f32.xlu0 %v7326
    %v7402 = vpop.xlane.xlu0 %7401
    %7403 = vadd.xlane.f32.xlu0 %v7328
    %v7404 = vpop.xlane.xlu0 %7403
    %7405 = vadd.xlane.f32.xlu0 %v7330
    %v7406 = vpop.xlane.xlu0 %7405
    %7407 = vadd.xlane.f32.xlu0 %v7332
    %v7408 = vpop.xlane.xlu0 %7407
    %7409 = vadd.xlane.f32.xlu0 %v7334
    %v7410 = vpop.xlane.xlu0 %7409
    %7411 = vadd.xlane.f32.xlu0 %v7336
    %v7412 = vpop.xlane.xlu0 %7411
    %7413 = vadd.xlane.f32.xlu0 %v7338
    %v7414 = vpop.xlane.xlu0 %7413
    %7415 = vadd.xlane.f32.xlu0 %v7340
    %v7416 = vpop.xlane.xlu0 %7415
    %7417 = vadd.xlane.f32.xlu0 %v7342
    %v7418 = vpop.xlane.xlu0 %7417
    %v7419 = vlog2.pop %v7344
    %v7420 = vmul.f32 %v7419, 0.6931472
    %v7421 = vlog2.pop %v7346
    %v7422 = vmul.f32 %v7421, 0.6931472
    %v7423 = vlog2.pop %v7348
    %v7424 = vmul.f32 %v7423, 0.6931472
    %v7425 = vlog2.pop %v7350
    %v7426 = vmul.f32 %v7425, 0.6931472
    %v7427 = vlog2.pop %v7352
    %v7428 = vmul.f32 %v7427, 0.6931472
    %v7429 = vlog2.pop %v7354
    %v7430 = vmul.f32 %v7429, 0.6931472
    %v7431 = vlog2.pop %v7356
    %v7432 = vmul.f32 %v7431, 0.6931472
    %v7433 = vlog2.pop %v7358
    %v7434 = vmul.f32 %v7433, 0.6931472
    %v7435 = vlog2.pop %v7360
    %v7436 = vmul.f32 %v7435, 0.6931472
    %v7437 = vlog2.pop %v7362
    %v7438 = vmul.f32 %v7437, 0.6931472
    %v7439 = vlog2.pop %v7364
    %v7440 = vmul.f32 %v7439, 0.6931472
    %v7441 = vlog2.pop %v7366
    %v7442 = vmul.f32 %v7441, 0.6931472
    %v7443 = vlog2.pop %v7368
    %v7444 = vmul.f32 %v7443, 0.6931472
    %v7445 = vlog2.pop %v7370
    %v7446 = vmul.f32 %v7445, 0.6931472
    %v7447 = vlog2.pop %v7372
    %v7448 = vmul.f32 %v7447, 0.6931472
    %v7449 = vlog2.pop %v7374
    %v7450 = vmul.f32 %v7449, 0.6931472
    %v7451 = vlog2.pop %v7376
    %v7452 = vmul.f32 %v7451, 0.6931472
    %v7453 = vlog2.pop %v7378
    %v7454 = vmul.f32 %v7453, 0.6931472
    %v7455 = vlog2.pop %v7380
    %v7456 = vmul.f32 %v7455, 0.6931472
    %v7457 = vlog2.pop %v7382
    %v7458 = vmul.f32 %v7457, 0.6931472
    %v7459 = vlog2.pop %v7384
    %v7460 = vmul.f32 %v7459, 0.6931472
    %v7461 = vlog2.pop %v7386
    %v7462 = vmul.f32 %v7461, 0.6931472
    %v7463 = vlog2.pop %v7388
    %v7464 = vmul.f32 %v7463, 0.6931472
    %v7465 = vlog2.pop %v7390
    %v7466 = vmul.f32 %v7465, 0.6931472
    %v7467 = vlog2.pop %v7392
    %v7468 = vmul.f32 %v7467, 0.6931472
    %v7469 = vlog2.pop %v7394
    %v7470 = vmul.f32 %v7469, 0.6931472
    %v7471 = vlog2.pop %v7396
    %v7472 = vmul.f32 %v7471, 0.6931472
    %v7473 = vlog2.pop %v7398
    %v7474 = vmul.f32 %v7473, 0.6931472
    %v7475 = vlog2.pop %v7400
    %v7476 = vmul.f32 %v7475, 0.6931472
    %v7477 = vlog2.pop %v7402
    %v7478 = vmul.f32 %v7477, 0.6931472
    %v7479 = vlog2.pop %v7404
    %v7480 = vmul.f32 %v7479, 0.6931472
    %v7481 = vlog2.pop %v7406
    %v7482 = vmul.f32 %v7481, 0.6931472
    %v7483 = vlog2.pop %v7408
    %v7484 = vmul.f32 %v7483, 0.6931472
    %v7485 = vlog2.pop %v7410
    %v7486 = vmul.f32 %v7485, 0.6931472
    %v7487 = vlog2.pop %v7412
    %v7488 = vmul.f32 %v7487, 0.6931472
    %v7489 = vlog2.pop %v7414
    %v7490 = vmul.f32 %v7489, 0.6931472
    %v7491 = vlog2.pop %v7416
    %v7492 = vmul.f32 %v7491, 0.6931472
    %v7493 = vlog2.pop %v7418
    %v7494 = vmul.f32 %v7493, 0.6931472
    %v7495 = vsub.f32 %v7229, %v7420
    %v7496 = vsub.f32 %v7230, %v7422
    %v7497 = vsub.f32 %v7231, %v7424
    %v7498 = vsub.f32 %v7232, %v7426
    %v7499 = vsub.f32 %v7233, %v7428
    %v7500 = vsub.f32 %v7234, %v7430
    %v7501 = vsub.f32 %v7235, %v7432
    %v7502 = vsub.f32 %v7236, %v7434
    %v7503 = vsub.f32 %v7237, %v7436
    %v7504 = vsub.f32 %v7238, %v7438
    %v7505 = vsub.f32 %v7239, %v7440
    %v7506 = vsub.f32 %v7240, %v7442
    %v7507 = vsub.f32 %v7241, %v7444
    %v7508 = vsub.f32 %v7242, %v7446
    %v7509 = vsub.f32 %v7243, %v7448
    %v7510 = vsub.f32 %v7244, %v7450
    %v7511 = vsub.f32 %v7245, %v7452
    %v7512 = vsub.f32 %v7246, %v7454
    %v7513 = vsub.f32 %v7247, %v7456
    %v7514 = vsub.f32 %v7248, %v7458
    %v7515 = vsub.f32 %v7249, %v7460
    %v7516 = vsub.f32 %v7250, %v7462
    %v7517 = vsub.f32 %v7251, %v7464
    %v7518 = vsub.f32 %v7252, %v7466
    %v7519 = vsub.f32 %v7253, %v7468
    %v7520 = vsub.f32 %v7254, %v7470
    %v7521 = vsub.f32 %v7255, %v7472
    %v7522 = vsub.f32 %v7256, %v7474
    %v7523 = vsub.f32 %v7257, %v7476
    %v7524 = vsub.f32 %v7258, %v7478
    %v7525 = vsub.f32 %v7259, %v7480
    %v7526 = vsub.f32 %v7260, %v7482
    %v7527 = vsub.f32 %v7261, %v7484
    %v7528 = vsub.f32 %v7262, %v7486
    %v7529 = vsub.f32 %v7263, %v7488
    %v7530 = vsub.f32 %v7264, %v7490
    %v7531 = vsub.f32 %v7265, %v7492
    %v7532 = vsub.f32 %v7266, %v7494
    %7533 = vst [vmem:[#allocation2] sm:$0xff] %v7495
    %7534 = vst [vmem:[#allocation2 + $0x8] sm:$0xff] %v7496
    %7535 = vst [vmem:[#allocation2 + $0x10] sm:$0xff] %v7497
    %7536 = vst [vmem:[#allocation2 + $0x18] sm:$0xff] %v7498
    %7537 = vst [vmem:[#allocation2 + $0x20] sm:$0xff] %v7499
    %7538 = vst [vmem:[#allocation2 + $0x28] sm:$0xff] %v7500
    %7539 = vst [vmem:[#allocation2 + $0x30] sm:$0xff] %v7501
    %7540 = vst [vmem:[#allocation2 + $0x38] sm:$0xff] %v7502
    %7541 = vst [vmem:[#allocation2 + $0x40] sm:$0xff] %v7503
    %7542 = vst [vmem:[#allocation2 + $0x48] sm:$0xff] %v7504
    %7543 = vst [vmem:[#allocation2 + $0x50] sm:$0xff] %v7505
    %7544 = vst [vmem:[#allocation2 + $0x58] sm:$0xff] %v7506
    %7545 = vst [vmem:[#allocation2 + $0x60] sm:$0xff] %v7507
    %7546 = vst [vmem:[#allocation2 + $0x68] sm:$0xff] %v7508
    %7547 = vst [vmem:[#allocation2 + $0x70] sm:$0xff] %v7509
    %7548 = vst [vmem:[#allocation2 + $0x78] sm:$0xff] %v7510
    %7549 = vst [vmem:[#allocation2 + $0x80] sm:$0xff] %v7511
    %7550 = vst [vmem:[#allocation2 + $0x88] sm:$0xff] %v7512
    %7551 = vst [vmem:[#allocation2 + $0x90] sm:$0xff] %v7513
    %7552 = vst [vmem:[#allocation2 + $0x98] sm:$0xff] %v7514
    %7553 = vst [vmem:[#allocation2 + $0xa0] sm:$0xff] %v7515
    %7554 = vst [vmem:[#allocation2 + $0xa8] sm:$0xff] %v7516
    %7555 = vst [vmem:[#allocation2 + $0xb0] sm:$0xff] %v7517
    %7556 = vst [vmem:[#allocation2 + $0xb8] sm:$0xff] %v7518
    %7557 = vst [vmem:[#allocation2 + $0xc0] sm:$0xff] %v7519
    %7558 = vst [vmem:[#allocation2 + $0xc8] sm:$0xff] %v7520
    %7559 = vst [vmem:[#allocation2 + $0xd0] sm:$0xff] %v7521
    %7560 = vst [vmem:[#allocation2 + $0xd8] sm:$0xff] %v7522
    %7561 = vst [vmem:[#allocation2 + $0xe0] sm:$0xff] %v7523
    %7562 = vst [vmem:[#allocation2 + $0xe8] sm:$0xff] %v7524
    %7563 = vst [vmem:[#allocation2 + $0xf0] sm:$0xff] %v7525
    %7564 = vst [vmem:[#allocation2 + $0xf8] sm:$0xff] %v7526
    %7565 = vst [vmem:[#allocation2 + $0x100] sm:$0xff] %v7527
    %7566 = vst [vmem:[#allocation2 + $0x108] sm:$0xff] %v7528
    %7567 = vst [vmem:[#allocation2 + $0x110] sm:$0xff] %v7529
    %7568 = vst [vmem:[#allocation2 + $0x118] sm:$0xff] %v7530
    %7569 = vst [vmem:[#allocation2 + $0x120] sm:$0xff] %v7531
    %7570 = vst [vmem:[#allocation2 + $0x128] sm:$0xff] %v7532
    // Predicated region
    $region26: #{tpu_custom_call.1} parent=1 // pred_check
      _
    $region27: #{tpu_custom_call.1} parent=1 // pred_check_branch
      %7572 = sbr.rel (0) target = $region29
    $region28: #{tpu_custom_call.1} parent=1 // pred_region
      %s7574 = ssub.s32 4864, 4864
      %7575 = vsyncadd [#allocation3], %s7574
      %s7576 = sshll.u32 [#allocation2], 4
      %s7577 = int_to_ptr.vmem [resolvable:$true] %s7576
      %7582 = dma.vmem_to_hbm [thread:$0]  %s7577, 4864, %s6, [#allocation3], 128, 128, 8
    $region29: #{tpu_custom_call.1} parent=1 // pred_fallthru
      _
    // Predicated region
    $region30: #{tpu_custom_call.1} parent=1 // pred_check
      _
    $region31: #{tpu_custom_call.1} parent=1 // pred_check_branch
      %7584 = sbr.rel (0) target = $region33
    $region32: #{tpu_custom_call.1} parent=1 // pred_region
      %7585 = dma.done [#allocation3], 4864
    $region33: #{tpu_custom_call.1} parent=1 // pred_fallthru
      _
    %7586 = vsyncpa [#allocation3], 1

</llo_original>
